<compile_context>
chip_gen: v5e
topology: v5e:2x2
jax: 0.10.0
libtpu: 0.0.40
codegen_flags: <defaults>
</compile_context>

<pallas_src>
import jax
import jax.numpy as jnp
from jax.experimental import pallas as pl
from jax.experimental.pallas import tpu as pltpu

C_OUT, KH, KW = 10, 3, 3
H_IN, W_IN = 28, 28
H_OUT, W_OUT = H_IN - KH + 1, W_IN - KW + 1          # 26, 26
FLAT = C_OUT * H_OUT * W_OUT                         # 6760 (torch channel-major flatten)
HID1, HID2, N_CLASSES = 50, 20, 10

H_PAD = 32                        # image rows padded 26..28 -> 32 (sublane aligned)
X_ROWS = W_IN * H_PAD             # 896 slab rows, row index = j*32 + i
CONV_M = C_OUT * H_OUT            # 260: (channel, out-row) packing of one out-column
CONV_K = KW * H_PAD               # 96: window length per out-column


# ---------------------------------------------------------------------------
# Fused kernel: conv(3x3, 1->10) on the MXU + ReLU + Linear(6760,50) + ReLU +
#               Linear(50,20) + ReLU + Linear(20,10), transposed layout
#               (batch in lanes, features in sublanes).
# ---------------------------------------------------------------------------
def fused_forward_kernel(xt_ref, a_ref, cb_ref, w1_ref, b1_ref,
                         w2_ref, b2_ref, w3_ref, b3_ref, out_ref):
    # xt_ref : (896, BT) bf16   image slab, row = j*32 + i, batch in lanes
    # a_ref  : (260, 96) bf16   block-banded conv weight matrix
    # cb_ref : (260, 1)  f32    conv bias broadcast over (c, oi)
    # w1_ref : (26, 50, 260) bf16  per-output-column blocks of W1
    # b1_ref : (50, 1), w2_ref: (20, 50), b2_ref: (20, 1),
    # w3_ref : (10, 20), b3_ref: (10, 1)   all f32
    # out_ref: (10, BT)  f32    transposed logits
    bt = out_ref.shape[1]

    a = a_ref[...]            # hoisted: reused by all 26 column matmuls
    cb = cb_ref[...]

    h1 = jnp.zeros((HID1, bt), jnp.float32)
    for oj in range(W_OUT):
        # 96 contiguous, sublane-aligned slab rows cover every tap of column oj.
        win = xt_ref[pl.ds(oj * H_PAD, CONV_K), :]                       # (96, bt) bf16
        pre = jnp.dot(a, win, preferred_element_type=jnp.float32)        # (260, bt)
        act = jnp.maximum(pre + cb, 0.0).astype(jnp.bfloat16)            # (260, bt)
        # Accumulate straight into h1 (MRB-friendly chain on v7x).
        h1 = h1 + jnp.dot(w1_ref[oj], act,
                          preferred_element_type=jnp.float32)            # (50, bt)

    h1 = jnp.maximum(h1 + b1_ref[...], 0.0)
    h2 = jnp.maximum(
        jnp.dot(w2_ref[...], h1, preferred_element_type=jnp.float32) + b2_ref[...],
        0.0)
    out_ref[...] = (
        jnp.dot(w3_ref[...], h2, preferred_element_type=jnp.float32) + b3_ref[...])


def simple_conv_net_forward(x, params):
    """x: (B, 1, 28, 28) float32 NCHW. Returns (B, 10) float32 logits."""
    conv_w, conv_b, w1, b1, w2, b2, w3, b3 = params
    B = x.shape[0]

    # 128 fills the MXU N width everywhere and gives v7x >= 2 grid steps for
    # any B > 128; only widen to 256 once there is batch to spare (B >= 512).
    block_b = 256 if B >= 512 else 128
    n_tiles = max(1, -(-B // block_b))
    b_pad = n_tiles * block_b

    # ---- wrapper-side layout plumbing (small arrays / one fused copy) ------
    # Image slab: row j*32 + i  <-  pixel (i, j); batch in lanes; bf16.
    # (Preferred long-term: emit this layout upstream in the data loader.)
    xt = jnp.transpose(x[:, 0, :, :], (2, 1, 0))                        # (28, 28, B) [j,i,b]
    xt = jnp.pad(xt, ((0, 0), (0, H_PAD - H_IN), (0, 0)))               # (28, 32, B)
    xt = xt.reshape(X_ROWS, B)                                          # (896, B)
    xt = jnp.pad(xt, ((0, 0), (0, b_pad - B))).astype(jnp.bfloat16)     # (896, b_pad)

    # Block-banded conv matrix: a_band[c*26 + oi, kx*32 + oi + ky] = conv_w[c, ky, kx]
    a = jnp.zeros((C_OUT, H_OUT, KW, H_PAD), jnp.float32)
    for ky in range(KH):
        sel = jnp.eye(H_PAD, dtype=jnp.float32)[ky:ky + H_OUT]          # (26, 32)
        for kx in range(KW):
            a = a.at[:, :, kx, :].add(conv_w[:, ky, kx][:, None, None] * sel[None])
    a_band = a.reshape(CONV_M, CONV_K).astype(jnp.bfloat16)             # (260, 96)

    # Conv bias broadcast over (c, oi) rows.
    cb_vec = jnp.repeat(conv_b, H_OUT).reshape(CONV_M, 1)               # (260, 1)

    # W1 regrouped per output column: w1p[oj, o, c*26+oi] = w1[c*676 + oi*26 + oj, o]
    w1p = w1.reshape(C_OUT, H_OUT, W_OUT, HID1)                         # [c, oi, oj, o]
    w1p = jnp.transpose(w1p, (2, 3, 0, 1))                              # [oj, o, c, oi]
    w1p = w1p.reshape(W_OUT, HID1, CONV_M).astype(jnp.bfloat16)         # (26, 50, 260)

    out_t = pl.pallas_call(
        fused_forward_kernel,
        grid=(n_tiles,),
        in_specs=[
            pl.BlockSpec((X_ROWS, block_b), lambda g: (0, g)),
            pl.BlockSpec((CONV_M, CONV_K), lambda g: (0, 0)),
            pl.BlockSpec((CONV_M, 1), lambda g: (0, 0)),
            pl.BlockSpec((W_OUT, HID1, CONV_M), lambda g: (0, 0, 0)),
            pl.BlockSpec((HID1, 1), lambda g: (0, 0)),
            pl.BlockSpec((HID2, HID1), lambda g: (0, 0)),
            pl.BlockSpec((HID2, 1), lambda g: (0, 0)),
            pl.BlockSpec((N_CLASSES, HID2), lambda g: (0, 0)),
            pl.BlockSpec((N_CLASSES, 1), lambda g: (0, 0)),
        ],
        out_specs=pl.BlockSpec((N_CLASSES, block_b), lambda g: (0, g)),
        out_shape=jax.ShapeDtypeStruct((N_CLASSES, b_pad), jnp.float32),
        compiler_params=pltpu.CompilerParams(
            dimension_semantics=("parallel",),
            vmem_limit_bytes=32 * 1024 * 1024),
    )(xt,
      a_band,
      cb_vec,
      w1p,
      b1.reshape(HID1, 1),
      w2.T,
      b2.reshape(HID2, 1),
      w3.T,
      b3.reshape(N_CLASSES, 1))

    return jnp.transpose(out_t)[:B]


# ---------------------------------------------------------------------------
# Pure-JAX reference (identical semantics) + deterministic init
# ---------------------------------------------------------------------------
def reference_forward(x, params):
    conv_w, conv_b, w1, b1, w2, b2, w3, b3 = params
    y = jax.lax.conv_general_dilated(
        x, conv_w[:, None, :, :], window_strides=(1, 1), padding="VALID",
        dimension_numbers=("NCHW", "OIHW", "NCHW"))
    y = jnp.maximum(y + conv_b.reshape(1, C_OUT, 1, 1), 0.0)
    flat = y.reshape(x.shape[0], -1)
    h = jnp.maximum(flat @ w1 + b1, 0.0)
    h = jnp.maximum(h @ w2 + b2, 0.0)
    return h @ w3 + b3


def init_params(key):
    """PyTorch-style U(-1/sqrt(fan_in), 1/sqrt(fan_in)) init (math layout W=(in,out))."""
    ks = jax.random.split(key, 8)

    def u(k, shape, fan_in):
        bound = 1.0 / jnp.sqrt(float(fan_in))
        return jax.random.uniform(k, shape, jnp.float32, -bound, bound)

    conv_w = u(ks[0], (C_OUT, KH, KW), KH * KW)        # C_in = 1 squeezed
    conv_b = u(ks[1], (C_OUT,), KH * KW)
    w1 = u(ks[2], (FLAT, HID1), FLAT)
    b1 = u(ks[3], (HID1,), FLAT)
    w2 = u(ks[4], (HID1, HID2), HID1)
    b2 = u(ks[5], (HID2,), HID1)
    w3 = u(ks[6], (HID2, N_CLASSES), HID2)
    b3 = u(ks[7], (N_CLASSES,), HID2)
    return (conv_w, conv_b, w1, b1, w2, b2, w3, b3)


if __name__ == "__main__":
    key = jax.random.PRNGKey(0)
    k_x, k_p = jax.random.split(key)

    B = 2
    x = jax.random.normal(k_x, (B, 1, H_IN, W_IN), jnp.float32)
    params = init_params(k_p)

    fwd = jax.jit(simple_conv_net_forward)
    out = jax.block_until_ready(fwd(x, params))
    ref = jax.block_until_ready(reference_forward(x, params))

    assert out.shape == (B, N_CLASSES), out.shape
    assert jnp.allclose(out, ref, atol=2e-2, rtol=2e-2), (out, ref)

    print("KERNEL_OK")
</pallas_src>

<mosaic_0001>
module attributes {stable_mosaic.version = 11 : i64} {
  func.func @fused_forward_kernel(%arg0: i32, %arg1: memref<896x128xbf16, #tpu.memory_space<vmem>>, %arg2: memref<260x96xbf16, #tpu.memory_space<vmem>>, %arg3: memref<260x1xf32, #tpu.memory_space<vmem>>, %arg4: memref<26x50x260xbf16, #tpu.memory_space<vmem>>, %arg5: memref<50x1xf32, #tpu.memory_space<vmem>>, %arg6: memref<20x50xf32, #tpu.memory_space<vmem>>, %arg7: memref<20x1xf32, #tpu.memory_space<vmem>>, %arg8: memref<10x20xf32, #tpu.memory_space<vmem>>, %arg9: memref<10x1xf32, #tpu.memory_space<vmem>>, %arg10: memref<10x128xf32, #tpu.memory_space<vmem>>) attributes {dimension_semantics = [#tpu.dimension_semantics<parallel>], iteration_bounds = array<i64: 1>, scalar_prefetch = 0 : i64, scratch_operands = 0 : i64, tpu.core_type = #tpu.core_type<tc>, window_params = [{transform_indices = @transform_0, window_bounds = array<i64: 896, 128>}, {pipeline_mode = #tpu.pipeline_mode<synchronous>, transform_indices = @transform_1, window_bounds = array<i64: 260, 96>}, {pipeline_mode = #tpu.pipeline_mode<synchronous>, transform_indices = @transform_2, window_bounds = array<i64: 260, 1>}, {pipeline_mode = #tpu.pipeline_mode<synchronous>, transform_indices = @transform_3, window_bounds = array<i64: 26, 50, 260>}, {pipeline_mode = #tpu.pipeline_mode<synchronous>, transform_indices = @transform_4, window_bounds = array<i64: 50, 1>}, {pipeline_mode = #tpu.pipeline_mode<synchronous>, transform_indices = @transform_5, window_bounds = array<i64: 20, 50>}, {pipeline_mode = #tpu.pipeline_mode<synchronous>, transform_indices = @transform_6, window_bounds = array<i64: 20, 1>}, {pipeline_mode = #tpu.pipeline_mode<synchronous>, transform_indices = @transform_7, window_bounds = array<i64: 10, 20>}, {pipeline_mode = #tpu.pipeline_mode<synchronous>, transform_indices = @transform_8, window_bounds = array<i64: 10, 1>}, {transform_indices = @transform_9, window_bounds = array<i64: 10, 128>}]} {
    %c0 = arith.constant 0 : index
    %c0_0 = arith.constant 0 : index
    %0 = vector.load %arg2[%c0, %c0_0] : memref<260x96xbf16, #tpu.memory_space<vmem>>, vector<260x96xbf16>
    %c0_1 = arith.constant 0 : index
    %c0_2 = arith.constant 0 : index
    %1 = vector.load %arg3[%c0_1, %c0_2] : memref<260x1xf32, #tpu.memory_space<vmem>>, vector<260x1xf32>
    %cst = arith.constant 0.000000e+00 : f32
    %2 = vector.broadcast %cst : f32 to vector<50x128xf32>
    %c0_3 = arith.constant 0 : index
    %c0_4 = arith.constant 0 : index
    %3 = vector.load %arg1[%c0_3, %c0_4] : memref<896x128xbf16, #tpu.memory_space<vmem>>, vector<96x128xbf16>
    %cst_5 = arith.constant dense<0.000000e+00> : vector<260x128xf32>
    %4 = tpu.matmul %0, %3, %cst_5 {dimension_numbers = #tpu.dot_dimension_numbers<[1], [0], [0], [1], [0, 0, 1, 1], [], []>} : vector<260x96xbf16>, vector<96x128xbf16>, vector<260x128xf32> -> vector<260x128xf32>
    %5 = vector.broadcast %1 : vector<260x1xf32> to vector<260x128xf32>
    %6 = arith.addf %4, %5 : vector<260x128xf32>
    %cst_6 = arith.constant 0.000000e+00 : f32
    %7 = vector.broadcast %cst_6 : f32 to vector<260x128xf32>
    %8 = arith.maximumf %6, %7 : vector<260x128xf32>
    %9 = arith.truncf %8 : vector<260x128xf32> to vector<260x128xbf16>
    %c0_7 = arith.constant 0 : index
    %c0_8 = arith.constant 0 : index
    %c0_9 = arith.constant 0 : index
    %10 = vector.load %arg4[%c0_7, %c0_8, %c0_9] : memref<26x50x260xbf16, #tpu.memory_space<vmem>>, vector<1x50x260xbf16>
    %11 = vector.shape_cast %10 : vector<1x50x260xbf16> to vector<50x260xbf16>
    %cst_10 = arith.constant dense<0.000000e+00> : vector<50x128xf32>
    %12 = tpu.matmul %11, %9, %cst_10 {dimension_numbers = #tpu.dot_dimension_numbers<[1], [0], [0], [1], [0, 0, 1, 1], [], []>} : vector<50x260xbf16>, vector<260x128xbf16>, vector<50x128xf32> -> vector<50x128xf32>
    %13 = arith.addf %2, %12 : vector<50x128xf32>
    %c32 = arith.constant 32 : index
    %c0_11 = arith.constant 0 : index
    %14 = vector.load %arg1[%c32, %c0_11] : memref<896x128xbf16, #tpu.memory_space<vmem>>, vector<96x128xbf16>
    %cst_12 = arith.constant dense<0.000000e+00> : vector<260x128xf32>
    %15 = tpu.matmul %0, %14, %cst_12 {dimension_numbers = #tpu.dot_dimension_numbers<[1], [0], [0], [1], [0, 0, 1, 1], [], []>} : vector<260x96xbf16>, vector<96x128xbf16>, vector<260x128xf32> -> vector<260x128xf32>
    %16 = vector.broadcast %1 : vector<260x1xf32> to vector<260x128xf32>
    %17 = arith.addf %15, %16 : vector<260x128xf32>
    %cst_13 = arith.constant 0.000000e+00 : f32
    %18 = vector.broadcast %cst_13 : f32 to vector<260x128xf32>
    %19 = arith.maximumf %17, %18 : vector<260x128xf32>
    %20 = arith.truncf %19 : vector<260x128xf32> to vector<260x128xbf16>
    %c1 = arith.constant 1 : index
    %c0_14 = arith.constant 0 : index
    %c0_15 = arith.constant 0 : index
    %21 = vector.load %arg4[%c1, %c0_14, %c0_15] : memref<26x50x260xbf16, #tpu.memory_space<vmem>>, vector<1x50x260xbf16>
    %22 = vector.shape_cast %21 : vector<1x50x260xbf16> to vector<50x260xbf16>
    %cst_16 = arith.constant dense<0.000000e+00> : vector<50x128xf32>
    %23 = tpu.matmul %22, %20, %cst_16 {dimension_numbers = #tpu.dot_dimension_numbers<[1], [0], [0], [1], [0, 0, 1, 1], [], []>} : vector<50x260xbf16>, vector<260x128xbf16>, vector<50x128xf32> -> vector<50x128xf32>
    %24 = arith.addf %13, %23 : vector<50x128xf32>
    %c64 = arith.constant 64 : index
    %c0_17 = arith.constant 0 : index
    %25 = vector.load %arg1[%c64, %c0_17] : memref<896x128xbf16, #tpu.memory_space<vmem>>, vector<96x128xbf16>
    %cst_18 = arith.constant dense<0.000000e+00> : vector<260x128xf32>
    %26 = tpu.matmul %0, %25, %cst_18 {dimension_numbers = #tpu.dot_dimension_numbers<[1], [0], [0], [1], [0, 0, 1, 1], [], []>} : vector<260x96xbf16>, vector<96x128xbf16>, vector<260x128xf32> -> vector<260x128xf32>
    %27 = vector.broadcast %1 : vector<260x1xf32> to vector<260x128xf32>
    %28 = arith.addf %26, %27 : vector<260x128xf32>
    %cst_19 = arith.constant 0.000000e+00 : f32
    %29 = vector.broadcast %cst_19 : f32 to vector<260x128xf32>
    %30 = arith.maximumf %28, %29 : vector<260x128xf32>
    %31 = arith.truncf %30 : vector<260x128xf32> to vector<260x128xbf16>
    %c2 = arith.constant 2 : index
    %c0_20 = arith.constant 0 : index
    %c0_21 = arith.constant 0 : index
    %32 = vector.load %arg4[%c2, %c0_20, %c0_21] : memref<26x50x260xbf16, #tpu.memory_space<vmem>>, vector<1x50x260xbf16>
    %33 = vector.shape_cast %32 : vector<1x50x260xbf16> to vector<50x260xbf16>
    %cst_22 = arith.constant dense<0.000000e+00> : vector<50x128xf32>
    %34 = tpu.matmul %33, %31, %cst_22 {dimension_numbers = #tpu.dot_dimension_numbers<[1], [0], [0], [1], [0, 0, 1, 1], [], []>} : vector<50x260xbf16>, vector<260x128xbf16>, vector<50x128xf32> -> vector<50x128xf32>
    %35 = arith.addf %24, %34 : vector<50x128xf32>
    %c96 = arith.constant 96 : index
    %c0_23 = arith.constant 0 : index
    %36 = vector.load %arg1[%c96, %c0_23] : memref<896x128xbf16, #tpu.memory_space<vmem>>, vector<96x128xbf16>
    %cst_24 = arith.constant dense<0.000000e+00> : vector<260x128xf32>
    %37 = tpu.matmul %0, %36, %cst_24 {dimension_numbers = #tpu.dot_dimension_numbers<[1], [0], [0], [1], [0, 0, 1, 1], [], []>} : vector<260x96xbf16>, vector<96x128xbf16>, vector<260x128xf32> -> vector<260x128xf32>
    %38 = vector.broadcast %1 : vector<260x1xf32> to vector<260x128xf32>
    %39 = arith.addf %37, %38 : vector<260x128xf32>
    %cst_25 = arith.constant 0.000000e+00 : f32
    %40 = vector.broadcast %cst_25 : f32 to vector<260x128xf32>
    %41 = arith.maximumf %39, %40 : vector<260x128xf32>
    %42 = arith.truncf %41 : vector<260x128xf32> to vector<260x128xbf16>
    %c3 = arith.constant 3 : index
    %c0_26 = arith.constant 0 : index
    %c0_27 = arith.constant 0 : index
    %43 = vector.load %arg4[%c3, %c0_26, %c0_27] : memref<26x50x260xbf16, #tpu.memory_space<vmem>>, vector<1x50x260xbf16>
    %44 = vector.shape_cast %43 : vector<1x50x260xbf16> to vector<50x260xbf16>
    %cst_28 = arith.constant dense<0.000000e+00> : vector<50x128xf32>
    %45 = tpu.matmul %44, %42, %cst_28 {dimension_numbers = #tpu.dot_dimension_numbers<[1], [0], [0], [1], [0, 0, 1, 1], [], []>} : vector<50x260xbf16>, vector<260x128xbf16>, vector<50x128xf32> -> vector<50x128xf32>
    %46 = arith.addf %35, %45 : vector<50x128xf32>
    %c128 = arith.constant 128 : index
    %c0_29 = arith.constant 0 : index
    %47 = vector.load %arg1[%c128, %c0_29] : memref<896x128xbf16, #tpu.memory_space<vmem>>, vector<96x128xbf16>
    %cst_30 = arith.constant dense<0.000000e+00> : vector<260x128xf32>
    %48 = tpu.matmul %0, %47, %cst_30 {dimension_numbers = #tpu.dot_dimension_numbers<[1], [0], [0], [1], [0, 0, 1, 1], [], []>} : vector<260x96xbf16>, vector<96x128xbf16>, vector<260x128xf32> -> vector<260x128xf32>
    %49 = vector.broadcast %1 : vector<260x1xf32> to vector<260x128xf32>
    %50 = arith.addf %48, %49 : vector<260x128xf32>
    %cst_31 = arith.constant 0.000000e+00 : f32
    %51 = vector.broadcast %cst_31 : f32 to vector<260x128xf32>
    %52 = arith.maximumf %50, %51 : vector<260x128xf32>
    %53 = arith.truncf %52 : vector<260x128xf32> to vector<260x128xbf16>
    %c4 = arith.constant 4 : index
    %c0_32 = arith.constant 0 : index
    %c0_33 = arith.constant 0 : index
    %54 = vector.load %arg4[%c4, %c0_32, %c0_33] : memref<26x50x260xbf16, #tpu.memory_space<vmem>>, vector<1x50x260xbf16>
    %55 = vector.shape_cast %54 : vector<1x50x260xbf16> to vector<50x260xbf16>
    %cst_34 = arith.constant dense<0.000000e+00> : vector<50x128xf32>
    %56 = tpu.matmul %55, %53, %cst_34 {dimension_numbers = #tpu.dot_dimension_numbers<[1], [0], [0], [1], [0, 0, 1, 1], [], []>} : vector<50x260xbf16>, vector<260x128xbf16>, vector<50x128xf32> -> vector<50x128xf32>
    %57 = arith.addf %46, %56 : vector<50x128xf32>
    %c160 = arith.constant 160 : index
    %c0_35 = arith.constant 0 : index
    %58 = vector.load %arg1[%c160, %c0_35] : memref<896x128xbf16, #tpu.memory_space<vmem>>, vector<96x128xbf16>
    %cst_36 = arith.constant dense<0.000000e+00> : vector<260x128xf32>
    %59 = tpu.matmul %0, %58, %cst_36 {dimension_numbers = #tpu.dot_dimension_numbers<[1], [0], [0], [1], [0, 0, 1, 1], [], []>} : vector<260x96xbf16>, vector<96x128xbf16>, vector<260x128xf32> -> vector<260x128xf32>
    %60 = vector.broadcast %1 : vector<260x1xf32> to vector<260x128xf32>
    %61 = arith.addf %59, %60 : vector<260x128xf32>
    %cst_37 = arith.constant 0.000000e+00 : f32
    %62 = vector.broadcast %cst_37 : f32 to vector<260x128xf32>
    %63 = arith.maximumf %61, %62 : vector<260x128xf32>
    %64 = arith.truncf %63 : vector<260x128xf32> to vector<260x128xbf16>
    %c5 = arith.constant 5 : index
    %c0_38 = arith.constant 0 : index
    %c0_39 = arith.constant 0 : index
    %65 = vector.load %arg4[%c5, %c0_38, %c0_39] : memref<26x50x260xbf16, #tpu.memory_space<vmem>>, vector<1x50x260xbf16>
    %66 = vector.shape_cast %65 : vector<1x50x260xbf16> to vector<50x260xbf16>
    %cst_40 = arith.constant dense<0.000000e+00> : vector<50x128xf32>
    %67 = tpu.matmul %66, %64, %cst_40 {dimension_numbers = #tpu.dot_dimension_numbers<[1], [0], [0], [1], [0, 0, 1, 1], [], []>} : vector<50x260xbf16>, vector<260x128xbf16>, vector<50x128xf32> -> vector<50x128xf32>
    %68 = arith.addf %57, %67 : vector<50x128xf32>
    %c192 = arith.constant 192 : index
    %c0_41 = arith.constant 0 : index
    %69 = vector.load %arg1[%c192, %c0_41] : memref<896x128xbf16, #tpu.memory_space<vmem>>, vector<96x128xbf16>
    %cst_42 = arith.constant dense<0.000000e+00> : vector<260x128xf32>
    %70 = tpu.matmul %0, %69, %cst_42 {dimension_numbers = #tpu.dot_dimension_numbers<[1], [0], [0], [1], [0, 0, 1, 1], [], []>} : vector<260x96xbf16>, vector<96x128xbf16>, vector<260x128xf32> -> vector<260x128xf32>
    %71 = vector.broadcast %1 : vector<260x1xf32> to vector<260x128xf32>
    %72 = arith.addf %70, %71 : vector<260x128xf32>
    %cst_43 = arith.constant 0.000000e+00 : f32
    %73 = vector.broadcast %cst_43 : f32 to vector<260x128xf32>
    %74 = arith.maximumf %72, %73 : vector<260x128xf32>
    %75 = arith.truncf %74 : vector<260x128xf32> to vector<260x128xbf16>
    %c6 = arith.constant 6 : index
    %c0_44 = arith.constant 0 : index
    %c0_45 = arith.constant 0 : index
    %76 = vector.load %arg4[%c6, %c0_44, %c0_45] : memref<26x50x260xbf16, #tpu.memory_space<vmem>>, vector<1x50x260xbf16>
    %77 = vector.shape_cast %76 : vector<1x50x260xbf16> to vector<50x260xbf16>
    %cst_46 = arith.constant dense<0.000000e+00> : vector<50x128xf32>
    %78 = tpu.matmul %77, %75, %cst_46 {dimension_numbers = #tpu.dot_dimension_numbers<[1], [0], [0], [1], [0, 0, 1, 1], [], []>} : vector<50x260xbf16>, vector<260x128xbf16>, vector<50x128xf32> -> vector<50x128xf32>
    %79 = arith.addf %68, %78 : vector<50x128xf32>
    %c224 = arith.constant 224 : index
    %c0_47 = arith.constant 0 : index
    %80 = vector.load %arg1[%c224, %c0_47] : memref<896x128xbf16, #tpu.memory_space<vmem>>, vector<96x128xbf16>
    %cst_48 = arith.constant dense<0.000000e+00> : vector<260x128xf32>
    %81 = tpu.matmul %0, %80, %cst_48 {dimension_numbers = #tpu.dot_dimension_numbers<[1], [0], [0], [1], [0, 0, 1, 1], [], []>} : vector<260x96xbf16>, vector<96x128xbf16>, vector<260x128xf32> -> vector<260x128xf32>
    %82 = vector.broadcast %1 : vector<260x1xf32> to vector<260x128xf32>
    %83 = arith.addf %81, %82 : vector<260x128xf32>
    %cst_49 = arith.constant 0.000000e+00 : f32
    %84 = vector.broadcast %cst_49 : f32 to vector<260x128xf32>
    %85 = arith.maximumf %83, %84 : vector<260x128xf32>
    %86 = arith.truncf %85 : vector<260x128xf32> to vector<260x128xbf16>
    %c7 = arith.constant 7 : index
    %c0_50 = arith.constant 0 : index
    %c0_51 = arith.constant 0 : index
    %87 = vector.load %arg4[%c7, %c0_50, %c0_51] : memref<26x50x260xbf16, #tpu.memory_space<vmem>>, vector<1x50x260xbf16>
    %88 = vector.shape_cast %87 : vector<1x50x260xbf16> to vector<50x260xbf16>
    %cst_52 = arith.constant dense<0.000000e+00> : vector<50x128xf32>
    %89 = tpu.matmul %88, %86, %cst_52 {dimension_numbers = #tpu.dot_dimension_numbers<[1], [0], [0], [1], [0, 0, 1, 1], [], []>} : vector<50x260xbf16>, vector<260x128xbf16>, vector<50x128xf32> -> vector<50x128xf32>
    %90 = arith.addf %79, %89 : vector<50x128xf32>
    %c256 = arith.constant 256 : index
    %c0_53 = arith.constant 0 : index
    %91 = vector.load %arg1[%c256, %c0_53] : memref<896x128xbf16, #tpu.memory_space<vmem>>, vector<96x128xbf16>
    %cst_54 = arith.constant dense<0.000000e+00> : vector<260x128xf32>
    %92 = tpu.matmul %0, %91, %cst_54 {dimension_numbers = #tpu.dot_dimension_numbers<[1], [0], [0], [1], [0, 0, 1, 1], [], []>} : vector<260x96xbf16>, vector<96x128xbf16>, vector<260x128xf32> -> vector<260x128xf32>
    %93 = vector.broadcast %1 : vector<260x1xf32> to vector<260x128xf32>
    %94 = arith.addf %92, %93 : vector<260x128xf32>
    %cst_55 = arith.constant 0.000000e+00 : f32
    %95 = vector.broadcast %cst_55 : f32 to vector<260x128xf32>
    %96 = arith.maximumf %94, %95 : vector<260x128xf32>
    %97 = arith.truncf %96 : vector<260x128xf32> to vector<260x128xbf16>
    %c8 = arith.constant 8 : index
    %c0_56 = arith.constant 0 : index
    %c0_57 = arith.constant 0 : index
    %98 = vector.load %arg4[%c8, %c0_56, %c0_57] : memref<26x50x260xbf16, #tpu.memory_space<vmem>>, vector<1x50x260xbf16>
    %99 = vector.shape_cast %98 : vector<1x50x260xbf16> to vector<50x260xbf16>
    %cst_58 = arith.constant dense<0.000000e+00> : vector<50x128xf32>
    %100 = tpu.matmul %99, %97, %cst_58 {dimension_numbers = #tpu.dot_dimension_numbers<[1], [0], [0], [1], [0, 0, 1, 1], [], []>} : vector<50x260xbf16>, vector<260x128xbf16>, vector<50x128xf32> -> vector<50x128xf32>
    %101 = arith.addf %90, %100 : vector<50x128xf32>
    %c288 = arith.constant 288 : index
    %c0_59 = arith.constant 0 : index
    %102 = vector.load %arg1[%c288, %c0_59] : memref<896x128xbf16, #tpu.memory_space<vmem>>, vector<96x128xbf16>
    %cst_60 = arith.constant dense<0.000000e+00> : vector<260x128xf32>
    %103 = tpu.matmul %0, %102, %cst_60 {dimension_numbers = #tpu.dot_dimension_numbers<[1], [0], [0], [1], [0, 0, 1, 1], [], []>} : vector<260x96xbf16>, vector<96x128xbf16>, vector<260x128xf32> -> vector<260x128xf32>
    %104 = vector.broadcast %1 : vector<260x1xf32> to vector<260x128xf32>
    %105 = arith.addf %103, %104 : vector<260x128xf32>
    %cst_61 = arith.constant 0.000000e+00 : f32
    %106 = vector.broadcast %cst_61 : f32 to vector<260x128xf32>
    %107 = arith.maximumf %105, %106 : vector<260x128xf32>
    %108 = arith.truncf %107 : vector<260x128xf32> to vector<260x128xbf16>
    %c9 = arith.constant 9 : index
    %c0_62 = arith.constant 0 : index
    %c0_63 = arith.constant 0 : index
    %109 = vector.load %arg4[%c9, %c0_62, %c0_63] : memref<26x50x260xbf16, #tpu.memory_space<vmem>>, vector<1x50x260xbf16>
    %110 = vector.shape_cast %109 : vector<1x50x260xbf16> to vector<50x260xbf16>
    %cst_64 = arith.constant dense<0.000000e+00> : vector<50x128xf32>
    %111 = tpu.matmul %110, %108, %cst_64 {dimension_numbers = #tpu.dot_dimension_numbers<[1], [0], [0], [1], [0, 0, 1, 1], [], []>} : vector<50x260xbf16>, vector<260x128xbf16>, vector<50x128xf32> -> vector<50x128xf32>
    %112 = arith.addf %101, %111 : vector<50x128xf32>
    %c320 = arith.constant 320 : index
    %c0_65 = arith.constant 0 : index
    %113 = vector.load %arg1[%c320, %c0_65] : memref<896x128xbf16, #tpu.memory_space<vmem>>, vector<96x128xbf16>
    %cst_66 = arith.constant dense<0.000000e+00> : vector<260x128xf32>
    %114 = tpu.matmul %0, %113, %cst_66 {dimension_numbers = #tpu.dot_dimension_numbers<[1], [0], [0], [1], [0, 0, 1, 1], [], []>} : vector<260x96xbf16>, vector<96x128xbf16>, vector<260x128xf32> -> vector<260x128xf32>
    %115 = vector.broadcast %1 : vector<260x1xf32> to vector<260x128xf32>
    %116 = arith.addf %114, %115 : vector<260x128xf32>
    %cst_67 = arith.constant 0.000000e+00 : f32
    %117 = vector.broadcast %cst_67 : f32 to vector<260x128xf32>
    %118 = arith.maximumf %116, %117 : vector<260x128xf32>
    %119 = arith.truncf %118 : vector<260x128xf32> to vector<260x128xbf16>
    %c10 = arith.constant 10 : index
    %c0_68 = arith.constant 0 : index
    %c0_69 = arith.constant 0 : index
    %120 = vector.load %arg4[%c10, %c0_68, %c0_69] : memref<26x50x260xbf16, #tpu.memory_space<vmem>>, vector<1x50x260xbf16>
    %121 = vector.shape_cast %120 : vector<1x50x260xbf16> to vector<50x260xbf16>
    %cst_70 = arith.constant dense<0.000000e+00> : vector<50x128xf32>
    %122 = tpu.matmul %121, %119, %cst_70 {dimension_numbers = #tpu.dot_dimension_numbers<[1], [0], [0], [1], [0, 0, 1, 1], [], []>} : vector<50x260xbf16>, vector<260x128xbf16>, vector<50x128xf32> -> vector<50x128xf32>
    %123 = arith.addf %112, %122 : vector<50x128xf32>
    %c352 = arith.constant 352 : index
    %c0_71 = arith.constant 0 : index
    %124 = vector.load %arg1[%c352, %c0_71] : memref<896x128xbf16, #tpu.memory_space<vmem>>, vector<96x128xbf16>
    %cst_72 = arith.constant dense<0.000000e+00> : vector<260x128xf32>
    %125 = tpu.matmul %0, %124, %cst_72 {dimension_numbers = #tpu.dot_dimension_numbers<[1], [0], [0], [1], [0, 0, 1, 1], [], []>} : vector<260x96xbf16>, vector<96x128xbf16>, vector<260x128xf32> -> vector<260x128xf32>
    %126 = vector.broadcast %1 : vector<260x1xf32> to vector<260x128xf32>
    %127 = arith.addf %125, %126 : vector<260x128xf32>
    %cst_73 = arith.constant 0.000000e+00 : f32
    %128 = vector.broadcast %cst_73 : f32 to vector<260x128xf32>
    %129 = arith.maximumf %127, %128 : vector<260x128xf32>
    %130 = arith.truncf %129 : vector<260x128xf32> to vector<260x128xbf16>
    %c11 = arith.constant 11 : index
    %c0_74 = arith.constant 0 : index
    %c0_75 = arith.constant 0 : index
    %131 = vector.load %arg4[%c11, %c0_74, %c0_75] : memref<26x50x260xbf16, #tpu.memory_space<vmem>>, vector<1x50x260xbf16>
    %132 = vector.shape_cast %131 : vector<1x50x260xbf16> to vector<50x260xbf16>
    %cst_76 = arith.constant dense<0.000000e+00> : vector<50x128xf32>
    %133 = tpu.matmul %132, %130, %cst_76 {dimension_numbers = #tpu.dot_dimension_numbers<[1], [0], [0], [1], [0, 0, 1, 1], [], []>} : vector<50x260xbf16>, vector<260x128xbf16>, vector<50x128xf32> -> vector<50x128xf32>
    %134 = arith.addf %123, %133 : vector<50x128xf32>
    %c384 = arith.constant 384 : index
    %c0_77 = arith.constant 0 : index
    %135 = vector.load %arg1[%c384, %c0_77] : memref<896x128xbf16, #tpu.memory_space<vmem>>, vector<96x128xbf16>
    %cst_78 = arith.constant dense<0.000000e+00> : vector<260x128xf32>
    %136 = tpu.matmul %0, %135, %cst_78 {dimension_numbers = #tpu.dot_dimension_numbers<[1], [0], [0], [1], [0, 0, 1, 1], [], []>} : vector<260x96xbf16>, vector<96x128xbf16>, vector<260x128xf32> -> vector<260x128xf32>
    %137 = vector.broadcast %1 : vector<260x1xf32> to vector<260x128xf32>
    %138 = arith.addf %136, %137 : vector<260x128xf32>
    %cst_79 = arith.constant 0.000000e+00 : f32
    %139 = vector.broadcast %cst_79 : f32 to vector<260x128xf32>
    %140 = arith.maximumf %138, %139 : vector<260x128xf32>
    %141 = arith.truncf %140 : vector<260x128xf32> to vector<260x128xbf16>
    %c12 = arith.constant 12 : index
    %c0_80 = arith.constant 0 : index
    %c0_81 = arith.constant 0 : index
    %142 = vector.load %arg4[%c12, %c0_80, %c0_81] : memref<26x50x260xbf16, #tpu.memory_space<vmem>>, vector<1x50x260xbf16>
    %143 = vector.shape_cast %142 : vector<1x50x260xbf16> to vector<50x260xbf16>
    %cst_82 = arith.constant dense<0.000000e+00> : vector<50x128xf32>
    %144 = tpu.matmul %143, %141, %cst_82 {dimension_numbers = #tpu.dot_dimension_numbers<[1], [0], [0], [1], [0, 0, 1, 1], [], []>} : vector<50x260xbf16>, vector<260x128xbf16>, vector<50x128xf32> -> vector<50x128xf32>
    %145 = arith.addf %134, %144 : vector<50x128xf32>
    %c416 = arith.constant 416 : index
    %c0_83 = arith.constant 0 : index
    %146 = vector.load %arg1[%c416, %c0_83] : memref<896x128xbf16, #tpu.memory_space<vmem>>, vector<96x128xbf16>
    %cst_84 = arith.constant dense<0.000000e+00> : vector<260x128xf32>
    %147 = tpu.matmul %0, %146, %cst_84 {dimension_numbers = #tpu.dot_dimension_numbers<[1], [0], [0], [1], [0, 0, 1, 1], [], []>} : vector<260x96xbf16>, vector<96x128xbf16>, vector<260x128xf32> -> vector<260x128xf32>
    %148 = vector.broadcast %1 : vector<260x1xf32> to vector<260x128xf32>
    %149 = arith.addf %147, %148 : vector<260x128xf32>
    %cst_85 = arith.constant 0.000000e+00 : f32
    %150 = vector.broadcast %cst_85 : f32 to vector<260x128xf32>
    %151 = arith.maximumf %149, %150 : vector<260x128xf32>
    %152 = arith.truncf %151 : vector<260x128xf32> to vector<260x128xbf16>
    %c13 = arith.constant 13 : index
    %c0_86 = arith.constant 0 : index
    %c0_87 = arith.constant 0 : index
    %153 = vector.load %arg4[%c13, %c0_86, %c0_87] : memref<26x50x260xbf16, #tpu.memory_space<vmem>>, vector<1x50x260xbf16>
    %154 = vector.shape_cast %153 : vector<1x50x260xbf16> to vector<50x260xbf16>
    %cst_88 = arith.constant dense<0.000000e+00> : vector<50x128xf32>
    %155 = tpu.matmul %154, %152, %cst_88 {dimension_numbers = #tpu.dot_dimension_numbers<[1], [0], [0], [1], [0, 0, 1, 1], [], []>} : vector<50x260xbf16>, vector<260x128xbf16>, vector<50x128xf32> -> vector<50x128xf32>
    %156 = arith.addf %145, %155 : vector<50x128xf32>
    %c448 = arith.constant 448 : index
    %c0_89 = arith.constant 0 : index
    %157 = vector.load %arg1[%c448, %c0_89] : memref<896x128xbf16, #tpu.memory_space<vmem>>, vector<96x128xbf16>
    %cst_90 = arith.constant dense<0.000000e+00> : vector<260x128xf32>
    %158 = tpu.matmul %0, %157, %cst_90 {dimension_numbers = #tpu.dot_dimension_numbers<[1], [0], [0], [1], [0, 0, 1, 1], [], []>} : vector<260x96xbf16>, vector<96x128xbf16>, vector<260x128xf32> -> vector<260x128xf32>
    %159 = vector.broadcast %1 : vector<260x1xf32> to vector<260x128xf32>
    %160 = arith.addf %158, %159 : vector<260x128xf32>
    %cst_91 = arith.constant 0.000000e+00 : f32
    %161 = vector.broadcast %cst_91 : f32 to vector<260x128xf32>
    %162 = arith.maximumf %160, %161 : vector<260x128xf32>
    %163 = arith.truncf %162 : vector<260x128xf32> to vector<260x128xbf16>
    %c14 = arith.constant 14 : index
    %c0_92 = arith.constant 0 : index
    %c0_93 = arith.constant 0 : index
    %164 = vector.load %arg4[%c14, %c0_92, %c0_93] : memref<26x50x260xbf16, #tpu.memory_space<vmem>>, vector<1x50x260xbf16>
    %165 = vector.shape_cast %164 : vector<1x50x260xbf16> to vector<50x260xbf16>
    %cst_94 = arith.constant dense<0.000000e+00> : vector<50x128xf32>
    %166 = tpu.matmul %165, %163, %cst_94 {dimension_numbers = #tpu.dot_dimension_numbers<[1], [0], [0], [1], [0, 0, 1, 1], [], []>} : vector<50x260xbf16>, vector<260x128xbf16>, vector<50x128xf32> -> vector<50x128xf32>
    %167 = arith.addf %156, %166 : vector<50x128xf32>
    %c480 = arith.constant 480 : index
    %c0_95 = arith.constant 0 : index
    %168 = vector.load %arg1[%c480, %c0_95] : memref<896x128xbf16, #tpu.memory_space<vmem>>, vector<96x128xbf16>
    %cst_96 = arith.constant dense<0.000000e+00> : vector<260x128xf32>
    %169 = tpu.matmul %0, %168, %cst_96 {dimension_numbers = #tpu.dot_dimension_numbers<[1], [0], [0], [1], [0, 0, 1, 1], [], []>} : vector<260x96xbf16>, vector<96x128xbf16>, vector<260x128xf32> -> vector<260x128xf32>
    %170 = vector.broadcast %1 : vector<260x1xf32> to vector<260x128xf32>
    %171 = arith.addf %169, %170 : vector<260x128xf32>
    %cst_97 = arith.constant 0.000000e+00 : f32
    %172 = vector.broadcast %cst_97 : f32 to vector<260x128xf32>
    %173 = arith.maximumf %171, %172 : vector<260x128xf32>
    %174 = arith.truncf %173 : vector<260x128xf32> to vector<260x128xbf16>
    %c15 = arith.constant 15 : index
    %c0_98 = arith.constant 0 : index
    %c0_99 = arith.constant 0 : index
    %175 = vector.load %arg4[%c15, %c0_98, %c0_99] : memref<26x50x260xbf16, #tpu.memory_space<vmem>>, vector<1x50x260xbf16>
    %176 = vector.shape_cast %175 : vector<1x50x260xbf16> to vector<50x260xbf16>
    %cst_100 = arith.constant dense<0.000000e+00> : vector<50x128xf32>
    %177 = tpu.matmul %176, %174, %cst_100 {dimension_numbers = #tpu.dot_dimension_numbers<[1], [0], [0], [1], [0, 0, 1, 1], [], []>} : vector<50x260xbf16>, vector<260x128xbf16>, vector<50x128xf32> -> vector<50x128xf32>
    %178 = arith.addf %167, %177 : vector<50x128xf32>
    %c512 = arith.constant 512 : index
    %c0_101 = arith.constant 0 : index
    %179 = vector.load %arg1[%c512, %c0_101] : memref<896x128xbf16, #tpu.memory_space<vmem>>, vector<96x128xbf16>
    %cst_102 = arith.constant dense<0.000000e+00> : vector<260x128xf32>
    %180 = tpu.matmul %0, %179, %cst_102 {dimension_numbers = #tpu.dot_dimension_numbers<[1], [0], [0], [1], [0, 0, 1, 1], [], []>} : vector<260x96xbf16>, vector<96x128xbf16>, vector<260x128xf32> -> vector<260x128xf32>
    %181 = vector.broadcast %1 : vector<260x1xf32> to vector<260x128xf32>
    %182 = arith.addf %180, %181 : vector<260x128xf32>
    %cst_103 = arith.constant 0.000000e+00 : f32
    %183 = vector.broadcast %cst_103 : f32 to vector<260x128xf32>
    %184 = arith.maximumf %182, %183 : vector<260x128xf32>
    %185 = arith.truncf %184 : vector<260x128xf32> to vector<260x128xbf16>
    %c16 = arith.constant 16 : index
    %c0_104 = arith.constant 0 : index
    %c0_105 = arith.constant 0 : index
    %186 = vector.load %arg4[%c16, %c0_104, %c0_105] : memref<26x50x260xbf16, #tpu.memory_space<vmem>>, vector<1x50x260xbf16>
    %187 = vector.shape_cast %186 : vector<1x50x260xbf16> to vector<50x260xbf16>
    %cst_106 = arith.constant dense<0.000000e+00> : vector<50x128xf32>
    %188 = tpu.matmul %187, %185, %cst_106 {dimension_numbers = #tpu.dot_dimension_numbers<[1], [0], [0], [1], [0, 0, 1, 1], [], []>} : vector<50x260xbf16>, vector<260x128xbf16>, vector<50x128xf32> -> vector<50x128xf32>
    %189 = arith.addf %178, %188 : vector<50x128xf32>
    %c544 = arith.constant 544 : index
    %c0_107 = arith.constant 0 : index
    %190 = vector.load %arg1[%c544, %c0_107] : memref<896x128xbf16, #tpu.memory_space<vmem>>, vector<96x128xbf16>
    %cst_108 = arith.constant dense<0.000000e+00> : vector<260x128xf32>
    %191 = tpu.matmul %0, %190, %cst_108 {dimension_numbers = #tpu.dot_dimension_numbers<[1], [0], [0], [1], [0, 0, 1, 1], [], []>} : vector<260x96xbf16>, vector<96x128xbf16>, vector<260x128xf32> -> vector<260x128xf32>
    %192 = vector.broadcast %1 : vector<260x1xf32> to vector<260x128xf32>
    %193 = arith.addf %191, %192 : vector<260x128xf32>
    %cst_109 = arith.constant 0.000000e+00 : f32
    %194 = vector.broadcast %cst_109 : f32 to vector<260x128xf32>
    %195 = arith.maximumf %193, %194 : vector<260x128xf32>
    %196 = arith.truncf %195 : vector<260x128xf32> to vector<260x128xbf16>
    %c17 = arith.constant 17 : index
    %c0_110 = arith.constant 0 : index
    %c0_111 = arith.constant 0 : index
    %197 = vector.load %arg4[%c17, %c0_110, %c0_111] : memref<26x50x260xbf16, #tpu.memory_space<vmem>>, vector<1x50x260xbf16>
    %198 = vector.shape_cast %197 : vector<1x50x260xbf16> to vector<50x260xbf16>
    %cst_112 = arith.constant dense<0.000000e+00> : vector<50x128xf32>
    %199 = tpu.matmul %198, %196, %cst_112 {dimension_numbers = #tpu.dot_dimension_numbers<[1], [0], [0], [1], [0, 0, 1, 1], [], []>} : vector<50x260xbf16>, vector<260x128xbf16>, vector<50x128xf32> -> vector<50x128xf32>
    %200 = arith.addf %189, %199 : vector<50x128xf32>
    %c576 = arith.constant 576 : index
    %c0_113 = arith.constant 0 : index
    %201 = vector.load %arg1[%c576, %c0_113] : memref<896x128xbf16, #tpu.memory_space<vmem>>, vector<96x128xbf16>
    %cst_114 = arith.constant dense<0.000000e+00> : vector<260x128xf32>
    %202 = tpu.matmul %0, %201, %cst_114 {dimension_numbers = #tpu.dot_dimension_numbers<[1], [0], [0], [1], [0, 0, 1, 1], [], []>} : vector<260x96xbf16>, vector<96x128xbf16>, vector<260x128xf32> -> vector<260x128xf32>
    %203 = vector.broadcast %1 : vector<260x1xf32> to vector<260x128xf32>
    %204 = arith.addf %202, %203 : vector<260x128xf32>
    %cst_115 = arith.constant 0.000000e+00 : f32
    %205 = vector.broadcast %cst_115 : f32 to vector<260x128xf32>
    %206 = arith.maximumf %204, %205 : vector<260x128xf32>
    %207 = arith.truncf %206 : vector<260x128xf32> to vector<260x128xbf16>
    %c18 = arith.constant 18 : index
    %c0_116 = arith.constant 0 : index
    %c0_117 = arith.constant 0 : index
    %208 = vector.load %arg4[%c18, %c0_116, %c0_117] : memref<26x50x260xbf16, #tpu.memory_space<vmem>>, vector<1x50x260xbf16>
    %209 = vector.shape_cast %208 : vector<1x50x260xbf16> to vector<50x260xbf16>
    %cst_118 = arith.constant dense<0.000000e+00> : vector<50x128xf32>
    %210 = tpu.matmul %209, %207, %cst_118 {dimension_numbers = #tpu.dot_dimension_numbers<[1], [0], [0], [1], [0, 0, 1, 1], [], []>} : vector<50x260xbf16>, vector<260x128xbf16>, vector<50x128xf32> -> vector<50x128xf32>
    %211 = arith.addf %200, %210 : vector<50x128xf32>
    %c608 = arith.constant 608 : index
    %c0_119 = arith.constant 0 : index
    %212 = vector.load %arg1[%c608, %c0_119] : memref<896x128xbf16, #tpu.memory_space<vmem>>, vector<96x128xbf16>
    %cst_120 = arith.constant dense<0.000000e+00> : vector<260x128xf32>
    %213 = tpu.matmul %0, %212, %cst_120 {dimension_numbers = #tpu.dot_dimension_numbers<[1], [0], [0], [1], [0, 0, 1, 1], [], []>} : vector<260x96xbf16>, vector<96x128xbf16>, vector<260x128xf32> -> vector<260x128xf32>
    %214 = vector.broadcast %1 : vector<260x1xf32> to vector<260x128xf32>
    %215 = arith.addf %213, %214 : vector<260x128xf32>
    %cst_121 = arith.constant 0.000000e+00 : f32
    %216 = vector.broadcast %cst_121 : f32 to vector<260x128xf32>
    %217 = arith.maximumf %215, %216 : vector<260x128xf32>
    %218 = arith.truncf %217 : vector<260x128xf32> to vector<260x128xbf16>
    %c19 = arith.constant 19 : index
    %c0_122 = arith.constant 0 : index
    %c0_123 = arith.constant 0 : index
    %219 = vector.load %arg4[%c19, %c0_122, %c0_123] : memref<26x50x260xbf16, #tpu.memory_space<vmem>>, vector<1x50x260xbf16>
    %220 = vector.shape_cast %219 : vector<1x50x260xbf16> to vector<50x260xbf16>
    %cst_124 = arith.constant dense<0.000000e+00> : vector<50x128xf32>
    %221 = tpu.matmul %220, %218, %cst_124 {dimension_numbers = #tpu.dot_dimension_numbers<[1], [0], [0], [1], [0, 0, 1, 1], [], []>} : vector<50x260xbf16>, vector<260x128xbf16>, vector<50x128xf32> -> vector<50x128xf32>
    %222 = arith.addf %211, %221 : vector<50x128xf32>
    %c640 = arith.constant 640 : index
    %c0_125 = arith.constant 0 : index
    %223 = vector.load %arg1[%c640, %c0_125] : memref<896x128xbf16, #tpu.memory_space<vmem>>, vector<96x128xbf16>
    %cst_126 = arith.constant dense<0.000000e+00> : vector<260x128xf32>
    %224 = tpu.matmul %0, %223, %cst_126 {dimension_numbers = #tpu.dot_dimension_numbers<[1], [0], [0], [1], [0, 0, 1, 1], [], []>} : vector<260x96xbf16>, vector<96x128xbf16>, vector<260x128xf32> -> vector<260x128xf32>
    %225 = vector.broadcast %1 : vector<260x1xf32> to vector<260x128xf32>
    %226 = arith.addf %224, %225 : vector<260x128xf32>
    %cst_127 = arith.constant 0.000000e+00 : f32
    %227 = vector.broadcast %cst_127 : f32 to vector<260x128xf32>
    %228 = arith.maximumf %226, %227 : vector<260x128xf32>
    %229 = arith.truncf %228 : vector<260x128xf32> to vector<260x128xbf16>
    %c20 = arith.constant 20 : index
    %c0_128 = arith.constant 0 : index
    %c0_129 = arith.constant 0 : index
    %230 = vector.load %arg4[%c20, %c0_128, %c0_129] : memref<26x50x260xbf16, #tpu.memory_space<vmem>>, vector<1x50x260xbf16>
    %231 = vector.shape_cast %230 : vector<1x50x260xbf16> to vector<50x260xbf16>
    %cst_130 = arith.constant dense<0.000000e+00> : vector<50x128xf32>
    %232 = tpu.matmul %231, %229, %cst_130 {dimension_numbers = #tpu.dot_dimension_numbers<[1], [0], [0], [1], [0, 0, 1, 1], [], []>} : vector<50x260xbf16>, vector<260x128xbf16>, vector<50x128xf32> -> vector<50x128xf32>
    %233 = arith.addf %222, %232 : vector<50x128xf32>
    %c672 = arith.constant 672 : index
    %c0_131 = arith.constant 0 : index
    %234 = vector.load %arg1[%c672, %c0_131] : memref<896x128xbf16, #tpu.memory_space<vmem>>, vector<96x128xbf16>
    %cst_132 = arith.constant dense<0.000000e+00> : vector<260x128xf32>
    %235 = tpu.matmul %0, %234, %cst_132 {dimension_numbers = #tpu.dot_dimension_numbers<[1], [0], [0], [1], [0, 0, 1, 1], [], []>} : vector<260x96xbf16>, vector<96x128xbf16>, vector<260x128xf32> -> vector<260x128xf32>
    %236 = vector.broadcast %1 : vector<260x1xf32> to vector<260x128xf32>
    %237 = arith.addf %235, %236 : vector<260x128xf32>
    %cst_133 = arith.constant 0.000000e+00 : f32
    %238 = vector.broadcast %cst_133 : f32 to vector<260x128xf32>
    %239 = arith.maximumf %237, %238 : vector<260x128xf32>
    %240 = arith.truncf %239 : vector<260x128xf32> to vector<260x128xbf16>
    %c21 = arith.constant 21 : index
    %c0_134 = arith.constant 0 : index
    %c0_135 = arith.constant 0 : index
    %241 = vector.load %arg4[%c21, %c0_134, %c0_135] : memref<26x50x260xbf16, #tpu.memory_space<vmem>>, vector<1x50x260xbf16>
    %242 = vector.shape_cast %241 : vector<1x50x260xbf16> to vector<50x260xbf16>
    %cst_136 = arith.constant dense<0.000000e+00> : vector<50x128xf32>
    %243 = tpu.matmul %242, %240, %cst_136 {dimension_numbers = #tpu.dot_dimension_numbers<[1], [0], [0], [1], [0, 0, 1, 1], [], []>} : vector<50x260xbf16>, vector<260x128xbf16>, vector<50x128xf32> -> vector<50x128xf32>
    %244 = arith.addf %233, %243 : vector<50x128xf32>
    %c704 = arith.constant 704 : index
    %c0_137 = arith.constant 0 : index
    %245 = vector.load %arg1[%c704, %c0_137] : memref<896x128xbf16, #tpu.memory_space<vmem>>, vector<96x128xbf16>
    %cst_138 = arith.constant dense<0.000000e+00> : vector<260x128xf32>
    %246 = tpu.matmul %0, %245, %cst_138 {dimension_numbers = #tpu.dot_dimension_numbers<[1], [0], [0], [1], [0, 0, 1, 1], [], []>} : vector<260x96xbf16>, vector<96x128xbf16>, vector<260x128xf32> -> vector<260x128xf32>
    %247 = vector.broadcast %1 : vector<260x1xf32> to vector<260x128xf32>
    %248 = arith.addf %246, %247 : vector<260x128xf32>
    %cst_139 = arith.constant 0.000000e+00 : f32
    %249 = vector.broadcast %cst_139 : f32 to vector<260x128xf32>
    %250 = arith.maximumf %248, %249 : vector<260x128xf32>
    %251 = arith.truncf %250 : vector<260x128xf32> to vector<260x128xbf16>
    %c22 = arith.constant 22 : index
    %c0_140 = arith.constant 0 : index
    %c0_141 = arith.constant 0 : index
    %252 = vector.load %arg4[%c22, %c0_140, %c0_141] : memref<26x50x260xbf16, #tpu.memory_space<vmem>>, vector<1x50x260xbf16>
    %253 = vector.shape_cast %252 : vector<1x50x260xbf16> to vector<50x260xbf16>
    %cst_142 = arith.constant dense<0.000000e+00> : vector<50x128xf32>
    %254 = tpu.matmul %253, %251, %cst_142 {dimension_numbers = #tpu.dot_dimension_numbers<[1], [0], [0], [1], [0, 0, 1, 1], [], []>} : vector<50x260xbf16>, vector<260x128xbf16>, vector<50x128xf32> -> vector<50x128xf32>
    %255 = arith.addf %244, %254 : vector<50x128xf32>
    %c736 = arith.constant 736 : index
    %c0_143 = arith.constant 0 : index
    %256 = vector.load %arg1[%c736, %c0_143] : memref<896x128xbf16, #tpu.memory_space<vmem>>, vector<96x128xbf16>
    %cst_144 = arith.constant dense<0.000000e+00> : vector<260x128xf32>
    %257 = tpu.matmul %0, %256, %cst_144 {dimension_numbers = #tpu.dot_dimension_numbers<[1], [0], [0], [1], [0, 0, 1, 1], [], []>} : vector<260x96xbf16>, vector<96x128xbf16>, vector<260x128xf32> -> vector<260x128xf32>
    %258 = vector.broadcast %1 : vector<260x1xf32> to vector<260x128xf32>
    %259 = arith.addf %257, %258 : vector<260x128xf32>
    %cst_145 = arith.constant 0.000000e+00 : f32
    %260 = vector.broadcast %cst_145 : f32 to vector<260x128xf32>
    %261 = arith.maximumf %259, %260 : vector<260x128xf32>
    %262 = arith.truncf %261 : vector<260x128xf32> to vector<260x128xbf16>
    %c23 = arith.constant 23 : index
    %c0_146 = arith.constant 0 : index
    %c0_147 = arith.constant 0 : index
    %263 = vector.load %arg4[%c23, %c0_146, %c0_147] : memref<26x50x260xbf16, #tpu.memory_space<vmem>>, vector<1x50x260xbf16>
    %264 = vector.shape_cast %263 : vector<1x50x260xbf16> to vector<50x260xbf16>
    %cst_148 = arith.constant dense<0.000000e+00> : vector<50x128xf32>
    %265 = tpu.matmul %264, %262, %cst_148 {dimension_numbers = #tpu.dot_dimension_numbers<[1], [0], [0], [1], [0, 0, 1, 1], [], []>} : vector<50x260xbf16>, vector<260x128xbf16>, vector<50x128xf32> -> vector<50x128xf32>
    %266 = arith.addf %255, %265 : vector<50x128xf32>
    %c768 = arith.constant 768 : index
    %c0_149 = arith.constant 0 : index
    %267 = vector.load %arg1[%c768, %c0_149] : memref<896x128xbf16, #tpu.memory_space<vmem>>, vector<96x128xbf16>
    %cst_150 = arith.constant dense<0.000000e+00> : vector<260x128xf32>
    %268 = tpu.matmul %0, %267, %cst_150 {dimension_numbers = #tpu.dot_dimension_numbers<[1], [0], [0], [1], [0, 0, 1, 1], [], []>} : vector<260x96xbf16>, vector<96x128xbf16>, vector<260x128xf32> -> vector<260x128xf32>
    %269 = vector.broadcast %1 : vector<260x1xf32> to vector<260x128xf32>
    %270 = arith.addf %268, %269 : vector<260x128xf32>
    %cst_151 = arith.constant 0.000000e+00 : f32
    %271 = vector.broadcast %cst_151 : f32 to vector<260x128xf32>
    %272 = arith.maximumf %270, %271 : vector<260x128xf32>
    %273 = arith.truncf %272 : vector<260x128xf32> to vector<260x128xbf16>
    %c24 = arith.constant 24 : index
    %c0_152 = arith.constant 0 : index
    %c0_153 = arith.constant 0 : index
    %274 = vector.load %arg4[%c24, %c0_152, %c0_153] : memref<26x50x260xbf16, #tpu.memory_space<vmem>>, vector<1x50x260xbf16>
    %275 = vector.shape_cast %274 : vector<1x50x260xbf16> to vector<50x260xbf16>
    %cst_154 = arith.constant dense<0.000000e+00> : vector<50x128xf32>
    %276 = tpu.matmul %275, %273, %cst_154 {dimension_numbers = #tpu.dot_dimension_numbers<[1], [0], [0], [1], [0, 0, 1, 1], [], []>} : vector<50x260xbf16>, vector<260x128xbf16>, vector<50x128xf32> -> vector<50x128xf32>
    %277 = arith.addf %266, %276 : vector<50x128xf32>
    %c800 = arith.constant 800 : index
    %c0_155 = arith.constant 0 : index
    %278 = vector.load %arg1[%c800, %c0_155] : memref<896x128xbf16, #tpu.memory_space<vmem>>, vector<96x128xbf16>
    %cst_156 = arith.constant dense<0.000000e+00> : vector<260x128xf32>
    %279 = tpu.matmul %0, %278, %cst_156 {dimension_numbers = #tpu.dot_dimension_numbers<[1], [0], [0], [1], [0, 0, 1, 1], [], []>} : vector<260x96xbf16>, vector<96x128xbf16>, vector<260x128xf32> -> vector<260x128xf32>
    %280 = vector.broadcast %1 : vector<260x1xf32> to vector<260x128xf32>
    %281 = arith.addf %279, %280 : vector<260x128xf32>
    %cst_157 = arith.constant 0.000000e+00 : f32
    %282 = vector.broadcast %cst_157 : f32 to vector<260x128xf32>
    %283 = arith.maximumf %281, %282 : vector<260x128xf32>
    %284 = arith.truncf %283 : vector<260x128xf32> to vector<260x128xbf16>
    %c25 = arith.constant 25 : index
    %c0_158 = arith.constant 0 : index
    %c0_159 = arith.constant 0 : index
    %285 = vector.load %arg4[%c25, %c0_158, %c0_159] : memref<26x50x260xbf16, #tpu.memory_space<vmem>>, vector<1x50x260xbf16>
    %286 = vector.shape_cast %285 : vector<1x50x260xbf16> to vector<50x260xbf16>
    %cst_160 = arith.constant dense<0.000000e+00> : vector<50x128xf32>
    %287 = tpu.matmul %286, %284, %cst_160 {dimension_numbers = #tpu.dot_dimension_numbers<[1], [0], [0], [1], [0, 0, 1, 1], [], []>} : vector<50x260xbf16>, vector<260x128xbf16>, vector<50x128xf32> -> vector<50x128xf32>
    %288 = arith.addf %277, %287 : vector<50x128xf32>
    %c0_161 = arith.constant 0 : index
    %c0_162 = arith.constant 0 : index
    %289 = vector.load %arg5[%c0_161, %c0_162] : memref<50x1xf32, #tpu.memory_space<vmem>>, vector<50x1xf32>
    %290 = vector.broadcast %289 : vector<50x1xf32> to vector<50x128xf32>
    %291 = arith.addf %288, %290 : vector<50x128xf32>
    %cst_163 = arith.constant 0.000000e+00 : f32
    %292 = vector.broadcast %cst_163 : f32 to vector<50x128xf32>
    %293 = arith.maximumf %291, %292 : vector<50x128xf32>
    %c0_164 = arith.constant 0 : index
    %c0_165 = arith.constant 0 : index
    %294 = vector.load %arg6[%c0_164, %c0_165] : memref<20x50xf32, #tpu.memory_space<vmem>>, vector<20x50xf32>
    %cst_166 = arith.constant dense<0.000000e+00> : vector<20x128xf32>
    %295 = tpu.matmul %294, %293, %cst_166 {dimension_numbers = #tpu.dot_dimension_numbers<[1], [0], [0], [1], [0, 0, 1, 1], [], []>} : vector<20x50xf32>, vector<50x128xf32>, vector<20x128xf32> -> vector<20x128xf32>
    %c0_167 = arith.constant 0 : index
    %c0_168 = arith.constant 0 : index
    %296 = vector.load %arg7[%c0_167, %c0_168] : memref<20x1xf32, #tpu.memory_space<vmem>>, vector<20x1xf32>
    %297 = vector.broadcast %296 : vector<20x1xf32> to vector<20x128xf32>
    %298 = arith.addf %295, %297 : vector<20x128xf32>
    %cst_169 = arith.constant 0.000000e+00 : f32
    %299 = vector.broadcast %cst_169 : f32 to vector<20x128xf32>
    %300 = arith.maximumf %298, %299 : vector<20x128xf32>
    %c0_170 = arith.constant 0 : index
    %c0_171 = arith.constant 0 : index
    %301 = vector.load %arg8[%c0_170, %c0_171] : memref<10x20xf32, #tpu.memory_space<vmem>>, vector<10x20xf32>
    %cst_172 = arith.constant dense<0.000000e+00> : vector<10x128xf32>
    %302 = tpu.matmul %301, %300, %cst_172 {dimension_numbers = #tpu.dot_dimension_numbers<[1], [0], [0], [1], [0, 0, 1, 1], [], []>} : vector<10x20xf32>, vector<20x128xf32>, vector<10x128xf32> -> vector<10x128xf32>
    %c0_173 = arith.constant 0 : index
    %c0_174 = arith.constant 0 : index
    %303 = vector.load %arg9[%c0_173, %c0_174] : memref<10x1xf32, #tpu.memory_space<vmem>>, vector<10x1xf32>
    %304 = vector.broadcast %303 : vector<10x1xf32> to vector<10x128xf32>
    %305 = arith.addf %302, %304 : vector<10x128xf32>
    %c0_175 = arith.constant 0 : index
    %c0_176 = arith.constant 0 : index
    %306 = vector.load %arg10[%c0_175, %c0_176] : memref<10x128xf32, #tpu.memory_space<vmem>>, vector<10x128xf32>
    tpu.vector_store %arg10[%c0_175, %c0_176], %305 {strides = array<i32>} : memref<10x128xf32, #tpu.memory_space<vmem>>, vector<10x128xf32>,
    return
  }
  func.func @transform_0(%arg0: i32) -> (i32, i32) {
    %c0_i32 = arith.constant 0 : i32
    %c0_i32_0 = arith.constant 0 : i32
    return %c0_i32, %arg0 : i32, i32
  }
  func.func @transform_1(%arg0: i32) -> (i32, i32) {
    %c0_i32 = arith.constant 0 : i32
    %c0_i32_0 = arith.constant 0 : i32
    %c0_i32_1 = arith.constant 0 : i32
    return %c0_i32, %c0_i32_0 : i32, i32
  }
  func.func @transform_2(%arg0: i32) -> (i32, i32) {
    %c0_i32 = arith.constant 0 : i32
    %c0_i32_0 = arith.constant 0 : i32
    %c0_i32_1 = arith.constant 0 : i32
    return %c0_i32, %c0_i32_0 : i32, i32
  }
  func.func @transform_3(%arg0: i32) -> (i32, i32, i32) {
    %c0_i32 = arith.constant 0 : i32
    %c0_i32_0 = arith.constant 0 : i32
    %c0_i32_1 = arith.constant 0 : i32
    %c0_i32_2 = arith.constant 0 : i32
    return %c0_i32, %c0_i32_0, %c0_i32_1 : i32, i32, i32
  }
  func.func @transform_4(%arg0: i32) -> (i32, i32) {
    %c0_i32 = arith.constant 0 : i32
    %c0_i32_0 = arith.constant 0 : i32
    %c0_i32_1 = arith.constant 0 : i32
    return %c0_i32, %c0_i32_0 : i32, i32
  }
  func.func @transform_5(%arg0: i32) -> (i32, i32) {
    %c0_i32 = arith.constant 0 : i32
    %c0_i32_0 = arith.constant 0 : i32
    %c0_i32_1 = arith.constant 0 : i32
    return %c0_i32, %c0_i32_0 : i32, i32
  }
  func.func @transform_6(%arg0: i32) -> (i32, i32) {
    %c0_i32 = arith.constant 0 : i32
    %c0_i32_0 = arith.constant 0 : i32
    %c0_i32_1 = arith.constant 0 : i32
    return %c0_i32, %c0_i32_0 : i32, i32
  }
  func.func @transform_7(%arg0: i32) -> (i32, i32) {
    %c0_i32 = arith.constant 0 : i32
    %c0_i32_0 = arith.constant 0 : i32
    %c0_i32_1 = arith.constant 0 : i32
    return %c0_i32, %c0_i32_0 : i32, i32
  }
  func.func @transform_8(%arg0: i32) -> (i32, i32) {
    %c0_i32 = arith.constant 0 : i32
    %c0_i32_0 = arith.constant 0 : i32
    %c0_i32_1 = arith.constant 0 : i32
    return %c0_i32, %c0_i32_0 : i32, i32
  }
  func.func @transform_9(%arg0: i32) -> (i32, i32) {
    %c0_i32 = arith.constant 0 : i32
    %c0_i32_0 = arith.constant 0 : i32
    return %c0_i32, %arg0 : i32, i32
  }
}

</mosaic_0001>

<llo_original>
// kernel: simple_conv_net_forward.1
$region0: #{simple_conv_net_forward.1}
  #allocation0 [shape = 'u32[]', space=smem, size = 0x4, offset = 0x4, fixed_abs, tag = 'smem constant byte address 0x4 - core index']
  #allocation1 [shape = 'u32[72,128]{1,0:T(1,128)}', space=vmem, size = 0x9000, scoped, tag = 'internal scratch']
  %s0 = inlined_call_operand.vmem [shape: bf16[896,128], index: 0, kind: input, shape index: {}]
  %s1 = inlined_call_operand.vmem [shape: bf16[260,96], index: 1, kind: input, shape index: {}]
  %s2 = inlined_call_operand.vmem [shape: f32[260,1], index: 2, kind: input, shape index: {}]
  %s3 = inlined_call_operand.vmem [shape: bf16[26,50,260], index: 3, kind: input, shape index: {}]
  %s4 = inlined_call_operand.vmem [shape: f32[50,1], index: 4, kind: input, shape index: {}]
  %s5 = inlined_call_operand.vmem [shape: f32[20,50], index: 5, kind: input, shape index: {}]
  %s6 = inlined_call_operand.vmem [shape: f32[20,1], index: 6, kind: input, shape index: {}]
  %s7 = inlined_call_operand.vmem [shape: f32[10,20], index: 7, kind: input, shape index: {}]
  %s8 = inlined_call_operand.vmem [shape: f32[10,1], index: 8, kind: input, shape index: {}]
  %s9 = inlined_call_operand.vmem [shape: f32[10,128], index: 9, kind: output, shape index: {}]
  %s10 = sld [smem:[#allocation0]]
  $region46: #{simple_conv_net_forward.1} parent=0
    _
  %s12 = ssub.s32 1, %s10
  %s13 = scalar_select 0, %s12, %s10
  // Predicated region
  $region2: #{simple_conv_net_forward.1} parent=0 // pred_check
    _
  $region3: #{simple_conv_net_forward.1} parent=0 // pred_check_branch
    %15 = sbr.rel (0) target = $region5
  $region4: #{simple_conv_net_forward.1} parent=0 // pred_region
    _
  $region5: #{simple_conv_net_forward.1} parent=0 // pred_fallthru
    _
  // Predicated region
  $region6: #{simple_conv_net_forward.1} parent=0 // pred_check
    _
  $region7: #{simple_conv_net_forward.1} parent=0 // pred_check_branch
    %17 = sbr.rel (0) target = $region9
  $region8: #{simple_conv_net_forward.1} parent=0 // pred_region
    _
  $region9: #{simple_conv_net_forward.1} parent=0 // pred_fallthru
    _
  // Predicated region
  $region10: #{simple_conv_net_forward.1} parent=0 // pred_check
    _
  $region11: #{simple_conv_net_forward.1} parent=0 // pred_check_branch
    %19 = sbr.rel (0) target = $region13
  $region12: #{simple_conv_net_forward.1} parent=0 // pred_region
    _
  $region13: #{simple_conv_net_forward.1} parent=0 // pred_fallthru
    _
  // Predicated region
  $region14: #{simple_conv_net_forward.1} parent=0 // pred_check
    _
  $region15: #{simple_conv_net_forward.1} parent=0 // pred_check_branch
    %21 = sbr.rel (0) target = $region17
  $region16: #{simple_conv_net_forward.1} parent=0 // pred_region
    _
  $region17: #{simple_conv_net_forward.1} parent=0 // pred_fallthru
    _
  // Predicated region
  $region18: #{simple_conv_net_forward.1} parent=0 // pred_check
    _
  $region19: #{simple_conv_net_forward.1} parent=0 // pred_check_branch
    %23 = sbr.rel (0) target = $region21
  $region20: #{simple_conv_net_forward.1} parent=0 // pred_region
    _
  $region21: #{simple_conv_net_forward.1} parent=0 // pred_fallthru
    _
  // Predicated region
  $region22: #{simple_conv_net_forward.1} parent=0 // pred_check
    _
  $region23: #{simple_conv_net_forward.1} parent=0 // pred_check_branch
    %25 = sbr.rel (0) target = $region25
  $region24: #{simple_conv_net_forward.1} parent=0 // pred_region
    _
  $region25: #{simple_conv_net_forward.1} parent=0 // pred_fallthru
    _
  // Predicated region
  $region26: #{simple_conv_net_forward.1} parent=0 // pred_check
    _
  $region27: #{simple_conv_net_forward.1} parent=0 // pred_check_branch
    %27 = sbr.rel (0) target = $region29
  $region28: #{simple_conv_net_forward.1} parent=0 // pred_region
    _
  $region29: #{simple_conv_net_forward.1} parent=0 // pred_fallthru
    _
  // Predicated region
  $region30: #{simple_conv_net_forward.1} parent=0 // pred_check
    _
  $region31: #{simple_conv_net_forward.1} parent=0 // pred_check_branch
    %29 = sbr.rel (0) target = $region33
  $region32: #{simple_conv_net_forward.1} parent=0 // pred_region
    _
  $region33: #{simple_conv_net_forward.1} parent=0 // pred_fallthru
    _
  // Predicated region
  $region34: #{simple_conv_net_forward.1} parent=0 // pred_check
    _
  $region35: #{simple_conv_net_forward.1} parent=0 // pred_check_branch
    %31 = sbr.rel (0) target = $region37
  $region36: #{simple_conv_net_forward.1} parent=0 // pred_region
    _
  $region37: #{simple_conv_net_forward.1} parent=0 // pred_fallthru
    _
  %v33 = vld [vmem:[%s1] sm:$0xf]
  %v34 = vld [vmem:[%s1 + $0x4] sm:$0xf]
  %v35 = vld [vmem:[%s1 + $0x8] sm:$0xf]
  %v36 = vld [vmem:[%s1 + $0xc] sm:$0xf]
  %v37 = vld [vmem:[%s1 + $0x10] sm:$0xf]
  %v38 = vld [vmem:[%s1 + $0x14] sm:$0xf]
  %v39 = vld [vmem:[%s1 + $0x18] sm:$0xf]
  %v40 = vld [vmem:[%s1 + $0x1c] sm:$0xf]
  %v41 = vld [vmem:[%s1 + $0x20] sm:$0xf]
  %v42 = vld [vmem:[%s1 + $0x24] sm:$0xf]
  %v43 = vld [vmem:[%s1 + $0x28] sm:$0xf]
  %v44 = vld [vmem:[%s1 + $0x2c] sm:$0xf]
  %v45 = vld [vmem:[%s1 + $0x30] sm:$0xf]
  %v46 = vld [vmem:[%s1 + $0x34] sm:$0xf]
  %v47 = vld [vmem:[%s1 + $0x38] sm:$0xf]
  %v48 = vld [vmem:[%s1 + $0x3c] sm:$0xf]
  %v49 = vld [vmem:[%s1 + $0x40] sm:$0xf]
  %v50 = vld [vmem:[%s1 + $0x44] sm:$0xf]
  %v51 = vld [vmem:[%s1 + $0x48] sm:$0xf]
  %v52 = vld [vmem:[%s1 + $0x4c] sm:$0xf]
  %v53 = vld [vmem:[%s1 + $0x50] sm:$0xf]
  %v54 = vld [vmem:[%s1 + $0x54] sm:$0xf]
  %v55 = vld [vmem:[%s1 + $0x58] sm:$0xf]
  %v56 = vld [vmem:[%s1 + $0x5c] sm:$0xf]
  %v57 = vld [vmem:[%s1 + $0x60] sm:$0xf]
  %v58 = vld [vmem:[%s1 + $0x64] sm:$0xf]
  %v59 = vld [vmem:[%s1 + $0x68] sm:$0xf]
  %v60 = vld [vmem:[%s1 + $0x6c] sm:$0xf]
  %v61 = vld [vmem:[%s1 + $0x70] sm:$0xf]
  %v62 = vld [vmem:[%s1 + $0x74] sm:$0xf]
  %v63 = vld [vmem:[%s1 + $0x78] sm:$0xf]
  %v64 = vld [vmem:[%s1 + $0x7c] sm:$0xf]
  %v65 = vld [vmem:[%s1 + $0x80] sm:$0x3]
  %v66 = vld [vmem:[%s2] sm:$0xff]
  %v67 = vld [vmem:[%s2 + $0x8] sm:$0xff]
  %v68 = vld [vmem:[%s2 + $0x10] sm:$0xff]
  %v69 = vld [vmem:[%s2 + $0x18] sm:$0xff]
  %v70 = vld [vmem:[%s2 + $0x20] sm:$0xff]
  %v71 = vld [vmem:[%s2 + $0x28] sm:$0xff]
  %v72 = vld [vmem:[%s2 + $0x30] sm:$0xff]
  %v73 = vld [vmem:[%s2 + $0x38] sm:$0xff]
  %v74 = vld [vmem:[%s2 + $0x40] sm:$0xff]
  %v75 = vld [vmem:[%s2 + $0x48] sm:$0xff]
  %v76 = vld [vmem:[%s2 + $0x50] sm:$0xff]
  %v77 = vld [vmem:[%s2 + $0x58] sm:$0xff]
  %v78 = vld [vmem:[%s2 + $0x60] sm:$0xff]
  %v79 = vld [vmem:[%s2 + $0x68] sm:$0xff]
  %v80 = vld [vmem:[%s2 + $0x70] sm:$0xff]
  %v81 = vld [vmem:[%s2 + $0x78] sm:$0xff]
  %v82 = vld [vmem:[%s2 + $0x80] sm:$0xff]
  %v83 = vld [vmem:[%s2 + $0x88] sm:$0xff]
  %v84 = vld [vmem:[%s2 + $0x90] sm:$0xff]
  %v85 = vld [vmem:[%s2 + $0x98] sm:$0xff]
  %v86 = vld [vmem:[%s2 + $0xa0] sm:$0xff]
  %v87 = vld [vmem:[%s2 + $0xa8] sm:$0xff]
  %v88 = vld [vmem:[%s2 + $0xb0] sm:$0xff]
  %v89 = vld [vmem:[%s2 + $0xb8] sm:$0xff]
  %v90 = vld [vmem:[%s2 + $0xc0] sm:$0xff]
  %v91 = vld [vmem:[%s2 + $0xc8] sm:$0xff]
  %v92 = vld [vmem:[%s2 + $0xd0] sm:$0xff]
  %v93 = vld [vmem:[%s2 + $0xd8] sm:$0xff]
  %v94 = vld [vmem:[%s2 + $0xe0] sm:$0xff]
  %v95 = vld [vmem:[%s2 + $0xe8] sm:$0xff]
  %v96 = vld [vmem:[%s2 + $0xf0] sm:$0xff]
  %v97 = vld [vmem:[%s2 + $0xf8] sm:$0xff]
  %v98 = vld [vmem:[%s2 + $0x100] sm:$0xf]
  %v99 = vld [vmem:[%s0] sm:$0xf]
  %v100 = vld [vmem:[%s0 + $0x4] sm:$0xf]
  %v101 = vld [vmem:[%s0 + $0x8] sm:$0xf]
  %v102 = vld [vmem:[%s0 + $0xc] sm:$0xf]
  %v103 = vld [vmem:[%s0 + $0x10] sm:$0xf]
  %v104 = vld [vmem:[%s0 + $0x14] sm:$0xf]
  %v105 = vld [vmem:[%s0 + $0x18] sm:$0xf]
  %v106 = vld [vmem:[%s0 + $0x1c] sm:$0xf]
  %v107 = vld [vmem:[%s0 + $0x20] sm:$0xf]
  %v108 = vld [vmem:[%s0 + $0x24] sm:$0xf]
  %v109 = vld [vmem:[%s0 + $0x28] sm:$0xf]
  %v110 = vld [vmem:[%s0 + $0x2c] sm:$0xf]
  %112 = vset.pattern.permute.xlu0 0
  %113 = vperm.xlu0 %112, %v66
  %v114 = vpop.permute.xlu0 %113
  %117 = vset.pattern.permute.xlu0 0
  %118 = vperm.xlu0 %117, %v67
  %v119 = vpop.permute.xlu0 %118
  %122 = vset.pattern.permute.xlu0 0
  %123 = vperm.xlu0 %122, %v68
  %v124 = vpop.permute.xlu0 %123
  %127 = vset.pattern.permute.xlu0 0
  %128 = vperm.xlu0 %127, %v69
  %v129 = vpop.permute.xlu0 %128
  %132 = vset.pattern.permute.xlu0 0
  %133 = vperm.xlu0 %132, %v70
  %v134 = vpop.permute.xlu0 %133
  %137 = vset.pattern.permute.xlu0 0
  %138 = vperm.xlu0 %137, %v71
  %v139 = vpop.permute.xlu0 %138
  %142 = vset.pattern.permute.xlu0 0
  %143 = vperm.xlu0 %142, %v72
  %v144 = vpop.permute.xlu0 %143
  %147 = vset.pattern.permute.xlu0 0
  %148 = vperm.xlu0 %147, %v73
  %v149 = vpop.permute.xlu0 %148
  %152 = vset.pattern.permute.xlu0 0
  %153 = vperm.xlu0 %152, %v74
  %v154 = vpop.permute.xlu0 %153
  %157 = vset.pattern.permute.xlu0 0
  %158 = vperm.xlu0 %157, %v75
  %v159 = vpop.permute.xlu0 %158
  %162 = vset.pattern.permute.xlu0 0
  %163 = vperm.xlu0 %162, %v76
  %v164 = vpop.permute.xlu0 %163
  %167 = vset.pattern.permute.xlu0 0
  %168 = vperm.xlu0 %167, %v77
  %v169 = vpop.permute.xlu0 %168
  %172 = vset.pattern.permute.xlu0 0
  %173 = vperm.xlu0 %172, %v78
  %v174 = vpop.permute.xlu0 %173
  %177 = vset.pattern.permute.xlu0 0
  %178 = vperm.xlu0 %177, %v79
  %v179 = vpop.permute.xlu0 %178
  %182 = vset.pattern.permute.xlu0 0
  %183 = vperm.xlu0 %182, %v80
  %v184 = vpop.permute.xlu0 %183
  %187 = vset.pattern.permute.xlu0 0
  %188 = vperm.xlu0 %187, %v81
  %v189 = vpop.permute.xlu0 %188
  %192 = vset.pattern.permute.xlu0 0
  %193 = vperm.xlu0 %192, %v82
  %v194 = vpop.permute.xlu0 %193
  %197 = vset.pattern.permute.xlu0 0
  %198 = vperm.xlu0 %197, %v83
  %v199 = vpop.permute.xlu0 %198
  %202 = vset.pattern.permute.xlu0 0
  %203 = vperm.xlu0 %202, %v84
  %v204 = vpop.permute.xlu0 %203
  %207 = vset.pattern.permute.xlu0 0
  %208 = vperm.xlu0 %207, %v85
  %v209 = vpop.permute.xlu0 %208
  %212 = vset.pattern.permute.xlu0 0
  %213 = vperm.xlu0 %212, %v86
  %v214 = vpop.permute.xlu0 %213
  %217 = vset.pattern.permute.xlu0 0
  %218 = vperm.xlu0 %217, %v87
  %v219 = vpop.permute.xlu0 %218
  %222 = vset.pattern.permute.xlu0 0
  %223 = vperm.xlu0 %222, %v88
  %v224 = vpop.permute.xlu0 %223
  %227 = vset.pattern.permute.xlu0 0
  %228 = vperm.xlu0 %227, %v89
  %v229 = vpop.permute.xlu0 %228
  %232 = vset.pattern.permute.xlu0 0
  %233 = vperm.xlu0 %232, %v90
  %v234 = vpop.permute.xlu0 %233
  %237 = vset.pattern.permute.xlu0 0
  %238 = vperm.xlu0 %237, %v91
  %v239 = vpop.permute.xlu0 %238
  %242 = vset.pattern.permute.xlu0 0
  %243 = vperm.xlu0 %242, %v92
  %v244 = vpop.permute.xlu0 %243
  %247 = vset.pattern.permute.xlu0 0
  %248 = vperm.xlu0 %247, %v93
  %v249 = vpop.permute.xlu0 %248
  %252 = vset.pattern.permute.xlu0 0
  %253 = vperm.xlu0 %252, %v94
  %v254 = vpop.permute.xlu0 %253
  %257 = vset.pattern.permute.xlu0 0
  %258 = vperm.xlu0 %257, %v95
  %v259 = vpop.permute.xlu0 %258
  %262 = vset.pattern.permute.xlu0 0
  %263 = vperm.xlu0 %262, %v96
  %v264 = vpop.permute.xlu0 %263
  %267 = vset.pattern.permute.xlu0 0
  %268 = vperm.xlu0 %267, %v97
  %v269 = vpop.permute.xlu0 %268
  %272 = vset.pattern.permute.xlu0 0
  %273 = vperm.xlu0 %272, %v98
  %v274 = vpop.permute.xlu0 %273
  %v309 = vunpack.c.l.b16 %v33
  %v310 = vunpack.c.l.b16 %v34
  %v311 = vunpack.c.l.b16 %v35
  %v312 = vunpack.c.l.b16 %v36
  %v313 = vunpack.c.l.b16 %v37
  %v314 = vunpack.c.l.b16 %v38
  %v315 = vunpack.c.l.b16 %v39
  %v316 = vunpack.c.l.b16 %v40
  %v317 = vunpack.c.l.b16 %v41
  %v318 = vunpack.c.l.b16 %v42
  %v319 = vunpack.c.l.b16 %v43
  %v320 = vunpack.c.l.b16 %v44
  %v321 = vunpack.c.l.b16 %v45
  %v322 = vunpack.c.l.b16 %v46
  %v323 = vunpack.c.l.b16 %v47
  %v324 = vunpack.c.l.b16 %v48
  %v325 = vunpack.c.l.b16 %v49
  %v326 = vunpack.c.l.b16 %v50
  %v327 = vunpack.c.l.b16 %v51
  %v328 = vunpack.c.l.b16 %v52
  %v329 = vunpack.c.l.b16 %v53
  %v330 = vunpack.c.l.b16 %v54
  %v331 = vunpack.c.l.b16 %v55
  %v332 = vunpack.c.l.b16 %v56
  %v333 = vunpack.c.l.b16 %v57
  %v334 = vunpack.c.l.b16 %v58
  %v335 = vunpack.c.l.b16 %v59
  %v336 = vunpack.c.l.b16 %v60
  %v337 = vunpack.c.l.b16 %v61
  %v338 = vunpack.c.l.b16 %v62
  %v339 = vunpack.c.l.b16 %v63
  %v340 = vunpack.c.l.b16 %v64
  %v341 = vunpack.c.l.b16 %v65
  %v342 = vpack.c.b16 %v310, %v309
  %v343 = vpack.c.b16 %v312, %v311
  %v344 = vpack.c.b16 %v314, %v313
  %v345 = vpack.c.b16 %v316, %v315
  %v346 = vpack.c.b16 %v318, %v317
  %v347 = vpack.c.b16 %v320, %v319
  %v348 = vpack.c.b16 %v322, %v321
  %v349 = vpack.c.b16 %v324, %v323
  %v350 = vpack.c.b16 %v326, %v325
  %v351 = vpack.c.b16 %v328, %v327
  %v352 = vpack.c.b16 %v330, %v329
  %v353 = vpack.c.b16 %v332, %v331
  %v354 = vpack.c.b16 %v334, %v333
  %v355 = vpack.c.b16 %v336, %v335
  %v356 = vpack.c.b16 %v338, %v337
  %v357 = vpack.c.b16 %v340, %v339
  %v358 = vpack.c.b16 %v341, %v341
  %v371 = vunpack.c.l.b16 %v99
  %v372 = vunpack.c.l.b16 %v100
  %v373 = vunpack.c.l.b16 %v101
  %v374 = vunpack.c.l.b16 %v102
  %v375 = vunpack.c.l.b16 %v103
  %v376 = vunpack.c.l.b16 %v104
  %v377 = vunpack.c.l.b16 %v105
  %v378 = vunpack.c.l.b16 %v106
  %v379 = vunpack.c.l.b16 %v107
  %v380 = vunpack.c.l.b16 %v108
  %v381 = vunpack.c.l.b16 %v109
  %v382 = vunpack.c.l.b16 %v110
  %v383 = vpack.c.b16 %v372, %v371
  %v384 = vpack.c.b16 %v374, %v373
  %v385 = vpack.c.b16 %v376, %v375
  %v386 = vpack.c.b16 %v378, %v377
  %v387 = vpack.c.b16 %v380, %v379
  %v388 = vpack.c.b16 %v382, %v381
  %vm395 = vcmask 785408
  %v397 = vsel %vm395, %v342, 0
  %v400 = vsel %vm395, %v343, 0
  %v403 = vsel %vm395, %v344, 0
  %v406 = vsel %vm395, %v345, 0
  %v409 = vsel %vm395, %v346, 0
  %v412 = vsel %vm395, %v347, 0
  %v415 = vsel %vm395, %v348, 0
  %v418 = vsel %vm395, %v349, 0
  %v421 = vsel %vm395, %v350, 0
  %v424 = vsel %vm395, %v351, 0
  %v427 = vsel %vm395, %v352, 0
  %v430 = vsel %vm395, %v353, 0
  %v433 = vsel %vm395, %v354, 0
  %v436 = vsel %vm395, %v355, 0
  %v439 = vsel %vm395, %v356, 0
  %v442 = vsel %vm395, %v357, 0
  %v445 = vsel %vm395, %v358, 0
  %447 = vmatpush.bf16.msra.mxu0 0
  %448 = vmatpush.bf16.msra.mxu0 0
  %449 = vmatpush.bf16.msra.mxu0 %v388
  %450 = vmatpush.bf16.msra.mxu0 %v387
  %451 = vmatpush.bf16.msra.mxu0 %v386
  %452 = vmatpush.bf16.msra.mxu0 %v385
  %453 = vmatpush.bf16.msra.mxu0 %v384
  %454 = vmatpush.bf16.msra.mxu0 %v383
  %455 = vmatmul.bf16.gmra.mxu0 %v397
  %v456 = vpop.f32.mrf.mxu0
  %v457 = vadd.f32 %v114, %v456
  %v458 = vpop.f32.mrf.mxu0
  %v459 = vadd.f32 %v119, %v458
  %460 = vmatmul.bf16.gmra.mxu0 %v400
  %v461 = vpop.f32.mrf.mxu0
  %v462 = vadd.f32 %v124, %v461
  %v463 = vpop.f32.mrf.mxu0
  %v464 = vadd.f32 %v129, %v463
  %465 = vmatmul.bf16.gmra.mxu0 %v403
  %v466 = vpop.f32.mrf.mxu0
  %v467 = vadd.f32 %v134, %v466
  %v468 = vpop.f32.mrf.mxu0
  %v469 = vadd.f32 %v139, %v468
  %470 = vmatmul.bf16.gmra.mxu0 %v406
  %v471 = vpop.f32.mrf.mxu0
  %v472 = vadd.f32 %v144, %v471
  %v473 = vpop.f32.mrf.mxu0
  %v474 = vadd.f32 %v149, %v473
  %475 = vmatmul.bf16.gmra.mxu0 %v409
  %v476 = vpop.f32.mrf.mxu0
  %v477 = vadd.f32 %v154, %v476
  %v478 = vpop.f32.mrf.mxu0
  %v479 = vadd.f32 %v159, %v478
  %480 = vmatmul.bf16.gmra.mxu0 %v412
  %v481 = vpop.f32.mrf.mxu0
  %v482 = vadd.f32 %v164, %v481
  %v483 = vpop.f32.mrf.mxu0
  %v484 = vadd.f32 %v169, %v483
  %485 = vmatmul.bf16.gmra.mxu0 %v415
  %v486 = vpop.f32.mrf.mxu0
  %v487 = vadd.f32 %v174, %v486
  %v488 = vpop.f32.mrf.mxu0
  %v489 = vadd.f32 %v179, %v488
  %490 = vmatmul.bf16.gmra.mxu0 %v418
  %v491 = vpop.f32.mrf.mxu0
  %v492 = vadd.f32 %v184, %v491
  %v493 = vpop.f32.mrf.mxu0
  %v494 = vadd.f32 %v189, %v493
  %495 = vmatmul.bf16.gmra.mxu0 %v421
  %v496 = vpop.f32.mrf.mxu0
  %v497 = vadd.f32 %v194, %v496
  %v498 = vpop.f32.mrf.mxu0
  %v499 = vadd.f32 %v199, %v498
  %500 = vmatmul.bf16.gmra.mxu0 %v424
  %v501 = vpop.f32.mrf.mxu0
  %v502 = vadd.f32 %v204, %v501
  %v503 = vpop.f32.mrf.mxu0
  %v504 = vadd.f32 %v209, %v503
  %505 = vmatmul.bf16.gmra.mxu0 %v427
  %v506 = vpop.f32.mrf.mxu0
  %v507 = vadd.f32 %v214, %v506
  %v508 = vpop.f32.mrf.mxu0
  %v509 = vadd.f32 %v219, %v508
  %510 = vmatmul.bf16.gmra.mxu0 %v430
  %v511 = vpop.f32.mrf.mxu0
  %v512 = vadd.f32 %v224, %v511
  %v513 = vpop.f32.mrf.mxu0
  %v514 = vadd.f32 %v229, %v513
  %515 = vmatmul.bf16.gmra.mxu0 %v433
  %v516 = vpop.f32.mrf.mxu0
  %v517 = vadd.f32 %v234, %v516
  %v518 = vpop.f32.mrf.mxu0
  %v519 = vadd.f32 %v239, %v518
  %520 = vmatmul.bf16.gmra.mxu0 %v436
  %v521 = vpop.f32.mrf.mxu0
  %v522 = vadd.f32 %v244, %v521
  %v523 = vpop.f32.mrf.mxu0
  %v524 = vadd.f32 %v249, %v523
  %525 = vmatmul.bf16.gmra.mxu0 %v439
  %v526 = vpop.f32.mrf.mxu0
  %v527 = vadd.f32 %v254, %v526
  %v528 = vpop.f32.mrf.mxu0
  %v529 = vadd.f32 %v259, %v528
  %530 = vmatmul.bf16.gmra.mxu0 %v442
  %v531 = vpop.f32.mrf.mxu0
  %v532 = vadd.f32 %v264, %v531
  %v533 = vpop.f32.mrf.mxu0
  %v534 = vadd.f32 %v269, %v533
  %535 = vmatmul.bf16.gmra.mxu0 %v445
  %v536 = vpop.f32.mrf.mxu0
  %v537 = vadd.f32 %v274, %v536
  %v538 = vpop.f32.mrf.mxu0
  %539 = vdwg.mxu0
  %v540 = vmax.f32 %v457, 0.0
  %v541 = vmax.f32 %v459, 0.0
  %v542 = vmax.f32 %v462, 0.0
  %v543 = vmax.f32 %v464, 0.0
  %v544 = vmax.f32 %v467, 0.0
  %v545 = vmax.f32 %v469, 0.0
  %v546 = vmax.f32 %v472, 0.0
  %v547 = vmax.f32 %v474, 0.0
  %v548 = vmax.f32 %v477, 0.0
  %v549 = vmax.f32 %v479, 0.0
  %v550 = vmax.f32 %v482, 0.0
  %v551 = vmax.f32 %v484, 0.0
  %v552 = vmax.f32 %v487, 0.0
  %v553 = vmax.f32 %v489, 0.0
  %v554 = vmax.f32 %v492, 0.0
  %v555 = vmax.f32 %v494, 0.0
  %v556 = vmax.f32 %v497, 0.0
  %v557 = vmax.f32 %v499, 0.0
  %v558 = vmax.f32 %v502, 0.0
  %v559 = vmax.f32 %v504, 0.0
  %v560 = vmax.f32 %v507, 0.0
  %v561 = vmax.f32 %v509, 0.0
  %v562 = vmax.f32 %v512, 0.0
  %v563 = vmax.f32 %v514, 0.0
  %v564 = vmax.f32 %v517, 0.0
  %v565 = vmax.f32 %v519, 0.0
  %v566 = vmax.f32 %v522, 0.0
  %v567 = vmax.f32 %v524, 0.0
  %v568 = vmax.f32 %v527, 0.0
  %v569 = vmax.f32 %v529, 0.0
  %v570 = vmax.f32 %v532, 0.0
  %v571 = vmax.f32 %v534, 0.0
  %v572 = vmax.f32 %v537, 0.0
  %v573 = vpack.c.bf16 %v541, %v540
  %v574 = vpack.c.bf16 %v543, %v542
  %v575 = vpack.c.bf16 %v545, %v544
  %v576 = vpack.c.bf16 %v547, %v546
  %v577 = vpack.c.bf16 %v549, %v548
  %v578 = vpack.c.bf16 %v551, %v550
  %v579 = vpack.c.bf16 %v553, %v552
  %v580 = vpack.c.bf16 %v555, %v554
  %v581 = vpack.c.bf16 %v557, %v556
  %v582 = vpack.c.bf16 %v559, %v558
  %v583 = vpack.c.bf16 %v561, %v560
  %v584 = vpack.c.bf16 %v563, %v562
  %v585 = vpack.c.bf16 %v565, %v564
  %v586 = vpack.c.bf16 %v567, %v566
  %v587 = vpack.c.bf16 %v569, %v568
  %v588 = vpack.c.bf16 %v571, %v570
  %v589 = vpack.c.bf16 %v572, %v572
  %v590 = vld [vmem:[%s3] sm:$0xff]
  %v591 = vld [vmem:[%s3 + $0x8] sm:$0xf]
  %v592 = vld [vmem:[%s3 + $0xc] sm:$0xff]
  %v593 = vld [vmem:[%s3 + $0x14] sm:$0xf]
  %v594 = vld [vmem:[%s3 + $0x18] sm:$0xff]
  %v595 = vld [vmem:[%s3 + $0x20] sm:$0xf]
  %v596 = vld [vmem:[%s3 + $0x24] sm:$0xff]
  %v597 = vld [vmem:[%s3 + $0x2c] sm:$0xf]
  %v598 = vld [vmem:[%s3 + $0x30] sm:$0xff]
  %v599 = vld [vmem:[%s3 + $0x38] sm:$0xf]
  %v600 = vld [vmem:[%s3 + $0x3c] sm:$0xff]
  %v601 = vld [vmem:[%s3 + $0x44] sm:$0xf]
  %v602 = vld [vmem:[%s3 + $0x48] sm:$0x11]
  %v603 = vld [vmem:[%s3 + $0x50] sm:$0x1]
  %v604 = vld [vmem:[%s0 + $0x10] sm:$0xf]
  %v605 = vld [vmem:[%s0 + $0x14] sm:$0xf]
  %v606 = vld [vmem:[%s0 + $0x18] sm:$0xf]
  %v607 = vld [vmem:[%s0 + $0x1c] sm:$0xf]
  %v608 = vld [vmem:[%s0 + $0x20] sm:$0xf]
  %v609 = vld [vmem:[%s0 + $0x24] sm:$0xf]
  %v610 = vld [vmem:[%s0 + $0x28] sm:$0xf]
  %v611 = vld [vmem:[%s0 + $0x2c] sm:$0xf]
  %v612 = vld [vmem:[%s0 + $0x30] sm:$0xf]
  %v613 = vld [vmem:[%s0 + $0x34] sm:$0xf]
  %v614 = vld [vmem:[%s0 + $0x38] sm:$0xf]
  %v615 = vld [vmem:[%s0 + $0x3c] sm:$0xf]
  %v628 = vunpack.c.l.b16 %v604
  %v629 = vunpack.c.l.b16 %v605
  %v630 = vunpack.c.l.b16 %v606
  %v631 = vunpack.c.l.b16 %v607
  %v632 = vunpack.c.l.b16 %v608
  %v633 = vunpack.c.l.b16 %v609
  %v634 = vunpack.c.l.b16 %v610
  %v635 = vunpack.c.l.b16 %v611
  %v636 = vunpack.c.l.b16 %v612
  %v637 = vunpack.c.l.b16 %v613
  %v638 = vunpack.c.l.b16 %v614
  %v639 = vunpack.c.l.b16 %v615
  %v640 = vpack.c.b16 %v629, %v628
  %v641 = vpack.c.b16 %v631, %v630
  %v642 = vpack.c.b16 %v633, %v632
  %v643 = vpack.c.b16 %v635, %v634
  %v644 = vpack.c.b16 %v637, %v636
  %v645 = vpack.c.b16 %v639, %v638
  %652 = vmatpush.bf16.msra.mxu0 0
  %653 = vmatpush.bf16.msra.mxu0 0
  %654 = vmatpush.bf16.msra.mxu0 %v645
  %655 = vmatpush.bf16.msra.mxu0 %v644
  %656 = vmatpush.bf16.msra.mxu0 %v643
  %657 = vmatpush.bf16.msra.mxu0 %v642
  %658 = vmatpush.bf16.msra.mxu0 %v641
  %659 = vmatpush.bf16.msra.mxu0 %v640
  %660 = vmatmul.bf16.gmra.mxu0 %v397
  %v661 = vpop.f32.mrf.mxu0
  %v662 = vadd.f32 %v114, %v661
  %v663 = vpop.f32.mrf.mxu0
  %v664 = vadd.f32 %v119, %v663
  %665 = vmatmul.bf16.gmra.mxu0 %v400
  %v666 = vpop.f32.mrf.mxu0
  %v667 = vadd.f32 %v124, %v666
  %v668 = vpop.f32.mrf.mxu0
  %v669 = vadd.f32 %v129, %v668
  %670 = vmatmul.bf16.gmra.mxu0 %v403
  %v671 = vpop.f32.mrf.mxu0
  %v672 = vadd.f32 %v134, %v671
  %v673 = vpop.f32.mrf.mxu0
  %v674 = vadd.f32 %v139, %v673
  %675 = vmatmul.bf16.gmra.mxu0 %v406
  %v676 = vpop.f32.mrf.mxu0
  %v677 = vadd.f32 %v144, %v676
  %v678 = vpop.f32.mrf.mxu0
  %v679 = vadd.f32 %v149, %v678
  %680 = vmatmul.bf16.gmra.mxu0 %v409
  %v681 = vpop.f32.mrf.mxu0
  %v682 = vadd.f32 %v154, %v681
  %v683 = vpop.f32.mrf.mxu0
  %v684 = vadd.f32 %v159, %v683
  %685 = vmatmul.bf16.gmra.mxu0 %v412
  %v686 = vpop.f32.mrf.mxu0
  %v687 = vadd.f32 %v164, %v686
  %v688 = vpop.f32.mrf.mxu0
  %v689 = vadd.f32 %v169, %v688
  %690 = vmatmul.bf16.gmra.mxu0 %v415
  %v691 = vpop.f32.mrf.mxu0
  %v692 = vadd.f32 %v174, %v691
  %v693 = vpop.f32.mrf.mxu0
  %v694 = vadd.f32 %v179, %v693
  %695 = vmatmul.bf16.gmra.mxu0 %v418
  %v696 = vpop.f32.mrf.mxu0
  %v697 = vadd.f32 %v184, %v696
  %v698 = vpop.f32.mrf.mxu0
  %v699 = vadd.f32 %v189, %v698
  %700 = vmatmul.bf16.gmra.mxu0 %v421
  %v701 = vpop.f32.mrf.mxu0
  %v702 = vadd.f32 %v194, %v701
  %v703 = vpop.f32.mrf.mxu0
  %v704 = vadd.f32 %v199, %v703
  %705 = vmatmul.bf16.gmra.mxu0 %v424
  %v706 = vpop.f32.mrf.mxu0
  %v707 = vadd.f32 %v204, %v706
  %v708 = vpop.f32.mrf.mxu0
  %v709 = vadd.f32 %v209, %v708
  %710 = vmatmul.bf16.gmra.mxu0 %v427
  %v711 = vpop.f32.mrf.mxu0
  %v712 = vadd.f32 %v214, %v711
  %v713 = vpop.f32.mrf.mxu0
  %v714 = vadd.f32 %v219, %v713
  %715 = vmatmul.bf16.gmra.mxu0 %v430
  %v716 = vpop.f32.mrf.mxu0
  %v717 = vadd.f32 %v224, %v716
  %v718 = vpop.f32.mrf.mxu0
  %v719 = vadd.f32 %v229, %v718
  %720 = vmatmul.bf16.gmra.mxu0 %v433
  %v721 = vpop.f32.mrf.mxu0
  %v722 = vadd.f32 %v234, %v721
  %v723 = vpop.f32.mrf.mxu0
  %v724 = vadd.f32 %v239, %v723
  %725 = vmatmul.bf16.gmra.mxu0 %v436
  %v726 = vpop.f32.mrf.mxu0
  %v727 = vadd.f32 %v244, %v726
  %v728 = vpop.f32.mrf.mxu0
  %v729 = vadd.f32 %v249, %v728
  %730 = vmatmul.bf16.gmra.mxu0 %v439
  %v731 = vpop.f32.mrf.mxu0
  %v732 = vadd.f32 %v254, %v731
  %v733 = vpop.f32.mrf.mxu0
  %v734 = vadd.f32 %v259, %v733
  %735 = vmatmul.bf16.gmra.mxu0 %v442
  %v736 = vpop.f32.mrf.mxu0
  %v737 = vadd.f32 %v264, %v736
  %v738 = vpop.f32.mrf.mxu0
  %v739 = vadd.f32 %v269, %v738
  %740 = vmatmul.bf16.gmra.mxu0 %v445
  %v741 = vpop.f32.mrf.mxu0
  %v742 = vadd.f32 %v274, %v741
  %v743 = vpop.f32.mrf.mxu0
  %744 = vdwg.mxu0
  %v745 = vmax.f32 %v662, 0.0
  %v746 = vmax.f32 %v664, 0.0
  %v747 = vmax.f32 %v667, 0.0
  %v748 = vmax.f32 %v669, 0.0
  %v749 = vmax.f32 %v672, 0.0
  %v750 = vmax.f32 %v674, 0.0
  %v751 = vmax.f32 %v677, 0.0
  %v752 = vmax.f32 %v679, 0.0
  %v753 = vmax.f32 %v682, 0.0
  %v754 = vmax.f32 %v684, 0.0
  %v755 = vmax.f32 %v687, 0.0
  %v756 = vmax.f32 %v689, 0.0
  %v757 = vmax.f32 %v692, 0.0
  %v758 = vmax.f32 %v694, 0.0
  %v759 = vmax.f32 %v697, 0.0
  %v760 = vmax.f32 %v699, 0.0
  %v761 = vmax.f32 %v702, 0.0
  %v762 = vmax.f32 %v704, 0.0
  %v763 = vmax.f32 %v707, 0.0
  %v764 = vmax.f32 %v709, 0.0
  %v765 = vmax.f32 %v712, 0.0
  %v766 = vmax.f32 %v714, 0.0
  %v767 = vmax.f32 %v717, 0.0
  %v768 = vmax.f32 %v719, 0.0
  %v769 = vmax.f32 %v722, 0.0
  %v770 = vmax.f32 %v724, 0.0
  %v771 = vmax.f32 %v727, 0.0
  %v772 = vmax.f32 %v729, 0.0
  %v773 = vmax.f32 %v732, 0.0
  %v774 = vmax.f32 %v734, 0.0
  %v775 = vmax.f32 %v737, 0.0
  %v776 = vmax.f32 %v739, 0.0
  %v777 = vmax.f32 %v742, 0.0
  %v778 = vpack.c.bf16 %v746, %v745
  %v779 = vpack.c.bf16 %v748, %v747
  %v780 = vpack.c.bf16 %v750, %v749
  %v781 = vpack.c.bf16 %v752, %v751
  %v782 = vpack.c.bf16 %v754, %v753
  %v783 = vpack.c.bf16 %v756, %v755
  %v784 = vpack.c.bf16 %v758, %v757
  %v785 = vpack.c.bf16 %v760, %v759
  %v786 = vpack.c.bf16 %v762, %v761
  %v787 = vpack.c.bf16 %v764, %v763
  %v788 = vpack.c.bf16 %v766, %v765
  %v789 = vpack.c.bf16 %v768, %v767
  %v790 = vpack.c.bf16 %v770, %v769
  %v791 = vpack.c.bf16 %v772, %v771
  %v792 = vpack.c.bf16 %v774, %v773
  %v793 = vpack.c.bf16 %v776, %v775
  %v794 = vpack.c.bf16 %v777, %v777
  %s795 = scalar_lea.vmem %s3, 84
  %v796 = vld [vmem:[%s795] sm:$0xff]
  %v797 = vld [vmem:[%s795 + $0x8] sm:$0xf]
  %v798 = vld [vmem:[%s795 + $0xc] sm:$0xff]
  %v799 = vld [vmem:[%s795 + $0x14] sm:$0xf]
  %v800 = vld [vmem:[%s795 + $0x18] sm:$0xff]
  %v801 = vld [vmem:[%s795 + $0x20] sm:$0xf]
  %v802 = vld [vmem:[%s795 + $0x24] sm:$0xff]
  %v803 = vld [vmem:[%s795 + $0x2c] sm:$0xf]
  %v804 = vld [vmem:[%s795 + $0x30] sm:$0xff]
  %v805 = vld [vmem:[%s795 + $0x38] sm:$0xf]
  %v806 = vld [vmem:[%s795 + $0x3c] sm:$0xff]
  %v807 = vld [vmem:[%s795 + $0x44] sm:$0xf]
  %v808 = vld [vmem:[%s795 + $0x48] sm:$0x11]
  %v809 = vld [vmem:[%s795 + $0x50] sm:$0x1]
  %v824 = vunpack.c.l.b16 %v796
  %v825 = vunpack.c.h.b16 %v796
  %v826 = vunpack.c.l.b16 %v797
  %v827 = vunpack.c.l.b16 %v798
  %v828 = vunpack.c.h.b16 %v798
  %v829 = vunpack.c.l.b16 %v799
  %v830 = vunpack.c.l.b16 %v800
  %v831 = vunpack.c.h.b16 %v800
  %v832 = vunpack.c.l.b16 %v801
  %v833 = vunpack.c.l.b16 %v802
  %v834 = vunpack.c.h.b16 %v802
  %v835 = vunpack.c.l.b16 %v803
  %v836 = vunpack.c.l.b16 %v804
  %v837 = vunpack.c.h.b16 %v804
  %v838 = vunpack.c.l.b16 %v805
  %v839 = vunpack.c.l.b16 %v806
  %v840 = vunpack.c.h.b16 %v806
  %v841 = vunpack.c.l.b16 %v807
  %v842 = vunpack.c.l.b16 %v808
  %v843 = vunpack.c.h.b16 %v808
  %v844 = vunpack.c.l.b16 %v809
  %v845 = vpack.c.b16 %v827, %v824
  %v846 = vpack.c.b16 %v828, %v825
  %v847 = vpack.c.b16 %v829, %v826
  %v848 = vpack.c.b16 %v833, %v830
  %v849 = vpack.c.b16 %v834, %v831
  %v850 = vpack.c.b16 %v835, %v832
  %v851 = vpack.c.b16 %v839, %v836
  %v852 = vpack.c.b16 %v840, %v837
  %v853 = vpack.c.b16 %v841, %v838
  %v854 = vpack.c.b16 %v842, %v842
  %v855 = vpack.c.b16 %v843, %v843
  %v856 = vpack.c.b16 %v844, %v844
  %vm865 = vcmask 31744
  %v867 = vsel %vm865, %v847, 0
  %v870 = vsel %vm865, %v850, 0
  %v873 = vsel %vm865, %v853, 0
  %v876 = vsel %vm865, %v856, 0
  %vm878 = vcmask 1041408
  %v880 = vsel %vm878, %v794, 0
  %882 = vmatpush.bf16.msra.mxu0 %v785
  %883 = vmatpush.bf16.msra.mxu0 %v784
  %884 = vmatpush.bf16.msra.mxu0 %v783
  %885 = vmatpush.bf16.msra.mxu0 %v782
  %886 = vmatpush.bf16.msra.mxu0 %v781
  %887 = vmatpush.bf16.msra.mxu0 %v780
  %888 = vmatpush.bf16.msra.mxu0 %v779
  %889 = vmatpush.bf16.msra.mxu0 %v778
  %890 = vmatmul.bf16.gmra.mxu0 %v845
  %v891 = vpop.f32.mrf.mxu0
  %v892 = vadd.f32 0.0, %v891
  %v893 = vpop.f32.mrf.mxu0
  %v894 = vadd.f32 0.0, %v893
  %895 = vmatmul.bf16.gmra.mxu0 %v848
  %v896 = vpop.f32.mrf.mxu0
  %v897 = vadd.f32 0.0, %v896
  %v898 = vpop.f32.mrf.mxu0
  %v899 = vadd.f32 0.0, %v898
  %900 = vmatmul.bf16.gmra.mxu0 %v851
  %v901 = vpop.f32.mrf.mxu0
  %v902 = vadd.f32 0.0, %v901
  %v903 = vpop.f32.mrf.mxu0
  %v904 = vadd.f32 0.0, %v903
  %905 = vmatmul.bf16.gmra.mxu0 %v854
  %v906 = vpop.f32.mrf.mxu0
  %v907 = vadd.f32 0.0, %v906
  %v908 = vpop.f32.mrf.mxu0
  %909 = vdwg.mxu0
  %910 = vmatpush.bf16.msra.mxu0 %v793
  %911 = vmatpush.bf16.msra.mxu0 %v792
  %912 = vmatpush.bf16.msra.mxu0 %v791
  %913 = vmatpush.bf16.msra.mxu0 %v790
  %914 = vmatpush.bf16.msra.mxu0 %v789
  %915 = vmatpush.bf16.msra.mxu0 %v788
  %916 = vmatpush.bf16.msra.mxu0 %v787
  %917 = vmatpush.bf16.msra.mxu0 %v786
  %918 = vmatmul.bf16.gmra.mxu0 %v846
  %v919 = vpop.f32.mrf.mxu0
  %v920 = vadd.f32 %v892, %v919
  %v921 = vpop.f32.mrf.mxu0
  %v922 = vadd.f32 %v894, %v921
  %923 = vmatmul.bf16.gmra.mxu0 %v849
  %v924 = vpop.f32.mrf.mxu0
  %v925 = vadd.f32 %v897, %v924
  %v926 = vpop.f32.mrf.mxu0
  %v927 = vadd.f32 %v899, %v926
  %928 = vmatmul.bf16.gmra.mxu0 %v852
  %v929 = vpop.f32.mrf.mxu0
  %v930 = vadd.f32 %v902, %v929
  %v931 = vpop.f32.mrf.mxu0
  %v932 = vadd.f32 %v904, %v931
  %933 = vmatmul.bf16.gmra.mxu0 %v855
  %v934 = vpop.f32.mrf.mxu0
  %v935 = vadd.f32 %v907, %v934
  %v936 = vpop.f32.mrf.mxu0
  %937 = vdwg.mxu0
  %938 = vmatpush.bf16.msra.mxu0 0
  %939 = vmatpush.bf16.msra.mxu0 0
  %940 = vmatpush.bf16.msra.mxu0 0
  %941 = vmatpush.bf16.msra.mxu0 0
  %942 = vmatpush.bf16.msra.mxu0 0
  %943 = vmatpush.bf16.msra.mxu0 0
  %944 = vmatpush.bf16.msra.mxu0 0
  %945 = vmatpush.bf16.msra.mxu0 %v880
  %946 = vmatmul.bf16.gmra.mxu0 %v867
  %v947 = vpop.f32.mrf.mxu0
  %v948 = vadd.f32 %v920, %v947
  %v949 = vpop.f32.mrf.mxu0
  %v950 = vadd.f32 %v922, %v949
  %951 = vmatmul.bf16.gmra.mxu0 %v870
  %v952 = vpop.f32.mrf.mxu0
  %v953 = vadd.f32 %v925, %v952
  %v954 = vpop.f32.mrf.mxu0
  %v955 = vadd.f32 %v927, %v954
  %956 = vmatmul.bf16.gmra.mxu0 %v873
  %v957 = vpop.f32.mrf.mxu0
  %v958 = vadd.f32 %v930, %v957
  %v959 = vpop.f32.mrf.mxu0
  %v960 = vadd.f32 %v932, %v959
  %961 = vmatmul.bf16.gmra.mxu0 %v876
  %v962 = vpop.f32.mrf.mxu0
  %v963 = vadd.f32 %v935, %v962
  %v964 = vpop.f32.mrf.mxu0
  %965 = vdwg.mxu0
  %v980 = vunpack.c.l.b16 %v590
  %v981 = vunpack.c.h.b16 %v590
  %v982 = vunpack.c.l.b16 %v591
  %v983 = vunpack.c.l.b16 %v592
  %v984 = vunpack.c.h.b16 %v592
  %v985 = vunpack.c.l.b16 %v593
  %v986 = vunpack.c.l.b16 %v594
  %v987 = vunpack.c.h.b16 %v594
  %v988 = vunpack.c.l.b16 %v595
  %v989 = vunpack.c.l.b16 %v596
  %v990 = vunpack.c.h.b16 %v596
  %v991 = vunpack.c.l.b16 %v597
  %v992 = vunpack.c.l.b16 %v598
  %v993 = vunpack.c.h.b16 %v598
  %v994 = vunpack.c.l.b16 %v599
  %v995 = vunpack.c.l.b16 %v600
  %v996 = vunpack.c.h.b16 %v600
  %v997 = vunpack.c.l.b16 %v601
  %v998 = vunpack.c.l.b16 %v602
  %v999 = vunpack.c.h.b16 %v602
  %v1000 = vunpack.c.l.b16 %v603
  %v1001 = vpack.c.b16 %v983, %v980
  %v1002 = vpack.c.b16 %v984, %v981
  %v1003 = vpack.c.b16 %v985, %v982
  %v1004 = vpack.c.b16 %v989, %v986
  %v1005 = vpack.c.b16 %v990, %v987
  %v1006 = vpack.c.b16 %v991, %v988
  %v1007 = vpack.c.b16 %v995, %v992
  %v1008 = vpack.c.b16 %v996, %v993
  %v1009 = vpack.c.b16 %v997, %v994
  %v1010 = vpack.c.b16 %v998, %v998
  %v1011 = vpack.c.b16 %v999, %v999
  %v1012 = vpack.c.b16 %v1000, %v1000
  %v1022 = vsel %vm865, %v1003, 0
  %v1025 = vsel %vm865, %v1006, 0
  %v1028 = vsel %vm865, %v1009, 0
  %v1031 = vsel %vm865, %v1012, 0
  %v1034 = vsel %vm878, %v589, 0
  %1036 = vmatpush.bf16.msra.mxu0 %v580
  %1037 = vmatpush.bf16.msra.mxu0 %v579
  %1038 = vmatpush.bf16.msra.mxu0 %v578
  %1039 = vmatpush.bf16.msra.mxu0 %v577
  %1040 = vmatpush.bf16.msra.mxu0 %v576
  %1041 = vmatpush.bf16.msra.mxu0 %v575
  %1042 = vmatpush.bf16.msra.mxu0 %v574
  %1043 = vmatpush.bf16.msra.mxu0 %v573
  %1044 = vmatmul.bf16.gmra.mxu0 %v1001
  %v1045 = vpop.f32.mrf.mxu0
  %v1046 = vadd.f32 %v948, %v1045
  %v1047 = vpop.f32.mrf.mxu0
  %v1048 = vadd.f32 %v950, %v1047
  %1049 = vmatmul.bf16.gmra.mxu0 %v1004
  %v1050 = vpop.f32.mrf.mxu0
  %v1051 = vadd.f32 %v953, %v1050
  %v1052 = vpop.f32.mrf.mxu0
  %v1053 = vadd.f32 %v955, %v1052
  %1054 = vmatmul.bf16.gmra.mxu0 %v1007
  %v1055 = vpop.f32.mrf.mxu0
  %v1056 = vadd.f32 %v958, %v1055
  %v1057 = vpop.f32.mrf.mxu0
  %v1058 = vadd.f32 %v960, %v1057
  %1059 = vmatmul.bf16.gmra.mxu0 %v1010
  %v1060 = vpop.f32.mrf.mxu0
  %v1061 = vadd.f32 %v963, %v1060
  %v1062 = vpop.f32.mrf.mxu0
  %1063 = vdwg.mxu0
  %1064 = vmatpush.bf16.msra.mxu0 %v588
  %1065 = vmatpush.bf16.msra.mxu0 %v587
  %1066 = vmatpush.bf16.msra.mxu0 %v586
  %1067 = vmatpush.bf16.msra.mxu0 %v585
  %1068 = vmatpush.bf16.msra.mxu0 %v584
  %1069 = vmatpush.bf16.msra.mxu0 %v583
  %1070 = vmatpush.bf16.msra.mxu0 %v582
  %1071 = vmatpush.bf16.msra.mxu0 %v581
  %1072 = vmatmul.bf16.gmra.mxu0 %v1002
  %v1073 = vpop.f32.mrf.mxu0
  %v1074 = vadd.f32 %v1046, %v1073
  %v1075 = vpop.f32.mrf.mxu0
  %v1076 = vadd.f32 %v1048, %v1075
  %1077 = vmatmul.bf16.gmra.mxu0 %v1005
  %v1078 = vpop.f32.mrf.mxu0
  %v1079 = vadd.f32 %v1051, %v1078
  %v1080 = vpop.f32.mrf.mxu0
  %v1081 = vadd.f32 %v1053, %v1080
  %1082 = vmatmul.bf16.gmra.mxu0 %v1008
  %v1083 = vpop.f32.mrf.mxu0
  %v1084 = vadd.f32 %v1056, %v1083
  %v1085 = vpop.f32.mrf.mxu0
  %v1086 = vadd.f32 %v1058, %v1085
  %1087 = vmatmul.bf16.gmra.mxu0 %v1011
  %v1088 = vpop.f32.mrf.mxu0
  %v1089 = vadd.f32 %v1061, %v1088
  %v1090 = vpop.f32.mrf.mxu0
  %1091 = vdwg.mxu0
  %1092 = vmatpush.bf16.msra.mxu0 0
  %1093 = vmatpush.bf16.msra.mxu0 0
  %1094 = vmatpush.bf16.msra.mxu0 0
  %1095 = vmatpush.bf16.msra.mxu0 0
  %1096 = vmatpush.bf16.msra.mxu0 0
  %1097 = vmatpush.bf16.msra.mxu0 0
  %1098 = vmatpush.bf16.msra.mxu0 0
  %1099 = vmatpush.bf16.msra.mxu0 %v1034
  %1100 = vmatmul.bf16.gmra.mxu0 %v1022
  %v1101 = vpop.f32.mrf.mxu0
  %v1102 = vadd.f32 %v1074, %v1101
  %v1103 = vpop.f32.mrf.mxu0
  %v1104 = vadd.f32 %v1076, %v1103
  %1105 = vmatmul.bf16.gmra.mxu0 %v1025
  %v1106 = vpop.f32.mrf.mxu0
  %v1107 = vadd.f32 %v1079, %v1106
  %v1108 = vpop.f32.mrf.mxu0
  %v1109 = vadd.f32 %v1081, %v1108
  %1110 = vmatmul.bf16.gmra.mxu0 %v1028
  %v1111 = vpop.f32.mrf.mxu0
  %v1112 = vadd.f32 %v1084, %v1111
  %v1113 = vpop.f32.mrf.mxu0
  %v1114 = vadd.f32 %v1086, %v1113
  %1115 = vmatmul.bf16.gmra.mxu0 %v1031
  %v1116 = vpop.f32.mrf.mxu0
  %v1117 = vadd.f32 %v1089, %v1116
  %v1118 = vpop.f32.mrf.mxu0
  %1119 = vdwg.mxu0
  %v1120 = vld [vmem:[%s0 + $0x20] sm:$0xf]
  %v1121 = vld [vmem:[%s0 + $0x24] sm:$0xf]
  %v1122 = vld [vmem:[%s0 + $0x28] sm:$0xf]
  %v1123 = vld [vmem:[%s0 + $0x2c] sm:$0xf]
  %v1124 = vld [vmem:[%s0 + $0x30] sm:$0xf]
  %v1125 = vld [vmem:[%s0 + $0x34] sm:$0xf]
  %v1126 = vld [vmem:[%s0 + $0x38] sm:$0xf]
  %v1127 = vld [vmem:[%s0 + $0x3c] sm:$0xf]
  %v1128 = vld [vmem:[%s0 + $0x40] sm:$0xf]
  %v1129 = vld [vmem:[%s0 + $0x44] sm:$0xf]
  %v1130 = vld [vmem:[%s0 + $0x48] sm:$0xf]
  %v1131 = vld [vmem:[%s0 + $0x4c] sm:$0xf]
  %v1144 = vunpack.c.l.b16 %v1120
  %v1145 = vunpack.c.l.b16 %v1121
  %v1146 = vunpack.c.l.b16 %v1122
  %v1147 = vunpack.c.l.b16 %v1123
  %v1148 = vunpack.c.l.b16 %v1124
  %v1149 = vunpack.c.l.b16 %v1125
  %v1150 = vunpack.c.l.b16 %v1126
  %v1151 = vunpack.c.l.b16 %v1127
  %v1152 = vunpack.c.l.b16 %v1128
  %v1153 = vunpack.c.l.b16 %v1129
  %v1154 = vunpack.c.l.b16 %v1130
  %v1155 = vunpack.c.l.b16 %v1131
  %v1156 = vpack.c.b16 %v1145, %v1144
  %v1157 = vpack.c.b16 %v1147, %v1146
  %v1158 = vpack.c.b16 %v1149, %v1148
  %v1159 = vpack.c.b16 %v1151, %v1150
  %v1160 = vpack.c.b16 %v1153, %v1152
  %v1161 = vpack.c.b16 %v1155, %v1154
  %1168 = vmatpush.bf16.msra.mxu0 0
  %1169 = vmatpush.bf16.msra.mxu0 0
  %1170 = vmatpush.bf16.msra.mxu0 %v1161
  %1171 = vmatpush.bf16.msra.mxu0 %v1160
  %1172 = vmatpush.bf16.msra.mxu0 %v1159
  %1173 = vmatpush.bf16.msra.mxu0 %v1158
  %1174 = vmatpush.bf16.msra.mxu0 %v1157
  %1175 = vmatpush.bf16.msra.mxu0 %v1156
  %1176 = vmatmul.bf16.gmra.mxu0 %v397
  %v1177 = vpop.f32.mrf.mxu0
  %v1178 = vadd.f32 %v114, %v1177
  %v1179 = vpop.f32.mrf.mxu0
  %v1180 = vadd.f32 %v119, %v1179
  %1181 = vmatmul.bf16.gmra.mxu0 %v400
  %v1182 = vpop.f32.mrf.mxu0
  %v1183 = vadd.f32 %v124, %v1182
  %v1184 = vpop.f32.mrf.mxu0
  %v1185 = vadd.f32 %v129, %v1184
  %1186 = vmatmul.bf16.gmra.mxu0 %v403
  %v1187 = vpop.f32.mrf.mxu0
  %v1188 = vadd.f32 %v134, %v1187
  %v1189 = vpop.f32.mrf.mxu0
  %v1190 = vadd.f32 %v139, %v1189
  %1191 = vmatmul.bf16.gmra.mxu0 %v406
  %v1192 = vpop.f32.mrf.mxu0
  %v1193 = vadd.f32 %v144, %v1192
  %v1194 = vpop.f32.mrf.mxu0
  %v1195 = vadd.f32 %v149, %v1194
  %1196 = vmatmul.bf16.gmra.mxu0 %v409
  %v1197 = vpop.f32.mrf.mxu0
  %v1198 = vadd.f32 %v154, %v1197
  %v1199 = vpop.f32.mrf.mxu0
  %v1200 = vadd.f32 %v159, %v1199
  %1201 = vmatmul.bf16.gmra.mxu0 %v412
  %v1202 = vpop.f32.mrf.mxu0
  %v1203 = vadd.f32 %v164, %v1202
  %v1204 = vpop.f32.mrf.mxu0
  %v1205 = vadd.f32 %v169, %v1204
  %1206 = vmatmul.bf16.gmra.mxu0 %v415
  %v1207 = vpop.f32.mrf.mxu0
  %v1208 = vadd.f32 %v174, %v1207
  %v1209 = vpop.f32.mrf.mxu0
  %v1210 = vadd.f32 %v179, %v1209
  %1211 = vmatmul.bf16.gmra.mxu0 %v418
  %v1212 = vpop.f32.mrf.mxu0
  %v1213 = vadd.f32 %v184, %v1212
  %v1214 = vpop.f32.mrf.mxu0
  %v1215 = vadd.f32 %v189, %v1214
  %1216 = vmatmul.bf16.gmra.mxu0 %v421
  %v1217 = vpop.f32.mrf.mxu0
  %v1218 = vadd.f32 %v194, %v1217
  %v1219 = vpop.f32.mrf.mxu0
  %v1220 = vadd.f32 %v199, %v1219
  %1221 = vmatmul.bf16.gmra.mxu0 %v424
  %v1222 = vpop.f32.mrf.mxu0
  %v1223 = vadd.f32 %v204, %v1222
  %v1224 = vpop.f32.mrf.mxu0
  %v1225 = vadd.f32 %v209, %v1224
  %1226 = vmatmul.bf16.gmra.mxu0 %v427
  %v1227 = vpop.f32.mrf.mxu0
  %v1228 = vadd.f32 %v214, %v1227
  %v1229 = vpop.f32.mrf.mxu0
  %v1230 = vadd.f32 %v219, %v1229
  %1231 = vmatmul.bf16.gmra.mxu0 %v430
  %v1232 = vpop.f32.mrf.mxu0
  %v1233 = vadd.f32 %v224, %v1232
  %v1234 = vpop.f32.mrf.mxu0
  %v1235 = vadd.f32 %v229, %v1234
  %1236 = vmatmul.bf16.gmra.mxu0 %v433
  %v1237 = vpop.f32.mrf.mxu0
  %v1238 = vadd.f32 %v234, %v1237
  %v1239 = vpop.f32.mrf.mxu0
  %v1240 = vadd.f32 %v239, %v1239
  %1241 = vmatmul.bf16.gmra.mxu0 %v436
  %v1242 = vpop.f32.mrf.mxu0
  %v1243 = vadd.f32 %v244, %v1242
  %v1244 = vpop.f32.mrf.mxu0
  %v1245 = vadd.f32 %v249, %v1244
  %1246 = vmatmul.bf16.gmra.mxu0 %v439
  %v1247 = vpop.f32.mrf.mxu0
  %v1248 = vadd.f32 %v254, %v1247
  %v1249 = vpop.f32.mrf.mxu0
  %v1250 = vadd.f32 %v259, %v1249
  %1251 = vmatmul.bf16.gmra.mxu0 %v442
  %v1252 = vpop.f32.mrf.mxu0
  %v1253 = vadd.f32 %v264, %v1252
  %v1254 = vpop.f32.mrf.mxu0
  %v1255 = vadd.f32 %v269, %v1254
  %1256 = vmatmul.bf16.gmra.mxu0 %v445
  %v1257 = vpop.f32.mrf.mxu0
  %v1258 = vadd.f32 %v274, %v1257
  %v1259 = vpop.f32.mrf.mxu0
  %1260 = vdwg.mxu0
  %v1261 = vmax.f32 %v1178, 0.0
  %v1262 = vmax.f32 %v1180, 0.0
  %v1263 = vmax.f32 %v1183, 0.0
  %v1264 = vmax.f32 %v1185, 0.0
  %v1265 = vmax.f32 %v1188, 0.0
  %v1266 = vmax.f32 %v1190, 0.0
  %v1267 = vmax.f32 %v1193, 0.0
  %v1268 = vmax.f32 %v1195, 0.0
  %v1269 = vmax.f32 %v1198, 0.0
  %v1270 = vmax.f32 %v1200, 0.0
  %v1271 = vmax.f32 %v1203, 0.0
  %v1272 = vmax.f32 %v1205, 0.0
  %v1273 = vmax.f32 %v1208, 0.0
  %v1274 = vmax.f32 %v1210, 0.0
  %v1275 = vmax.f32 %v1213, 0.0
  %v1276 = vmax.f32 %v1215, 0.0
  %v1277 = vmax.f32 %v1218, 0.0
  %v1278 = vmax.f32 %v1220, 0.0
  %v1279 = vmax.f32 %v1223, 0.0
  %v1280 = vmax.f32 %v1225, 0.0
  %v1281 = vmax.f32 %v1228, 0.0
  %v1282 = vmax.f32 %v1230, 0.0
  %v1283 = vmax.f32 %v1233, 0.0
  %v1284 = vmax.f32 %v1235, 0.0
  %v1285 = vmax.f32 %v1238, 0.0
  %v1286 = vmax.f32 %v1240, 0.0
  %v1287 = vmax.f32 %v1243, 0.0
  %v1288 = vmax.f32 %v1245, 0.0
  %v1289 = vmax.f32 %v1248, 0.0
  %v1290 = vmax.f32 %v1250, 0.0
  %v1291 = vmax.f32 %v1253, 0.0
  %v1292 = vmax.f32 %v1255, 0.0
  %v1293 = vmax.f32 %v1258, 0.0
  %v1294 = vpack.c.bf16 %v1262, %v1261
  %v1295 = vpack.c.bf16 %v1264, %v1263
  %v1296 = vpack.c.bf16 %v1266, %v1265
  %v1297 = vpack.c.bf16 %v1268, %v1267
  %v1298 = vpack.c.bf16 %v1270, %v1269
  %v1299 = vpack.c.bf16 %v1272, %v1271
  %v1300 = vpack.c.bf16 %v1274, %v1273
  %v1301 = vpack.c.bf16 %v1276, %v1275
  %v1302 = vpack.c.bf16 %v1278, %v1277
  %v1303 = vpack.c.bf16 %v1280, %v1279
  %v1304 = vpack.c.bf16 %v1282, %v1281
  %v1305 = vpack.c.bf16 %v1284, %v1283
  %v1306 = vpack.c.bf16 %v1286, %v1285
  %v1307 = vpack.c.bf16 %v1288, %v1287
  %v1308 = vpack.c.bf16 %v1290, %v1289
  %v1309 = vpack.c.bf16 %v1292, %v1291
  %v1310 = vpack.c.bf16 %v1293, %v1293
  %s1311 = scalar_lea.vmem %s3, 168
  %v1312 = vld [vmem:[%s1311] sm:$0xff]
  %v1313 = vld [vmem:[%s1311 + $0x8] sm:$0xf]
  %v1314 = vld [vmem:[%s1311 + $0xc] sm:$0xff]
  %v1315 = vld [vmem:[%s1311 + $0x14] sm:$0xf]
  %v1316 = vld [vmem:[%s1311 + $0x18] sm:$0xff]
  %v1317 = vld [vmem:[%s1311 + $0x20] sm:$0xf]
  %v1318 = vld [vmem:[%s1311 + $0x24] sm:$0xff]
  %v1319 = vld [vmem:[%s1311 + $0x2c] sm:$0xf]
  %v1320 = vld [vmem:[%s1311 + $0x30] sm:$0xff]
  %v1321 = vld [vmem:[%s1311 + $0x38] sm:$0xf]
  %v1322 = vld [vmem:[%s1311 + $0x3c] sm:$0xff]
  %v1323 = vld [vmem:[%s1311 + $0x44] sm:$0xf]
  %v1324 = vld [vmem:[%s1311 + $0x48] sm:$0x11]
  %v1325 = vld [vmem:[%s1311 + $0x50] sm:$0x1]
  %v1340 = vunpack.c.l.b16 %v1312
  %v1341 = vunpack.c.h.b16 %v1312
  %v1342 = vunpack.c.l.b16 %v1313
  %v1343 = vunpack.c.l.b16 %v1314
  %v1344 = vunpack.c.h.b16 %v1314
  %v1345 = vunpack.c.l.b16 %v1315
  %v1346 = vunpack.c.l.b16 %v1316
  %v1347 = vunpack.c.h.b16 %v1316
  %v1348 = vunpack.c.l.b16 %v1317
  %v1349 = vunpack.c.l.b16 %v1318
  %v1350 = vunpack.c.h.b16 %v1318
  %v1351 = vunpack.c.l.b16 %v1319
  %v1352 = vunpack.c.l.b16 %v1320
  %v1353 = vunpack.c.h.b16 %v1320
  %v1354 = vunpack.c.l.b16 %v1321
  %v1355 = vunpack.c.l.b16 %v1322
  %v1356 = vunpack.c.h.b16 %v1322
  %v1357 = vunpack.c.l.b16 %v1323
  %v1358 = vunpack.c.l.b16 %v1324
  %v1359 = vunpack.c.h.b16 %v1324
  %v1360 = vunpack.c.l.b16 %v1325
  %v1361 = vpack.c.b16 %v1343, %v1340
  %v1362 = vpack.c.b16 %v1344, %v1341
  %v1363 = vpack.c.b16 %v1345, %v1342
  %v1364 = vpack.c.b16 %v1349, %v1346
  %v1365 = vpack.c.b16 %v1350, %v1347
  %v1366 = vpack.c.b16 %v1351, %v1348
  %v1367 = vpack.c.b16 %v1355, %v1352
  %v1368 = vpack.c.b16 %v1356, %v1353
  %v1369 = vpack.c.b16 %v1357, %v1354
  %v1370 = vpack.c.b16 %v1358, %v1358
  %v1371 = vpack.c.b16 %v1359, %v1359
  %v1372 = vpack.c.b16 %v1360, %v1360
  %v1382 = vsel %vm865, %v1363, 0
  %v1385 = vsel %vm865, %v1366, 0
  %v1388 = vsel %vm865, %v1369, 0
  %v1391 = vsel %vm865, %v1372, 0
  %v1394 = vsel %vm878, %v1310, 0
  %1396 = vmatpush.bf16.msra.mxu0 %v1301
  %1397 = vmatpush.bf16.msra.mxu0 %v1300
  %1398 = vmatpush.bf16.msra.mxu0 %v1299
  %1399 = vmatpush.bf16.msra.mxu0 %v1298
  %1400 = vmatpush.bf16.msra.mxu0 %v1297
  %1401 = vmatpush.bf16.msra.mxu0 %v1296
  %1402 = vmatpush.bf16.msra.mxu0 %v1295
  %1403 = vmatpush.bf16.msra.mxu0 %v1294
  %1404 = vmatmul.bf16.gmra.mxu0 %v1361
  %v1405 = vpop.f32.mrf.mxu0
  %v1406 = vadd.f32 0.0, %v1405
  %v1407 = vpop.f32.mrf.mxu0
  %v1408 = vadd.f32 0.0, %v1407
  %1409 = vmatmul.bf16.gmra.mxu0 %v1364
  %v1410 = vpop.f32.mrf.mxu0
  %v1411 = vadd.f32 0.0, %v1410
  %v1412 = vpop.f32.mrf.mxu0
  %v1413 = vadd.f32 0.0, %v1412
  %1414 = vmatmul.bf16.gmra.mxu0 %v1367
  %v1415 = vpop.f32.mrf.mxu0
  %v1416 = vadd.f32 0.0, %v1415
  %v1417 = vpop.f32.mrf.mxu0
  %v1418 = vadd.f32 0.0, %v1417
  %1419 = vmatmul.bf16.gmra.mxu0 %v1370
  %v1420 = vpop.f32.mrf.mxu0
  %v1421 = vadd.f32 0.0, %v1420
  %v1422 = vpop.f32.mrf.mxu0
  %1423 = vdwg.mxu0
  %1424 = vmatpush.bf16.msra.mxu0 %v1309
  %1425 = vmatpush.bf16.msra.mxu0 %v1308
  %1426 = vmatpush.bf16.msra.mxu0 %v1307
  %1427 = vmatpush.bf16.msra.mxu0 %v1306
  %1428 = vmatpush.bf16.msra.mxu0 %v1305
  %1429 = vmatpush.bf16.msra.mxu0 %v1304
  %1430 = vmatpush.bf16.msra.mxu0 %v1303
  %1431 = vmatpush.bf16.msra.mxu0 %v1302
  %1432 = vmatmul.bf16.gmra.mxu0 %v1362
  %v1433 = vpop.f32.mrf.mxu0
  %v1434 = vadd.f32 %v1406, %v1433
  %v1435 = vpop.f32.mrf.mxu0
  %v1436 = vadd.f32 %v1408, %v1435
  %1437 = vmatmul.bf16.gmra.mxu0 %v1365
  %v1438 = vpop.f32.mrf.mxu0
  %v1439 = vadd.f32 %v1411, %v1438
  %v1440 = vpop.f32.mrf.mxu0
  %v1441 = vadd.f32 %v1413, %v1440
  %1442 = vmatmul.bf16.gmra.mxu0 %v1368
  %v1443 = vpop.f32.mrf.mxu0
  %v1444 = vadd.f32 %v1416, %v1443
  %v1445 = vpop.f32.mrf.mxu0
  %v1446 = vadd.f32 %v1418, %v1445
  %1447 = vmatmul.bf16.gmra.mxu0 %v1371
  %v1448 = vpop.f32.mrf.mxu0
  %v1449 = vadd.f32 %v1421, %v1448
  %v1450 = vpop.f32.mrf.mxu0
  %1451 = vdwg.mxu0
  %1452 = vmatpush.bf16.msra.mxu0 0
  %1453 = vmatpush.bf16.msra.mxu0 0
  %1454 = vmatpush.bf16.msra.mxu0 0
  %1455 = vmatpush.bf16.msra.mxu0 0
  %1456 = vmatpush.bf16.msra.mxu0 0
  %1457 = vmatpush.bf16.msra.mxu0 0
  %1458 = vmatpush.bf16.msra.mxu0 0
  %1459 = vmatpush.bf16.msra.mxu0 %v1394
  %1460 = vmatmul.bf16.gmra.mxu0 %v1382
  %v1461 = vpop.f32.mrf.mxu0
  %v1462 = vadd.f32 %v1434, %v1461
  %v1463 = vpop.f32.mrf.mxu0
  %v1464 = vadd.f32 %v1436, %v1463
  %1465 = vmatmul.bf16.gmra.mxu0 %v1385
  %v1466 = vpop.f32.mrf.mxu0
  %v1467 = vadd.f32 %v1439, %v1466
  %v1468 = vpop.f32.mrf.mxu0
  %v1469 = vadd.f32 %v1441, %v1468
  %1470 = vmatmul.bf16.gmra.mxu0 %v1388
  %v1471 = vpop.f32.mrf.mxu0
  %v1472 = vadd.f32 %v1444, %v1471
  %v1473 = vpop.f32.mrf.mxu0
  %v1474 = vadd.f32 %v1446, %v1473
  %1475 = vmatmul.bf16.gmra.mxu0 %v1391
  %v1476 = vpop.f32.mrf.mxu0
  %v1477 = vadd.f32 %v1449, %v1476
  %v1478 = vpop.f32.mrf.mxu0
  %1479 = vdwg.mxu0
  %v1480 = vadd.f32 %v1102, %v1462
  %v1481 = vadd.f32 %v1104, %v1464
  %v1482 = vadd.f32 %v1107, %v1467
  %v1483 = vadd.f32 %v1109, %v1469
  %v1484 = vadd.f32 %v1112, %v1472
  %v1485 = vadd.f32 %v1114, %v1474
  %v1486 = vadd.f32 %v1117, %v1477
  %v1487 = vld [vmem:[%s0 + $0x30] sm:$0xf]
  %v1488 = vld [vmem:[%s0 + $0x34] sm:$0xf]
  %v1489 = vld [vmem:[%s0 + $0x38] sm:$0xf]
  %v1490 = vld [vmem:[%s0 + $0x3c] sm:$0xf]
  %v1491 = vld [vmem:[%s0 + $0x40] sm:$0xf]
  %v1492 = vld [vmem:[%s0 + $0x44] sm:$0xf]
  %v1493 = vld [vmem:[%s0 + $0x48] sm:$0xf]
  %v1494 = vld [vmem:[%s0 + $0x4c] sm:$0xf]
  %v1495 = vld [vmem:[%s0 + $0x50] sm:$0xf]
  %v1496 = vld [vmem:[%s0 + $0x54] sm:$0xf]
  %v1497 = vld [vmem:[%s0 + $0x58] sm:$0xf]
  %v1498 = vld [vmem:[%s0 + $0x5c] sm:$0xf]
  %v1511 = vunpack.c.l.b16 %v1487
  %v1512 = vunpack.c.l.b16 %v1488
  %v1513 = vunpack.c.l.b16 %v1489
  %v1514 = vunpack.c.l.b16 %v1490
  %v1515 = vunpack.c.l.b16 %v1491
  %v1516 = vunpack.c.l.b16 %v1492
  %v1517 = vunpack.c.l.b16 %v1493
  %v1518 = vunpack.c.l.b16 %v1494
  %v1519 = vunpack.c.l.b16 %v1495
  %v1520 = vunpack.c.l.b16 %v1496
  %v1521 = vunpack.c.l.b16 %v1497
  %v1522 = vunpack.c.l.b16 %v1498
  %v1523 = vpack.c.b16 %v1512, %v1511
  %v1524 = vpack.c.b16 %v1514, %v1513
  %v1525 = vpack.c.b16 %v1516, %v1515
  %v1526 = vpack.c.b16 %v1518, %v1517
  %v1527 = vpack.c.b16 %v1520, %v1519
  %v1528 = vpack.c.b16 %v1522, %v1521
  %1535 = vmatpush.bf16.msra.mxu0 0
  %1536 = vmatpush.bf16.msra.mxu0 0
  %1537 = vmatpush.bf16.msra.mxu0 %v1528
  %1538 = vmatpush.bf16.msra.mxu0 %v1527
  %1539 = vmatpush.bf16.msra.mxu0 %v1526
  %1540 = vmatpush.bf16.msra.mxu0 %v1525
  %1541 = vmatpush.bf16.msra.mxu0 %v1524
  %1542 = vmatpush.bf16.msra.mxu0 %v1523
  %1543 = vmatmul.bf16.gmra.mxu0 %v397
  %v1544 = vpop.f32.mrf.mxu0
  %v1545 = vadd.f32 %v114, %v1544
  %v1546 = vpop.f32.mrf.mxu0
  %v1547 = vadd.f32 %v119, %v1546
  %1548 = vmatmul.bf16.gmra.mxu0 %v400
  %v1549 = vpop.f32.mrf.mxu0
  %v1550 = vadd.f32 %v124, %v1549
  %v1551 = vpop.f32.mrf.mxu0
  %v1552 = vadd.f32 %v129, %v1551
  %1553 = vmatmul.bf16.gmra.mxu0 %v403
  %v1554 = vpop.f32.mrf.mxu0
  %v1555 = vadd.f32 %v134, %v1554
  %v1556 = vpop.f32.mrf.mxu0
  %v1557 = vadd.f32 %v139, %v1556
  %1558 = vmatmul.bf16.gmra.mxu0 %v406
  %v1559 = vpop.f32.mrf.mxu0
  %v1560 = vadd.f32 %v144, %v1559
  %v1561 = vpop.f32.mrf.mxu0
  %v1562 = vadd.f32 %v149, %v1561
  %1563 = vmatmul.bf16.gmra.mxu0 %v409
  %v1564 = vpop.f32.mrf.mxu0
  %v1565 = vadd.f32 %v154, %v1564
  %v1566 = vpop.f32.mrf.mxu0
  %v1567 = vadd.f32 %v159, %v1566
  %1568 = vmatmul.bf16.gmra.mxu0 %v412
  %v1569 = vpop.f32.mrf.mxu0
  %v1570 = vadd.f32 %v164, %v1569
  %v1571 = vpop.f32.mrf.mxu0
  %v1572 = vadd.f32 %v169, %v1571
  %1573 = vmatmul.bf16.gmra.mxu0 %v415
  %v1574 = vpop.f32.mrf.mxu0
  %v1575 = vadd.f32 %v174, %v1574
  %v1576 = vpop.f32.mrf.mxu0
  %v1577 = vadd.f32 %v179, %v1576
  %1578 = vmatmul.bf16.gmra.mxu0 %v418
  %v1579 = vpop.f32.mrf.mxu0
  %v1580 = vadd.f32 %v184, %v1579
  %v1581 = vpop.f32.mrf.mxu0
  %v1582 = vadd.f32 %v189, %v1581
  %1583 = vmatmul.bf16.gmra.mxu0 %v421
  %v1584 = vpop.f32.mrf.mxu0
  %v1585 = vadd.f32 %v194, %v1584
  %v1586 = vpop.f32.mrf.mxu0
  %v1587 = vadd.f32 %v199, %v1586
  %1588 = vmatmul.bf16.gmra.mxu0 %v424
  %v1589 = vpop.f32.mrf.mxu0
  %v1590 = vadd.f32 %v204, %v1589
  %v1591 = vpop.f32.mrf.mxu0
  %v1592 = vadd.f32 %v209, %v1591
  %1593 = vmatmul.bf16.gmra.mxu0 %v427
  %v1594 = vpop.f32.mrf.mxu0
  %v1595 = vadd.f32 %v214, %v1594
  %v1596 = vpop.f32.mrf.mxu0
  %v1597 = vadd.f32 %v219, %v1596
  %1598 = vmatmul.bf16.gmra.mxu0 %v430
  %v1599 = vpop.f32.mrf.mxu0
  %v1600 = vadd.f32 %v224, %v1599
  %v1601 = vpop.f32.mrf.mxu0
  %v1602 = vadd.f32 %v229, %v1601
  %1603 = vmatmul.bf16.gmra.mxu0 %v433
  %v1604 = vpop.f32.mrf.mxu0
  %v1605 = vadd.f32 %v234, %v1604
  %v1606 = vpop.f32.mrf.mxu0
  %v1607 = vadd.f32 %v239, %v1606
  %1608 = vmatmul.bf16.gmra.mxu0 %v436
  %v1609 = vpop.f32.mrf.mxu0
  %v1610 = vadd.f32 %v244, %v1609
  %v1611 = vpop.f32.mrf.mxu0
  %v1612 = vadd.f32 %v249, %v1611
  %1613 = vmatmul.bf16.gmra.mxu0 %v439
  %v1614 = vpop.f32.mrf.mxu0
  %v1615 = vadd.f32 %v254, %v1614
  %v1616 = vpop.f32.mrf.mxu0
  %v1617 = vadd.f32 %v259, %v1616
  %1618 = vmatmul.bf16.gmra.mxu0 %v442
  %v1619 = vpop.f32.mrf.mxu0
  %v1620 = vadd.f32 %v264, %v1619
  %v1621 = vpop.f32.mrf.mxu0
  %v1622 = vadd.f32 %v269, %v1621
  %1623 = vmatmul.bf16.gmra.mxu0 %v445
  %v1624 = vpop.f32.mrf.mxu0
  %v1625 = vadd.f32 %v274, %v1624
  %v1626 = vpop.f32.mrf.mxu0
  %1627 = vdwg.mxu0
  %v1628 = vmax.f32 %v1545, 0.0
  %v1629 = vmax.f32 %v1547, 0.0
  %v1630 = vmax.f32 %v1550, 0.0
  %v1631 = vmax.f32 %v1552, 0.0
  %v1632 = vmax.f32 %v1555, 0.0
  %v1633 = vmax.f32 %v1557, 0.0
  %v1634 = vmax.f32 %v1560, 0.0
  %v1635 = vmax.f32 %v1562, 0.0
  %v1636 = vmax.f32 %v1565, 0.0
  %v1637 = vmax.f32 %v1567, 0.0
  %v1638 = vmax.f32 %v1570, 0.0
  %v1639 = vmax.f32 %v1572, 0.0
  %v1640 = vmax.f32 %v1575, 0.0
  %v1641 = vmax.f32 %v1577, 0.0
  %v1642 = vmax.f32 %v1580, 0.0
  %v1643 = vmax.f32 %v1582, 0.0
  %v1644 = vmax.f32 %v1585, 0.0
  %v1645 = vmax.f32 %v1587, 0.0
  %v1646 = vmax.f32 %v1590, 0.0
  %v1647 = vmax.f32 %v1592, 0.0
  %v1648 = vmax.f32 %v1595, 0.0
  %v1649 = vmax.f32 %v1597, 0.0
  %v1650 = vmax.f32 %v1600, 0.0
  %v1651 = vmax.f32 %v1602, 0.0
  %v1652 = vmax.f32 %v1605, 0.0
  %v1653 = vmax.f32 %v1607, 0.0
  %v1654 = vmax.f32 %v1610, 0.0
  %v1655 = vmax.f32 %v1612, 0.0
  %v1656 = vmax.f32 %v1615, 0.0
  %v1657 = vmax.f32 %v1617, 0.0
  %v1658 = vmax.f32 %v1620, 0.0
  %v1659 = vmax.f32 %v1622, 0.0
  %v1660 = vmax.f32 %v1625, 0.0
  %v1661 = vpack.c.bf16 %v1629, %v1628
  %v1662 = vpack.c.bf16 %v1631, %v1630
  %v1663 = vpack.c.bf16 %v1633, %v1632
  %v1664 = vpack.c.bf16 %v1635, %v1634
  %v1665 = vpack.c.bf16 %v1637, %v1636
  %v1666 = vpack.c.bf16 %v1639, %v1638
  %v1667 = vpack.c.bf16 %v1641, %v1640
  %v1668 = vpack.c.bf16 %v1643, %v1642
  %v1669 = vpack.c.bf16 %v1645, %v1644
  %v1670 = vpack.c.bf16 %v1647, %v1646
  %v1671 = vpack.c.bf16 %v1649, %v1648
  %v1672 = vpack.c.bf16 %v1651, %v1650
  %v1673 = vpack.c.bf16 %v1653, %v1652
  %v1674 = vpack.c.bf16 %v1655, %v1654
  %v1675 = vpack.c.bf16 %v1657, %v1656
  %v1676 = vpack.c.bf16 %v1659, %v1658
  %v1677 = vpack.c.bf16 %v1660, %v1660
  %s1678 = scalar_lea.vmem %s3, 252
  %v1679 = vld [vmem:[%s1678] sm:$0xff]
  %v1680 = vld [vmem:[%s1678 + $0x8] sm:$0xf]
  %v1681 = vld [vmem:[%s1678 + $0xc] sm:$0xff]
  %v1682 = vld [vmem:[%s1678 + $0x14] sm:$0xf]
  %v1683 = vld [vmem:[%s1678 + $0x18] sm:$0xff]
  %v1684 = vld [vmem:[%s1678 + $0x20] sm:$0xf]
  %v1685 = vld [vmem:[%s1678 + $0x24] sm:$0xff]
  %v1686 = vld [vmem:[%s1678 + $0x2c] sm:$0xf]
  %v1687 = vld [vmem:[%s1678 + $0x30] sm:$0xff]
  %v1688 = vld [vmem:[%s1678 + $0x38] sm:$0xf]
  %v1689 = vld [vmem:[%s1678 + $0x3c] sm:$0xff]
  %v1690 = vld [vmem:[%s1678 + $0x44] sm:$0xf]
  %v1691 = vld [vmem:[%s1678 + $0x48] sm:$0x11]
  %v1692 = vld [vmem:[%s1678 + $0x50] sm:$0x1]
  %v1707 = vunpack.c.l.b16 %v1679
  %v1708 = vunpack.c.h.b16 %v1679
  %v1709 = vunpack.c.l.b16 %v1680
  %v1710 = vunpack.c.l.b16 %v1681
  %v1711 = vunpack.c.h.b16 %v1681
  %v1712 = vunpack.c.l.b16 %v1682
  %v1713 = vunpack.c.l.b16 %v1683
  %v1714 = vunpack.c.h.b16 %v1683
  %v1715 = vunpack.c.l.b16 %v1684
  %v1716 = vunpack.c.l.b16 %v1685
  %v1717 = vunpack.c.h.b16 %v1685
  %v1718 = vunpack.c.l.b16 %v1686
  %v1719 = vunpack.c.l.b16 %v1687
  %v1720 = vunpack.c.h.b16 %v1687
  %v1721 = vunpack.c.l.b16 %v1688
  %v1722 = vunpack.c.l.b16 %v1689
  %v1723 = vunpack.c.h.b16 %v1689
  %v1724 = vunpack.c.l.b16 %v1690
  %v1725 = vunpack.c.l.b16 %v1691
  %v1726 = vunpack.c.h.b16 %v1691
  %v1727 = vunpack.c.l.b16 %v1692
  %v1728 = vpack.c.b16 %v1710, %v1707
  %v1729 = vpack.c.b16 %v1711, %v1708
  %v1730 = vpack.c.b16 %v1712, %v1709
  %v1731 = vpack.c.b16 %v1716, %v1713
  %v1732 = vpack.c.b16 %v1717, %v1714
  %v1733 = vpack.c.b16 %v1718, %v1715
  %v1734 = vpack.c.b16 %v1722, %v1719
  %v1735 = vpack.c.b16 %v1723, %v1720
  %v1736 = vpack.c.b16 %v1724, %v1721
  %v1737 = vpack.c.b16 %v1725, %v1725
  %v1738 = vpack.c.b16 %v1726, %v1726
  %v1739 = vpack.c.b16 %v1727, %v1727
  %v1749 = vsel %vm865, %v1730, 0
  %v1752 = vsel %vm865, %v1733, 0
  %v1755 = vsel %vm865, %v1736, 0
  %v1758 = vsel %vm865, %v1739, 0
  %v1761 = vsel %vm878, %v1677, 0
  %1763 = vmatpush.bf16.msra.mxu0 %v1668
  %1764 = vmatpush.bf16.msra.mxu0 %v1667
  %1765 = vmatpush.bf16.msra.mxu0 %v1666
  %1766 = vmatpush.bf16.msra.mxu0 %v1665
  %1767 = vmatpush.bf16.msra.mxu0 %v1664
  %1768 = vmatpush.bf16.msra.mxu0 %v1663
  %1769 = vmatpush.bf16.msra.mxu0 %v1662
  %1770 = vmatpush.bf16.msra.mxu0 %v1661
  %1771 = vmatmul.bf16.gmra.mxu0 %v1728
  %v1772 = vpop.f32.mrf.mxu0
  %v1773 = vadd.f32 0.0, %v1772
  %v1774 = vpop.f32.mrf.mxu0
  %v1775 = vadd.f32 0.0, %v1774
  %1776 = vmatmul.bf16.gmra.mxu0 %v1731
  %v1777 = vpop.f32.mrf.mxu0
  %v1778 = vadd.f32 0.0, %v1777
  %v1779 = vpop.f32.mrf.mxu0
  %v1780 = vadd.f32 0.0, %v1779
  %1781 = vmatmul.bf16.gmra.mxu0 %v1734
  %v1782 = vpop.f32.mrf.mxu0
  %v1783 = vadd.f32 0.0, %v1782
  %v1784 = vpop.f32.mrf.mxu0
  %v1785 = vadd.f32 0.0, %v1784
  %1786 = vmatmul.bf16.gmra.mxu0 %v1737
  %v1787 = vpop.f32.mrf.mxu0
  %v1788 = vadd.f32 0.0, %v1787
  %v1789 = vpop.f32.mrf.mxu0
  %1790 = vdwg.mxu0
  %1791 = vmatpush.bf16.msra.mxu0 %v1676
  %1792 = vmatpush.bf16.msra.mxu0 %v1675
  %1793 = vmatpush.bf16.msra.mxu0 %v1674
  %1794 = vmatpush.bf16.msra.mxu0 %v1673
  %1795 = vmatpush.bf16.msra.mxu0 %v1672
  %1796 = vmatpush.bf16.msra.mxu0 %v1671
  %1797 = vmatpush.bf16.msra.mxu0 %v1670
  %1798 = vmatpush.bf16.msra.mxu0 %v1669
  %1799 = vmatmul.bf16.gmra.mxu0 %v1729
  %v1800 = vpop.f32.mrf.mxu0
  %v1801 = vadd.f32 %v1773, %v1800
  %v1802 = vpop.f32.mrf.mxu0
  %v1803 = vadd.f32 %v1775, %v1802
  %1804 = vmatmul.bf16.gmra.mxu0 %v1732
  %v1805 = vpop.f32.mrf.mxu0
  %v1806 = vadd.f32 %v1778, %v1805
  %v1807 = vpop.f32.mrf.mxu0
  %v1808 = vadd.f32 %v1780, %v1807
  %1809 = vmatmul.bf16.gmra.mxu0 %v1735
  %v1810 = vpop.f32.mrf.mxu0
  %v1811 = vadd.f32 %v1783, %v1810
  %v1812 = vpop.f32.mrf.mxu0
  %v1813 = vadd.f32 %v1785, %v1812
  %1814 = vmatmul.bf16.gmra.mxu0 %v1738
  %v1815 = vpop.f32.mrf.mxu0
  %v1816 = vadd.f32 %v1788, %v1815
  %v1817 = vpop.f32.mrf.mxu0
  %1818 = vdwg.mxu0
  %1819 = vmatpush.bf16.msra.mxu0 0
  %1820 = vmatpush.bf16.msra.mxu0 0
  %1821 = vmatpush.bf16.msra.mxu0 0
  %1822 = vmatpush.bf16.msra.mxu0 0
  %1823 = vmatpush.bf16.msra.mxu0 0
  %1824 = vmatpush.bf16.msra.mxu0 0
  %1825 = vmatpush.bf16.msra.mxu0 0
  %1826 = vmatpush.bf16.msra.mxu0 %v1761
  %1827 = vmatmul.bf16.gmra.mxu0 %v1749
  %v1828 = vpop.f32.mrf.mxu0
  %v1829 = vadd.f32 %v1801, %v1828
  %v1830 = vpop.f32.mrf.mxu0
  %v1831 = vadd.f32 %v1803, %v1830
  %1832 = vmatmul.bf16.gmra.mxu0 %v1752
  %v1833 = vpop.f32.mrf.mxu0
  %v1834 = vadd.f32 %v1806, %v1833
  %v1835 = vpop.f32.mrf.mxu0
  %v1836 = vadd.f32 %v1808, %v1835
  %1837 = vmatmul.bf16.gmra.mxu0 %v1755
  %v1838 = vpop.f32.mrf.mxu0
  %v1839 = vadd.f32 %v1811, %v1838
  %v1840 = vpop.f32.mrf.mxu0
  %v1841 = vadd.f32 %v1813, %v1840
  %1842 = vmatmul.bf16.gmra.mxu0 %v1758
  %v1843 = vpop.f32.mrf.mxu0
  %v1844 = vadd.f32 %v1816, %v1843
  %v1845 = vpop.f32.mrf.mxu0
  %1846 = vdwg.mxu0
  %v1847 = vadd.f32 %v1480, %v1829
  %v1848 = vadd.f32 %v1481, %v1831
  %v1849 = vadd.f32 %v1482, %v1834
  %v1850 = vadd.f32 %v1483, %v1836
  %v1851 = vadd.f32 %v1484, %v1839
  %v1852 = vadd.f32 %v1485, %v1841
  %v1853 = vadd.f32 %v1486, %v1844
  %v1854 = vld [vmem:[%s0 + $0x40] sm:$0xf]
  %v1855 = vld [vmem:[%s0 + $0x44] sm:$0xf]
  %v1856 = vld [vmem:[%s0 + $0x48] sm:$0xf]
  %v1857 = vld [vmem:[%s0 + $0x4c] sm:$0xf]
  %v1858 = vld [vmem:[%s0 + $0x50] sm:$0xf]
  %v1859 = vld [vmem:[%s0 + $0x54] sm:$0xf]
  %v1860 = vld [vmem:[%s0 + $0x58] sm:$0xf]
  %v1861 = vld [vmem:[%s0 + $0x5c] sm:$0xf]
  %v1862 = vld [vmem:[%s0 + $0x60] sm:$0xf]
  %v1863 = vld [vmem:[%s0 + $0x64] sm:$0xf]
  %v1864 = vld [vmem:[%s0 + $0x68] sm:$0xf]
  %v1865 = vld [vmem:[%s0 + $0x6c] sm:$0xf]
  %v1878 = vunpack.c.l.b16 %v1854
  %v1879 = vunpack.c.l.b16 %v1855
  %v1880 = vunpack.c.l.b16 %v1856
  %v1881 = vunpack.c.l.b16 %v1857
  %v1882 = vunpack.c.l.b16 %v1858
  %v1883 = vunpack.c.l.b16 %v1859
  %v1884 = vunpack.c.l.b16 %v1860
  %v1885 = vunpack.c.l.b16 %v1861
  %v1886 = vunpack.c.l.b16 %v1862
  %v1887 = vunpack.c.l.b16 %v1863
  %v1888 = vunpack.c.l.b16 %v1864
  %v1889 = vunpack.c.l.b16 %v1865
  %v1890 = vpack.c.b16 %v1879, %v1878
  %v1891 = vpack.c.b16 %v1881, %v1880
  %v1892 = vpack.c.b16 %v1883, %v1882
  %v1893 = vpack.c.b16 %v1885, %v1884
  %v1894 = vpack.c.b16 %v1887, %v1886
  %v1895 = vpack.c.b16 %v1889, %v1888
  %1902 = vmatpush.bf16.msra.mxu0 0
  %1903 = vmatpush.bf16.msra.mxu0 0
  %1904 = vmatpush.bf16.msra.mxu0 %v1895
  %1905 = vmatpush.bf16.msra.mxu0 %v1894
  %1906 = vmatpush.bf16.msra.mxu0 %v1893
  %1907 = vmatpush.bf16.msra.mxu0 %v1892
  %1908 = vmatpush.bf16.msra.mxu0 %v1891
  %1909 = vmatpush.bf16.msra.mxu0 %v1890
  %1910 = vmatmul.bf16.gmra.mxu0 %v397
  %v1911 = vpop.f32.mrf.mxu0
  %v1912 = vadd.f32 %v114, %v1911
  %v1913 = vpop.f32.mrf.mxu0
  %v1914 = vadd.f32 %v119, %v1913
  %1915 = vmatmul.bf16.gmra.mxu0 %v400
  %v1916 = vpop.f32.mrf.mxu0
  %v1917 = vadd.f32 %v124, %v1916
  %v1918 = vpop.f32.mrf.mxu0
  %v1919 = vadd.f32 %v129, %v1918
  %1920 = vmatmul.bf16.gmra.mxu0 %v403
  %v1921 = vpop.f32.mrf.mxu0
  %v1922 = vadd.f32 %v134, %v1921
  %v1923 = vpop.f32.mrf.mxu0
  %v1924 = vadd.f32 %v139, %v1923
  %1925 = vmatmul.bf16.gmra.mxu0 %v406
  %v1926 = vpop.f32.mrf.mxu0
  %v1927 = vadd.f32 %v144, %v1926
  %v1928 = vpop.f32.mrf.mxu0
  %v1929 = vadd.f32 %v149, %v1928
  %1930 = vmatmul.bf16.gmra.mxu0 %v409
  %v1931 = vpop.f32.mrf.mxu0
  %v1932 = vadd.f32 %v154, %v1931
  %v1933 = vpop.f32.mrf.mxu0
  %v1934 = vadd.f32 %v159, %v1933
  %1935 = vmatmul.bf16.gmra.mxu0 %v412
  %v1936 = vpop.f32.mrf.mxu0
  %v1937 = vadd.f32 %v164, %v1936
  %v1938 = vpop.f32.mrf.mxu0
  %v1939 = vadd.f32 %v169, %v1938
  %1940 = vmatmul.bf16.gmra.mxu0 %v415
  %v1941 = vpop.f32.mrf.mxu0
  %v1942 = vadd.f32 %v174, %v1941
  %v1943 = vpop.f32.mrf.mxu0
  %v1944 = vadd.f32 %v179, %v1943
  %1945 = vmatmul.bf16.gmra.mxu0 %v418
  %v1946 = vpop.f32.mrf.mxu0
  %v1947 = vadd.f32 %v184, %v1946
  %v1948 = vpop.f32.mrf.mxu0
  %v1949 = vadd.f32 %v189, %v1948
  %1950 = vmatmul.bf16.gmra.mxu0 %v421
  %v1951 = vpop.f32.mrf.mxu0
  %v1952 = vadd.f32 %v194, %v1951
  %v1953 = vpop.f32.mrf.mxu0
  %v1954 = vadd.f32 %v199, %v1953
  %1955 = vmatmul.bf16.gmra.mxu0 %v424
  %v1956 = vpop.f32.mrf.mxu0
  %v1957 = vadd.f32 %v204, %v1956
  %v1958 = vpop.f32.mrf.mxu0
  %v1959 = vadd.f32 %v209, %v1958
  %1960 = vmatmul.bf16.gmra.mxu0 %v427
  %v1961 = vpop.f32.mrf.mxu0
  %v1962 = vadd.f32 %v214, %v1961
  %v1963 = vpop.f32.mrf.mxu0
  %v1964 = vadd.f32 %v219, %v1963
  %1965 = vmatmul.bf16.gmra.mxu0 %v430
  %v1966 = vpop.f32.mrf.mxu0
  %v1967 = vadd.f32 %v224, %v1966
  %v1968 = vpop.f32.mrf.mxu0
  %v1969 = vadd.f32 %v229, %v1968
  %1970 = vmatmul.bf16.gmra.mxu0 %v433
  %v1971 = vpop.f32.mrf.mxu0
  %v1972 = vadd.f32 %v234, %v1971
  %v1973 = vpop.f32.mrf.mxu0
  %v1974 = vadd.f32 %v239, %v1973
  %1975 = vmatmul.bf16.gmra.mxu0 %v436
  %v1976 = vpop.f32.mrf.mxu0
  %v1977 = vadd.f32 %v244, %v1976
  %v1978 = vpop.f32.mrf.mxu0
  %v1979 = vadd.f32 %v249, %v1978
  %1980 = vmatmul.bf16.gmra.mxu0 %v439
  %v1981 = vpop.f32.mrf.mxu0
  %v1982 = vadd.f32 %v254, %v1981
  %v1983 = vpop.f32.mrf.mxu0
  %v1984 = vadd.f32 %v259, %v1983
  %1985 = vmatmul.bf16.gmra.mxu0 %v442
  %v1986 = vpop.f32.mrf.mxu0
  %v1987 = vadd.f32 %v264, %v1986
  %v1988 = vpop.f32.mrf.mxu0
  %v1989 = vadd.f32 %v269, %v1988
  %1990 = vmatmul.bf16.gmra.mxu0 %v445
  %v1991 = vpop.f32.mrf.mxu0
  %v1992 = vadd.f32 %v274, %v1991
  %v1993 = vpop.f32.mrf.mxu0
  %1994 = vdwg.mxu0
  %v1995 = vmax.f32 %v1912, 0.0
  %v1996 = vmax.f32 %v1914, 0.0
  %v1997 = vmax.f32 %v1917, 0.0
  %v1998 = vmax.f32 %v1919, 0.0
  %v1999 = vmax.f32 %v1922, 0.0
  %v2000 = vmax.f32 %v1924, 0.0
  %v2001 = vmax.f32 %v1927, 0.0
  %v2002 = vmax.f32 %v1929, 0.0
  %v2003 = vmax.f32 %v1932, 0.0
  %v2004 = vmax.f32 %v1934, 0.0
  %v2005 = vmax.f32 %v1937, 0.0
  %v2006 = vmax.f32 %v1939, 0.0
  %v2007 = vmax.f32 %v1942, 0.0
  %v2008 = vmax.f32 %v1944, 0.0
  %v2009 = vmax.f32 %v1947, 0.0
  %v2010 = vmax.f32 %v1949, 0.0
  %v2011 = vmax.f32 %v1952, 0.0
  %v2012 = vmax.f32 %v1954, 0.0
  %v2013 = vmax.f32 %v1957, 0.0
  %v2014 = vmax.f32 %v1959, 0.0
  %v2015 = vmax.f32 %v1962, 0.0
  %v2016 = vmax.f32 %v1964, 0.0
  %v2017 = vmax.f32 %v1967, 0.0
  %v2018 = vmax.f32 %v1969, 0.0
  %v2019 = vmax.f32 %v1972, 0.0
  %v2020 = vmax.f32 %v1974, 0.0
  %v2021 = vmax.f32 %v1977, 0.0
  %v2022 = vmax.f32 %v1979, 0.0
  %v2023 = vmax.f32 %v1982, 0.0
  %v2024 = vmax.f32 %v1984, 0.0
  %v2025 = vmax.f32 %v1987, 0.0
  %v2026 = vmax.f32 %v1989, 0.0
  %v2027 = vmax.f32 %v1992, 0.0
  %v2028 = vpack.c.bf16 %v1996, %v1995
  %v2029 = vpack.c.bf16 %v1998, %v1997
  %v2030 = vpack.c.bf16 %v2000, %v1999
  %v2031 = vpack.c.bf16 %v2002, %v2001
  %v2032 = vpack.c.bf16 %v2004, %v2003
  %v2033 = vpack.c.bf16 %v2006, %v2005
  %v2034 = vpack.c.bf16 %v2008, %v2007
  %v2035 = vpack.c.bf16 %v2010, %v2009
  %v2036 = vpack.c.bf16 %v2012, %v2011
  %v2037 = vpack.c.bf16 %v2014, %v2013
  %v2038 = vpack.c.bf16 %v2016, %v2015
  %v2039 = vpack.c.bf16 %v2018, %v2017
  %v2040 = vpack.c.bf16 %v2020, %v2019
  %v2041 = vpack.c.bf16 %v2022, %v2021
  %v2042 = vpack.c.bf16 %v2024, %v2023
  %v2043 = vpack.c.bf16 %v2026, %v2025
  %v2044 = vpack.c.bf16 %v2027, %v2027
  %s2045 = scalar_lea.vmem %s3, 336
  %v2046 = vld [vmem:[%s2045] sm:$0xff]
  %v2047 = vld [vmem:[%s2045 + $0x8] sm:$0xf]
  %v2048 = vld [vmem:[%s2045 + $0xc] sm:$0xff]
  %v2049 = vld [vmem:[%s2045 + $0x14] sm:$0xf]
  %v2050 = vld [vmem:[%s2045 + $0x18] sm:$0xff]
  %v2051 = vld [vmem:[%s2045 + $0x20] sm:$0xf]
  %v2052 = vld [vmem:[%s2045 + $0x24] sm:$0xff]
  %v2053 = vld [vmem:[%s2045 + $0x2c] sm:$0xf]
  %v2054 = vld [vmem:[%s2045 + $0x30] sm:$0xff]
  %v2055 = vld [vmem:[%s2045 + $0x38] sm:$0xf]
  %v2056 = vld [vmem:[%s2045 + $0x3c] sm:$0xff]
  %v2057 = vld [vmem:[%s2045 + $0x44] sm:$0xf]
  %v2058 = vld [vmem:[%s2045 + $0x48] sm:$0x11]
  %v2059 = vld [vmem:[%s2045 + $0x50] sm:$0x1]
  %v2074 = vunpack.c.l.b16 %v2046
  %v2075 = vunpack.c.h.b16 %v2046
  %v2076 = vunpack.c.l.b16 %v2047
  %v2077 = vunpack.c.l.b16 %v2048
  %v2078 = vunpack.c.h.b16 %v2048
  %v2079 = vunpack.c.l.b16 %v2049
  %v2080 = vunpack.c.l.b16 %v2050
  %v2081 = vunpack.c.h.b16 %v2050
  %v2082 = vunpack.c.l.b16 %v2051
  %v2083 = vunpack.c.l.b16 %v2052
  %v2084 = vunpack.c.h.b16 %v2052
  %v2085 = vunpack.c.l.b16 %v2053
  %v2086 = vunpack.c.l.b16 %v2054
  %v2087 = vunpack.c.h.b16 %v2054
  %v2088 = vunpack.c.l.b16 %v2055
  %v2089 = vunpack.c.l.b16 %v2056
  %v2090 = vunpack.c.h.b16 %v2056
  %v2091 = vunpack.c.l.b16 %v2057
  %v2092 = vunpack.c.l.b16 %v2058
  %v2093 = vunpack.c.h.b16 %v2058
  %v2094 = vunpack.c.l.b16 %v2059
  %v2095 = vpack.c.b16 %v2077, %v2074
  %v2096 = vpack.c.b16 %v2078, %v2075
  %v2097 = vpack.c.b16 %v2079, %v2076
  %v2098 = vpack.c.b16 %v2083, %v2080
  %v2099 = vpack.c.b16 %v2084, %v2081
  %v2100 = vpack.c.b16 %v2085, %v2082
  %v2101 = vpack.c.b16 %v2089, %v2086
  %v2102 = vpack.c.b16 %v2090, %v2087
  %v2103 = vpack.c.b16 %v2091, %v2088
  %v2104 = vpack.c.b16 %v2092, %v2092
  %v2105 = vpack.c.b16 %v2093, %v2093
  %v2106 = vpack.c.b16 %v2094, %v2094
  %v2116 = vsel %vm865, %v2097, 0
  %v2119 = vsel %vm865, %v2100, 0
  %v2122 = vsel %vm865, %v2103, 0
  %v2125 = vsel %vm865, %v2106, 0
  %v2128 = vsel %vm878, %v2044, 0
  %2130 = vmatpush.bf16.msra.mxu0 %v2035
  %2131 = vmatpush.bf16.msra.mxu0 %v2034
  %2132 = vmatpush.bf16.msra.mxu0 %v2033
  %2133 = vmatpush.bf16.msra.mxu0 %v2032
  %2134 = vmatpush.bf16.msra.mxu0 %v2031
  %2135 = vmatpush.bf16.msra.mxu0 %v2030
  %2136 = vmatpush.bf16.msra.mxu0 %v2029
  %2137 = vmatpush.bf16.msra.mxu0 %v2028
  %2138 = vmatmul.bf16.gmra.mxu0 %v2095
  %v2139 = vpop.f32.mrf.mxu0
  %v2140 = vadd.f32 0.0, %v2139
  %v2141 = vpop.f32.mrf.mxu0
  %v2142 = vadd.f32 0.0, %v2141
  %2143 = vmatmul.bf16.gmra.mxu0 %v2098
  %v2144 = vpop.f32.mrf.mxu0
  %v2145 = vadd.f32 0.0, %v2144
  %v2146 = vpop.f32.mrf.mxu0
  %v2147 = vadd.f32 0.0, %v2146
  %2148 = vmatmul.bf16.gmra.mxu0 %v2101
  %v2149 = vpop.f32.mrf.mxu0
  %v2150 = vadd.f32 0.0, %v2149
  %v2151 = vpop.f32.mrf.mxu0
  %v2152 = vadd.f32 0.0, %v2151
  %2153 = vmatmul.bf16.gmra.mxu0 %v2104
  %v2154 = vpop.f32.mrf.mxu0
  %v2155 = vadd.f32 0.0, %v2154
  %v2156 = vpop.f32.mrf.mxu0
  %2157 = vdwg.mxu0
  %2158 = vmatpush.bf16.msra.mxu0 %v2043
  %2159 = vmatpush.bf16.msra.mxu0 %v2042
  %2160 = vmatpush.bf16.msra.mxu0 %v2041
  %2161 = vmatpush.bf16.msra.mxu0 %v2040
  %2162 = vmatpush.bf16.msra.mxu0 %v2039
  %2163 = vmatpush.bf16.msra.mxu0 %v2038
  %2164 = vmatpush.bf16.msra.mxu0 %v2037
  %2165 = vmatpush.bf16.msra.mxu0 %v2036
  %2166 = vmatmul.bf16.gmra.mxu0 %v2096
  %v2167 = vpop.f32.mrf.mxu0
  %v2168 = vadd.f32 %v2140, %v2167
  %v2169 = vpop.f32.mrf.mxu0
  %v2170 = vadd.f32 %v2142, %v2169
  %2171 = vmatmul.bf16.gmra.mxu0 %v2099
  %v2172 = vpop.f32.mrf.mxu0
  %v2173 = vadd.f32 %v2145, %v2172
  %v2174 = vpop.f32.mrf.mxu0
  %v2175 = vadd.f32 %v2147, %v2174
  %2176 = vmatmul.bf16.gmra.mxu0 %v2102
  %v2177 = vpop.f32.mrf.mxu0
  %v2178 = vadd.f32 %v2150, %v2177
  %v2179 = vpop.f32.mrf.mxu0
  %v2180 = vadd.f32 %v2152, %v2179
  %2181 = vmatmul.bf16.gmra.mxu0 %v2105
  %v2182 = vpop.f32.mrf.mxu0
  %v2183 = vadd.f32 %v2155, %v2182
  %v2184 = vpop.f32.mrf.mxu0
  %2185 = vdwg.mxu0
  %2186 = vmatpush.bf16.msra.mxu0 0
  %2187 = vmatpush.bf16.msra.mxu0 0
  %2188 = vmatpush.bf16.msra.mxu0 0
  %2189 = vmatpush.bf16.msra.mxu0 0
  %2190 = vmatpush.bf16.msra.mxu0 0
  %2191 = vmatpush.bf16.msra.mxu0 0
  %2192 = vmatpush.bf16.msra.mxu0 0
  %2193 = vmatpush.bf16.msra.mxu0 %v2128
  %2194 = vmatmul.bf16.gmra.mxu0 %v2116
  %v2195 = vpop.f32.mrf.mxu0
  %v2196 = vadd.f32 %v2168, %v2195
  %v2197 = vpop.f32.mrf.mxu0
  %v2198 = vadd.f32 %v2170, %v2197
  %2199 = vmatmul.bf16.gmra.mxu0 %v2119
  %v2200 = vpop.f32.mrf.mxu0
  %v2201 = vadd.f32 %v2173, %v2200
  %v2202 = vpop.f32.mrf.mxu0
  %v2203 = vadd.f32 %v2175, %v2202
  %2204 = vmatmul.bf16.gmra.mxu0 %v2122
  %v2205 = vpop.f32.mrf.mxu0
  %v2206 = vadd.f32 %v2178, %v2205
  %v2207 = vpop.f32.mrf.mxu0
  %v2208 = vadd.f32 %v2180, %v2207
  %2209 = vmatmul.bf16.gmra.mxu0 %v2125
  %v2210 = vpop.f32.mrf.mxu0
  %v2211 = vadd.f32 %v2183, %v2210
  %v2212 = vpop.f32.mrf.mxu0
  %2213 = vdwg.mxu0
  %v2214 = vadd.f32 %v1847, %v2196
  %v2215 = vadd.f32 %v1848, %v2198
  %v2216 = vadd.f32 %v1849, %v2201
  %v2217 = vadd.f32 %v1850, %v2203
  %v2218 = vadd.f32 %v1851, %v2206
  %v2219 = vadd.f32 %v1852, %v2208
  %v2220 = vadd.f32 %v1853, %v2211
  %v2221 = vld [vmem:[%s0 + $0x50] sm:$0xf]
  %v2222 = vld [vmem:[%s0 + $0x54] sm:$0xf]
  %v2223 = vld [vmem:[%s0 + $0x58] sm:$0xf]
  %v2224 = vld [vmem:[%s0 + $0x5c] sm:$0xf]
  %v2225 = vld [vmem:[%s0 + $0x60] sm:$0xf]
  %v2226 = vld [vmem:[%s0 + $0x64] sm:$0xf]
  %v2227 = vld [vmem:[%s0 + $0x68] sm:$0xf]
  %v2228 = vld [vmem:[%s0 + $0x6c] sm:$0xf]
  %v2229 = vld [vmem:[%s0 + $0x70] sm:$0xf]
  %v2230 = vld [vmem:[%s0 + $0x74] sm:$0xf]
  %v2231 = vld [vmem:[%s0 + $0x78] sm:$0xf]
  %v2232 = vld [vmem:[%s0 + $0x7c] sm:$0xf]
  %v2245 = vunpack.c.l.b16 %v2221
  %v2246 = vunpack.c.l.b16 %v2222
  %v2247 = vunpack.c.l.b16 %v2223
  %v2248 = vunpack.c.l.b16 %v2224
  %v2249 = vunpack.c.l.b16 %v2225
  %v2250 = vunpack.c.l.b16 %v2226
  %v2251 = vunpack.c.l.b16 %v2227
  %v2252 = vunpack.c.l.b16 %v2228
  %v2253 = vunpack.c.l.b16 %v2229
  %v2254 = vunpack.c.l.b16 %v2230
  %v2255 = vunpack.c.l.b16 %v2231
  %v2256 = vunpack.c.l.b16 %v2232
  %v2257 = vpack.c.b16 %v2246, %v2245
  %v2258 = vpack.c.b16 %v2248, %v2247
  %v2259 = vpack.c.b16 %v2250, %v2249
  %v2260 = vpack.c.b16 %v2252, %v2251
  %v2261 = vpack.c.b16 %v2254, %v2253
  %v2262 = vpack.c.b16 %v2256, %v2255
  %2269 = vmatpush.bf16.msra.mxu0 0
  %2270 = vmatpush.bf16.msra.mxu0 0
  %2271 = vmatpush.bf16.msra.mxu0 %v2262
  %2272 = vmatpush.bf16.msra.mxu0 %v2261
  %2273 = vmatpush.bf16.msra.mxu0 %v2260
  %2274 = vmatpush.bf16.msra.mxu0 %v2259
  %2275 = vmatpush.bf16.msra.mxu0 %v2258
  %2276 = vmatpush.bf16.msra.mxu0 %v2257
  %2277 = vmatmul.bf16.gmra.mxu0 %v397
  %v2278 = vpop.f32.mrf.mxu0
  %v2279 = vadd.f32 %v114, %v2278
  %v2280 = vpop.f32.mrf.mxu0
  %v2281 = vadd.f32 %v119, %v2280
  %2282 = vmatmul.bf16.gmra.mxu0 %v400
  %v2283 = vpop.f32.mrf.mxu0
  %v2284 = vadd.f32 %v124, %v2283
  %v2285 = vpop.f32.mrf.mxu0
  %v2286 = vadd.f32 %v129, %v2285
  %2287 = vmatmul.bf16.gmra.mxu0 %v403
  %v2288 = vpop.f32.mrf.mxu0
  %v2289 = vadd.f32 %v134, %v2288
  %v2290 = vpop.f32.mrf.mxu0
  %v2291 = vadd.f32 %v139, %v2290
  %2292 = vmatmul.bf16.gmra.mxu0 %v406
  %v2293 = vpop.f32.mrf.mxu0
  %v2294 = vadd.f32 %v144, %v2293
  %v2295 = vpop.f32.mrf.mxu0
  %v2296 = vadd.f32 %v149, %v2295
  %2297 = vmatmul.bf16.gmra.mxu0 %v409
  %v2298 = vpop.f32.mrf.mxu0
  %v2299 = vadd.f32 %v154, %v2298
  %v2300 = vpop.f32.mrf.mxu0
  %v2301 = vadd.f32 %v159, %v2300
  %2302 = vmatmul.bf16.gmra.mxu0 %v412
  %v2303 = vpop.f32.mrf.mxu0
  %v2304 = vadd.f32 %v164, %v2303
  %v2305 = vpop.f32.mrf.mxu0
  %v2306 = vadd.f32 %v169, %v2305
  %2307 = vmatmul.bf16.gmra.mxu0 %v415
  %v2308 = vpop.f32.mrf.mxu0
  %v2309 = vadd.f32 %v174, %v2308
  %v2310 = vpop.f32.mrf.mxu0
  %v2311 = vadd.f32 %v179, %v2310
  %2312 = vmatmul.bf16.gmra.mxu0 %v418
  %v2313 = vpop.f32.mrf.mxu0
  %v2314 = vadd.f32 %v184, %v2313
  %v2315 = vpop.f32.mrf.mxu0
  %v2316 = vadd.f32 %v189, %v2315
  %2317 = vmatmul.bf16.gmra.mxu0 %v421
  %v2318 = vpop.f32.mrf.mxu0
  %v2319 = vadd.f32 %v194, %v2318
  %v2320 = vpop.f32.mrf.mxu0
  %v2321 = vadd.f32 %v199, %v2320
  %2322 = vmatmul.bf16.gmra.mxu0 %v424
  %v2323 = vpop.f32.mrf.mxu0
  %v2324 = vadd.f32 %v204, %v2323
  %v2325 = vpop.f32.mrf.mxu0
  %v2326 = vadd.f32 %v209, %v2325
  %2327 = vmatmul.bf16.gmra.mxu0 %v427
  %v2328 = vpop.f32.mrf.mxu0
  %v2329 = vadd.f32 %v214, %v2328
  %v2330 = vpop.f32.mrf.mxu0
  %v2331 = vadd.f32 %v219, %v2330
  %2332 = vmatmul.bf16.gmra.mxu0 %v430
  %v2333 = vpop.f32.mrf.mxu0
  %v2334 = vadd.f32 %v224, %v2333
  %v2335 = vpop.f32.mrf.mxu0
  %v2336 = vadd.f32 %v229, %v2335
  %2337 = vmatmul.bf16.gmra.mxu0 %v433
  %v2338 = vpop.f32.mrf.mxu0
  %v2339 = vadd.f32 %v234, %v2338
  %v2340 = vpop.f32.mrf.mxu0
  %v2341 = vadd.f32 %v239, %v2340
  %2342 = vmatmul.bf16.gmra.mxu0 %v436
  %v2343 = vpop.f32.mrf.mxu0
  %v2344 = vadd.f32 %v244, %v2343
  %v2345 = vpop.f32.mrf.mxu0
  %v2346 = vadd.f32 %v249, %v2345
  %2347 = vmatmul.bf16.gmra.mxu0 %v439
  %v2348 = vpop.f32.mrf.mxu0
  %v2349 = vadd.f32 %v254, %v2348
  %v2350 = vpop.f32.mrf.mxu0
  %v2351 = vadd.f32 %v259, %v2350
  %2352 = vmatmul.bf16.gmra.mxu0 %v442
  %v2353 = vpop.f32.mrf.mxu0
  %v2354 = vadd.f32 %v264, %v2353
  %v2355 = vpop.f32.mrf.mxu0
  %v2356 = vadd.f32 %v269, %v2355
  %2357 = vmatmul.bf16.gmra.mxu0 %v445
  %v2358 = vpop.f32.mrf.mxu0
  %v2359 = vadd.f32 %v274, %v2358
  %v2360 = vpop.f32.mrf.mxu0
  %2361 = vdwg.mxu0
  %v2362 = vmax.f32 %v2279, 0.0
  %v2363 = vmax.f32 %v2281, 0.0
  %v2364 = vmax.f32 %v2284, 0.0
  %v2365 = vmax.f32 %v2286, 0.0
  %v2366 = vmax.f32 %v2289, 0.0
  %v2367 = vmax.f32 %v2291, 0.0
  %v2368 = vmax.f32 %v2294, 0.0
  %v2369 = vmax.f32 %v2296, 0.0
  %v2370 = vmax.f32 %v2299, 0.0
  %v2371 = vmax.f32 %v2301, 0.0
  %v2372 = vmax.f32 %v2304, 0.0
  %v2373 = vmax.f32 %v2306, 0.0
  %v2374 = vmax.f32 %v2309, 0.0
  %v2375 = vmax.f32 %v2311, 0.0
  %v2376 = vmax.f32 %v2314, 0.0
  %v2377 = vmax.f32 %v2316, 0.0
  %v2378 = vmax.f32 %v2319, 0.0
  %v2379 = vmax.f32 %v2321, 0.0
  %v2380 = vmax.f32 %v2324, 0.0
  %v2381 = vmax.f32 %v2326, 0.0
  %v2382 = vmax.f32 %v2329, 0.0
  %v2383 = vmax.f32 %v2331, 0.0
  %v2384 = vmax.f32 %v2334, 0.0
  %v2385 = vmax.f32 %v2336, 0.0
  %v2386 = vmax.f32 %v2339, 0.0
  %v2387 = vmax.f32 %v2341, 0.0
  %v2388 = vmax.f32 %v2344, 0.0
  %v2389 = vmax.f32 %v2346, 0.0
  %v2390 = vmax.f32 %v2349, 0.0
  %v2391 = vmax.f32 %v2351, 0.0
  %v2392 = vmax.f32 %v2354, 0.0
  %v2393 = vmax.f32 %v2356, 0.0
  %v2394 = vmax.f32 %v2359, 0.0
  %v2395 = vpack.c.bf16 %v2363, %v2362
  %v2396 = vpack.c.bf16 %v2365, %v2364
  %v2397 = vpack.c.bf16 %v2367, %v2366
  %v2398 = vpack.c.bf16 %v2369, %v2368
  %v2399 = vpack.c.bf16 %v2371, %v2370
  %v2400 = vpack.c.bf16 %v2373, %v2372
  %v2401 = vpack.c.bf16 %v2375, %v2374
  %v2402 = vpack.c.bf16 %v2377, %v2376
  %v2403 = vpack.c.bf16 %v2379, %v2378
  %v2404 = vpack.c.bf16 %v2381, %v2380
  %v2405 = vpack.c.bf16 %v2383, %v2382
  %v2406 = vpack.c.bf16 %v2385, %v2384
  %v2407 = vpack.c.bf16 %v2387, %v2386
  %v2408 = vpack.c.bf16 %v2389, %v2388
  %v2409 = vpack.c.bf16 %v2391, %v2390
  %v2410 = vpack.c.bf16 %v2393, %v2392
  %v2411 = vpack.c.bf16 %v2394, %v2394
  %s2412 = scalar_lea.vmem %s3, 420
  %v2413 = vld [vmem:[%s2412] sm:$0xff]
  %v2414 = vld [vmem:[%s2412 + $0x8] sm:$0xf]
  %v2415 = vld [vmem:[%s2412 + $0xc] sm:$0xff]
  %v2416 = vld [vmem:[%s2412 + $0x14] sm:$0xf]
  %v2417 = vld [vmem:[%s2412 + $0x18] sm:$0xff]
  %v2418 = vld [vmem:[%s2412 + $0x20] sm:$0xf]
  %v2419 = vld [vmem:[%s2412 + $0x24] sm:$0xff]
  %v2420 = vld [vmem:[%s2412 + $0x2c] sm:$0xf]
  %v2421 = vld [vmem:[%s2412 + $0x30] sm:$0xff]
  %v2422 = vld [vmem:[%s2412 + $0x38] sm:$0xf]
  %v2423 = vld [vmem:[%s2412 + $0x3c] sm:$0xff]
  %v2424 = vld [vmem:[%s2412 + $0x44] sm:$0xf]
  %v2425 = vld [vmem:[%s2412 + $0x48] sm:$0x11]
  %v2426 = vld [vmem:[%s2412 + $0x50] sm:$0x1]
  %v2441 = vunpack.c.l.b16 %v2413
  %v2442 = vunpack.c.h.b16 %v2413
  %v2443 = vunpack.c.l.b16 %v2414
  %v2444 = vunpack.c.l.b16 %v2415
  %v2445 = vunpack.c.h.b16 %v2415
  %v2446 = vunpack.c.l.b16 %v2416
  %v2447 = vunpack.c.l.b16 %v2417
  %v2448 = vunpack.c.h.b16 %v2417
  %v2449 = vunpack.c.l.b16 %v2418
  %v2450 = vunpack.c.l.b16 %v2419
  %v2451 = vunpack.c.h.b16 %v2419
  %v2452 = vunpack.c.l.b16 %v2420
  %v2453 = vunpack.c.l.b16 %v2421
  %v2454 = vunpack.c.h.b16 %v2421
  %v2455 = vunpack.c.l.b16 %v2422
  %v2456 = vunpack.c.l.b16 %v2423
  %v2457 = vunpack.c.h.b16 %v2423
  %v2458 = vunpack.c.l.b16 %v2424
  %v2459 = vunpack.c.l.b16 %v2425
  %v2460 = vunpack.c.h.b16 %v2425
  %v2461 = vunpack.c.l.b16 %v2426
  %v2462 = vpack.c.b16 %v2444, %v2441
  %v2463 = vpack.c.b16 %v2445, %v2442
  %v2464 = vpack.c.b16 %v2446, %v2443
  %v2465 = vpack.c.b16 %v2450, %v2447
  %v2466 = vpack.c.b16 %v2451, %v2448
  %v2467 = vpack.c.b16 %v2452, %v2449
  %v2468 = vpack.c.b16 %v2456, %v2453
  %v2469 = vpack.c.b16 %v2457, %v2454
  %v2470 = vpack.c.b16 %v2458, %v2455
  %v2471 = vpack.c.b16 %v2459, %v2459
  %v2472 = vpack.c.b16 %v2460, %v2460
  %v2473 = vpack.c.b16 %v2461, %v2461
  %v2483 = vsel %vm865, %v2464, 0
  %v2486 = vsel %vm865, %v2467, 0
  %v2489 = vsel %vm865, %v2470, 0
  %v2492 = vsel %vm865, %v2473, 0
  %v2495 = vsel %vm878, %v2411, 0
  %2497 = vmatpush.bf16.msra.mxu0 %v2402
  %2498 = vmatpush.bf16.msra.mxu0 %v2401
  %2499 = vmatpush.bf16.msra.mxu0 %v2400
  %2500 = vmatpush.bf16.msra.mxu0 %v2399
  %2501 = vmatpush.bf16.msra.mxu0 %v2398
  %2502 = vmatpush.bf16.msra.mxu0 %v2397
  %2503 = vmatpush.bf16.msra.mxu0 %v2396
  %2504 = vmatpush.bf16.msra.mxu0 %v2395
  %2505 = vmatmul.bf16.gmra.mxu0 %v2462
  %v2506 = vpop.f32.mrf.mxu0
  %v2507 = vadd.f32 0.0, %v2506
  %v2508 = vpop.f32.mrf.mxu0
  %v2509 = vadd.f32 0.0, %v2508
  %2510 = vmatmul.bf16.gmra.mxu0 %v2465
  %v2511 = vpop.f32.mrf.mxu0
  %v2512 = vadd.f32 0.0, %v2511
  %v2513 = vpop.f32.mrf.mxu0
  %v2514 = vadd.f32 0.0, %v2513
  %2515 = vmatmul.bf16.gmra.mxu0 %v2468
  %v2516 = vpop.f32.mrf.mxu0
  %v2517 = vadd.f32 0.0, %v2516
  %v2518 = vpop.f32.mrf.mxu0
  %v2519 = vadd.f32 0.0, %v2518
  %2520 = vmatmul.bf16.gmra.mxu0 %v2471
  %v2521 = vpop.f32.mrf.mxu0
  %v2522 = vadd.f32 0.0, %v2521
  %v2523 = vpop.f32.mrf.mxu0
  %2524 = vdwg.mxu0
  %2525 = vmatpush.bf16.msra.mxu0 %v2410
  %2526 = vmatpush.bf16.msra.mxu0 %v2409
  %2527 = vmatpush.bf16.msra.mxu0 %v2408
  %2528 = vmatpush.bf16.msra.mxu0 %v2407
  %2529 = vmatpush.bf16.msra.mxu0 %v2406
  %2530 = vmatpush.bf16.msra.mxu0 %v2405
  %2531 = vmatpush.bf16.msra.mxu0 %v2404
  %2532 = vmatpush.bf16.msra.mxu0 %v2403
  %2533 = vmatmul.bf16.gmra.mxu0 %v2463
  %v2534 = vpop.f32.mrf.mxu0
  %v2535 = vadd.f32 %v2507, %v2534
  %v2536 = vpop.f32.mrf.mxu0
  %v2537 = vadd.f32 %v2509, %v2536
  %2538 = vmatmul.bf16.gmra.mxu0 %v2466
  %v2539 = vpop.f32.mrf.mxu0
  %v2540 = vadd.f32 %v2512, %v2539
  %v2541 = vpop.f32.mrf.mxu0
  %v2542 = vadd.f32 %v2514, %v2541
  %2543 = vmatmul.bf16.gmra.mxu0 %v2469
  %v2544 = vpop.f32.mrf.mxu0
  %v2545 = vadd.f32 %v2517, %v2544
  %v2546 = vpop.f32.mrf.mxu0
  %v2547 = vadd.f32 %v2519, %v2546
  %2548 = vmatmul.bf16.gmra.mxu0 %v2472
  %v2549 = vpop.f32.mrf.mxu0
  %v2550 = vadd.f32 %v2522, %v2549
  %v2551 = vpop.f32.mrf.mxu0
  %2552 = vdwg.mxu0
  %2553 = vmatpush.bf16.msra.mxu0 0
  %2554 = vmatpush.bf16.msra.mxu0 0
  %2555 = vmatpush.bf16.msra.mxu0 0
  %2556 = vmatpush.bf16.msra.mxu0 0
  %2557 = vmatpush.bf16.msra.mxu0 0
  %2558 = vmatpush.bf16.msra.mxu0 0
  %2559 = vmatpush.bf16.msra.mxu0 0
  %2560 = vmatpush.bf16.msra.mxu0 %v2495
  %2561 = vmatmul.bf16.gmra.mxu0 %v2483
  %v2562 = vpop.f32.mrf.mxu0
  %v2563 = vadd.f32 %v2535, %v2562
  %v2564 = vpop.f32.mrf.mxu0
  %v2565 = vadd.f32 %v2537, %v2564
  %2566 = vmatmul.bf16.gmra.mxu0 %v2486
  %v2567 = vpop.f32.mrf.mxu0
  %v2568 = vadd.f32 %v2540, %v2567
  %v2569 = vpop.f32.mrf.mxu0
  %v2570 = vadd.f32 %v2542, %v2569
  %2571 = vmatmul.bf16.gmra.mxu0 %v2489
  %v2572 = vpop.f32.mrf.mxu0
  %v2573 = vadd.f32 %v2545, %v2572
  %v2574 = vpop.f32.mrf.mxu0
  %v2575 = vadd.f32 %v2547, %v2574
  %2576 = vmatmul.bf16.gmra.mxu0 %v2492
  %v2577 = vpop.f32.mrf.mxu0
  %v2578 = vadd.f32 %v2550, %v2577
  %v2579 = vpop.f32.mrf.mxu0
  %2580 = vdwg.mxu0
  %v2581 = vadd.f32 %v2214, %v2563
  %v2582 = vadd.f32 %v2215, %v2565
  %v2583 = vadd.f32 %v2216, %v2568
  %v2584 = vadd.f32 %v2217, %v2570
  %v2585 = vadd.f32 %v2218, %v2573
  %v2586 = vadd.f32 %v2219, %v2575
  %v2587 = vadd.f32 %v2220, %v2578
  %v2588 = vld [vmem:[%s0 + $0x60] sm:$0xf]
  %v2589 = vld [vmem:[%s0 + $0x64] sm:$0xf]
  %v2590 = vld [vmem:[%s0 + $0x68] sm:$0xf]
  %v2591 = vld [vmem:[%s0 + $0x6c] sm:$0xf]
  %v2592 = vld [vmem:[%s0 + $0x70] sm:$0xf]
  %v2593 = vld [vmem:[%s0 + $0x74] sm:$0xf]
  %v2594 = vld [vmem:[%s0 + $0x78] sm:$0xf]
  %v2595 = vld [vmem:[%s0 + $0x7c] sm:$0xf]
  %v2596 = vld [vmem:[%s0 + $0x80] sm:$0xf]
  %v2597 = vld [vmem:[%s0 + $0x84] sm:$0xf]
  %v2598 = vld [vmem:[%s0 + $0x88] sm:$0xf]
  %v2599 = vld [vmem:[%s0 + $0x8c] sm:$0xf]
  %v2612 = vunpack.c.l.b16 %v2588
  %v2613 = vunpack.c.l.b16 %v2589
  %v2614 = vunpack.c.l.b16 %v2590
  %v2615 = vunpack.c.l.b16 %v2591
  %v2616 = vunpack.c.l.b16 %v2592
  %v2617 = vunpack.c.l.b16 %v2593
  %v2618 = vunpack.c.l.b16 %v2594
  %v2619 = vunpack.c.l.b16 %v2595
  %v2620 = vunpack.c.l.b16 %v2596
  %v2621 = vunpack.c.l.b16 %v2597
  %v2622 = vunpack.c.l.b16 %v2598
  %v2623 = vunpack.c.l.b16 %v2599
  %v2624 = vpack.c.b16 %v2613, %v2612
  %v2625 = vpack.c.b16 %v2615, %v2614
  %v2626 = vpack.c.b16 %v2617, %v2616
  %v2627 = vpack.c.b16 %v2619, %v2618
  %v2628 = vpack.c.b16 %v2621, %v2620
  %v2629 = vpack.c.b16 %v2623, %v2622
  %2636 = vmatpush.bf16.msra.mxu0 0
  %2637 = vmatpush.bf16.msra.mxu0 0
  %2638 = vmatpush.bf16.msra.mxu0 %v2629
  %2639 = vmatpush.bf16.msra.mxu0 %v2628
  %2640 = vmatpush.bf16.msra.mxu0 %v2627
  %2641 = vmatpush.bf16.msra.mxu0 %v2626
  %2642 = vmatpush.bf16.msra.mxu0 %v2625
  %2643 = vmatpush.bf16.msra.mxu0 %v2624
  %2644 = vmatmul.bf16.gmra.mxu0 %v397
  %v2645 = vpop.f32.mrf.mxu0
  %v2646 = vadd.f32 %v114, %v2645
  %v2647 = vpop.f32.mrf.mxu0
  %v2648 = vadd.f32 %v119, %v2647
  %2649 = vmatmul.bf16.gmra.mxu0 %v400
  %v2650 = vpop.f32.mrf.mxu0
  %v2651 = vadd.f32 %v124, %v2650
  %v2652 = vpop.f32.mrf.mxu0
  %v2653 = vadd.f32 %v129, %v2652
  %2654 = vmatmul.bf16.gmra.mxu0 %v403
  %v2655 = vpop.f32.mrf.mxu0
  %v2656 = vadd.f32 %v134, %v2655
  %v2657 = vpop.f32.mrf.mxu0
  %v2658 = vadd.f32 %v139, %v2657
  %2659 = vmatmul.bf16.gmra.mxu0 %v406
  %v2660 = vpop.f32.mrf.mxu0
  %v2661 = vadd.f32 %v144, %v2660
  %v2662 = vpop.f32.mrf.mxu0
  %v2663 = vadd.f32 %v149, %v2662
  %2664 = vmatmul.bf16.gmra.mxu0 %v409
  %v2665 = vpop.f32.mrf.mxu0
  %v2666 = vadd.f32 %v154, %v2665
  %v2667 = vpop.f32.mrf.mxu0
  %v2668 = vadd.f32 %v159, %v2667
  %2669 = vmatmul.bf16.gmra.mxu0 %v412
  %v2670 = vpop.f32.mrf.mxu0
  %v2671 = vadd.f32 %v164, %v2670
  %v2672 = vpop.f32.mrf.mxu0
  %v2673 = vadd.f32 %v169, %v2672
  %2674 = vmatmul.bf16.gmra.mxu0 %v415
  %v2675 = vpop.f32.mrf.mxu0
  %v2676 = vadd.f32 %v174, %v2675
  %v2677 = vpop.f32.mrf.mxu0
  %v2678 = vadd.f32 %v179, %v2677
  %2679 = vmatmul.bf16.gmra.mxu0 %v418
  %v2680 = vpop.f32.mrf.mxu0
  %v2681 = vadd.f32 %v184, %v2680
  %v2682 = vpop.f32.mrf.mxu0
  %v2683 = vadd.f32 %v189, %v2682
  %2684 = vmatmul.bf16.gmra.mxu0 %v421
  %v2685 = vpop.f32.mrf.mxu0
  %v2686 = vadd.f32 %v194, %v2685
  %v2687 = vpop.f32.mrf.mxu0
  %v2688 = vadd.f32 %v199, %v2687
  %2689 = vmatmul.bf16.gmra.mxu0 %v424
  %v2690 = vpop.f32.mrf.mxu0
  %v2691 = vadd.f32 %v204, %v2690
  %v2692 = vpop.f32.mrf.mxu0
  %v2693 = vadd.f32 %v209, %v2692
  %2694 = vmatmul.bf16.gmra.mxu0 %v427
  %v2695 = vpop.f32.mrf.mxu0
  %v2696 = vadd.f32 %v214, %v2695
  %v2697 = vpop.f32.mrf.mxu0
  %v2698 = vadd.f32 %v219, %v2697
  %2699 = vmatmul.bf16.gmra.mxu0 %v430
  %v2700 = vpop.f32.mrf.mxu0
  %v2701 = vadd.f32 %v224, %v2700
  %v2702 = vpop.f32.mrf.mxu0
  %v2703 = vadd.f32 %v229, %v2702
  %2704 = vmatmul.bf16.gmra.mxu0 %v433
  %v2705 = vpop.f32.mrf.mxu0
  %v2706 = vadd.f32 %v234, %v2705
  %v2707 = vpop.f32.mrf.mxu0
  %v2708 = vadd.f32 %v239, %v2707
  %2709 = vmatmul.bf16.gmra.mxu0 %v436
  %v2710 = vpop.f32.mrf.mxu0
  %v2711 = vadd.f32 %v244, %v2710
  %v2712 = vpop.f32.mrf.mxu0
  %v2713 = vadd.f32 %v249, %v2712
  %2714 = vmatmul.bf16.gmra.mxu0 %v439
  %v2715 = vpop.f32.mrf.mxu0
  %v2716 = vadd.f32 %v254, %v2715
  %v2717 = vpop.f32.mrf.mxu0
  %v2718 = vadd.f32 %v259, %v2717
  %2719 = vmatmul.bf16.gmra.mxu0 %v442
  %v2720 = vpop.f32.mrf.mxu0
  %v2721 = vadd.f32 %v264, %v2720
  %v2722 = vpop.f32.mrf.mxu0
  %v2723 = vadd.f32 %v269, %v2722
  %2724 = vmatmul.bf16.gmra.mxu0 %v445
  %v2725 = vpop.f32.mrf.mxu0
  %v2726 = vadd.f32 %v274, %v2725
  %v2727 = vpop.f32.mrf.mxu0
  %2728 = vdwg.mxu0
  %v2729 = vmax.f32 %v2646, 0.0
  %v2730 = vmax.f32 %v2648, 0.0
  %v2731 = vmax.f32 %v2651, 0.0
  %v2732 = vmax.f32 %v2653, 0.0
  %v2733 = vmax.f32 %v2656, 0.0
  %v2734 = vmax.f32 %v2658, 0.0
  %v2735 = vmax.f32 %v2661, 0.0
  %v2736 = vmax.f32 %v2663, 0.0
  %v2737 = vmax.f32 %v2666, 0.0
  %v2738 = vmax.f32 %v2668, 0.0
  %v2739 = vmax.f32 %v2671, 0.0
  %v2740 = vmax.f32 %v2673, 0.0
  %v2741 = vmax.f32 %v2676, 0.0
  %v2742 = vmax.f32 %v2678, 0.0
  %v2743 = vmax.f32 %v2681, 0.0
  %v2744 = vmax.f32 %v2683, 0.0
  %v2745 = vmax.f32 %v2686, 0.0
  %v2746 = vmax.f32 %v2688, 0.0
  %v2747 = vmax.f32 %v2691, 0.0
  %v2748 = vmax.f32 %v2693, 0.0
  %v2749 = vmax.f32 %v2696, 0.0
  %v2750 = vmax.f32 %v2698, 0.0
  %v2751 = vmax.f32 %v2701, 0.0
  %v2752 = vmax.f32 %v2703, 0.0
  %v2753 = vmax.f32 %v2706, 0.0
  %v2754 = vmax.f32 %v2708, 0.0
  %v2755 = vmax.f32 %v2711, 0.0
  %v2756 = vmax.f32 %v2713, 0.0
  %v2757 = vmax.f32 %v2716, 0.0
  %v2758 = vmax.f32 %v2718, 0.0
  %v2759 = vmax.f32 %v2721, 0.0
  %v2760 = vmax.f32 %v2723, 0.0
  %v2761 = vmax.f32 %v2726, 0.0
  %v2762 = vpack.c.bf16 %v2730, %v2729
  %v2763 = vpack.c.bf16 %v2732, %v2731
  %v2764 = vpack.c.bf16 %v2734, %v2733
  %v2765 = vpack.c.bf16 %v2736, %v2735
  %v2766 = vpack.c.bf16 %v2738, %v2737
  %v2767 = vpack.c.bf16 %v2740, %v2739
  %v2768 = vpack.c.bf16 %v2742, %v2741
  %v2769 = vpack.c.bf16 %v2744, %v2743
  %v2770 = vpack.c.bf16 %v2746, %v2745
  %v2771 = vpack.c.bf16 %v2748, %v2747
  %v2772 = vpack.c.bf16 %v2750, %v2749
  %v2773 = vpack.c.bf16 %v2752, %v2751
  %v2774 = vpack.c.bf16 %v2754, %v2753
  %v2775 = vpack.c.bf16 %v2756, %v2755
  %v2776 = vpack.c.bf16 %v2758, %v2757
  %v2777 = vpack.c.bf16 %v2760, %v2759
  %v2778 = vpack.c.bf16 %v2761, %v2761
  %s2779 = scalar_lea.vmem %s3, 504
  %v2780 = vld [vmem:[%s2779] sm:$0xff]
  %v2781 = vld [vmem:[%s2779 + $0x8] sm:$0xf]
  %v2782 = vld [vmem:[%s2779 + $0xc] sm:$0xff]
  %v2783 = vld [vmem:[%s2779 + $0x14] sm:$0xf]
  %v2784 = vld [vmem:[%s2779 + $0x18] sm:$0xff]
  %v2785 = vld [vmem:[%s2779 + $0x20] sm:$0xf]
  %v2786 = vld [vmem:[%s2779 + $0x24] sm:$0xff]
  %v2787 = vld [vmem:[%s2779 + $0x2c] sm:$0xf]
  %v2788 = vld [vmem:[%s2779 + $0x30] sm:$0xff]
  %v2789 = vld [vmem:[%s2779 + $0x38] sm:$0xf]
  %v2790 = vld [vmem:[%s2779 + $0x3c] sm:$0xff]
  %v2791 = vld [vmem:[%s2779 + $0x44] sm:$0xf]
  %v2792 = vld [vmem:[%s2779 + $0x48] sm:$0x11]
  %v2793 = vld [vmem:[%s2779 + $0x50] sm:$0x1]
  %v2808 = vunpack.c.l.b16 %v2780
  %v2809 = vunpack.c.h.b16 %v2780
  %v2810 = vunpack.c.l.b16 %v2781
  %v2811 = vunpack.c.l.b16 %v2782
  %v2812 = vunpack.c.h.b16 %v2782
  %v2813 = vunpack.c.l.b16 %v2783
  %v2814 = vunpack.c.l.b16 %v2784
  %v2815 = vunpack.c.h.b16 %v2784
  %v2816 = vunpack.c.l.b16 %v2785
  %v2817 = vunpack.c.l.b16 %v2786
  %v2818 = vunpack.c.h.b16 %v2786
  %v2819 = vunpack.c.l.b16 %v2787
  %v2820 = vunpack.c.l.b16 %v2788
  %v2821 = vunpack.c.h.b16 %v2788
  %v2822 = vunpack.c.l.b16 %v2789
  %v2823 = vunpack.c.l.b16 %v2790
  %v2824 = vunpack.c.h.b16 %v2790
  %v2825 = vunpack.c.l.b16 %v2791
  %v2826 = vunpack.c.l.b16 %v2792
  %v2827 = vunpack.c.h.b16 %v2792
  %v2828 = vunpack.c.l.b16 %v2793
  %v2829 = vpack.c.b16 %v2811, %v2808
  %v2830 = vpack.c.b16 %v2812, %v2809
  %v2831 = vpack.c.b16 %v2813, %v2810
  %v2832 = vpack.c.b16 %v2817, %v2814
  %v2833 = vpack.c.b16 %v2818, %v2815
  %v2834 = vpack.c.b16 %v2819, %v2816
  %v2835 = vpack.c.b16 %v2823, %v2820
  %v2836 = vpack.c.b16 %v2824, %v2821
  %v2837 = vpack.c.b16 %v2825, %v2822
  %v2838 = vpack.c.b16 %v2826, %v2826
  %v2839 = vpack.c.b16 %v2827, %v2827
  %v2840 = vpack.c.b16 %v2828, %v2828
  %v2850 = vsel %vm865, %v2831, 0
  %v2853 = vsel %vm865, %v2834, 0
  %v2856 = vsel %vm865, %v2837, 0
  %v2859 = vsel %vm865, %v2840, 0
  %v2862 = vsel %vm878, %v2778, 0
  %2864 = vmatpush.bf16.msra.mxu0 %v2769
  %2865 = vmatpush.bf16.msra.mxu0 %v2768
  %2866 = vmatpush.bf16.msra.mxu0 %v2767
  %2867 = vmatpush.bf16.msra.mxu0 %v2766
  %2868 = vmatpush.bf16.msra.mxu0 %v2765
  %2869 = vmatpush.bf16.msra.mxu0 %v2764
  %2870 = vmatpush.bf16.msra.mxu0 %v2763
  %2871 = vmatpush.bf16.msra.mxu0 %v2762
  %2872 = vmatmul.bf16.gmra.mxu0 %v2829
  %v2873 = vpop.f32.mrf.mxu0
  %v2874 = vadd.f32 0.0, %v2873
  %v2875 = vpop.f32.mrf.mxu0
  %v2876 = vadd.f32 0.0, %v2875
  %2877 = vmatmul.bf16.gmra.mxu0 %v2832
  %v2878 = vpop.f32.mrf.mxu0
  %v2879 = vadd.f32 0.0, %v2878
  %v2880 = vpop.f32.mrf.mxu0
  %v2881 = vadd.f32 0.0, %v2880
  %2882 = vmatmul.bf16.gmra.mxu0 %v2835
  %v2883 = vpop.f32.mrf.mxu0
  %v2884 = vadd.f32 0.0, %v2883
  %v2885 = vpop.f32.mrf.mxu0
  %v2886 = vadd.f32 0.0, %v2885
  %2887 = vmatmul.bf16.gmra.mxu0 %v2838
  %v2888 = vpop.f32.mrf.mxu0
  %v2889 = vadd.f32 0.0, %v2888
  %v2890 = vpop.f32.mrf.mxu0
  %2891 = vdwg.mxu0
  %2892 = vmatpush.bf16.msra.mxu0 %v2777
  %2893 = vmatpush.bf16.msra.mxu0 %v2776
  %2894 = vmatpush.bf16.msra.mxu0 %v2775
  %2895 = vmatpush.bf16.msra.mxu0 %v2774
  %2896 = vmatpush.bf16.msra.mxu0 %v2773
  %2897 = vmatpush.bf16.msra.mxu0 %v2772
  %2898 = vmatpush.bf16.msra.mxu0 %v2771
  %2899 = vmatpush.bf16.msra.mxu0 %v2770
  %2900 = vmatmul.bf16.gmra.mxu0 %v2830
  %v2901 = vpop.f32.mrf.mxu0
  %v2902 = vadd.f32 %v2874, %v2901
  %v2903 = vpop.f32.mrf.mxu0
  %v2904 = vadd.f32 %v2876, %v2903
  %2905 = vmatmul.bf16.gmra.mxu0 %v2833
  %v2906 = vpop.f32.mrf.mxu0
  %v2907 = vadd.f32 %v2879, %v2906
  %v2908 = vpop.f32.mrf.mxu0
  %v2909 = vadd.f32 %v2881, %v2908
  %2910 = vmatmul.bf16.gmra.mxu0 %v2836
  %v2911 = vpop.f32.mrf.mxu0
  %v2912 = vadd.f32 %v2884, %v2911
  %v2913 = vpop.f32.mrf.mxu0
  %v2914 = vadd.f32 %v2886, %v2913
  %2915 = vmatmul.bf16.gmra.mxu0 %v2839
  %v2916 = vpop.f32.mrf.mxu0
  %v2917 = vadd.f32 %v2889, %v2916
  %v2918 = vpop.f32.mrf.mxu0
  %2919 = vdwg.mxu0
  %2920 = vmatpush.bf16.msra.mxu0 0
  %2921 = vmatpush.bf16.msra.mxu0 0
  %2922 = vmatpush.bf16.msra.mxu0 0
  %2923 = vmatpush.bf16.msra.mxu0 0
  %2924 = vmatpush.bf16.msra.mxu0 0
  %2925 = vmatpush.bf16.msra.mxu0 0
  %2926 = vmatpush.bf16.msra.mxu0 0
  %2927 = vmatpush.bf16.msra.mxu0 %v2862
  %2928 = vmatmul.bf16.gmra.mxu0 %v2850
  %v2929 = vpop.f32.mrf.mxu0
  %v2930 = vadd.f32 %v2902, %v2929
  %v2931 = vpop.f32.mrf.mxu0
  %v2932 = vadd.f32 %v2904, %v2931
  %2933 = vmatmul.bf16.gmra.mxu0 %v2853
  %v2934 = vpop.f32.mrf.mxu0
  %v2935 = vadd.f32 %v2907, %v2934
  %v2936 = vpop.f32.mrf.mxu0
  %v2937 = vadd.f32 %v2909, %v2936
  %2938 = vmatmul.bf16.gmra.mxu0 %v2856
  %v2939 = vpop.f32.mrf.mxu0
  %v2940 = vadd.f32 %v2912, %v2939
  %v2941 = vpop.f32.mrf.mxu0
  %v2942 = vadd.f32 %v2914, %v2941
  %2943 = vmatmul.bf16.gmra.mxu0 %v2859
  %v2944 = vpop.f32.mrf.mxu0
  %v2945 = vadd.f32 %v2917, %v2944
  %v2946 = vpop.f32.mrf.mxu0
  %2947 = vdwg.mxu0
  %v2948 = vadd.f32 %v2581, %v2930
  %v2949 = vadd.f32 %v2582, %v2932
  %v2950 = vadd.f32 %v2583, %v2935
  %v2951 = vadd.f32 %v2584, %v2937
  %v2952 = vadd.f32 %v2585, %v2940
  %v2953 = vadd.f32 %v2586, %v2942
  %v2954 = vadd.f32 %v2587, %v2945
  %v2955 = vld [vmem:[%s0 + $0x70] sm:$0xf]
  %v2956 = vld [vmem:[%s0 + $0x74] sm:$0xf]
  %v2957 = vld [vmem:[%s0 + $0x78] sm:$0xf]
  %v2958 = vld [vmem:[%s0 + $0x7c] sm:$0xf]
  %v2959 = vld [vmem:[%s0 + $0x80] sm:$0xf]
  %v2960 = vld [vmem:[%s0 + $0x84] sm:$0xf]
  %v2961 = vld [vmem:[%s0 + $0x88] sm:$0xf]
  %v2962 = vld [vmem:[%s0 + $0x8c] sm:$0xf]
  %v2963 = vld [vmem:[%s0 + $0x90] sm:$0xf]
  %v2964 = vld [vmem:[%s0 + $0x94] sm:$0xf]
  %v2965 = vld [vmem:[%s0 + $0x98] sm:$0xf]
  %v2966 = vld [vmem:[%s0 + $0x9c] sm:$0xf]
  %v2979 = vunpack.c.l.b16 %v2955
  %v2980 = vunpack.c.l.b16 %v2956
  %v2981 = vunpack.c.l.b16 %v2957
  %v2982 = vunpack.c.l.b16 %v2958
  %v2983 = vunpack.c.l.b16 %v2959
  %v2984 = vunpack.c.l.b16 %v2960
  %v2985 = vunpack.c.l.b16 %v2961
  %v2986 = vunpack.c.l.b16 %v2962
  %v2987 = vunpack.c.l.b16 %v2963
  %v2988 = vunpack.c.l.b16 %v2964
  %v2989 = vunpack.c.l.b16 %v2965
  %v2990 = vunpack.c.l.b16 %v2966
  %v2991 = vpack.c.b16 %v2980, %v2979
  %v2992 = vpack.c.b16 %v2982, %v2981
  %v2993 = vpack.c.b16 %v2984, %v2983
  %v2994 = vpack.c.b16 %v2986, %v2985
  %v2995 = vpack.c.b16 %v2988, %v2987
  %v2996 = vpack.c.b16 %v2990, %v2989
  %3003 = vmatpush.bf16.msra.mxu0 0
  %3004 = vmatpush.bf16.msra.mxu0 0
  %3005 = vmatpush.bf16.msra.mxu0 %v2996
  %3006 = vmatpush.bf16.msra.mxu0 %v2995
  %3007 = vmatpush.bf16.msra.mxu0 %v2994
  %3008 = vmatpush.bf16.msra.mxu0 %v2993
  %3009 = vmatpush.bf16.msra.mxu0 %v2992
  %3010 = vmatpush.bf16.msra.mxu0 %v2991
  %3011 = vmatmul.bf16.gmra.mxu0 %v397
  %v3012 = vpop.f32.mrf.mxu0
  %v3013 = vadd.f32 %v114, %v3012
  %v3014 = vpop.f32.mrf.mxu0
  %v3015 = vadd.f32 %v119, %v3014
  %3016 = vmatmul.bf16.gmra.mxu0 %v400
  %v3017 = vpop.f32.mrf.mxu0
  %v3018 = vadd.f32 %v124, %v3017
  %v3019 = vpop.f32.mrf.mxu0
  %v3020 = vadd.f32 %v129, %v3019
  %3021 = vmatmul.bf16.gmra.mxu0 %v403
  %v3022 = vpop.f32.mrf.mxu0
  %v3023 = vadd.f32 %v134, %v3022
  %v3024 = vpop.f32.mrf.mxu0
  %v3025 = vadd.f32 %v139, %v3024
  %3026 = vmatmul.bf16.gmra.mxu0 %v406
  %v3027 = vpop.f32.mrf.mxu0
  %v3028 = vadd.f32 %v144, %v3027
  %v3029 = vpop.f32.mrf.mxu0
  %v3030 = vadd.f32 %v149, %v3029
  %3031 = vmatmul.bf16.gmra.mxu0 %v409
  %v3032 = vpop.f32.mrf.mxu0
  %v3033 = vadd.f32 %v154, %v3032
  %v3034 = vpop.f32.mrf.mxu0
  %v3035 = vadd.f32 %v159, %v3034
  %3036 = vmatmul.bf16.gmra.mxu0 %v412
  %v3037 = vpop.f32.mrf.mxu0
  %v3038 = vadd.f32 %v164, %v3037
  %v3039 = vpop.f32.mrf.mxu0
  %v3040 = vadd.f32 %v169, %v3039
  %3041 = vmatmul.bf16.gmra.mxu0 %v415
  %v3042 = vpop.f32.mrf.mxu0
  %v3043 = vadd.f32 %v174, %v3042
  %v3044 = vpop.f32.mrf.mxu0
  %v3045 = vadd.f32 %v179, %v3044
  %3046 = vmatmul.bf16.gmra.mxu0 %v418
  %v3047 = vpop.f32.mrf.mxu0
  %v3048 = vadd.f32 %v184, %v3047
  %v3049 = vpop.f32.mrf.mxu0
  %v3050 = vadd.f32 %v189, %v3049
  %3051 = vmatmul.bf16.gmra.mxu0 %v421
  %v3052 = vpop.f32.mrf.mxu0
  %v3053 = vadd.f32 %v194, %v3052
  %v3054 = vpop.f32.mrf.mxu0
  %v3055 = vadd.f32 %v199, %v3054
  %3056 = vmatmul.bf16.gmra.mxu0 %v424
  %v3057 = vpop.f32.mrf.mxu0
  %v3058 = vadd.f32 %v204, %v3057
  %v3059 = vpop.f32.mrf.mxu0
  %v3060 = vadd.f32 %v209, %v3059
  %3061 = vmatmul.bf16.gmra.mxu0 %v427
  %v3062 = vpop.f32.mrf.mxu0
  %v3063 = vadd.f32 %v214, %v3062
  %v3064 = vpop.f32.mrf.mxu0
  %v3065 = vadd.f32 %v219, %v3064
  %3066 = vmatmul.bf16.gmra.mxu0 %v430
  %v3067 = vpop.f32.mrf.mxu0
  %v3068 = vadd.f32 %v224, %v3067
  %v3069 = vpop.f32.mrf.mxu0
  %v3070 = vadd.f32 %v229, %v3069
  %3071 = vmatmul.bf16.gmra.mxu0 %v433
  %v3072 = vpop.f32.mrf.mxu0
  %v3073 = vadd.f32 %v234, %v3072
  %v3074 = vpop.f32.mrf.mxu0
  %v3075 = vadd.f32 %v239, %v3074
  %3076 = vmatmul.bf16.gmra.mxu0 %v436
  %v3077 = vpop.f32.mrf.mxu0
  %v3078 = vadd.f32 %v244, %v3077
  %v3079 = vpop.f32.mrf.mxu0
  %v3080 = vadd.f32 %v249, %v3079
  %3081 = vmatmul.bf16.gmra.mxu0 %v439
  %v3082 = vpop.f32.mrf.mxu0
  %v3083 = vadd.f32 %v254, %v3082
  %v3084 = vpop.f32.mrf.mxu0
  %v3085 = vadd.f32 %v259, %v3084
  %3086 = vmatmul.bf16.gmra.mxu0 %v442
  %v3087 = vpop.f32.mrf.mxu0
  %v3088 = vadd.f32 %v264, %v3087
  %v3089 = vpop.f32.mrf.mxu0
  %v3090 = vadd.f32 %v269, %v3089
  %3091 = vmatmul.bf16.gmra.mxu0 %v445
  %v3092 = vpop.f32.mrf.mxu0
  %v3093 = vadd.f32 %v274, %v3092
  %v3094 = vpop.f32.mrf.mxu0
  %3095 = vdwg.mxu0
  %v3096 = vmax.f32 %v3013, 0.0
  %v3097 = vmax.f32 %v3015, 0.0
  %v3098 = vmax.f32 %v3018, 0.0
  %v3099 = vmax.f32 %v3020, 0.0
  %v3100 = vmax.f32 %v3023, 0.0
  %v3101 = vmax.f32 %v3025, 0.0
  %v3102 = vmax.f32 %v3028, 0.0
  %v3103 = vmax.f32 %v3030, 0.0
  %v3104 = vmax.f32 %v3033, 0.0
  %v3105 = vmax.f32 %v3035, 0.0
  %v3106 = vmax.f32 %v3038, 0.0
  %v3107 = vmax.f32 %v3040, 0.0
  %v3108 = vmax.f32 %v3043, 0.0
  %v3109 = vmax.f32 %v3045, 0.0
  %v3110 = vmax.f32 %v3048, 0.0
  %v3111 = vmax.f32 %v3050, 0.0
  %v3112 = vmax.f32 %v3053, 0.0
  %v3113 = vmax.f32 %v3055, 0.0
  %v3114 = vmax.f32 %v3058, 0.0
  %v3115 = vmax.f32 %v3060, 0.0
  %v3116 = vmax.f32 %v3063, 0.0
  %v3117 = vmax.f32 %v3065, 0.0
  %v3118 = vmax.f32 %v3068, 0.0
  %v3119 = vmax.f32 %v3070, 0.0
  %v3120 = vmax.f32 %v3073, 0.0
  %v3121 = vmax.f32 %v3075, 0.0
  %v3122 = vmax.f32 %v3078, 0.0
  %v3123 = vmax.f32 %v3080, 0.0
  %v3124 = vmax.f32 %v3083, 0.0
  %v3125 = vmax.f32 %v3085, 0.0
  %v3126 = vmax.f32 %v3088, 0.0
  %v3127 = vmax.f32 %v3090, 0.0
  %v3128 = vmax.f32 %v3093, 0.0
  %v3129 = vpack.c.bf16 %v3097, %v3096
  %v3130 = vpack.c.bf16 %v3099, %v3098
  %v3131 = vpack.c.bf16 %v3101, %v3100
  %v3132 = vpack.c.bf16 %v3103, %v3102
  %v3133 = vpack.c.bf16 %v3105, %v3104
  %v3134 = vpack.c.bf16 %v3107, %v3106
  %v3135 = vpack.c.bf16 %v3109, %v3108
  %v3136 = vpack.c.bf16 %v3111, %v3110
  %v3137 = vpack.c.bf16 %v3113, %v3112
  %v3138 = vpack.c.bf16 %v3115, %v3114
  %v3139 = vpack.c.bf16 %v3117, %v3116
  %v3140 = vpack.c.bf16 %v3119, %v3118
  %v3141 = vpack.c.bf16 %v3121, %v3120
  %v3142 = vpack.c.bf16 %v3123, %v3122
  %v3143 = vpack.c.bf16 %v3125, %v3124
  %v3144 = vpack.c.bf16 %v3127, %v3126
  %v3145 = vpack.c.bf16 %v3128, %v3128
  %s3146 = scalar_lea.vmem %s3, 588
  %v3147 = vld [vmem:[%s3146] sm:$0xff]
  %v3148 = vld [vmem:[%s3146 + $0x8] sm:$0xf]
  %v3149 = vld [vmem:[%s3146 + $0xc] sm:$0xff]
  %v3150 = vld [vmem:[%s3146 + $0x14] sm:$0xf]
  %v3151 = vld [vmem:[%s3146 + $0x18] sm:$0xff]
  %v3152 = vld [vmem:[%s3146 + $0x20] sm:$0xf]
  %v3153 = vld [vmem:[%s3146 + $0x24] sm:$0xff]
  %v3154 = vld [vmem:[%s3146 + $0x2c] sm:$0xf]
  %v3155 = vld [vmem:[%s3146 + $0x30] sm:$0xff]
  %v3156 = vld [vmem:[%s3146 + $0x38] sm:$0xf]
  %v3157 = vld [vmem:[%s3146 + $0x3c] sm:$0xff]
  %v3158 = vld [vmem:[%s3146 + $0x44] sm:$0xf]
  %v3159 = vld [vmem:[%s3146 + $0x48] sm:$0x11]
  %v3160 = vld [vmem:[%s3146 + $0x50] sm:$0x1]
  %v3175 = vunpack.c.l.b16 %v3147
  %v3176 = vunpack.c.h.b16 %v3147
  %v3177 = vunpack.c.l.b16 %v3148
  %v3178 = vunpack.c.l.b16 %v3149
  %v3179 = vunpack.c.h.b16 %v3149
  %v3180 = vunpack.c.l.b16 %v3150
  %v3181 = vunpack.c.l.b16 %v3151
  %v3182 = vunpack.c.h.b16 %v3151
  %v3183 = vunpack.c.l.b16 %v3152
  %v3184 = vunpack.c.l.b16 %v3153
  %v3185 = vunpack.c.h.b16 %v3153
  %v3186 = vunpack.c.l.b16 %v3154
  %v3187 = vunpack.c.l.b16 %v3155
  %v3188 = vunpack.c.h.b16 %v3155
  %v3189 = vunpack.c.l.b16 %v3156
  %v3190 = vunpack.c.l.b16 %v3157
  %v3191 = vunpack.c.h.b16 %v3157
  %v3192 = vunpack.c.l.b16 %v3158
  %v3193 = vunpack.c.l.b16 %v3159
  %v3194 = vunpack.c.h.b16 %v3159
  %v3195 = vunpack.c.l.b16 %v3160
  %v3196 = vpack.c.b16 %v3178, %v3175
  %v3197 = vpack.c.b16 %v3179, %v3176
  %v3198 = vpack.c.b16 %v3180, %v3177
  %v3199 = vpack.c.b16 %v3184, %v3181
  %v3200 = vpack.c.b16 %v3185, %v3182
  %v3201 = vpack.c.b16 %v3186, %v3183
  %v3202 = vpack.c.b16 %v3190, %v3187
  %v3203 = vpack.c.b16 %v3191, %v3188
  %v3204 = vpack.c.b16 %v3192, %v3189
  %v3205 = vpack.c.b16 %v3193, %v3193
  %v3206 = vpack.c.b16 %v3194, %v3194
  %v3207 = vpack.c.b16 %v3195, %v3195
  %v3217 = vsel %vm865, %v3198, 0
  %v3220 = vsel %vm865, %v3201, 0
  %v3223 = vsel %vm865, %v3204, 0
  %v3226 = vsel %vm865, %v3207, 0
  %v3229 = vsel %vm878, %v3145, 0
  %3231 = vmatpush.bf16.msra.mxu0 %v3136
  %3232 = vmatpush.bf16.msra.mxu0 %v3135
  %3233 = vmatpush.bf16.msra.mxu0 %v3134
  %3234 = vmatpush.bf16.msra.mxu0 %v3133
  %3235 = vmatpush.bf16.msra.mxu0 %v3132
  %3236 = vmatpush.bf16.msra.mxu0 %v3131
  %3237 = vmatpush.bf16.msra.mxu0 %v3130
  %3238 = vmatpush.bf16.msra.mxu0 %v3129
  %3239 = vmatmul.bf16.gmra.mxu0 %v3196
  %v3240 = vpop.f32.mrf.mxu0
  %v3241 = vadd.f32 0.0, %v3240
  %v3242 = vpop.f32.mrf.mxu0
  %v3243 = vadd.f32 0.0, %v3242
  %3244 = vmatmul.bf16.gmra.mxu0 %v3199
  %v3245 = vpop.f32.mrf.mxu0
  %v3246 = vadd.f32 0.0, %v3245
  %v3247 = vpop.f32.mrf.mxu0
  %v3248 = vadd.f32 0.0, %v3247
  %3249 = vmatmul.bf16.gmra.mxu0 %v3202
  %v3250 = vpop.f32.mrf.mxu0
  %v3251 = vadd.f32 0.0, %v3250
  %v3252 = vpop.f32.mrf.mxu0
  %v3253 = vadd.f32 0.0, %v3252
  %3254 = vmatmul.bf16.gmra.mxu0 %v3205
  %v3255 = vpop.f32.mrf.mxu0
  %v3256 = vadd.f32 0.0, %v3255
  %v3257 = vpop.f32.mrf.mxu0
  %3258 = vdwg.mxu0
  %3259 = vmatpush.bf16.msra.mxu0 %v3144
  %3260 = vmatpush.bf16.msra.mxu0 %v3143
  %3261 = vmatpush.bf16.msra.mxu0 %v3142
  %3262 = vmatpush.bf16.msra.mxu0 %v3141
  %3263 = vmatpush.bf16.msra.mxu0 %v3140
  %3264 = vmatpush.bf16.msra.mxu0 %v3139
  %3265 = vmatpush.bf16.msra.mxu0 %v3138
  %3266 = vmatpush.bf16.msra.mxu0 %v3137
  %3267 = vmatmul.bf16.gmra.mxu0 %v3197
  %v3268 = vpop.f32.mrf.mxu0
  %v3269 = vadd.f32 %v3241, %v3268
  %v3270 = vpop.f32.mrf.mxu0
  %v3271 = vadd.f32 %v3243, %v3270
  %3272 = vmatmul.bf16.gmra.mxu0 %v3200
  %v3273 = vpop.f32.mrf.mxu0
  %v3274 = vadd.f32 %v3246, %v3273
  %v3275 = vpop.f32.mrf.mxu0
  %v3276 = vadd.f32 %v3248, %v3275
  %3277 = vmatmul.bf16.gmra.mxu0 %v3203
  %v3278 = vpop.f32.mrf.mxu0
  %v3279 = vadd.f32 %v3251, %v3278
  %v3280 = vpop.f32.mrf.mxu0
  %v3281 = vadd.f32 %v3253, %v3280
  %3282 = vmatmul.bf16.gmra.mxu0 %v3206
  %v3283 = vpop.f32.mrf.mxu0
  %v3284 = vadd.f32 %v3256, %v3283
  %v3285 = vpop.f32.mrf.mxu0
  %3286 = vdwg.mxu0
  %3287 = vmatpush.bf16.msra.mxu0 0
  %3288 = vmatpush.bf16.msra.mxu0 0
  %3289 = vmatpush.bf16.msra.mxu0 0
  %3290 = vmatpush.bf16.msra.mxu0 0
  %3291 = vmatpush.bf16.msra.mxu0 0
  %3292 = vmatpush.bf16.msra.mxu0 0
  %3293 = vmatpush.bf16.msra.mxu0 0
  %3294 = vmatpush.bf16.msra.mxu0 %v3229
  %3295 = vmatmul.bf16.gmra.mxu0 %v3217
  %v3296 = vpop.f32.mrf.mxu0
  %v3297 = vadd.f32 %v3269, %v3296
  %v3298 = vpop.f32.mrf.mxu0
  %v3299 = vadd.f32 %v3271, %v3298
  %3300 = vmatmul.bf16.gmra.mxu0 %v3220
  %v3301 = vpop.f32.mrf.mxu0
  %v3302 = vadd.f32 %v3274, %v3301
  %v3303 = vpop.f32.mrf.mxu0
  %v3304 = vadd.f32 %v3276, %v3303
  %3305 = vmatmul.bf16.gmra.mxu0 %v3223
  %v3306 = vpop.f32.mrf.mxu0
  %v3307 = vadd.f32 %v3279, %v3306
  %v3308 = vpop.f32.mrf.mxu0
  %v3309 = vadd.f32 %v3281, %v3308
  %3310 = vmatmul.bf16.gmra.mxu0 %v3226
  %v3311 = vpop.f32.mrf.mxu0
  %v3312 = vadd.f32 %v3284, %v3311
  %v3313 = vpop.f32.mrf.mxu0
  %3314 = vdwg.mxu0
  %v3315 = vadd.f32 %v2948, %v3297
  %v3316 = vadd.f32 %v2949, %v3299
  %v3317 = vadd.f32 %v2950, %v3302
  %v3318 = vadd.f32 %v2951, %v3304
  %v3319 = vadd.f32 %v2952, %v3307
  %v3320 = vadd.f32 %v2953, %v3309
  %v3321 = vadd.f32 %v2954, %v3312
  %v3322 = vld [vmem:[%s0 + $0x80] sm:$0xf]
  %v3323 = vld [vmem:[%s0 + $0x84] sm:$0xf]
  %v3324 = vld [vmem:[%s0 + $0x88] sm:$0xf]
  %v3325 = vld [vmem:[%s0 + $0x8c] sm:$0xf]
  %v3326 = vld [vmem:[%s0 + $0x90] sm:$0xf]
  %v3327 = vld [vmem:[%s0 + $0x94] sm:$0xf]
  %v3328 = vld [vmem:[%s0 + $0x98] sm:$0xf]
  %v3329 = vld [vmem:[%s0 + $0x9c] sm:$0xf]
  %v3330 = vld [vmem:[%s0 + $0xa0] sm:$0xf]
  %v3331 = vld [vmem:[%s0 + $0xa4] sm:$0xf]
  %v3332 = vld [vmem:[%s0 + $0xa8] sm:$0xf]
  %v3333 = vld [vmem:[%s0 + $0xac] sm:$0xf]
  %v3346 = vunpack.c.l.b16 %v3322
  %v3347 = vunpack.c.l.b16 %v3323
  %v3348 = vunpack.c.l.b16 %v3324
  %v3349 = vunpack.c.l.b16 %v3325
  %v3350 = vunpack.c.l.b16 %v3326
  %v3351 = vunpack.c.l.b16 %v3327
  %v3352 = vunpack.c.l.b16 %v3328
  %v3353 = vunpack.c.l.b16 %v3329
  %v3354 = vunpack.c.l.b16 %v3330
  %v3355 = vunpack.c.l.b16 %v3331
  %v3356 = vunpack.c.l.b16 %v3332
  %v3357 = vunpack.c.l.b16 %v3333
  %v3358 = vpack.c.b16 %v3347, %v3346
  %v3359 = vpack.c.b16 %v3349, %v3348
  %v3360 = vpack.c.b16 %v3351, %v3350
  %v3361 = vpack.c.b16 %v3353, %v3352
  %v3362 = vpack.c.b16 %v3355, %v3354
  %v3363 = vpack.c.b16 %v3357, %v3356
  %3370 = vmatpush.bf16.msra.mxu0 0
  %3371 = vmatpush.bf16.msra.mxu0 0
  %3372 = vmatpush.bf16.msra.mxu0 %v3363
  %3373 = vmatpush.bf16.msra.mxu0 %v3362
  %3374 = vmatpush.bf16.msra.mxu0 %v3361
  %3375 = vmatpush.bf16.msra.mxu0 %v3360
  %3376 = vmatpush.bf16.msra.mxu0 %v3359
  %3377 = vmatpush.bf16.msra.mxu0 %v3358
  %3378 = vmatmul.bf16.gmra.mxu0 %v397
  %v3379 = vpop.f32.mrf.mxu0
  %v3380 = vadd.f32 %v114, %v3379
  %v3381 = vpop.f32.mrf.mxu0
  %v3382 = vadd.f32 %v119, %v3381
  %3383 = vmatmul.bf16.gmra.mxu0 %v400
  %v3384 = vpop.f32.mrf.mxu0
  %v3385 = vadd.f32 %v124, %v3384
  %v3386 = vpop.f32.mrf.mxu0
  %v3387 = vadd.f32 %v129, %v3386
  %3388 = vmatmul.bf16.gmra.mxu0 %v403
  %v3389 = vpop.f32.mrf.mxu0
  %v3390 = vadd.f32 %v134, %v3389
  %v3391 = vpop.f32.mrf.mxu0
  %v3392 = vadd.f32 %v139, %v3391
  %3393 = vmatmul.bf16.gmra.mxu0 %v406
  %v3394 = vpop.f32.mrf.mxu0
  %v3395 = vadd.f32 %v144, %v3394
  %v3396 = vpop.f32.mrf.mxu0
  %v3397 = vadd.f32 %v149, %v3396
  %3398 = vmatmul.bf16.gmra.mxu0 %v409
  %v3399 = vpop.f32.mrf.mxu0
  %v3400 = vadd.f32 %v154, %v3399
  %v3401 = vpop.f32.mrf.mxu0
  %v3402 = vadd.f32 %v159, %v3401
  %3403 = vmatmul.bf16.gmra.mxu0 %v412
  %v3404 = vpop.f32.mrf.mxu0
  %v3405 = vadd.f32 %v164, %v3404
  %v3406 = vpop.f32.mrf.mxu0
  %v3407 = vadd.f32 %v169, %v3406
  %3408 = vmatmul.bf16.gmra.mxu0 %v415
  %v3409 = vpop.f32.mrf.mxu0
  %v3410 = vadd.f32 %v174, %v3409
  %v3411 = vpop.f32.mrf.mxu0
  %v3412 = vadd.f32 %v179, %v3411
  %3413 = vmatmul.bf16.gmra.mxu0 %v418
  %v3414 = vpop.f32.mrf.mxu0
  %v3415 = vadd.f32 %v184, %v3414
  %v3416 = vpop.f32.mrf.mxu0
  %v3417 = vadd.f32 %v189, %v3416
  %3418 = vmatmul.bf16.gmra.mxu0 %v421
  %v3419 = vpop.f32.mrf.mxu0
  %v3420 = vadd.f32 %v194, %v3419
  %v3421 = vpop.f32.mrf.mxu0
  %v3422 = vadd.f32 %v199, %v3421
  %3423 = vmatmul.bf16.gmra.mxu0 %v424
  %v3424 = vpop.f32.mrf.mxu0
  %v3425 = vadd.f32 %v204, %v3424
  %v3426 = vpop.f32.mrf.mxu0
  %v3427 = vadd.f32 %v209, %v3426
  %3428 = vmatmul.bf16.gmra.mxu0 %v427
  %v3429 = vpop.f32.mrf.mxu0
  %v3430 = vadd.f32 %v214, %v3429
  %v3431 = vpop.f32.mrf.mxu0
  %v3432 = vadd.f32 %v219, %v3431
  %3433 = vmatmul.bf16.gmra.mxu0 %v430
  %v3434 = vpop.f32.mrf.mxu0
  %v3435 = vadd.f32 %v224, %v3434
  %v3436 = vpop.f32.mrf.mxu0
  %v3437 = vadd.f32 %v229, %v3436
  %3438 = vmatmul.bf16.gmra.mxu0 %v433
  %v3439 = vpop.f32.mrf.mxu0
  %v3440 = vadd.f32 %v234, %v3439
  %v3441 = vpop.f32.mrf.mxu0
  %v3442 = vadd.f32 %v239, %v3441
  %3443 = vmatmul.bf16.gmra.mxu0 %v436
  %v3444 = vpop.f32.mrf.mxu0
  %v3445 = vadd.f32 %v244, %v3444
  %v3446 = vpop.f32.mrf.mxu0
  %v3447 = vadd.f32 %v249, %v3446
  %3448 = vmatmul.bf16.gmra.mxu0 %v439
  %v3449 = vpop.f32.mrf.mxu0
  %v3450 = vadd.f32 %v254, %v3449
  %v3451 = vpop.f32.mrf.mxu0
  %v3452 = vadd.f32 %v259, %v3451
  %3453 = vmatmul.bf16.gmra.mxu0 %v442
  %v3454 = vpop.f32.mrf.mxu0
  %v3455 = vadd.f32 %v264, %v3454
  %v3456 = vpop.f32.mrf.mxu0
  %v3457 = vadd.f32 %v269, %v3456
  %3458 = vmatmul.bf16.gmra.mxu0 %v445
  %v3459 = vpop.f32.mrf.mxu0
  %v3460 = vadd.f32 %v274, %v3459
  %v3461 = vpop.f32.mrf.mxu0
  %3462 = vdwg.mxu0
  %v3463 = vmax.f32 %v3380, 0.0
  %v3464 = vmax.f32 %v3382, 0.0
  %v3465 = vmax.f32 %v3385, 0.0
  %v3466 = vmax.f32 %v3387, 0.0
  %v3467 = vmax.f32 %v3390, 0.0
  %v3468 = vmax.f32 %v3392, 0.0
  %v3469 = vmax.f32 %v3395, 0.0
  %v3470 = vmax.f32 %v3397, 0.0
  %v3471 = vmax.f32 %v3400, 0.0
  %v3472 = vmax.f32 %v3402, 0.0
  %v3473 = vmax.f32 %v3405, 0.0
  %v3474 = vmax.f32 %v3407, 0.0
  %v3475 = vmax.f32 %v3410, 0.0
  %v3476 = vmax.f32 %v3412, 0.0
  %v3477 = vmax.f32 %v3415, 0.0
  %v3478 = vmax.f32 %v3417, 0.0
  %v3479 = vmax.f32 %v3420, 0.0
  %v3480 = vmax.f32 %v3422, 0.0
  %v3481 = vmax.f32 %v3425, 0.0
  %v3482 = vmax.f32 %v3427, 0.0
  %v3483 = vmax.f32 %v3430, 0.0
  %v3484 = vmax.f32 %v3432, 0.0
  %v3485 = vmax.f32 %v3435, 0.0
  %v3486 = vmax.f32 %v3437, 0.0
  %v3487 = vmax.f32 %v3440, 0.0
  %v3488 = vmax.f32 %v3442, 0.0
  %v3489 = vmax.f32 %v3445, 0.0
  %v3490 = vmax.f32 %v3447, 0.0
  %v3491 = vmax.f32 %v3450, 0.0
  %v3492 = vmax.f32 %v3452, 0.0
  %v3493 = vmax.f32 %v3455, 0.0
  %v3494 = vmax.f32 %v3457, 0.0
  %v3495 = vmax.f32 %v3460, 0.0
  %v3496 = vpack.c.bf16 %v3464, %v3463
  %v3497 = vpack.c.bf16 %v3466, %v3465
  %v3498 = vpack.c.bf16 %v3468, %v3467
  %v3499 = vpack.c.bf16 %v3470, %v3469
  %v3500 = vpack.c.bf16 %v3472, %v3471
  %v3501 = vpack.c.bf16 %v3474, %v3473
  %v3502 = vpack.c.bf16 %v3476, %v3475
  %v3503 = vpack.c.bf16 %v3478, %v3477
  %v3504 = vpack.c.bf16 %v3480, %v3479
  %v3505 = vpack.c.bf16 %v3482, %v3481
  %v3506 = vpack.c.bf16 %v3484, %v3483
  %v3507 = vpack.c.bf16 %v3486, %v3485
  %v3508 = vpack.c.bf16 %v3488, %v3487
  %v3509 = vpack.c.bf16 %v3490, %v3489
  %v3510 = vpack.c.bf16 %v3492, %v3491
  %v3511 = vpack.c.bf16 %v3494, %v3493
  %v3512 = vpack.c.bf16 %v3495, %v3495
  %s3513 = scalar_lea.vmem %s3, 672
  %v3514 = vld [vmem:[%s3513] sm:$0xff]
  %v3515 = vld [vmem:[%s3513 + $0x8] sm:$0xf]
  %v3516 = vld [vmem:[%s3513 + $0xc] sm:$0xff]
  %v3517 = vld [vmem:[%s3513 + $0x14] sm:$0xf]
  %v3518 = vld [vmem:[%s3513 + $0x18] sm:$0xff]
  %v3519 = vld [vmem:[%s3513 + $0x20] sm:$0xf]
  %v3520 = vld [vmem:[%s3513 + $0x24] sm:$0xff]
  %v3521 = vld [vmem:[%s3513 + $0x2c] sm:$0xf]
  %v3522 = vld [vmem:[%s3513 + $0x30] sm:$0xff]
  %v3523 = vld [vmem:[%s3513 + $0x38] sm:$0xf]
  %v3524 = vld [vmem:[%s3513 + $0x3c] sm:$0xff]
  %v3525 = vld [vmem:[%s3513 + $0x44] sm:$0xf]
  %v3526 = vld [vmem:[%s3513 + $0x48] sm:$0x11]
  %v3527 = vld [vmem:[%s3513 + $0x50] sm:$0x1]
  %v3542 = vunpack.c.l.b16 %v3514
  %v3543 = vunpack.c.h.b16 %v3514
  %v3544 = vunpack.c.l.b16 %v3515
  %v3545 = vunpack.c.l.b16 %v3516
  %v3546 = vunpack.c.h.b16 %v3516
  %v3547 = vunpack.c.l.b16 %v3517
  %v3548 = vunpack.c.l.b16 %v3518
  %v3549 = vunpack.c.h.b16 %v3518
  %v3550 = vunpack.c.l.b16 %v3519
  %v3551 = vunpack.c.l.b16 %v3520
  %v3552 = vunpack.c.h.b16 %v3520
  %v3553 = vunpack.c.l.b16 %v3521
  %v3554 = vunpack.c.l.b16 %v3522
  %v3555 = vunpack.c.h.b16 %v3522
  %v3556 = vunpack.c.l.b16 %v3523
  %v3557 = vunpack.c.l.b16 %v3524
  %v3558 = vunpack.c.h.b16 %v3524
  %v3559 = vunpack.c.l.b16 %v3525
  %v3560 = vunpack.c.l.b16 %v3526
  %v3561 = vunpack.c.h.b16 %v3526
  %v3562 = vunpack.c.l.b16 %v3527
  %v3563 = vpack.c.b16 %v3545, %v3542
  %v3564 = vpack.c.b16 %v3546, %v3543
  %v3565 = vpack.c.b16 %v3547, %v3544
  %v3566 = vpack.c.b16 %v3551, %v3548
  %v3567 = vpack.c.b16 %v3552, %v3549
  %v3568 = vpack.c.b16 %v3553, %v3550
  %v3569 = vpack.c.b16 %v3557, %v3554
  %v3570 = vpack.c.b16 %v3558, %v3555
  %v3571 = vpack.c.b16 %v3559, %v3556
  %v3572 = vpack.c.b16 %v3560, %v3560
  %v3573 = vpack.c.b16 %v3561, %v3561
  %v3574 = vpack.c.b16 %v3562, %v3562
  %v3584 = vsel %vm865, %v3565, 0
  %v3587 = vsel %vm865, %v3568, 0
  %v3590 = vsel %vm865, %v3571, 0
  %v3593 = vsel %vm865, %v3574, 0
  %v3596 = vsel %vm878, %v3512, 0
  %3598 = vmatpush.bf16.msra.mxu0 %v3503
  %3599 = vmatpush.bf16.msra.mxu0 %v3502
  %3600 = vmatpush.bf16.msra.mxu0 %v3501
  %3601 = vmatpush.bf16.msra.mxu0 %v3500
  %3602 = vmatpush.bf16.msra.mxu0 %v3499
  %3603 = vmatpush.bf16.msra.mxu0 %v3498
  %3604 = vmatpush.bf16.msra.mxu0 %v3497
  %3605 = vmatpush.bf16.msra.mxu0 %v3496
  %3606 = vmatmul.bf16.gmra.mxu0 %v3563
  %v3607 = vpop.f32.mrf.mxu0
  %v3608 = vadd.f32 0.0, %v3607
  %v3609 = vpop.f32.mrf.mxu0
  %v3610 = vadd.f32 0.0, %v3609
  %3611 = vmatmul.bf16.gmra.mxu0 %v3566
  %v3612 = vpop.f32.mrf.mxu0
  %v3613 = vadd.f32 0.0, %v3612
  %v3614 = vpop.f32.mrf.mxu0
  %v3615 = vadd.f32 0.0, %v3614
  %3616 = vmatmul.bf16.gmra.mxu0 %v3569
  %v3617 = vpop.f32.mrf.mxu0
  %v3618 = vadd.f32 0.0, %v3617
  %v3619 = vpop.f32.mrf.mxu0
  %v3620 = vadd.f32 0.0, %v3619
  %3621 = vmatmul.bf16.gmra.mxu0 %v3572
  %v3622 = vpop.f32.mrf.mxu0
  %v3623 = vadd.f32 0.0, %v3622
  %v3624 = vpop.f32.mrf.mxu0
  %3625 = vdwg.mxu0
  %3626 = vmatpush.bf16.msra.mxu0 %v3511
  %3627 = vmatpush.bf16.msra.mxu0 %v3510
  %3628 = vmatpush.bf16.msra.mxu0 %v3509
  %3629 = vmatpush.bf16.msra.mxu0 %v3508
  %3630 = vmatpush.bf16.msra.mxu0 %v3507
  %3631 = vmatpush.bf16.msra.mxu0 %v3506
  %3632 = vmatpush.bf16.msra.mxu0 %v3505
  %3633 = vmatpush.bf16.msra.mxu0 %v3504
  %3634 = vmatmul.bf16.gmra.mxu0 %v3564
  %v3635 = vpop.f32.mrf.mxu0
  %v3636 = vadd.f32 %v3608, %v3635
  %v3637 = vpop.f32.mrf.mxu0
  %v3638 = vadd.f32 %v3610, %v3637
  %3639 = vmatmul.bf16.gmra.mxu0 %v3567
  %v3640 = vpop.f32.mrf.mxu0
  %v3641 = vadd.f32 %v3613, %v3640
  %v3642 = vpop.f32.mrf.mxu0
  %v3643 = vadd.f32 %v3615, %v3642
  %3644 = vmatmul.bf16.gmra.mxu0 %v3570
  %v3645 = vpop.f32.mrf.mxu0
  %v3646 = vadd.f32 %v3618, %v3645
  %v3647 = vpop.f32.mrf.mxu0
  %v3648 = vadd.f32 %v3620, %v3647
  %3649 = vmatmul.bf16.gmra.mxu0 %v3573
  %v3650 = vpop.f32.mrf.mxu0
  %v3651 = vadd.f32 %v3623, %v3650
  %v3652 = vpop.f32.mrf.mxu0
  %3653 = vdwg.mxu0
  %3654 = vmatpush.bf16.msra.mxu0 0
  %3655 = vmatpush.bf16.msra.mxu0 0
  %3656 = vmatpush.bf16.msra.mxu0 0
  %3657 = vmatpush.bf16.msra.mxu0 0
  %3658 = vmatpush.bf16.msra.mxu0 0
  %3659 = vmatpush.bf16.msra.mxu0 0
  %3660 = vmatpush.bf16.msra.mxu0 0
  %3661 = vmatpush.bf16.msra.mxu0 %v3596
  %3662 = vmatmul.bf16.gmra.mxu0 %v3584
  %v3663 = vpop.f32.mrf.mxu0
  %v3664 = vadd.f32 %v3636, %v3663
  %v3665 = vpop.f32.mrf.mxu0
  %v3666 = vadd.f32 %v3638, %v3665
  %3667 = vmatmul.bf16.gmra.mxu0 %v3587
  %v3668 = vpop.f32.mrf.mxu0
  %v3669 = vadd.f32 %v3641, %v3668
  %v3670 = vpop.f32.mrf.mxu0
  %v3671 = vadd.f32 %v3643, %v3670
  %3672 = vmatmul.bf16.gmra.mxu0 %v3590
  %v3673 = vpop.f32.mrf.mxu0
  %v3674 = vadd.f32 %v3646, %v3673
  %v3675 = vpop.f32.mrf.mxu0
  %v3676 = vadd.f32 %v3648, %v3675
  %3677 = vmatmul.bf16.gmra.mxu0 %v3593
  %v3678 = vpop.f32.mrf.mxu0
  %v3679 = vadd.f32 %v3651, %v3678
  %v3680 = vpop.f32.mrf.mxu0
  %3681 = vdwg.mxu0
  %v3682 = vadd.f32 %v3315, %v3664
  %v3683 = vadd.f32 %v3316, %v3666
  %v3684 = vadd.f32 %v3317, %v3669
  %v3685 = vadd.f32 %v3318, %v3671
  %v3686 = vadd.f32 %v3319, %v3674
  %v3687 = vadd.f32 %v3320, %v3676
  %v3688 = vadd.f32 %v3321, %v3679
  %v3689 = vld [vmem:[%s0 + $0x90] sm:$0xf]
  %v3690 = vld [vmem:[%s0 + $0x94] sm:$0xf]
  %v3691 = vld [vmem:[%s0 + $0x98] sm:$0xf]
  %v3692 = vld [vmem:[%s0 + $0x9c] sm:$0xf]
  %v3693 = vld [vmem:[%s0 + $0xa0] sm:$0xf]
  %v3694 = vld [vmem:[%s0 + $0xa4] sm:$0xf]
  %v3695 = vld [vmem:[%s0 + $0xa8] sm:$0xf]
  %v3696 = vld [vmem:[%s0 + $0xac] sm:$0xf]
  %v3697 = vld [vmem:[%s0 + $0xb0] sm:$0xf]
  %v3698 = vld [vmem:[%s0 + $0xb4] sm:$0xf]
  %v3699 = vld [vmem:[%s0 + $0xb8] sm:$0xf]
  %v3700 = vld [vmem:[%s0 + $0xbc] sm:$0xf]
  %v3713 = vunpack.c.l.b16 %v3689
  %v3714 = vunpack.c.l.b16 %v3690
  %v3715 = vunpack.c.l.b16 %v3691
  %v3716 = vunpack.c.l.b16 %v3692
  %v3717 = vunpack.c.l.b16 %v3693
  %v3718 = vunpack.c.l.b16 %v3694
  %v3719 = vunpack.c.l.b16 %v3695
  %v3720 = vunpack.c.l.b16 %v3696
  %v3721 = vunpack.c.l.b16 %v3697
  %v3722 = vunpack.c.l.b16 %v3698
  %v3723 = vunpack.c.l.b16 %v3699
  %v3724 = vunpack.c.l.b16 %v3700
  %v3725 = vpack.c.b16 %v3714, %v3713
  %v3726 = vpack.c.b16 %v3716, %v3715
  %v3727 = vpack.c.b16 %v3718, %v3717
  %v3728 = vpack.c.b16 %v3720, %v3719
  %v3729 = vpack.c.b16 %v3722, %v3721
  %v3730 = vpack.c.b16 %v3724, %v3723
  %3737 = vmatpush.bf16.msra.mxu0 0
  %3738 = vmatpush.bf16.msra.mxu0 0
  %3739 = vmatpush.bf16.msra.mxu0 %v3730
  %3740 = vmatpush.bf16.msra.mxu0 %v3729
  %3741 = vmatpush.bf16.msra.mxu0 %v3728
  %3742 = vmatpush.bf16.msra.mxu0 %v3727
  %3743 = vmatpush.bf16.msra.mxu0 %v3726
  %3744 = vmatpush.bf16.msra.mxu0 %v3725
  %3745 = vmatmul.bf16.gmra.mxu0 %v397
  %v3746 = vpop.f32.mrf.mxu0
  %v3747 = vadd.f32 %v114, %v3746
  %v3748 = vpop.f32.mrf.mxu0
  %v3749 = vadd.f32 %v119, %v3748
  %3750 = vmatmul.bf16.gmra.mxu0 %v400
  %v3751 = vpop.f32.mrf.mxu0
  %v3752 = vadd.f32 %v124, %v3751
  %v3753 = vpop.f32.mrf.mxu0
  %v3754 = vadd.f32 %v129, %v3753
  %3755 = vmatmul.bf16.gmra.mxu0 %v403
  %v3756 = vpop.f32.mrf.mxu0
  %v3757 = vadd.f32 %v134, %v3756
  %v3758 = vpop.f32.mrf.mxu0
  %v3759 = vadd.f32 %v139, %v3758
  %3760 = vmatmul.bf16.gmra.mxu0 %v406
  %v3761 = vpop.f32.mrf.mxu0
  %v3762 = vadd.f32 %v144, %v3761
  %v3763 = vpop.f32.mrf.mxu0
  %v3764 = vadd.f32 %v149, %v3763
  %3765 = vmatmul.bf16.gmra.mxu0 %v409
  %v3766 = vpop.f32.mrf.mxu0
  %v3767 = vadd.f32 %v154, %v3766
  %v3768 = vpop.f32.mrf.mxu0
  %v3769 = vadd.f32 %v159, %v3768
  %3770 = vmatmul.bf16.gmra.mxu0 %v412
  %v3771 = vpop.f32.mrf.mxu0
  %v3772 = vadd.f32 %v164, %v3771
  %v3773 = vpop.f32.mrf.mxu0
  %v3774 = vadd.f32 %v169, %v3773
  %3775 = vmatmul.bf16.gmra.mxu0 %v415
  %v3776 = vpop.f32.mrf.mxu0
  %v3777 = vadd.f32 %v174, %v3776
  %v3778 = vpop.f32.mrf.mxu0
  %v3779 = vadd.f32 %v179, %v3778
  %3780 = vmatmul.bf16.gmra.mxu0 %v418
  %v3781 = vpop.f32.mrf.mxu0
  %v3782 = vadd.f32 %v184, %v3781
  %v3783 = vpop.f32.mrf.mxu0
  %v3784 = vadd.f32 %v189, %v3783
  %3785 = vmatmul.bf16.gmra.mxu0 %v421
  %v3786 = vpop.f32.mrf.mxu0
  %v3787 = vadd.f32 %v194, %v3786
  %v3788 = vpop.f32.mrf.mxu0
  %v3789 = vadd.f32 %v199, %v3788
  %3790 = vmatmul.bf16.gmra.mxu0 %v424
  %v3791 = vpop.f32.mrf.mxu0
  %v3792 = vadd.f32 %v204, %v3791
  %v3793 = vpop.f32.mrf.mxu0
  %v3794 = vadd.f32 %v209, %v3793
  %3795 = vmatmul.bf16.gmra.mxu0 %v427
  %v3796 = vpop.f32.mrf.mxu0
  %v3797 = vadd.f32 %v214, %v3796
  %v3798 = vpop.f32.mrf.mxu0
  %v3799 = vadd.f32 %v219, %v3798
  %3800 = vmatmul.bf16.gmra.mxu0 %v430
  %v3801 = vpop.f32.mrf.mxu0
  %v3802 = vadd.f32 %v224, %v3801
  %v3803 = vpop.f32.mrf.mxu0
  %v3804 = vadd.f32 %v229, %v3803
  %3805 = vmatmul.bf16.gmra.mxu0 %v433
  %v3806 = vpop.f32.mrf.mxu0
  %v3807 = vadd.f32 %v234, %v3806
  %v3808 = vpop.f32.mrf.mxu0
  %v3809 = vadd.f32 %v239, %v3808
  %3810 = vmatmul.bf16.gmra.mxu0 %v436
  %v3811 = vpop.f32.mrf.mxu0
  %v3812 = vadd.f32 %v244, %v3811
  %v3813 = vpop.f32.mrf.mxu0
  %v3814 = vadd.f32 %v249, %v3813
  %3815 = vmatmul.bf16.gmra.mxu0 %v439
  %v3816 = vpop.f32.mrf.mxu0
  %v3817 = vadd.f32 %v254, %v3816
  %v3818 = vpop.f32.mrf.mxu0
  %v3819 = vadd.f32 %v259, %v3818
  %3820 = vmatmul.bf16.gmra.mxu0 %v442
  %v3821 = vpop.f32.mrf.mxu0
  %v3822 = vadd.f32 %v264, %v3821
  %v3823 = vpop.f32.mrf.mxu0
  %v3824 = vadd.f32 %v269, %v3823
  %3825 = vmatmul.bf16.gmra.mxu0 %v445
  %v3826 = vpop.f32.mrf.mxu0
  %v3827 = vadd.f32 %v274, %v3826
  %v3828 = vpop.f32.mrf.mxu0
  %3829 = vdwg.mxu0
  %v3830 = vmax.f32 %v3747, 0.0
  %v3831 = vmax.f32 %v3749, 0.0
  %v3832 = vmax.f32 %v3752, 0.0
  %v3833 = vmax.f32 %v3754, 0.0
  %v3834 = vmax.f32 %v3757, 0.0
  %v3835 = vmax.f32 %v3759, 0.0
  %v3836 = vmax.f32 %v3762, 0.0
  %v3837 = vmax.f32 %v3764, 0.0
  %v3838 = vmax.f32 %v3767, 0.0
  %v3839 = vmax.f32 %v3769, 0.0
  %v3840 = vmax.f32 %v3772, 0.0
  %v3841 = vmax.f32 %v3774, 0.0
  %v3842 = vmax.f32 %v3777, 0.0
  %v3843 = vmax.f32 %v3779, 0.0
  %v3844 = vmax.f32 %v3782, 0.0
  %v3845 = vmax.f32 %v3784, 0.0
  %v3846 = vmax.f32 %v3787, 0.0
  %v3847 = vmax.f32 %v3789, 0.0
  %v3848 = vmax.f32 %v3792, 0.0
  %v3849 = vmax.f32 %v3794, 0.0
  %v3850 = vmax.f32 %v3797, 0.0
  %v3851 = vmax.f32 %v3799, 0.0
  %v3852 = vmax.f32 %v3802, 0.0
  %v3853 = vmax.f32 %v3804, 0.0
  %v3854 = vmax.f32 %v3807, 0.0
  %v3855 = vmax.f32 %v3809, 0.0
  %v3856 = vmax.f32 %v3812, 0.0
  %v3857 = vmax.f32 %v3814, 0.0
  %v3858 = vmax.f32 %v3817, 0.0
  %v3859 = vmax.f32 %v3819, 0.0
  %v3860 = vmax.f32 %v3822, 0.0
  %v3861 = vmax.f32 %v3824, 0.0
  %v3862 = vmax.f32 %v3827, 0.0
  %v3863 = vpack.c.bf16 %v3831, %v3830
  %v3864 = vpack.c.bf16 %v3833, %v3832
  %v3865 = vpack.c.bf16 %v3835, %v3834
  %v3866 = vpack.c.bf16 %v3837, %v3836
  %v3867 = vpack.c.bf16 %v3839, %v3838
  %v3868 = vpack.c.bf16 %v3841, %v3840
  %v3869 = vpack.c.bf16 %v3843, %v3842
  %v3870 = vpack.c.bf16 %v3845, %v3844
  %v3871 = vpack.c.bf16 %v3847, %v3846
  %v3872 = vpack.c.bf16 %v3849, %v3848
  %v3873 = vpack.c.bf16 %v3851, %v3850
  %v3874 = vpack.c.bf16 %v3853, %v3852
  %v3875 = vpack.c.bf16 %v3855, %v3854
  %v3876 = vpack.c.bf16 %v3857, %v3856
  %v3877 = vpack.c.bf16 %v3859, %v3858
  %v3878 = vpack.c.bf16 %v3861, %v3860
  %v3879 = vpack.c.bf16 %v3862, %v3862
  %s3880 = scalar_lea.vmem %s3, 756
  %v3881 = vld [vmem:[%s3880] sm:$0xff]
  %v3882 = vld [vmem:[%s3880 + $0x8] sm:$0xf]
  %v3883 = vld [vmem:[%s3880 + $0xc] sm:$0xff]
  %v3884 = vld [vmem:[%s3880 + $0x14] sm:$0xf]
  %v3885 = vld [vmem:[%s3880 + $0x18] sm:$0xff]
  %v3886 = vld [vmem:[%s3880 + $0x20] sm:$0xf]
  %v3887 = vld [vmem:[%s3880 + $0x24] sm:$0xff]
  %v3888 = vld [vmem:[%s3880 + $0x2c] sm:$0xf]
  %v3889 = vld [vmem:[%s3880 + $0x30] sm:$0xff]
  %v3890 = vld [vmem:[%s3880 + $0x38] sm:$0xf]
  %v3891 = vld [vmem:[%s3880 + $0x3c] sm:$0xff]
  %v3892 = vld [vmem:[%s3880 + $0x44] sm:$0xf]
  %v3893 = vld [vmem:[%s3880 + $0x48] sm:$0x11]
  %v3894 = vld [vmem:[%s3880 + $0x50] sm:$0x1]
  %v3909 = vunpack.c.l.b16 %v3881
  %v3910 = vunpack.c.h.b16 %v3881
  %v3911 = vunpack.c.l.b16 %v3882
  %v3912 = vunpack.c.l.b16 %v3883
  %v3913 = vunpack.c.h.b16 %v3883
  %v3914 = vunpack.c.l.b16 %v3884
  %v3915 = vunpack.c.l.b16 %v3885
  %v3916 = vunpack.c.h.b16 %v3885
  %v3917 = vunpack.c.l.b16 %v3886
  %v3918 = vunpack.c.l.b16 %v3887
  %v3919 = vunpack.c.h.b16 %v3887
  %v3920 = vunpack.c.l.b16 %v3888
  %v3921 = vunpack.c.l.b16 %v3889
  %v3922 = vunpack.c.h.b16 %v3889
  %v3923 = vunpack.c.l.b16 %v3890
  %v3924 = vunpack.c.l.b16 %v3891
  %v3925 = vunpack.c.h.b16 %v3891
  %v3926 = vunpack.c.l.b16 %v3892
  %v3927 = vunpack.c.l.b16 %v3893
  %v3928 = vunpack.c.h.b16 %v3893
  %v3929 = vunpack.c.l.b16 %v3894
  %v3930 = vpack.c.b16 %v3912, %v3909
  %v3931 = vpack.c.b16 %v3913, %v3910
  %v3932 = vpack.c.b16 %v3914, %v3911
  %v3933 = vpack.c.b16 %v3918, %v3915
  %v3934 = vpack.c.b16 %v3919, %v3916
  %v3935 = vpack.c.b16 %v3920, %v3917
  %v3936 = vpack.c.b16 %v3924, %v3921
  %v3937 = vpack.c.b16 %v3925, %v3922
  %v3938 = vpack.c.b16 %v3926, %v3923
  %v3939 = vpack.c.b16 %v3927, %v3927
  %v3940 = vpack.c.b16 %v3928, %v3928
  %v3941 = vpack.c.b16 %v3929, %v3929
  %v3951 = vsel %vm865, %v3932, 0
  %v3954 = vsel %vm865, %v3935, 0
  %v3957 = vsel %vm865, %v3938, 0
  %v3960 = vsel %vm865, %v3941, 0
  %v3963 = vsel %vm878, %v3879, 0
  %3965 = vmatpush.bf16.msra.mxu0 %v3870
  %3966 = vmatpush.bf16.msra.mxu0 %v3869
  %3967 = vmatpush.bf16.msra.mxu0 %v3868
  %3968 = vmatpush.bf16.msra.mxu0 %v3867
  %3969 = vmatpush.bf16.msra.mxu0 %v3866
  %3970 = vmatpush.bf16.msra.mxu0 %v3865
  %3971 = vmatpush.bf16.msra.mxu0 %v3864
  %3972 = vmatpush.bf16.msra.mxu0 %v3863
  %3973 = vmatmul.bf16.gmra.mxu0 %v3930
  %v3974 = vpop.f32.mrf.mxu0
  %v3975 = vadd.f32 0.0, %v3974
  %v3976 = vpop.f32.mrf.mxu0
  %v3977 = vadd.f32 0.0, %v3976
  %3978 = vmatmul.bf16.gmra.mxu0 %v3933
  %v3979 = vpop.f32.mrf.mxu0
  %v3980 = vadd.f32 0.0, %v3979
  %v3981 = vpop.f32.mrf.mxu0
  %v3982 = vadd.f32 0.0, %v3981
  %3983 = vmatmul.bf16.gmra.mxu0 %v3936
  %v3984 = vpop.f32.mrf.mxu0
  %v3985 = vadd.f32 0.0, %v3984
  %v3986 = vpop.f32.mrf.mxu0
  %v3987 = vadd.f32 0.0, %v3986
  %3988 = vmatmul.bf16.gmra.mxu0 %v3939
  %v3989 = vpop.f32.mrf.mxu0
  %v3990 = vadd.f32 0.0, %v3989
  %v3991 = vpop.f32.mrf.mxu0
  %3992 = vdwg.mxu0
  %3993 = vmatpush.bf16.msra.mxu0 %v3878
  %3994 = vmatpush.bf16.msra.mxu0 %v3877
  %3995 = vmatpush.bf16.msra.mxu0 %v3876
  %3996 = vmatpush.bf16.msra.mxu0 %v3875
  %3997 = vmatpush.bf16.msra.mxu0 %v3874
  %3998 = vmatpush.bf16.msra.mxu0 %v3873
  %3999 = vmatpush.bf16.msra.mxu0 %v3872
  %4000 = vmatpush.bf16.msra.mxu0 %v3871
  %4001 = vmatmul.bf16.gmra.mxu0 %v3931
  %v4002 = vpop.f32.mrf.mxu0
  %v4003 = vadd.f32 %v3975, %v4002
  %v4004 = vpop.f32.mrf.mxu0
  %v4005 = vadd.f32 %v3977, %v4004
  %4006 = vmatmul.bf16.gmra.mxu0 %v3934
  %v4007 = vpop.f32.mrf.mxu0
  %v4008 = vadd.f32 %v3980, %v4007
  %v4009 = vpop.f32.mrf.mxu0
  %v4010 = vadd.f32 %v3982, %v4009
  %4011 = vmatmul.bf16.gmra.mxu0 %v3937
  %v4012 = vpop.f32.mrf.mxu0
  %v4013 = vadd.f32 %v3985, %v4012
  %v4014 = vpop.f32.mrf.mxu0
  %v4015 = vadd.f32 %v3987, %v4014
  %4016 = vmatmul.bf16.gmra.mxu0 %v3940
  %v4017 = vpop.f32.mrf.mxu0
  %v4018 = vadd.f32 %v3990, %v4017
  %v4019 = vpop.f32.mrf.mxu0
  %4020 = vdwg.mxu0
  %4021 = vmatpush.bf16.msra.mxu0 0
  %4022 = vmatpush.bf16.msra.mxu0 0
  %4023 = vmatpush.bf16.msra.mxu0 0
  %4024 = vmatpush.bf16.msra.mxu0 0
  %4025 = vmatpush.bf16.msra.mxu0 0
  %4026 = vmatpush.bf16.msra.mxu0 0
  %4027 = vmatpush.bf16.msra.mxu0 0
  %4028 = vmatpush.bf16.msra.mxu0 %v3963
  %4029 = vmatmul.bf16.gmra.mxu0 %v3951
  %v4030 = vpop.f32.mrf.mxu0
  %v4031 = vadd.f32 %v4003, %v4030
  %v4032 = vpop.f32.mrf.mxu0
  %v4033 = vadd.f32 %v4005, %v4032
  %4034 = vmatmul.bf16.gmra.mxu0 %v3954
  %v4035 = vpop.f32.mrf.mxu0
  %v4036 = vadd.f32 %v4008, %v4035
  %v4037 = vpop.f32.mrf.mxu0
  %v4038 = vadd.f32 %v4010, %v4037
  %4039 = vmatmul.bf16.gmra.mxu0 %v3957
  %v4040 = vpop.f32.mrf.mxu0
  %v4041 = vadd.f32 %v4013, %v4040
  %v4042 = vpop.f32.mrf.mxu0
  %v4043 = vadd.f32 %v4015, %v4042
  %4044 = vmatmul.bf16.gmra.mxu0 %v3960
  %v4045 = vpop.f32.mrf.mxu0
  %v4046 = vadd.f32 %v4018, %v4045
  %v4047 = vpop.f32.mrf.mxu0
  %4048 = vdwg.mxu0
  %v4049 = vadd.f32 %v3682, %v4031
  %v4050 = vadd.f32 %v3683, %v4033
  %v4051 = vadd.f32 %v3684, %v4036
  %v4052 = vadd.f32 %v3685, %v4038
  %v4053 = vadd.f32 %v3686, %v4041
  %v4054 = vadd.f32 %v3687, %v4043
  %v4055 = vadd.f32 %v3688, %v4046
  %v4056 = vld [vmem:[%s0 + $0xa0] sm:$0xf]
  %v4057 = vld [vmem:[%s0 + $0xa4] sm:$0xf]
  %v4058 = vld [vmem:[%s0 + $0xa8] sm:$0xf]
  %v4059 = vld [vmem:[%s0 + $0xac] sm:$0xf]
  %v4060 = vld [vmem:[%s0 + $0xb0] sm:$0xf]
  %v4061 = vld [vmem:[%s0 + $0xb4] sm:$0xf]
  %v4062 = vld [vmem:[%s0 + $0xb8] sm:$0xf]
  %v4063 = vld [vmem:[%s0 + $0xbc] sm:$0xf]
  %v4064 = vld [vmem:[%s0 + $0xc0] sm:$0xf]
  %v4065 = vld [vmem:[%s0 + $0xc4] sm:$0xf]
  %v4066 = vld [vmem:[%s0 + $0xc8] sm:$0xf]
  %v4067 = vld [vmem:[%s0 + $0xcc] sm:$0xf]
  %v4080 = vunpack.c.l.b16 %v4056
  %v4081 = vunpack.c.l.b16 %v4057
  %v4082 = vunpack.c.l.b16 %v4058
  %v4083 = vunpack.c.l.b16 %v4059
  %v4084 = vunpack.c.l.b16 %v4060
  %v4085 = vunpack.c.l.b16 %v4061
  %v4086 = vunpack.c.l.b16 %v4062
  %v4087 = vunpack.c.l.b16 %v4063
  %v4088 = vunpack.c.l.b16 %v4064
  %v4089 = vunpack.c.l.b16 %v4065
  %v4090 = vunpack.c.l.b16 %v4066
  %v4091 = vunpack.c.l.b16 %v4067
  %v4092 = vpack.c.b16 %v4081, %v4080
  %v4093 = vpack.c.b16 %v4083, %v4082
  %v4094 = vpack.c.b16 %v4085, %v4084
  %v4095 = vpack.c.b16 %v4087, %v4086
  %v4096 = vpack.c.b16 %v4089, %v4088
  %v4097 = vpack.c.b16 %v4091, %v4090
  %4104 = vmatpush.bf16.msra.mxu0 0
  %4105 = vmatpush.bf16.msra.mxu0 0
  %4106 = vmatpush.bf16.msra.mxu0 %v4097
  %4107 = vmatpush.bf16.msra.mxu0 %v4096
  %4108 = vmatpush.bf16.msra.mxu0 %v4095
  %4109 = vmatpush.bf16.msra.mxu0 %v4094
  %4110 = vmatpush.bf16.msra.mxu0 %v4093
  %4111 = vmatpush.bf16.msra.mxu0 %v4092
  %4112 = vmatmul.bf16.gmra.mxu0 %v397
  %v4113 = vpop.f32.mrf.mxu0
  %v4114 = vadd.f32 %v114, %v4113
  %v4115 = vpop.f32.mrf.mxu0
  %v4116 = vadd.f32 %v119, %v4115
  %4117 = vmatmul.bf16.gmra.mxu0 %v400
  %v4118 = vpop.f32.mrf.mxu0
  %v4119 = vadd.f32 %v124, %v4118
  %v4120 = vpop.f32.mrf.mxu0
  %v4121 = vadd.f32 %v129, %v4120
  %4122 = vmatmul.bf16.gmra.mxu0 %v403
  %v4123 = vpop.f32.mrf.mxu0
  %v4124 = vadd.f32 %v134, %v4123
  %v4125 = vpop.f32.mrf.mxu0
  %v4126 = vadd.f32 %v139, %v4125
  %4127 = vmatmul.bf16.gmra.mxu0 %v406
  %v4128 = vpop.f32.mrf.mxu0
  %v4129 = vadd.f32 %v144, %v4128
  %v4130 = vpop.f32.mrf.mxu0
  %v4131 = vadd.f32 %v149, %v4130
  %4132 = vmatmul.bf16.gmra.mxu0 %v409
  %v4133 = vpop.f32.mrf.mxu0
  %v4134 = vadd.f32 %v154, %v4133
  %v4135 = vpop.f32.mrf.mxu0
  %v4136 = vadd.f32 %v159, %v4135
  %4137 = vmatmul.bf16.gmra.mxu0 %v412
  %v4138 = vpop.f32.mrf.mxu0
  %v4139 = vadd.f32 %v164, %v4138
  %v4140 = vpop.f32.mrf.mxu0
  %v4141 = vadd.f32 %v169, %v4140
  %4142 = vmatmul.bf16.gmra.mxu0 %v415
  %v4143 = vpop.f32.mrf.mxu0
  %v4144 = vadd.f32 %v174, %v4143
  %v4145 = vpop.f32.mrf.mxu0
  %v4146 = vadd.f32 %v179, %v4145
  %4147 = vmatmul.bf16.gmra.mxu0 %v418
  %v4148 = vpop.f32.mrf.mxu0
  %v4149 = vadd.f32 %v184, %v4148
  %v4150 = vpop.f32.mrf.mxu0
  %v4151 = vadd.f32 %v189, %v4150
  %4152 = vmatmul.bf16.gmra.mxu0 %v421
  %v4153 = vpop.f32.mrf.mxu0
  %v4154 = vadd.f32 %v194, %v4153
  %v4155 = vpop.f32.mrf.mxu0
  %v4156 = vadd.f32 %v199, %v4155
  %4157 = vmatmul.bf16.gmra.mxu0 %v424
  %v4158 = vpop.f32.mrf.mxu0
  %v4159 = vadd.f32 %v204, %v4158
  %v4160 = vpop.f32.mrf.mxu0
  %v4161 = vadd.f32 %v209, %v4160
  %4162 = vmatmul.bf16.gmra.mxu0 %v427
  %v4163 = vpop.f32.mrf.mxu0
  %v4164 = vadd.f32 %v214, %v4163
  %v4165 = vpop.f32.mrf.mxu0
  %v4166 = vadd.f32 %v219, %v4165
  %4167 = vmatmul.bf16.gmra.mxu0 %v430
  %v4168 = vpop.f32.mrf.mxu0
  %v4169 = vadd.f32 %v224, %v4168
  %v4170 = vpop.f32.mrf.mxu0
  %v4171 = vadd.f32 %v229, %v4170
  %4172 = vmatmul.bf16.gmra.mxu0 %v433
  %v4173 = vpop.f32.mrf.mxu0
  %v4174 = vadd.f32 %v234, %v4173
  %v4175 = vpop.f32.mrf.mxu0
  %v4176 = vadd.f32 %v239, %v4175
  %4177 = vmatmul.bf16.gmra.mxu0 %v436
  %v4178 = vpop.f32.mrf.mxu0
  %v4179 = vadd.f32 %v244, %v4178
  %v4180 = vpop.f32.mrf.mxu0
  %v4181 = vadd.f32 %v249, %v4180
  %4182 = vmatmul.bf16.gmra.mxu0 %v439
  %v4183 = vpop.f32.mrf.mxu0
  %v4184 = vadd.f32 %v254, %v4183
  %v4185 = vpop.f32.mrf.mxu0
  %v4186 = vadd.f32 %v259, %v4185
  %4187 = vmatmul.bf16.gmra.mxu0 %v442
  %v4188 = vpop.f32.mrf.mxu0
  %v4189 = vadd.f32 %v264, %v4188
  %v4190 = vpop.f32.mrf.mxu0
  %v4191 = vadd.f32 %v269, %v4190
  %4192 = vmatmul.bf16.gmra.mxu0 %v445
  %v4193 = vpop.f32.mrf.mxu0
  %v4194 = vadd.f32 %v274, %v4193
  %v4195 = vpop.f32.mrf.mxu0
  %4196 = vdwg.mxu0
  %v4197 = vmax.f32 %v4114, 0.0
  %v4198 = vmax.f32 %v4116, 0.0
  %v4199 = vmax.f32 %v4119, 0.0
  %v4200 = vmax.f32 %v4121, 0.0
  %v4201 = vmax.f32 %v4124, 0.0
  %v4202 = vmax.f32 %v4126, 0.0
  %v4203 = vmax.f32 %v4129, 0.0
  %v4204 = vmax.f32 %v4131, 0.0
  %v4205 = vmax.f32 %v4134, 0.0
  %v4206 = vmax.f32 %v4136, 0.0
  %v4207 = vmax.f32 %v4139, 0.0
  %v4208 = vmax.f32 %v4141, 0.0
  %v4209 = vmax.f32 %v4144, 0.0
  %v4210 = vmax.f32 %v4146, 0.0
  %v4211 = vmax.f32 %v4149, 0.0
  %v4212 = vmax.f32 %v4151, 0.0
  %v4213 = vmax.f32 %v4154, 0.0
  %v4214 = vmax.f32 %v4156, 0.0
  %v4215 = vmax.f32 %v4159, 0.0
  %v4216 = vmax.f32 %v4161, 0.0
  %v4217 = vmax.f32 %v4164, 0.0
  %v4218 = vmax.f32 %v4166, 0.0
  %v4219 = vmax.f32 %v4169, 0.0
  %v4220 = vmax.f32 %v4171, 0.0
  %v4221 = vmax.f32 %v4174, 0.0
  %v4222 = vmax.f32 %v4176, 0.0
  %v4223 = vmax.f32 %v4179, 0.0
  %v4224 = vmax.f32 %v4181, 0.0
  %v4225 = vmax.f32 %v4184, 0.0
  %v4226 = vmax.f32 %v4186, 0.0
  %v4227 = vmax.f32 %v4189, 0.0
  %v4228 = vmax.f32 %v4191, 0.0
  %v4229 = vmax.f32 %v4194, 0.0
  %v4230 = vpack.c.bf16 %v4198, %v4197
  %v4231 = vpack.c.bf16 %v4200, %v4199
  %v4232 = vpack.c.bf16 %v4202, %v4201
  %v4233 = vpack.c.bf16 %v4204, %v4203
  %v4234 = vpack.c.bf16 %v4206, %v4205
  %v4235 = vpack.c.bf16 %v4208, %v4207
  %v4236 = vpack.c.bf16 %v4210, %v4209
  %v4237 = vpack.c.bf16 %v4212, %v4211
  %v4238 = vpack.c.bf16 %v4214, %v4213
  %v4239 = vpack.c.bf16 %v4216, %v4215
  %v4240 = vpack.c.bf16 %v4218, %v4217
  %v4241 = vpack.c.bf16 %v4220, %v4219
  %v4242 = vpack.c.bf16 %v4222, %v4221
  %v4243 = vpack.c.bf16 %v4224, %v4223
  %v4244 = vpack.c.bf16 %v4226, %v4225
  %v4245 = vpack.c.bf16 %v4228, %v4227
  %v4246 = vpack.c.bf16 %v4229, %v4229
  %s4247 = scalar_lea.vmem %s3, 840
  %v4248 = vld [vmem:[%s4247] sm:$0xff]
  %v4249 = vld [vmem:[%s4247 + $0x8] sm:$0xf]
  %v4250 = vld [vmem:[%s4247 + $0xc] sm:$0xff]
  %v4251 = vld [vmem:[%s4247 + $0x14] sm:$0xf]
  %v4252 = vld [vmem:[%s4247 + $0x18] sm:$0xff]
  %v4253 = vld [vmem:[%s4247 + $0x20] sm:$0xf]
  %v4254 = vld [vmem:[%s4247 + $0x24] sm:$0xff]
  %v4255 = vld [vmem:[%s4247 + $0x2c] sm:$0xf]
  %v4256 = vld [vmem:[%s4247 + $0x30] sm:$0xff]
  %v4257 = vld [vmem:[%s4247 + $0x38] sm:$0xf]
  %v4258 = vld [vmem:[%s4247 + $0x3c] sm:$0xff]
  %v4259 = vld [vmem:[%s4247 + $0x44] sm:$0xf]
  %v4260 = vld [vmem:[%s4247 + $0x48] sm:$0x11]
  %v4261 = vld [vmem:[%s4247 + $0x50] sm:$0x1]
  %v4276 = vunpack.c.l.b16 %v4248
  %v4277 = vunpack.c.h.b16 %v4248
  %v4278 = vunpack.c.l.b16 %v4249
  %v4279 = vunpack.c.l.b16 %v4250
  %v4280 = vunpack.c.h.b16 %v4250
  %v4281 = vunpack.c.l.b16 %v4251
  %v4282 = vunpack.c.l.b16 %v4252
  %v4283 = vunpack.c.h.b16 %v4252
  %v4284 = vunpack.c.l.b16 %v4253
  %v4285 = vunpack.c.l.b16 %v4254
  %v4286 = vunpack.c.h.b16 %v4254
  %v4287 = vunpack.c.l.b16 %v4255
  %v4288 = vunpack.c.l.b16 %v4256
  %v4289 = vunpack.c.h.b16 %v4256
  %v4290 = vunpack.c.l.b16 %v4257
  %v4291 = vunpack.c.l.b16 %v4258
  %v4292 = vunpack.c.h.b16 %v4258
  %v4293 = vunpack.c.l.b16 %v4259
  %v4294 = vunpack.c.l.b16 %v4260
  %v4295 = vunpack.c.h.b16 %v4260
  %v4296 = vunpack.c.l.b16 %v4261
  %v4297 = vpack.c.b16 %v4279, %v4276
  %v4298 = vpack.c.b16 %v4280, %v4277
  %v4299 = vpack.c.b16 %v4281, %v4278
  %v4300 = vpack.c.b16 %v4285, %v4282
  %v4301 = vpack.c.b16 %v4286, %v4283
  %v4302 = vpack.c.b16 %v4287, %v4284
  %v4303 = vpack.c.b16 %v4291, %v4288
  %v4304 = vpack.c.b16 %v4292, %v4289
  %v4305 = vpack.c.b16 %v4293, %v4290
  %v4306 = vpack.c.b16 %v4294, %v4294
  %v4307 = vpack.c.b16 %v4295, %v4295
  %v4308 = vpack.c.b16 %v4296, %v4296
  %v4318 = vsel %vm865, %v4299, 0
  %v4321 = vsel %vm865, %v4302, 0
  %v4324 = vsel %vm865, %v4305, 0
  %v4327 = vsel %vm865, %v4308, 0
  %v4330 = vsel %vm878, %v4246, 0
  %4332 = vmatpush.bf16.msra.mxu0 %v4237
  %4333 = vmatpush.bf16.msra.mxu0 %v4236
  %4334 = vmatpush.bf16.msra.mxu0 %v4235
  %4335 = vmatpush.bf16.msra.mxu0 %v4234
  %4336 = vmatpush.bf16.msra.mxu0 %v4233
  %4337 = vmatpush.bf16.msra.mxu0 %v4232
  %4338 = vmatpush.bf16.msra.mxu0 %v4231
  %4339 = vmatpush.bf16.msra.mxu0 %v4230
  %4340 = vmatmul.bf16.gmra.mxu0 %v4297
  %v4341 = vpop.f32.mrf.mxu0
  %v4342 = vadd.f32 0.0, %v4341
  %v4343 = vpop.f32.mrf.mxu0
  %v4344 = vadd.f32 0.0, %v4343
  %4345 = vmatmul.bf16.gmra.mxu0 %v4300
  %v4346 = vpop.f32.mrf.mxu0
  %v4347 = vadd.f32 0.0, %v4346
  %v4348 = vpop.f32.mrf.mxu0
  %v4349 = vadd.f32 0.0, %v4348
  %4350 = vmatmul.bf16.gmra.mxu0 %v4303
  %v4351 = vpop.f32.mrf.mxu0
  %v4352 = vadd.f32 0.0, %v4351
  %v4353 = vpop.f32.mrf.mxu0
  %v4354 = vadd.f32 0.0, %v4353
  %4355 = vmatmul.bf16.gmra.mxu0 %v4306
  %v4356 = vpop.f32.mrf.mxu0
  %v4357 = vadd.f32 0.0, %v4356
  %v4358 = vpop.f32.mrf.mxu0
  %4359 = vdwg.mxu0
  %4360 = vmatpush.bf16.msra.mxu0 %v4245
  %4361 = vmatpush.bf16.msra.mxu0 %v4244
  %4362 = vmatpush.bf16.msra.mxu0 %v4243
  %4363 = vmatpush.bf16.msra.mxu0 %v4242
  %4364 = vmatpush.bf16.msra.mxu0 %v4241
  %4365 = vmatpush.bf16.msra.mxu0 %v4240
  %4366 = vmatpush.bf16.msra.mxu0 %v4239
  %4367 = vmatpush.bf16.msra.mxu0 %v4238
  %4368 = vmatmul.bf16.gmra.mxu0 %v4298
  %v4369 = vpop.f32.mrf.mxu0
  %v4370 = vadd.f32 %v4342, %v4369
  %v4371 = vpop.f32.mrf.mxu0
  %v4372 = vadd.f32 %v4344, %v4371
  %4373 = vmatmul.bf16.gmra.mxu0 %v4301
  %v4374 = vpop.f32.mrf.mxu0
  %v4375 = vadd.f32 %v4347, %v4374
  %v4376 = vpop.f32.mrf.mxu0
  %v4377 = vadd.f32 %v4349, %v4376
  %4378 = vmatmul.bf16.gmra.mxu0 %v4304
  %v4379 = vpop.f32.mrf.mxu0
  %v4380 = vadd.f32 %v4352, %v4379
  %v4381 = vpop.f32.mrf.mxu0
  %v4382 = vadd.f32 %v4354, %v4381
  %4383 = vmatmul.bf16.gmra.mxu0 %v4307
  %v4384 = vpop.f32.mrf.mxu0
  %v4385 = vadd.f32 %v4357, %v4384
  %v4386 = vpop.f32.mrf.mxu0
  %4387 = vdwg.mxu0
  %4388 = vmatpush.bf16.msra.mxu0 0
  %4389 = vmatpush.bf16.msra.mxu0 0
  %4390 = vmatpush.bf16.msra.mxu0 0
  %4391 = vmatpush.bf16.msra.mxu0 0
  %4392 = vmatpush.bf16.msra.mxu0 0
  %4393 = vmatpush.bf16.msra.mxu0 0
  %4394 = vmatpush.bf16.msra.mxu0 0
  %4395 = vmatpush.bf16.msra.mxu0 %v4330
  %4396 = vmatmul.bf16.gmra.mxu0 %v4318
  %v4397 = vpop.f32.mrf.mxu0
  %v4398 = vadd.f32 %v4370, %v4397
  %v4399 = vpop.f32.mrf.mxu0
  %v4400 = vadd.f32 %v4372, %v4399
  %4401 = vmatmul.bf16.gmra.mxu0 %v4321
  %v4402 = vpop.f32.mrf.mxu0
  %v4403 = vadd.f32 %v4375, %v4402
  %v4404 = vpop.f32.mrf.mxu0
  %v4405 = vadd.f32 %v4377, %v4404
  %4406 = vmatmul.bf16.gmra.mxu0 %v4324
  %v4407 = vpop.f32.mrf.mxu0
  %v4408 = vadd.f32 %v4380, %v4407
  %v4409 = vpop.f32.mrf.mxu0
  %v4410 = vadd.f32 %v4382, %v4409
  %4411 = vmatmul.bf16.gmra.mxu0 %v4327
  %v4412 = vpop.f32.mrf.mxu0
  %v4413 = vadd.f32 %v4385, %v4412
  %v4414 = vpop.f32.mrf.mxu0
  %4415 = vdwg.mxu0
  %v4416 = vadd.f32 %v4049, %v4398
  %v4417 = vadd.f32 %v4050, %v4400
  %v4418 = vadd.f32 %v4051, %v4403
  %v4419 = vadd.f32 %v4052, %v4405
  %v4420 = vadd.f32 %v4053, %v4408
  %v4421 = vadd.f32 %v4054, %v4410
  %v4422 = vadd.f32 %v4055, %v4413
  %v4423 = vld [vmem:[%s0 + $0xb0] sm:$0xf]
  %v4424 = vld [vmem:[%s0 + $0xb4] sm:$0xf]
  %v4425 = vld [vmem:[%s0 + $0xb8] sm:$0xf]
  %v4426 = vld [vmem:[%s0 + $0xbc] sm:$0xf]
  %v4427 = vld [vmem:[%s0 + $0xc0] sm:$0xf]
  %v4428 = vld [vmem:[%s0 + $0xc4] sm:$0xf]
  %v4429 = vld [vmem:[%s0 + $0xc8] sm:$0xf]
  %v4430 = vld [vmem:[%s0 + $0xcc] sm:$0xf]
  %v4431 = vld [vmem:[%s0 + $0xd0] sm:$0xf]
  %v4432 = vld [vmem:[%s0 + $0xd4] sm:$0xf]
  %v4433 = vld [vmem:[%s0 + $0xd8] sm:$0xf]
  %v4434 = vld [vmem:[%s0 + $0xdc] sm:$0xf]
  %v4447 = vunpack.c.l.b16 %v4423
  %v4448 = vunpack.c.l.b16 %v4424
  %v4449 = vunpack.c.l.b16 %v4425
  %v4450 = vunpack.c.l.b16 %v4426
  %v4451 = vunpack.c.l.b16 %v4427
  %v4452 = vunpack.c.l.b16 %v4428
  %v4453 = vunpack.c.l.b16 %v4429
  %v4454 = vunpack.c.l.b16 %v4430
  %v4455 = vunpack.c.l.b16 %v4431
  %v4456 = vunpack.c.l.b16 %v4432
  %v4457 = vunpack.c.l.b16 %v4433
  %v4458 = vunpack.c.l.b16 %v4434
  %v4459 = vpack.c.b16 %v4448, %v4447
  %v4460 = vpack.c.b16 %v4450, %v4449
  %v4461 = vpack.c.b16 %v4452, %v4451
  %v4462 = vpack.c.b16 %v4454, %v4453
  %v4463 = vpack.c.b16 %v4456, %v4455
  %v4464 = vpack.c.b16 %v4458, %v4457
  %4471 = vmatpush.bf16.msra.mxu0 0
  %4472 = vmatpush.bf16.msra.mxu0 0
  %4473 = vmatpush.bf16.msra.mxu0 %v4464
  %4474 = vmatpush.bf16.msra.mxu0 %v4463
  %4475 = vmatpush.bf16.msra.mxu0 %v4462
  %4476 = vmatpush.bf16.msra.mxu0 %v4461
  %4477 = vmatpush.bf16.msra.mxu0 %v4460
  %4478 = vmatpush.bf16.msra.mxu0 %v4459
  %4479 = vmatmul.bf16.gmra.mxu0 %v397
  %v4480 = vpop.f32.mrf.mxu0
  %v4481 = vadd.f32 %v114, %v4480
  %v4482 = vpop.f32.mrf.mxu0
  %v4483 = vadd.f32 %v119, %v4482
  %4484 = vmatmul.bf16.gmra.mxu0 %v400
  %v4485 = vpop.f32.mrf.mxu0
  %v4486 = vadd.f32 %v124, %v4485
  %v4487 = vpop.f32.mrf.mxu0
  %v4488 = vadd.f32 %v129, %v4487
  %4489 = vmatmul.bf16.gmra.mxu0 %v403
  %v4490 = vpop.f32.mrf.mxu0
  %v4491 = vadd.f32 %v134, %v4490
  %v4492 = vpop.f32.mrf.mxu0
  %v4493 = vadd.f32 %v139, %v4492
  %4494 = vmatmul.bf16.gmra.mxu0 %v406
  %v4495 = vpop.f32.mrf.mxu0
  %v4496 = vadd.f32 %v144, %v4495
  %v4497 = vpop.f32.mrf.mxu0
  %v4498 = vadd.f32 %v149, %v4497
  %4499 = vmatmul.bf16.gmra.mxu0 %v409
  %v4500 = vpop.f32.mrf.mxu0
  %v4501 = vadd.f32 %v154, %v4500
  %v4502 = vpop.f32.mrf.mxu0
  %v4503 = vadd.f32 %v159, %v4502
  %4504 = vmatmul.bf16.gmra.mxu0 %v412
  %v4505 = vpop.f32.mrf.mxu0
  %v4506 = vadd.f32 %v164, %v4505
  %v4507 = vpop.f32.mrf.mxu0
  %v4508 = vadd.f32 %v169, %v4507
  %4509 = vmatmul.bf16.gmra.mxu0 %v415
  %v4510 = vpop.f32.mrf.mxu0
  %v4511 = vadd.f32 %v174, %v4510
  %v4512 = vpop.f32.mrf.mxu0
  %v4513 = vadd.f32 %v179, %v4512
  %4514 = vmatmul.bf16.gmra.mxu0 %v418
  %v4515 = vpop.f32.mrf.mxu0
  %v4516 = vadd.f32 %v184, %v4515
  %v4517 = vpop.f32.mrf.mxu0
  %v4518 = vadd.f32 %v189, %v4517
  %4519 = vmatmul.bf16.gmra.mxu0 %v421
  %v4520 = vpop.f32.mrf.mxu0
  %v4521 = vadd.f32 %v194, %v4520
  %v4522 = vpop.f32.mrf.mxu0
  %v4523 = vadd.f32 %v199, %v4522
  %4524 = vmatmul.bf16.gmra.mxu0 %v424
  %v4525 = vpop.f32.mrf.mxu0
  %v4526 = vadd.f32 %v204, %v4525
  %v4527 = vpop.f32.mrf.mxu0
  %v4528 = vadd.f32 %v209, %v4527
  %4529 = vmatmul.bf16.gmra.mxu0 %v427
  %v4530 = vpop.f32.mrf.mxu0
  %v4531 = vadd.f32 %v214, %v4530
  %v4532 = vpop.f32.mrf.mxu0
  %v4533 = vadd.f32 %v219, %v4532
  %4534 = vmatmul.bf16.gmra.mxu0 %v430
  %v4535 = vpop.f32.mrf.mxu0
  %v4536 = vadd.f32 %v224, %v4535
  %v4537 = vpop.f32.mrf.mxu0
  %v4538 = vadd.f32 %v229, %v4537
  %4539 = vmatmul.bf16.gmra.mxu0 %v433
  %v4540 = vpop.f32.mrf.mxu0
  %v4541 = vadd.f32 %v234, %v4540
  %v4542 = vpop.f32.mrf.mxu0
  %v4543 = vadd.f32 %v239, %v4542
  %4544 = vmatmul.bf16.gmra.mxu0 %v436
  %v4545 = vpop.f32.mrf.mxu0
  %v4546 = vadd.f32 %v244, %v4545
  %v4547 = vpop.f32.mrf.mxu0
  %v4548 = vadd.f32 %v249, %v4547
  %4549 = vmatmul.bf16.gmra.mxu0 %v439
  %v4550 = vpop.f32.mrf.mxu0
  %v4551 = vadd.f32 %v254, %v4550
  %v4552 = vpop.f32.mrf.mxu0
  %v4553 = vadd.f32 %v259, %v4552
  %4554 = vmatmul.bf16.gmra.mxu0 %v442
  %v4555 = vpop.f32.mrf.mxu0
  %v4556 = vadd.f32 %v264, %v4555
  %v4557 = vpop.f32.mrf.mxu0
  %v4558 = vadd.f32 %v269, %v4557
  %4559 = vmatmul.bf16.gmra.mxu0 %v445
  %v4560 = vpop.f32.mrf.mxu0
  %v4561 = vadd.f32 %v274, %v4560
  %v4562 = vpop.f32.mrf.mxu0
  %4563 = vdwg.mxu0
  %v4564 = vmax.f32 %v4481, 0.0
  %v4565 = vmax.f32 %v4483, 0.0
  %v4566 = vmax.f32 %v4486, 0.0
  %v4567 = vmax.f32 %v4488, 0.0
  %v4568 = vmax.f32 %v4491, 0.0
  %v4569 = vmax.f32 %v4493, 0.0
  %v4570 = vmax.f32 %v4496, 0.0
  %v4571 = vmax.f32 %v4498, 0.0
  %v4572 = vmax.f32 %v4501, 0.0
  %v4573 = vmax.f32 %v4503, 0.0
  %v4574 = vmax.f32 %v4506, 0.0
  %v4575 = vmax.f32 %v4508, 0.0
  %v4576 = vmax.f32 %v4511, 0.0
  %v4577 = vmax.f32 %v4513, 0.0
  %v4578 = vmax.f32 %v4516, 0.0
  %v4579 = vmax.f32 %v4518, 0.0
  %v4580 = vmax.f32 %v4521, 0.0
  %v4581 = vmax.f32 %v4523, 0.0
  %v4582 = vmax.f32 %v4526, 0.0
  %v4583 = vmax.f32 %v4528, 0.0
  %v4584 = vmax.f32 %v4531, 0.0
  %v4585 = vmax.f32 %v4533, 0.0
  %v4586 = vmax.f32 %v4536, 0.0
  %v4587 = vmax.f32 %v4538, 0.0
  %v4588 = vmax.f32 %v4541, 0.0
  %v4589 = vmax.f32 %v4543, 0.0
  %v4590 = vmax.f32 %v4546, 0.0
  %v4591 = vmax.f32 %v4548, 0.0
  %v4592 = vmax.f32 %v4551, 0.0
  %v4593 = vmax.f32 %v4553, 0.0
  %v4594 = vmax.f32 %v4556, 0.0
  %v4595 = vmax.f32 %v4558, 0.0
  %v4596 = vmax.f32 %v4561, 0.0
  %v4597 = vpack.c.bf16 %v4565, %v4564
  %v4598 = vpack.c.bf16 %v4567, %v4566
  %v4599 = vpack.c.bf16 %v4569, %v4568
  %v4600 = vpack.c.bf16 %v4571, %v4570
  %v4601 = vpack.c.bf16 %v4573, %v4572
  %v4602 = vpack.c.bf16 %v4575, %v4574
  %v4603 = vpack.c.bf16 %v4577, %v4576
  %v4604 = vpack.c.bf16 %v4579, %v4578
  %v4605 = vpack.c.bf16 %v4581, %v4580
  %v4606 = vpack.c.bf16 %v4583, %v4582
  %v4607 = vpack.c.bf16 %v4585, %v4584
  %v4608 = vpack.c.bf16 %v4587, %v4586
  %v4609 = vpack.c.bf16 %v4589, %v4588
  %v4610 = vpack.c.bf16 %v4591, %v4590
  %v4611 = vpack.c.bf16 %v4593, %v4592
  %v4612 = vpack.c.bf16 %v4595, %v4594
  %v4613 = vpack.c.bf16 %v4596, %v4596
  %s4614 = scalar_lea.vmem %s3, 924
  %v4615 = vld [vmem:[%s4614] sm:$0xff]
  %v4616 = vld [vmem:[%s4614 + $0x8] sm:$0xf]
  %v4617 = vld [vmem:[%s4614 + $0xc] sm:$0xff]
  %v4618 = vld [vmem:[%s4614 + $0x14] sm:$0xf]
  %v4619 = vld [vmem:[%s4614 + $0x18] sm:$0xff]
  %v4620 = vld [vmem:[%s4614 + $0x20] sm:$0xf]
  %v4621 = vld [vmem:[%s4614 + $0x24] sm:$0xff]
  %v4622 = vld [vmem:[%s4614 + $0x2c] sm:$0xf]
  %v4623 = vld [vmem:[%s4614 + $0x30] sm:$0xff]
  %v4624 = vld [vmem:[%s4614 + $0x38] sm:$0xf]
  %v4625 = vld [vmem:[%s4614 + $0x3c] sm:$0xff]
  %v4626 = vld [vmem:[%s4614 + $0x44] sm:$0xf]
  %v4627 = vld [vmem:[%s4614 + $0x48] sm:$0x11]
  %v4628 = vld [vmem:[%s4614 + $0x50] sm:$0x1]
  %v4643 = vunpack.c.l.b16 %v4615
  %v4644 = vunpack.c.h.b16 %v4615
  %v4645 = vunpack.c.l.b16 %v4616
  %v4646 = vunpack.c.l.b16 %v4617
  %v4647 = vunpack.c.h.b16 %v4617
  %v4648 = vunpack.c.l.b16 %v4618
  %v4649 = vunpack.c.l.b16 %v4619
  %v4650 = vunpack.c.h.b16 %v4619
  %v4651 = vunpack.c.l.b16 %v4620
  %v4652 = vunpack.c.l.b16 %v4621
  %v4653 = vunpack.c.h.b16 %v4621
  %v4654 = vunpack.c.l.b16 %v4622
  %v4655 = vunpack.c.l.b16 %v4623
  %v4656 = vunpack.c.h.b16 %v4623
  %v4657 = vunpack.c.l.b16 %v4624
  %v4658 = vunpack.c.l.b16 %v4625
  %v4659 = vunpack.c.h.b16 %v4625
  %v4660 = vunpack.c.l.b16 %v4626
  %v4661 = vunpack.c.l.b16 %v4627
  %v4662 = vunpack.c.h.b16 %v4627
  %v4663 = vunpack.c.l.b16 %v4628
  %v4664 = vpack.c.b16 %v4646, %v4643
  %v4665 = vpack.c.b16 %v4647, %v4644
  %v4666 = vpack.c.b16 %v4648, %v4645
  %v4667 = vpack.c.b16 %v4652, %v4649
  %v4668 = vpack.c.b16 %v4653, %v4650
  %v4669 = vpack.c.b16 %v4654, %v4651
  %v4670 = vpack.c.b16 %v4658, %v4655
  %v4671 = vpack.c.b16 %v4659, %v4656
  %v4672 = vpack.c.b16 %v4660, %v4657
  %v4673 = vpack.c.b16 %v4661, %v4661
  %v4674 = vpack.c.b16 %v4662, %v4662
  %v4675 = vpack.c.b16 %v4663, %v4663
  %v4685 = vsel %vm865, %v4666, 0
  %v4688 = vsel %vm865, %v4669, 0
  %v4691 = vsel %vm865, %v4672, 0
  %v4694 = vsel %vm865, %v4675, 0
  %v4697 = vsel %vm878, %v4613, 0
  %4699 = vmatpush.bf16.msra.mxu0 %v4604
  %4700 = vmatpush.bf16.msra.mxu0 %v4603
  %4701 = vmatpush.bf16.msra.mxu0 %v4602
  %4702 = vmatpush.bf16.msra.mxu0 %v4601
  %4703 = vmatpush.bf16.msra.mxu0 %v4600
  %4704 = vmatpush.bf16.msra.mxu0 %v4599
  %4705 = vmatpush.bf16.msra.mxu0 %v4598
  %4706 = vmatpush.bf16.msra.mxu0 %v4597
  %4707 = vmatmul.bf16.gmra.mxu0 %v4664
  %v4708 = vpop.f32.mrf.mxu0
  %v4709 = vadd.f32 0.0, %v4708
  %v4710 = vpop.f32.mrf.mxu0
  %v4711 = vadd.f32 0.0, %v4710
  %4712 = vmatmul.bf16.gmra.mxu0 %v4667
  %v4713 = vpop.f32.mrf.mxu0
  %v4714 = vadd.f32 0.0, %v4713
  %v4715 = vpop.f32.mrf.mxu0
  %v4716 = vadd.f32 0.0, %v4715
  %4717 = vmatmul.bf16.gmra.mxu0 %v4670
  %v4718 = vpop.f32.mrf.mxu0
  %v4719 = vadd.f32 0.0, %v4718
  %v4720 = vpop.f32.mrf.mxu0
  %v4721 = vadd.f32 0.0, %v4720
  %4722 = vmatmul.bf16.gmra.mxu0 %v4673
  %v4723 = vpop.f32.mrf.mxu0
  %v4724 = vadd.f32 0.0, %v4723
  %v4725 = vpop.f32.mrf.mxu0
  %4726 = vdwg.mxu0
  %4727 = vmatpush.bf16.msra.mxu0 %v4612
  %4728 = vmatpush.bf16.msra.mxu0 %v4611
  %4729 = vmatpush.bf16.msra.mxu0 %v4610
  %4730 = vmatpush.bf16.msra.mxu0 %v4609
  %4731 = vmatpush.bf16.msra.mxu0 %v4608
  %4732 = vmatpush.bf16.msra.mxu0 %v4607
  %4733 = vmatpush.bf16.msra.mxu0 %v4606
  %4734 = vmatpush.bf16.msra.mxu0 %v4605
  %4735 = vmatmul.bf16.gmra.mxu0 %v4665
  %v4736 = vpop.f32.mrf.mxu0
  %v4737 = vadd.f32 %v4709, %v4736
  %v4738 = vpop.f32.mrf.mxu0
  %v4739 = vadd.f32 %v4711, %v4738
  %4740 = vmatmul.bf16.gmra.mxu0 %v4668
  %v4741 = vpop.f32.mrf.mxu0
  %v4742 = vadd.f32 %v4714, %v4741
  %v4743 = vpop.f32.mrf.mxu0
  %v4744 = vadd.f32 %v4716, %v4743
  %4745 = vmatmul.bf16.gmra.mxu0 %v4671
  %v4746 = vpop.f32.mrf.mxu0
  %v4747 = vadd.f32 %v4719, %v4746
  %v4748 = vpop.f32.mrf.mxu0
  %v4749 = vadd.f32 %v4721, %v4748
  %4750 = vmatmul.bf16.gmra.mxu0 %v4674
  %v4751 = vpop.f32.mrf.mxu0
  %v4752 = vadd.f32 %v4724, %v4751
  %v4753 = vpop.f32.mrf.mxu0
  %4754 = vdwg.mxu0
  %4755 = vmatpush.bf16.msra.mxu0 0
  %4756 = vmatpush.bf16.msra.mxu0 0
  %4757 = vmatpush.bf16.msra.mxu0 0
  %4758 = vmatpush.bf16.msra.mxu0 0
  %4759 = vmatpush.bf16.msra.mxu0 0
  %4760 = vmatpush.bf16.msra.mxu0 0
  %4761 = vmatpush.bf16.msra.mxu0 0
  %4762 = vmatpush.bf16.msra.mxu0 %v4697
  %4763 = vmatmul.bf16.gmra.mxu0 %v4685
  %v4764 = vpop.f32.mrf.mxu0
  %v4765 = vadd.f32 %v4737, %v4764
  %v4766 = vpop.f32.mrf.mxu0
  %v4767 = vadd.f32 %v4739, %v4766
  %4768 = vmatmul.bf16.gmra.mxu0 %v4688
  %v4769 = vpop.f32.mrf.mxu0
  %v4770 = vadd.f32 %v4742, %v4769
  %v4771 = vpop.f32.mrf.mxu0
  %v4772 = vadd.f32 %v4744, %v4771
  %4773 = vmatmul.bf16.gmra.mxu0 %v4691
  %v4774 = vpop.f32.mrf.mxu0
  %v4775 = vadd.f32 %v4747, %v4774
  %v4776 = vpop.f32.mrf.mxu0
  %v4777 = vadd.f32 %v4749, %v4776
  %4778 = vmatmul.bf16.gmra.mxu0 %v4694
  %v4779 = vpop.f32.mrf.mxu0
  %v4780 = vadd.f32 %v4752, %v4779
  %v4781 = vpop.f32.mrf.mxu0
  %4782 = vdwg.mxu0
  %v4783 = vadd.f32 %v4416, %v4765
  %v4784 = vadd.f32 %v4417, %v4767
  %v4785 = vadd.f32 %v4418, %v4770
  %v4786 = vadd.f32 %v4419, %v4772
  %v4787 = vadd.f32 %v4420, %v4775
  %v4788 = vadd.f32 %v4421, %v4777
  %v4789 = vadd.f32 %v4422, %v4780
  %v4790 = vld [vmem:[%s0 + $0xc0] sm:$0xf]
  %v4791 = vld [vmem:[%s0 + $0xc4] sm:$0xf]
  %v4792 = vld [vmem:[%s0 + $0xc8] sm:$0xf]
  %v4793 = vld [vmem:[%s0 + $0xcc] sm:$0xf]
  %v4794 = vld [vmem:[%s0 + $0xd0] sm:$0xf]
  %v4795 = vld [vmem:[%s0 + $0xd4] sm:$0xf]
  %v4796 = vld [vmem:[%s0 + $0xd8] sm:$0xf]
  %v4797 = vld [vmem:[%s0 + $0xdc] sm:$0xf]
  %v4798 = vld [vmem:[%s0 + $0xe0] sm:$0xf]
  %v4799 = vld [vmem:[%s0 + $0xe4] sm:$0xf]
  %v4800 = vld [vmem:[%s0 + $0xe8] sm:$0xf]
  %v4801 = vld [vmem:[%s0 + $0xec] sm:$0xf]
  %v4814 = vunpack.c.l.b16 %v4790
  %v4815 = vunpack.c.l.b16 %v4791
  %v4816 = vunpack.c.l.b16 %v4792
  %v4817 = vunpack.c.l.b16 %v4793
  %v4818 = vunpack.c.l.b16 %v4794
  %v4819 = vunpack.c.l.b16 %v4795
  %v4820 = vunpack.c.l.b16 %v4796
  %v4821 = vunpack.c.l.b16 %v4797
  %v4822 = vunpack.c.l.b16 %v4798
  %v4823 = vunpack.c.l.b16 %v4799
  %v4824 = vunpack.c.l.b16 %v4800
  %v4825 = vunpack.c.l.b16 %v4801
  %v4826 = vpack.c.b16 %v4815, %v4814
  %v4827 = vpack.c.b16 %v4817, %v4816
  %v4828 = vpack.c.b16 %v4819, %v4818
  %v4829 = vpack.c.b16 %v4821, %v4820
  %v4830 = vpack.c.b16 %v4823, %v4822
  %v4831 = vpack.c.b16 %v4825, %v4824
  %4838 = vmatpush.bf16.msra.mxu0 0
  %4839 = vmatpush.bf16.msra.mxu0 0
  %4840 = vmatpush.bf16.msra.mxu0 %v4831
  %4841 = vmatpush.bf16.msra.mxu0 %v4830
  %4842 = vmatpush.bf16.msra.mxu0 %v4829
  %4843 = vmatpush.bf16.msra.mxu0 %v4828
  %4844 = vmatpush.bf16.msra.mxu0 %v4827
  %4845 = vmatpush.bf16.msra.mxu0 %v4826
  %4846 = vmatmul.bf16.gmra.mxu0 %v397
  %v4847 = vpop.f32.mrf.mxu0
  %v4848 = vadd.f32 %v114, %v4847
  %v4849 = vpop.f32.mrf.mxu0
  %v4850 = vadd.f32 %v119, %v4849
  %4851 = vmatmul.bf16.gmra.mxu0 %v400
  %v4852 = vpop.f32.mrf.mxu0
  %v4853 = vadd.f32 %v124, %v4852
  %v4854 = vpop.f32.mrf.mxu0
  %v4855 = vadd.f32 %v129, %v4854
  %4856 = vmatmul.bf16.gmra.mxu0 %v403
  %v4857 = vpop.f32.mrf.mxu0
  %v4858 = vadd.f32 %v134, %v4857
  %v4859 = vpop.f32.mrf.mxu0
  %v4860 = vadd.f32 %v139, %v4859
  %4861 = vmatmul.bf16.gmra.mxu0 %v406
  %v4862 = vpop.f32.mrf.mxu0
  %v4863 = vadd.f32 %v144, %v4862
  %v4864 = vpop.f32.mrf.mxu0
  %v4865 = vadd.f32 %v149, %v4864
  %4866 = vmatmul.bf16.gmra.mxu0 %v409
  %v4867 = vpop.f32.mrf.mxu0
  %v4868 = vadd.f32 %v154, %v4867
  %v4869 = vpop.f32.mrf.mxu0
  %v4870 = vadd.f32 %v159, %v4869
  %4871 = vmatmul.bf16.gmra.mxu0 %v412
  %v4872 = vpop.f32.mrf.mxu0
  %v4873 = vadd.f32 %v164, %v4872
  %v4874 = vpop.f32.mrf.mxu0
  %v4875 = vadd.f32 %v169, %v4874
  %4876 = vmatmul.bf16.gmra.mxu0 %v415
  %v4877 = vpop.f32.mrf.mxu0
  %v4878 = vadd.f32 %v174, %v4877
  %v4879 = vpop.f32.mrf.mxu0
  %v4880 = vadd.f32 %v179, %v4879
  %4881 = vmatmul.bf16.gmra.mxu0 %v418
  %v4882 = vpop.f32.mrf.mxu0
  %v4883 = vadd.f32 %v184, %v4882
  %v4884 = vpop.f32.mrf.mxu0
  %v4885 = vadd.f32 %v189, %v4884
  %4886 = vmatmul.bf16.gmra.mxu0 %v421
  %v4887 = vpop.f32.mrf.mxu0
  %v4888 = vadd.f32 %v194, %v4887
  %v4889 = vpop.f32.mrf.mxu0
  %v4890 = vadd.f32 %v199, %v4889
  %4891 = vmatmul.bf16.gmra.mxu0 %v424
  %v4892 = vpop.f32.mrf.mxu0
  %v4893 = vadd.f32 %v204, %v4892
  %v4894 = vpop.f32.mrf.mxu0
  %v4895 = vadd.f32 %v209, %v4894
  %4896 = vmatmul.bf16.gmra.mxu0 %v427
  %v4897 = vpop.f32.mrf.mxu0
  %v4898 = vadd.f32 %v214, %v4897
  %v4899 = vpop.f32.mrf.mxu0
  %v4900 = vadd.f32 %v219, %v4899
  %4901 = vmatmul.bf16.gmra.mxu0 %v430
  %v4902 = vpop.f32.mrf.mxu0
  %v4903 = vadd.f32 %v224, %v4902
  %v4904 = vpop.f32.mrf.mxu0
  %v4905 = vadd.f32 %v229, %v4904
  %4906 = vmatmul.bf16.gmra.mxu0 %v433
  %v4907 = vpop.f32.mrf.mxu0
  %v4908 = vadd.f32 %v234, %v4907
  %v4909 = vpop.f32.mrf.mxu0
  %v4910 = vadd.f32 %v239, %v4909
  %4911 = vmatmul.bf16.gmra.mxu0 %v436
  %v4912 = vpop.f32.mrf.mxu0
  %v4913 = vadd.f32 %v244, %v4912
  %v4914 = vpop.f32.mrf.mxu0
  %v4915 = vadd.f32 %v249, %v4914
  %4916 = vmatmul.bf16.gmra.mxu0 %v439
  %v4917 = vpop.f32.mrf.mxu0
  %v4918 = vadd.f32 %v254, %v4917
  %v4919 = vpop.f32.mrf.mxu0
  %v4920 = vadd.f32 %v259, %v4919
  %4921 = vmatmul.bf16.gmra.mxu0 %v442
  %v4922 = vpop.f32.mrf.mxu0
  %v4923 = vadd.f32 %v264, %v4922
  %v4924 = vpop.f32.mrf.mxu0
  %v4925 = vadd.f32 %v269, %v4924
  %4926 = vmatmul.bf16.gmra.mxu0 %v445
  %v4927 = vpop.f32.mrf.mxu0
  %v4928 = vadd.f32 %v274, %v4927
  %v4929 = vpop.f32.mrf.mxu0
  %4930 = vdwg.mxu0
  %v4931 = vmax.f32 %v4848, 0.0
  %v4932 = vmax.f32 %v4850, 0.0
  %v4933 = vmax.f32 %v4853, 0.0
  %v4934 = vmax.f32 %v4855, 0.0
  %v4935 = vmax.f32 %v4858, 0.0
  %v4936 = vmax.f32 %v4860, 0.0
  %v4937 = vmax.f32 %v4863, 0.0
  %v4938 = vmax.f32 %v4865, 0.0
  %v4939 = vmax.f32 %v4868, 0.0
  %v4940 = vmax.f32 %v4870, 0.0
  %v4941 = vmax.f32 %v4873, 0.0
  %v4942 = vmax.f32 %v4875, 0.0
  %v4943 = vmax.f32 %v4878, 0.0
  %v4944 = vmax.f32 %v4880, 0.0
  %v4945 = vmax.f32 %v4883, 0.0
  %v4946 = vmax.f32 %v4885, 0.0
  %v4947 = vmax.f32 %v4888, 0.0
  %v4948 = vmax.f32 %v4890, 0.0
  %v4949 = vmax.f32 %v4893, 0.0
  %v4950 = vmax.f32 %v4895, 0.0
  %v4951 = vmax.f32 %v4898, 0.0
  %v4952 = vmax.f32 %v4900, 0.0
  %v4953 = vmax.f32 %v4903, 0.0
  %v4954 = vmax.f32 %v4905, 0.0
  %v4955 = vmax.f32 %v4908, 0.0
  %v4956 = vmax.f32 %v4910, 0.0
  %v4957 = vmax.f32 %v4913, 0.0
  %v4958 = vmax.f32 %v4915, 0.0
  %v4959 = vmax.f32 %v4918, 0.0
  %v4960 = vmax.f32 %v4920, 0.0
  %v4961 = vmax.f32 %v4923, 0.0
  %v4962 = vmax.f32 %v4925, 0.0
  %v4963 = vmax.f32 %v4928, 0.0
  %v4964 = vpack.c.bf16 %v4932, %v4931
  %v4965 = vpack.c.bf16 %v4934, %v4933
  %v4966 = vpack.c.bf16 %v4936, %v4935
  %v4967 = vpack.c.bf16 %v4938, %v4937
  %v4968 = vpack.c.bf16 %v4940, %v4939
  %v4969 = vpack.c.bf16 %v4942, %v4941
  %v4970 = vpack.c.bf16 %v4944, %v4943
  %v4971 = vpack.c.bf16 %v4946, %v4945
  %v4972 = vpack.c.bf16 %v4948, %v4947
  %v4973 = vpack.c.bf16 %v4950, %v4949
  %v4974 = vpack.c.bf16 %v4952, %v4951
  %v4975 = vpack.c.bf16 %v4954, %v4953
  %v4976 = vpack.c.bf16 %v4956, %v4955
  %v4977 = vpack.c.bf16 %v4958, %v4957
  %v4978 = vpack.c.bf16 %v4960, %v4959
  %v4979 = vpack.c.bf16 %v4962, %v4961
  %v4980 = vpack.c.bf16 %v4963, %v4963
  %s4981 = scalar_lea.vmem %s3, 1008
  %v4982 = vld [vmem:[%s4981] sm:$0xff]
  %v4983 = vld [vmem:[%s4981 + $0x8] sm:$0xf]
  %v4984 = vld [vmem:[%s4981 + $0xc] sm:$0xff]
  %v4985 = vld [vmem:[%s4981 + $0x14] sm:$0xf]
  %v4986 = vld [vmem:[%s4981 + $0x18] sm:$0xff]
  %v4987 = vld [vmem:[%s4981 + $0x20] sm:$0xf]
  %v4988 = vld [vmem:[%s4981 + $0x24] sm:$0xff]
  %v4989 = vld [vmem:[%s4981 + $0x2c] sm:$0xf]
  %v4990 = vld [vmem:[%s4981 + $0x30] sm:$0xff]
  %v4991 = vld [vmem:[%s4981 + $0x38] sm:$0xf]
  %v4992 = vld [vmem:[%s4981 + $0x3c] sm:$0xff]
  %v4993 = vld [vmem:[%s4981 + $0x44] sm:$0xf]
  %v4994 = vld [vmem:[%s4981 + $0x48] sm:$0x11]
  %v4995 = vld [vmem:[%s4981 + $0x50] sm:$0x1]
  %v5010 = vunpack.c.l.b16 %v4982
  %v5011 = vunpack.c.h.b16 %v4982
  %v5012 = vunpack.c.l.b16 %v4983
  %v5013 = vunpack.c.l.b16 %v4984
  %v5014 = vunpack.c.h.b16 %v4984
  %v5015 = vunpack.c.l.b16 %v4985
  %v5016 = vunpack.c.l.b16 %v4986
  %v5017 = vunpack.c.h.b16 %v4986
  %v5018 = vunpack.c.l.b16 %v4987
  %v5019 = vunpack.c.l.b16 %v4988
  %v5020 = vunpack.c.h.b16 %v4988
  %v5021 = vunpack.c.l.b16 %v4989
  %v5022 = vunpack.c.l.b16 %v4990
  %v5023 = vunpack.c.h.b16 %v4990
  %v5024 = vunpack.c.l.b16 %v4991
  %v5025 = vunpack.c.l.b16 %v4992
  %v5026 = vunpack.c.h.b16 %v4992
  %v5027 = vunpack.c.l.b16 %v4993
  %v5028 = vunpack.c.l.b16 %v4994
  %v5029 = vunpack.c.h.b16 %v4994
  %v5030 = vunpack.c.l.b16 %v4995
  %v5031 = vpack.c.b16 %v5013, %v5010
  %v5032 = vpack.c.b16 %v5014, %v5011
  %v5033 = vpack.c.b16 %v5015, %v5012
  %v5034 = vpack.c.b16 %v5019, %v5016
  %v5035 = vpack.c.b16 %v5020, %v5017
  %v5036 = vpack.c.b16 %v5021, %v5018
  %v5037 = vpack.c.b16 %v5025, %v5022
  %v5038 = vpack.c.b16 %v5026, %v5023
  %v5039 = vpack.c.b16 %v5027, %v5024
  %v5040 = vpack.c.b16 %v5028, %v5028
  %v5041 = vpack.c.b16 %v5029, %v5029
  %v5042 = vpack.c.b16 %v5030, %v5030
  %v5052 = vsel %vm865, %v5033, 0
  %v5055 = vsel %vm865, %v5036, 0
  %v5058 = vsel %vm865, %v5039, 0
  %v5061 = vsel %vm865, %v5042, 0
  %v5064 = vsel %vm878, %v4980, 0
  %5066 = vmatpush.bf16.msra.mxu0 %v4971
  %5067 = vmatpush.bf16.msra.mxu0 %v4970
  %5068 = vmatpush.bf16.msra.mxu0 %v4969
  %5069 = vmatpush.bf16.msra.mxu0 %v4968
  %5070 = vmatpush.bf16.msra.mxu0 %v4967
  %5071 = vmatpush.bf16.msra.mxu0 %v4966
  %5072 = vmatpush.bf16.msra.mxu0 %v4965
  %5073 = vmatpush.bf16.msra.mxu0 %v4964
  %5074 = vmatmul.bf16.gmra.mxu0 %v5031
  %v5075 = vpop.f32.mrf.mxu0
  %v5076 = vadd.f32 0.0, %v5075
  %v5077 = vpop.f32.mrf.mxu0
  %v5078 = vadd.f32 0.0, %v5077
  %5079 = vmatmul.bf16.gmra.mxu0 %v5034
  %v5080 = vpop.f32.mrf.mxu0
  %v5081 = vadd.f32 0.0, %v5080
  %v5082 = vpop.f32.mrf.mxu0
  %v5083 = vadd.f32 0.0, %v5082
  %5084 = vmatmul.bf16.gmra.mxu0 %v5037
  %v5085 = vpop.f32.mrf.mxu0
  %v5086 = vadd.f32 0.0, %v5085
  %v5087 = vpop.f32.mrf.mxu0
  %v5088 = vadd.f32 0.0, %v5087
  %5089 = vmatmul.bf16.gmra.mxu0 %v5040
  %v5090 = vpop.f32.mrf.mxu0
  %v5091 = vadd.f32 0.0, %v5090
  %v5092 = vpop.f32.mrf.mxu0
  %5093 = vdwg.mxu0
  %5094 = vmatpush.bf16.msra.mxu0 %v4979
  %5095 = vmatpush.bf16.msra.mxu0 %v4978
  %5096 = vmatpush.bf16.msra.mxu0 %v4977
  %5097 = vmatpush.bf16.msra.mxu0 %v4976
  %5098 = vmatpush.bf16.msra.mxu0 %v4975
  %5099 = vmatpush.bf16.msra.mxu0 %v4974
  %5100 = vmatpush.bf16.msra.mxu0 %v4973
  %5101 = vmatpush.bf16.msra.mxu0 %v4972
  %5102 = vmatmul.bf16.gmra.mxu0 %v5032
  %v5103 = vpop.f32.mrf.mxu0
  %v5104 = vadd.f32 %v5076, %v5103
  %v5105 = vpop.f32.mrf.mxu0
  %v5106 = vadd.f32 %v5078, %v5105
  %5107 = vmatmul.bf16.gmra.mxu0 %v5035
  %v5108 = vpop.f32.mrf.mxu0
  %v5109 = vadd.f32 %v5081, %v5108
  %v5110 = vpop.f32.mrf.mxu0
  %v5111 = vadd.f32 %v5083, %v5110
  %5112 = vmatmul.bf16.gmra.mxu0 %v5038
  %v5113 = vpop.f32.mrf.mxu0
  %v5114 = vadd.f32 %v5086, %v5113
  %v5115 = vpop.f32.mrf.mxu0
  %v5116 = vadd.f32 %v5088, %v5115
  %5117 = vmatmul.bf16.gmra.mxu0 %v5041
  %v5118 = vpop.f32.mrf.mxu0
  %v5119 = vadd.f32 %v5091, %v5118
  %v5120 = vpop.f32.mrf.mxu0
  %5121 = vdwg.mxu0
  %5122 = vmatpush.bf16.msra.mxu0 0
  %5123 = vmatpush.bf16.msra.mxu0 0
  %5124 = vmatpush.bf16.msra.mxu0 0
  %5125 = vmatpush.bf16.msra.mxu0 0
  %5126 = vmatpush.bf16.msra.mxu0 0
  %5127 = vmatpush.bf16.msra.mxu0 0
  %5128 = vmatpush.bf16.msra.mxu0 0
  %5129 = vmatpush.bf16.msra.mxu0 %v5064
  %5130 = vmatmul.bf16.gmra.mxu0 %v5052
  %v5131 = vpop.f32.mrf.mxu0
  %v5132 = vadd.f32 %v5104, %v5131
  %v5133 = vpop.f32.mrf.mxu0
  %v5134 = vadd.f32 %v5106, %v5133
  %5135 = vmatmul.bf16.gmra.mxu0 %v5055
  %v5136 = vpop.f32.mrf.mxu0
  %v5137 = vadd.f32 %v5109, %v5136
  %v5138 = vpop.f32.mrf.mxu0
  %v5139 = vadd.f32 %v5111, %v5138
  %5140 = vmatmul.bf16.gmra.mxu0 %v5058
  %v5141 = vpop.f32.mrf.mxu0
  %v5142 = vadd.f32 %v5114, %v5141
  %v5143 = vpop.f32.mrf.mxu0
  %v5144 = vadd.f32 %v5116, %v5143
  %5145 = vmatmul.bf16.gmra.mxu0 %v5061
  %v5146 = vpop.f32.mrf.mxu0
  %v5147 = vadd.f32 %v5119, %v5146
  %v5148 = vpop.f32.mrf.mxu0
  %5149 = vdwg.mxu0
  %v5150 = vadd.f32 %v4783, %v5132
  %v5151 = vadd.f32 %v4784, %v5134
  %v5152 = vadd.f32 %v4785, %v5137
  %v5153 = vadd.f32 %v4786, %v5139
  %v5154 = vadd.f32 %v4787, %v5142
  %v5155 = vadd.f32 %v4788, %v5144
  %v5156 = vadd.f32 %v4789, %v5147
  %v5157 = vld [vmem:[%s0 + $0xd0] sm:$0xf]
  %v5158 = vld [vmem:[%s0 + $0xd4] sm:$0xf]
  %v5159 = vld [vmem:[%s0 + $0xd8] sm:$0xf]
  %v5160 = vld [vmem:[%s0 + $0xdc] sm:$0xf]
  %v5161 = vld [vmem:[%s0 + $0xe0] sm:$0xf]
  %v5162 = vld [vmem:[%s0 + $0xe4] sm:$0xf]
  %v5163 = vld [vmem:[%s0 + $0xe8] sm:$0xf]
  %v5164 = vld [vmem:[%s0 + $0xec] sm:$0xf]
  %v5165 = vld [vmem:[%s0 + $0xf0] sm:$0xf]
  %v5166 = vld [vmem:[%s0 + $0xf4] sm:$0xf]
  %v5167 = vld [vmem:[%s0 + $0xf8] sm:$0xf]
  %v5168 = vld [vmem:[%s0 + $0xfc] sm:$0xf]
  %v5181 = vunpack.c.l.b16 %v5157
  %v5182 = vunpack.c.l.b16 %v5158
  %v5183 = vunpack.c.l.b16 %v5159
  %v5184 = vunpack.c.l.b16 %v5160
  %v5185 = vunpack.c.l.b16 %v5161
  %v5186 = vunpack.c.l.b16 %v5162
  %v5187 = vunpack.c.l.b16 %v5163
  %v5188 = vunpack.c.l.b16 %v5164
  %v5189 = vunpack.c.l.b16 %v5165
  %v5190 = vunpack.c.l.b16 %v5166
  %v5191 = vunpack.c.l.b16 %v5167
  %v5192 = vunpack.c.l.b16 %v5168
  %v5193 = vpack.c.b16 %v5182, %v5181
  %v5194 = vpack.c.b16 %v5184, %v5183
  %v5195 = vpack.c.b16 %v5186, %v5185
  %v5196 = vpack.c.b16 %v5188, %v5187
  %v5197 = vpack.c.b16 %v5190, %v5189
  %v5198 = vpack.c.b16 %v5192, %v5191
  %5205 = vmatpush.bf16.msra.mxu0 0
  %5206 = vmatpush.bf16.msra.mxu0 0
  %5207 = vmatpush.bf16.msra.mxu0 %v5198
  %5208 = vmatpush.bf16.msra.mxu0 %v5197
  %5209 = vmatpush.bf16.msra.mxu0 %v5196
  %5210 = vmatpush.bf16.msra.mxu0 %v5195
  %5211 = vmatpush.bf16.msra.mxu0 %v5194
  %5212 = vmatpush.bf16.msra.mxu0 %v5193
  %5213 = vmatmul.bf16.gmra.mxu0 %v397
  %v5214 = vpop.f32.mrf.mxu0
  %v5215 = vadd.f32 %v114, %v5214
  %v5216 = vpop.f32.mrf.mxu0
  %v5217 = vadd.f32 %v119, %v5216
  %5218 = vmatmul.bf16.gmra.mxu0 %v400
  %v5219 = vpop.f32.mrf.mxu0
  %v5220 = vadd.f32 %v124, %v5219
  %v5221 = vpop.f32.mrf.mxu0
  %v5222 = vadd.f32 %v129, %v5221
  %5223 = vmatmul.bf16.gmra.mxu0 %v403
  %v5224 = vpop.f32.mrf.mxu0
  %v5225 = vadd.f32 %v134, %v5224
  %v5226 = vpop.f32.mrf.mxu0
  %v5227 = vadd.f32 %v139, %v5226
  %5228 = vmatmul.bf16.gmra.mxu0 %v406
  %v5229 = vpop.f32.mrf.mxu0
  %v5230 = vadd.f32 %v144, %v5229
  %v5231 = vpop.f32.mrf.mxu0
  %v5232 = vadd.f32 %v149, %v5231
  %5233 = vmatmul.bf16.gmra.mxu0 %v409
  %v5234 = vpop.f32.mrf.mxu0
  %v5235 = vadd.f32 %v154, %v5234
  %v5236 = vpop.f32.mrf.mxu0
  %v5237 = vadd.f32 %v159, %v5236
  %5238 = vmatmul.bf16.gmra.mxu0 %v412
  %v5239 = vpop.f32.mrf.mxu0
  %v5240 = vadd.f32 %v164, %v5239
  %v5241 = vpop.f32.mrf.mxu0
  %v5242 = vadd.f32 %v169, %v5241
  %5243 = vmatmul.bf16.gmra.mxu0 %v415
  %v5244 = vpop.f32.mrf.mxu0
  %v5245 = vadd.f32 %v174, %v5244
  %v5246 = vpop.f32.mrf.mxu0
  %v5247 = vadd.f32 %v179, %v5246
  %5248 = vmatmul.bf16.gmra.mxu0 %v418
  %v5249 = vpop.f32.mrf.mxu0
  %v5250 = vadd.f32 %v184, %v5249
  %v5251 = vpop.f32.mrf.mxu0
  %v5252 = vadd.f32 %v189, %v5251
  %5253 = vmatmul.bf16.gmra.mxu0 %v421
  %v5254 = vpop.f32.mrf.mxu0
  %v5255 = vadd.f32 %v194, %v5254
  %v5256 = vpop.f32.mrf.mxu0
  %v5257 = vadd.f32 %v199, %v5256
  %5258 = vmatmul.bf16.gmra.mxu0 %v424
  %v5259 = vpop.f32.mrf.mxu0
  %v5260 = vadd.f32 %v204, %v5259
  %v5261 = vpop.f32.mrf.mxu0
  %v5262 = vadd.f32 %v209, %v5261
  %5263 = vmatmul.bf16.gmra.mxu0 %v427
  %v5264 = vpop.f32.mrf.mxu0
  %v5265 = vadd.f32 %v214, %v5264
  %v5266 = vpop.f32.mrf.mxu0
  %v5267 = vadd.f32 %v219, %v5266
  %5268 = vmatmul.bf16.gmra.mxu0 %v430
  %v5269 = vpop.f32.mrf.mxu0
  %v5270 = vadd.f32 %v224, %v5269
  %v5271 = vpop.f32.mrf.mxu0
  %v5272 = vadd.f32 %v229, %v5271
  %5273 = vmatmul.bf16.gmra.mxu0 %v433
  %v5274 = vpop.f32.mrf.mxu0
  %v5275 = vadd.f32 %v234, %v5274
  %v5276 = vpop.f32.mrf.mxu0
  %v5277 = vadd.f32 %v239, %v5276
  %5278 = vmatmul.bf16.gmra.mxu0 %v436
  %v5279 = vpop.f32.mrf.mxu0
  %v5280 = vadd.f32 %v244, %v5279
  %v5281 = vpop.f32.mrf.mxu0
  %v5282 = vadd.f32 %v249, %v5281
  %5283 = vmatmul.bf16.gmra.mxu0 %v439
  %v5284 = vpop.f32.mrf.mxu0
  %v5285 = vadd.f32 %v254, %v5284
  %v5286 = vpop.f32.mrf.mxu0
  %v5287 = vadd.f32 %v259, %v5286
  %5288 = vmatmul.bf16.gmra.mxu0 %v442
  %v5289 = vpop.f32.mrf.mxu0
  %v5290 = vadd.f32 %v264, %v5289
  %v5291 = vpop.f32.mrf.mxu0
  %v5292 = vadd.f32 %v269, %v5291
  %5293 = vmatmul.bf16.gmra.mxu0 %v445
  %v5294 = vpop.f32.mrf.mxu0
  %v5295 = vadd.f32 %v274, %v5294
  %v5296 = vpop.f32.mrf.mxu0
  %5297 = vdwg.mxu0
  %v5298 = vmax.f32 %v5215, 0.0
  %v5299 = vmax.f32 %v5217, 0.0
  %v5300 = vmax.f32 %v5220, 0.0
  %v5301 = vmax.f32 %v5222, 0.0
  %v5302 = vmax.f32 %v5225, 0.0
  %v5303 = vmax.f32 %v5227, 0.0
  %v5304 = vmax.f32 %v5230, 0.0
  %v5305 = vmax.f32 %v5232, 0.0
  %v5306 = vmax.f32 %v5235, 0.0
  %v5307 = vmax.f32 %v5237, 0.0
  %v5308 = vmax.f32 %v5240, 0.0
  %v5309 = vmax.f32 %v5242, 0.0
  %v5310 = vmax.f32 %v5245, 0.0
  %v5311 = vmax.f32 %v5247, 0.0
  %v5312 = vmax.f32 %v5250, 0.0
  %v5313 = vmax.f32 %v5252, 0.0
  %v5314 = vmax.f32 %v5255, 0.0
  %v5315 = vmax.f32 %v5257, 0.0
  %v5316 = vmax.f32 %v5260, 0.0
  %v5317 = vmax.f32 %v5262, 0.0
  %v5318 = vmax.f32 %v5265, 0.0
  %v5319 = vmax.f32 %v5267, 0.0
  %v5320 = vmax.f32 %v5270, 0.0
  %v5321 = vmax.f32 %v5272, 0.0
  %v5322 = vmax.f32 %v5275, 0.0
  %v5323 = vmax.f32 %v5277, 0.0
  %v5324 = vmax.f32 %v5280, 0.0
  %v5325 = vmax.f32 %v5282, 0.0
  %v5326 = vmax.f32 %v5285, 0.0
  %v5327 = vmax.f32 %v5287, 0.0
  %v5328 = vmax.f32 %v5290, 0.0
  %v5329 = vmax.f32 %v5292, 0.0
  %v5330 = vmax.f32 %v5295, 0.0
  %v5331 = vpack.c.bf16 %v5299, %v5298
  %v5332 = vpack.c.bf16 %v5301, %v5300
  %v5333 = vpack.c.bf16 %v5303, %v5302
  %v5334 = vpack.c.bf16 %v5305, %v5304
  %v5335 = vpack.c.bf16 %v5307, %v5306
  %v5336 = vpack.c.bf16 %v5309, %v5308
  %v5337 = vpack.c.bf16 %v5311, %v5310
  %v5338 = vpack.c.bf16 %v5313, %v5312
  %v5339 = vpack.c.bf16 %v5315, %v5314
  %v5340 = vpack.c.bf16 %v5317, %v5316
  %v5341 = vpack.c.bf16 %v5319, %v5318
  %v5342 = vpack.c.bf16 %v5321, %v5320
  %v5343 = vpack.c.bf16 %v5323, %v5322
  %v5344 = vpack.c.bf16 %v5325, %v5324
  %v5345 = vpack.c.bf16 %v5327, %v5326
  %v5346 = vpack.c.bf16 %v5329, %v5328
  %v5347 = vpack.c.bf16 %v5330, %v5330
  %s5348 = scalar_lea.vmem %s3, 1092
  %v5349 = vld [vmem:[%s5348] sm:$0xff]
  %v5350 = vld [vmem:[%s5348 + $0x8] sm:$0xf]
  %v5351 = vld [vmem:[%s5348 + $0xc] sm:$0xff]
  %v5352 = vld [vmem:[%s5348 + $0x14] sm:$0xf]
  %v5353 = vld [vmem:[%s5348 + $0x18] sm:$0xff]
  %v5354 = vld [vmem:[%s5348 + $0x20] sm:$0xf]
  %v5355 = vld [vmem:[%s5348 + $0x24] sm:$0xff]
  %v5356 = vld [vmem:[%s5348 + $0x2c] sm:$0xf]
  %v5357 = vld [vmem:[%s5348 + $0x30] sm:$0xff]
  %v5358 = vld [vmem:[%s5348 + $0x38] sm:$0xf]
  %v5359 = vld [vmem:[%s5348 + $0x3c] sm:$0xff]
  %v5360 = vld [vmem:[%s5348 + $0x44] sm:$0xf]
  %v5361 = vld [vmem:[%s5348 + $0x48] sm:$0x11]
  %v5362 = vld [vmem:[%s5348 + $0x50] sm:$0x1]
  %v5377 = vunpack.c.l.b16 %v5349
  %v5378 = vunpack.c.h.b16 %v5349
  %v5379 = vunpack.c.l.b16 %v5350
  %v5380 = vunpack.c.l.b16 %v5351
  %v5381 = vunpack.c.h.b16 %v5351
  %v5382 = vunpack.c.l.b16 %v5352
  %v5383 = vunpack.c.l.b16 %v5353
  %v5384 = vunpack.c.h.b16 %v5353
  %v5385 = vunpack.c.l.b16 %v5354
  %v5386 = vunpack.c.l.b16 %v5355
  %v5387 = vunpack.c.h.b16 %v5355
  %v5388 = vunpack.c.l.b16 %v5356
  %v5389 = vunpack.c.l.b16 %v5357
  %v5390 = vunpack.c.h.b16 %v5357
  %v5391 = vunpack.c.l.b16 %v5358
  %v5392 = vunpack.c.l.b16 %v5359
  %v5393 = vunpack.c.h.b16 %v5359
  %v5394 = vunpack.c.l.b16 %v5360
  %v5395 = vunpack.c.l.b16 %v5361
  %v5396 = vunpack.c.h.b16 %v5361
  %v5397 = vunpack.c.l.b16 %v5362
  %v5398 = vpack.c.b16 %v5380, %v5377
  %v5399 = vpack.c.b16 %v5381, %v5378
  %v5400 = vpack.c.b16 %v5382, %v5379
  %v5401 = vpack.c.b16 %v5386, %v5383
  %v5402 = vpack.c.b16 %v5387, %v5384
  %v5403 = vpack.c.b16 %v5388, %v5385
  %v5404 = vpack.c.b16 %v5392, %v5389
  %v5405 = vpack.c.b16 %v5393, %v5390
  %v5406 = vpack.c.b16 %v5394, %v5391
  %v5407 = vpack.c.b16 %v5395, %v5395
  %v5408 = vpack.c.b16 %v5396, %v5396
  %v5409 = vpack.c.b16 %v5397, %v5397
  %v5419 = vsel %vm865, %v5400, 0
  %v5422 = vsel %vm865, %v5403, 0
  %v5425 = vsel %vm865, %v5406, 0
  %v5428 = vsel %vm865, %v5409, 0
  %v5431 = vsel %vm878, %v5347, 0
  %5433 = vmatpush.bf16.msra.mxu0 %v5338
  %5434 = vmatpush.bf16.msra.mxu0 %v5337
  %5435 = vmatpush.bf16.msra.mxu0 %v5336
  %5436 = vmatpush.bf16.msra.mxu0 %v5335
  %5437 = vmatpush.bf16.msra.mxu0 %v5334
  %5438 = vmatpush.bf16.msra.mxu0 %v5333
  %5439 = vmatpush.bf16.msra.mxu0 %v5332
  %5440 = vmatpush.bf16.msra.mxu0 %v5331
  %5441 = vmatmul.bf16.gmra.mxu0 %v5398
  %v5442 = vpop.f32.mrf.mxu0
  %v5443 = vadd.f32 0.0, %v5442
  %v5444 = vpop.f32.mrf.mxu0
  %v5445 = vadd.f32 0.0, %v5444
  %5446 = vmatmul.bf16.gmra.mxu0 %v5401
  %v5447 = vpop.f32.mrf.mxu0
  %v5448 = vadd.f32 0.0, %v5447
  %v5449 = vpop.f32.mrf.mxu0
  %v5450 = vadd.f32 0.0, %v5449
  %5451 = vmatmul.bf16.gmra.mxu0 %v5404
  %v5452 = vpop.f32.mrf.mxu0
  %v5453 = vadd.f32 0.0, %v5452
  %v5454 = vpop.f32.mrf.mxu0
  %v5455 = vadd.f32 0.0, %v5454
  %5456 = vmatmul.bf16.gmra.mxu0 %v5407
  %v5457 = vpop.f32.mrf.mxu0
  %v5458 = vadd.f32 0.0, %v5457
  %v5459 = vpop.f32.mrf.mxu0
  %5460 = vdwg.mxu0
  %5461 = vmatpush.bf16.msra.mxu0 %v5346
  %5462 = vmatpush.bf16.msra.mxu0 %v5345
  %5463 = vmatpush.bf16.msra.mxu0 %v5344
  %5464 = vmatpush.bf16.msra.mxu0 %v5343
  %5465 = vmatpush.bf16.msra.mxu0 %v5342
  %5466 = vmatpush.bf16.msra.mxu0 %v5341
  %5467 = vmatpush.bf16.msra.mxu0 %v5340
  %5468 = vmatpush.bf16.msra.mxu0 %v5339
  %5469 = vmatmul.bf16.gmra.mxu0 %v5399
  %v5470 = vpop.f32.mrf.mxu0
  %v5471 = vadd.f32 %v5443, %v5470
  %v5472 = vpop.f32.mrf.mxu0
  %v5473 = vadd.f32 %v5445, %v5472
  %5474 = vmatmul.bf16.gmra.mxu0 %v5402
  %v5475 = vpop.f32.mrf.mxu0
  %v5476 = vadd.f32 %v5448, %v5475
  %v5477 = vpop.f32.mrf.mxu0
  %v5478 = vadd.f32 %v5450, %v5477
  %5479 = vmatmul.bf16.gmra.mxu0 %v5405
  %v5480 = vpop.f32.mrf.mxu0
  %v5481 = vadd.f32 %v5453, %v5480
  %v5482 = vpop.f32.mrf.mxu0
  %v5483 = vadd.f32 %v5455, %v5482
  %5484 = vmatmul.bf16.gmra.mxu0 %v5408
  %v5485 = vpop.f32.mrf.mxu0
  %v5486 = vadd.f32 %v5458, %v5485
  %v5487 = vpop.f32.mrf.mxu0
  %5488 = vdwg.mxu0
  %5489 = vmatpush.bf16.msra.mxu0 0
  %5490 = vmatpush.bf16.msra.mxu0 0
  %5491 = vmatpush.bf16.msra.mxu0 0
  %5492 = vmatpush.bf16.msra.mxu0 0
  %5493 = vmatpush.bf16.msra.mxu0 0
  %5494 = vmatpush.bf16.msra.mxu0 0
  %5495 = vmatpush.bf16.msra.mxu0 0
  %5496 = vmatpush.bf16.msra.mxu0 %v5431
  %5497 = vmatmul.bf16.gmra.mxu0 %v5419
  %v5498 = vpop.f32.mrf.mxu0
  %v5499 = vadd.f32 %v5471, %v5498
  %v5500 = vpop.f32.mrf.mxu0
  %v5501 = vadd.f32 %v5473, %v5500
  %5502 = vmatmul.bf16.gmra.mxu0 %v5422
  %v5503 = vpop.f32.mrf.mxu0
  %v5504 = vadd.f32 %v5476, %v5503
  %v5505 = vpop.f32.mrf.mxu0
  %v5506 = vadd.f32 %v5478, %v5505
  %5507 = vmatmul.bf16.gmra.mxu0 %v5425
  %v5508 = vpop.f32.mrf.mxu0
  %v5509 = vadd.f32 %v5481, %v5508
  %v5510 = vpop.f32.mrf.mxu0
  %v5511 = vadd.f32 %v5483, %v5510
  %5512 = vmatmul.bf16.gmra.mxu0 %v5428
  %v5513 = vpop.f32.mrf.mxu0
  %v5514 = vadd.f32 %v5486, %v5513
  %v5515 = vpop.f32.mrf.mxu0
  %5516 = vdwg.mxu0
  %v5517 = vadd.f32 %v5150, %v5499
  %v5518 = vadd.f32 %v5151, %v5501
  %v5519 = vadd.f32 %v5152, %v5504
  %v5520 = vadd.f32 %v5153, %v5506
  %v5521 = vadd.f32 %v5154, %v5509
  %v5522 = vadd.f32 %v5155, %v5511
  %v5523 = vadd.f32 %v5156, %v5514
  %v5524 = vld [vmem:[%s0 + $0xe0] sm:$0xf]
  %v5525 = vld [vmem:[%s0 + $0xe4] sm:$0xf]
  %v5526 = vld [vmem:[%s0 + $0xe8] sm:$0xf]
  %v5527 = vld [vmem:[%s0 + $0xec] sm:$0xf]
  %v5528 = vld [vmem:[%s0 + $0xf0] sm:$0xf]
  %v5529 = vld [vmem:[%s0 + $0xf4] sm:$0xf]
  %v5530 = vld [vmem:[%s0 + $0xf8] sm:$0xf]
  %v5531 = vld [vmem:[%s0 + $0xfc] sm:$0xf]
  %v5532 = vld [vmem:[%s0 + $0x100] sm:$0xf]
  %v5533 = vld [vmem:[%s0 + $0x104] sm:$0xf]
  %v5534 = vld [vmem:[%s0 + $0x108] sm:$0xf]
  %v5535 = vld [vmem:[%s0 + $0x10c] sm:$0xf]
  %v5548 = vunpack.c.l.b16 %v5524
  %v5549 = vunpack.c.l.b16 %v5525
  %v5550 = vunpack.c.l.b16 %v5526
  %v5551 = vunpack.c.l.b16 %v5527
  %v5552 = vunpack.c.l.b16 %v5528
  %v5553 = vunpack.c.l.b16 %v5529
  %v5554 = vunpack.c.l.b16 %v5530
  %v5555 = vunpack.c.l.b16 %v5531
  %v5556 = vunpack.c.l.b16 %v5532
  %v5557 = vunpack.c.l.b16 %v5533
  %v5558 = vunpack.c.l.b16 %v5534
  %v5559 = vunpack.c.l.b16 %v5535
  %v5560 = vpack.c.b16 %v5549, %v5548
  %v5561 = vpack.c.b16 %v5551, %v5550
  %v5562 = vpack.c.b16 %v5553, %v5552
  %v5563 = vpack.c.b16 %v5555, %v5554
  %v5564 = vpack.c.b16 %v5557, %v5556
  %v5565 = vpack.c.b16 %v5559, %v5558
  %5572 = vmatpush.bf16.msra.mxu0 0
  %5573 = vmatpush.bf16.msra.mxu0 0
  %5574 = vmatpush.bf16.msra.mxu0 %v5565
  %5575 = vmatpush.bf16.msra.mxu0 %v5564
  %5576 = vmatpush.bf16.msra.mxu0 %v5563
  %5577 = vmatpush.bf16.msra.mxu0 %v5562
  %5578 = vmatpush.bf16.msra.mxu0 %v5561
  %5579 = vmatpush.bf16.msra.mxu0 %v5560
  %5580 = vmatmul.bf16.gmra.mxu0 %v397
  %v5581 = vpop.f32.mrf.mxu0
  %v5582 = vadd.f32 %v114, %v5581
  %v5583 = vpop.f32.mrf.mxu0
  %v5584 = vadd.f32 %v119, %v5583
  %5585 = vmatmul.bf16.gmra.mxu0 %v400
  %v5586 = vpop.f32.mrf.mxu0
  %v5587 = vadd.f32 %v124, %v5586
  %v5588 = vpop.f32.mrf.mxu0
  %v5589 = vadd.f32 %v129, %v5588
  %5590 = vmatmul.bf16.gmra.mxu0 %v403
  %v5591 = vpop.f32.mrf.mxu0
  %v5592 = vadd.f32 %v134, %v5591
  %v5593 = vpop.f32.mrf.mxu0
  %v5594 = vadd.f32 %v139, %v5593
  %5595 = vmatmul.bf16.gmra.mxu0 %v406
  %v5596 = vpop.f32.mrf.mxu0
  %v5597 = vadd.f32 %v144, %v5596
  %v5598 = vpop.f32.mrf.mxu0
  %v5599 = vadd.f32 %v149, %v5598
  %5600 = vmatmul.bf16.gmra.mxu0 %v409
  %v5601 = vpop.f32.mrf.mxu0
  %v5602 = vadd.f32 %v154, %v5601
  %v5603 = vpop.f32.mrf.mxu0
  %v5604 = vadd.f32 %v159, %v5603
  %5605 = vmatmul.bf16.gmra.mxu0 %v412
  %v5606 = vpop.f32.mrf.mxu0
  %v5607 = vadd.f32 %v164, %v5606
  %v5608 = vpop.f32.mrf.mxu0
  %v5609 = vadd.f32 %v169, %v5608
  %5610 = vmatmul.bf16.gmra.mxu0 %v415
  %v5611 = vpop.f32.mrf.mxu0
  %v5612 = vadd.f32 %v174, %v5611
  %v5613 = vpop.f32.mrf.mxu0
  %v5614 = vadd.f32 %v179, %v5613
  %5615 = vmatmul.bf16.gmra.mxu0 %v418
  %v5616 = vpop.f32.mrf.mxu0
  %v5617 = vadd.f32 %v184, %v5616
  %v5618 = vpop.f32.mrf.mxu0
  %v5619 = vadd.f32 %v189, %v5618
  %5620 = vmatmul.bf16.gmra.mxu0 %v421
  %v5621 = vpop.f32.mrf.mxu0
  %v5622 = vadd.f32 %v194, %v5621
  %v5623 = vpop.f32.mrf.mxu0
  %v5624 = vadd.f32 %v199, %v5623
  %5625 = vmatmul.bf16.gmra.mxu0 %v424
  %v5626 = vpop.f32.mrf.mxu0
  %v5627 = vadd.f32 %v204, %v5626
  %v5628 = vpop.f32.mrf.mxu0
  %v5629 = vadd.f32 %v209, %v5628
  %5630 = vmatmul.bf16.gmra.mxu0 %v427
  %v5631 = vpop.f32.mrf.mxu0
  %v5632 = vadd.f32 %v214, %v5631
  %v5633 = vpop.f32.mrf.mxu0
  %v5634 = vadd.f32 %v219, %v5633
  %5635 = vmatmul.bf16.gmra.mxu0 %v430
  %v5636 = vpop.f32.mrf.mxu0
  %v5637 = vadd.f32 %v224, %v5636
  %v5638 = vpop.f32.mrf.mxu0
  %v5639 = vadd.f32 %v229, %v5638
  %5640 = vmatmul.bf16.gmra.mxu0 %v433
  %v5641 = vpop.f32.mrf.mxu0
  %v5642 = vadd.f32 %v234, %v5641
  %v5643 = vpop.f32.mrf.mxu0
  %v5644 = vadd.f32 %v239, %v5643
  %5645 = vmatmul.bf16.gmra.mxu0 %v436
  %v5646 = vpop.f32.mrf.mxu0
  %v5647 = vadd.f32 %v244, %v5646
  %v5648 = vpop.f32.mrf.mxu0
  %v5649 = vadd.f32 %v249, %v5648
  %5650 = vmatmul.bf16.gmra.mxu0 %v439
  %v5651 = vpop.f32.mrf.mxu0
  %v5652 = vadd.f32 %v254, %v5651
  %v5653 = vpop.f32.mrf.mxu0
  %v5654 = vadd.f32 %v259, %v5653
  %5655 = vmatmul.bf16.gmra.mxu0 %v442
  %v5656 = vpop.f32.mrf.mxu0
  %v5657 = vadd.f32 %v264, %v5656
  %v5658 = vpop.f32.mrf.mxu0
  %v5659 = vadd.f32 %v269, %v5658
  %5660 = vmatmul.bf16.gmra.mxu0 %v445
  %v5661 = vpop.f32.mrf.mxu0
  %v5662 = vadd.f32 %v274, %v5661
  %v5663 = vpop.f32.mrf.mxu0
  %5664 = vdwg.mxu0
  %v5665 = vmax.f32 %v5582, 0.0
  %v5666 = vmax.f32 %v5584, 0.0
  %v5667 = vmax.f32 %v5587, 0.0
  %v5668 = vmax.f32 %v5589, 0.0
  %v5669 = vmax.f32 %v5592, 0.0
  %v5670 = vmax.f32 %v5594, 0.0
  %v5671 = vmax.f32 %v5597, 0.0
  %v5672 = vmax.f32 %v5599, 0.0
  %v5673 = vmax.f32 %v5602, 0.0
  %v5674 = vmax.f32 %v5604, 0.0
  %v5675 = vmax.f32 %v5607, 0.0
  %v5676 = vmax.f32 %v5609, 0.0
  %v5677 = vmax.f32 %v5612, 0.0
  %v5678 = vmax.f32 %v5614, 0.0
  %v5679 = vmax.f32 %v5617, 0.0
  %v5680 = vmax.f32 %v5619, 0.0
  %v5681 = vmax.f32 %v5622, 0.0
  %v5682 = vmax.f32 %v5624, 0.0
  %v5683 = vmax.f32 %v5627, 0.0
  %v5684 = vmax.f32 %v5629, 0.0
  %v5685 = vmax.f32 %v5632, 0.0
  %v5686 = vmax.f32 %v5634, 0.0
  %v5687 = vmax.f32 %v5637, 0.0
  %v5688 = vmax.f32 %v5639, 0.0
  %v5689 = vmax.f32 %v5642, 0.0
  %v5690 = vmax.f32 %v5644, 0.0
  %v5691 = vmax.f32 %v5647, 0.0
  %v5692 = vmax.f32 %v5649, 0.0
  %v5693 = vmax.f32 %v5652, 0.0
  %v5694 = vmax.f32 %v5654, 0.0
  %v5695 = vmax.f32 %v5657, 0.0
  %v5696 = vmax.f32 %v5659, 0.0
  %v5697 = vmax.f32 %v5662, 0.0
  %v5698 = vpack.c.bf16 %v5666, %v5665
  %v5699 = vpack.c.bf16 %v5668, %v5667
  %v5700 = vpack.c.bf16 %v5670, %v5669
  %v5701 = vpack.c.bf16 %v5672, %v5671
  %v5702 = vpack.c.bf16 %v5674, %v5673
  %v5703 = vpack.c.bf16 %v5676, %v5675
  %v5704 = vpack.c.bf16 %v5678, %v5677
  %v5705 = vpack.c.bf16 %v5680, %v5679
  %v5706 = vpack.c.bf16 %v5682, %v5681
  %v5707 = vpack.c.bf16 %v5684, %v5683
  %v5708 = vpack.c.bf16 %v5686, %v5685
  %v5709 = vpack.c.bf16 %v5688, %v5687
  %v5710 = vpack.c.bf16 %v5690, %v5689
  %v5711 = vpack.c.bf16 %v5692, %v5691
  %v5712 = vpack.c.bf16 %v5694, %v5693
  %v5713 = vpack.c.bf16 %v5696, %v5695
  %v5714 = vpack.c.bf16 %v5697, %v5697
  %s5715 = scalar_lea.vmem %s3, 1176
  %v5716 = vld [vmem:[%s5715] sm:$0xff]
  %v5717 = vld [vmem:[%s5715 + $0x8] sm:$0xf]
  %v5718 = vld [vmem:[%s5715 + $0xc] sm:$0xff]
  %v5719 = vld [vmem:[%s5715 + $0x14] sm:$0xf]
  %v5720 = vld [vmem:[%s5715 + $0x18] sm:$0xff]
  %v5721 = vld [vmem:[%s5715 + $0x20] sm:$0xf]
  %v5722 = vld [vmem:[%s5715 + $0x24] sm:$0xff]
  %v5723 = vld [vmem:[%s5715 + $0x2c] sm:$0xf]
  %v5724 = vld [vmem:[%s5715 + $0x30] sm:$0xff]
  %v5725 = vld [vmem:[%s5715 + $0x38] sm:$0xf]
  %v5726 = vld [vmem:[%s5715 + $0x3c] sm:$0xff]
  %v5727 = vld [vmem:[%s5715 + $0x44] sm:$0xf]
  %v5728 = vld [vmem:[%s5715 + $0x48] sm:$0x11]
  %v5729 = vld [vmem:[%s5715 + $0x50] sm:$0x1]
  %v5744 = vunpack.c.l.b16 %v5716
  %v5745 = vunpack.c.h.b16 %v5716
  %v5746 = vunpack.c.l.b16 %v5717
  %v5747 = vunpack.c.l.b16 %v5718
  %v5748 = vunpack.c.h.b16 %v5718
  %v5749 = vunpack.c.l.b16 %v5719
  %v5750 = vunpack.c.l.b16 %v5720
  %v5751 = vunpack.c.h.b16 %v5720
  %v5752 = vunpack.c.l.b16 %v5721
  %v5753 = vunpack.c.l.b16 %v5722
  %v5754 = vunpack.c.h.b16 %v5722
  %v5755 = vunpack.c.l.b16 %v5723
  %v5756 = vunpack.c.l.b16 %v5724
  %v5757 = vunpack.c.h.b16 %v5724
  %v5758 = vunpack.c.l.b16 %v5725
  %v5759 = vunpack.c.l.b16 %v5726
  %v5760 = vunpack.c.h.b16 %v5726
  %v5761 = vunpack.c.l.b16 %v5727
  %v5762 = vunpack.c.l.b16 %v5728
  %v5763 = vunpack.c.h.b16 %v5728
  %v5764 = vunpack.c.l.b16 %v5729
  %v5765 = vpack.c.b16 %v5747, %v5744
  %v5766 = vpack.c.b16 %v5748, %v5745
  %v5767 = vpack.c.b16 %v5749, %v5746
  %v5768 = vpack.c.b16 %v5753, %v5750
  %v5769 = vpack.c.b16 %v5754, %v5751
  %v5770 = vpack.c.b16 %v5755, %v5752
  %v5771 = vpack.c.b16 %v5759, %v5756
  %v5772 = vpack.c.b16 %v5760, %v5757
  %v5773 = vpack.c.b16 %v5761, %v5758
  %v5774 = vpack.c.b16 %v5762, %v5762
  %v5775 = vpack.c.b16 %v5763, %v5763
  %v5776 = vpack.c.b16 %v5764, %v5764
  %v5786 = vsel %vm865, %v5767, 0
  %v5789 = vsel %vm865, %v5770, 0
  %v5792 = vsel %vm865, %v5773, 0
  %v5795 = vsel %vm865, %v5776, 0
  %v5798 = vsel %vm878, %v5714, 0
  %5800 = vmatpush.bf16.msra.mxu0 %v5705
  %5801 = vmatpush.bf16.msra.mxu0 %v5704
  %5802 = vmatpush.bf16.msra.mxu0 %v5703
  %5803 = vmatpush.bf16.msra.mxu0 %v5702
  %5804 = vmatpush.bf16.msra.mxu0 %v5701
  %5805 = vmatpush.bf16.msra.mxu0 %v5700
  %5806 = vmatpush.bf16.msra.mxu0 %v5699
  %5807 = vmatpush.bf16.msra.mxu0 %v5698
  %5808 = vmatmul.bf16.gmra.mxu0 %v5765
  %v5809 = vpop.f32.mrf.mxu0
  %v5810 = vadd.f32 0.0, %v5809
  %v5811 = vpop.f32.mrf.mxu0
  %v5812 = vadd.f32 0.0, %v5811
  %5813 = vmatmul.bf16.gmra.mxu0 %v5768
  %v5814 = vpop.f32.mrf.mxu0
  %v5815 = vadd.f32 0.0, %v5814
  %v5816 = vpop.f32.mrf.mxu0
  %v5817 = vadd.f32 0.0, %v5816
  %5818 = vmatmul.bf16.gmra.mxu0 %v5771
  %v5819 = vpop.f32.mrf.mxu0
  %v5820 = vadd.f32 0.0, %v5819
  %v5821 = vpop.f32.mrf.mxu0
  %v5822 = vadd.f32 0.0, %v5821
  %5823 = vmatmul.bf16.gmra.mxu0 %v5774
  %v5824 = vpop.f32.mrf.mxu0
  %v5825 = vadd.f32 0.0, %v5824
  %v5826 = vpop.f32.mrf.mxu0
  %5827 = vdwg.mxu0
  %5828 = vmatpush.bf16.msra.mxu0 %v5713
  %5829 = vmatpush.bf16.msra.mxu0 %v5712
  %5830 = vmatpush.bf16.msra.mxu0 %v5711
  %5831 = vmatpush.bf16.msra.mxu0 %v5710
  %5832 = vmatpush.bf16.msra.mxu0 %v5709
  %5833 = vmatpush.bf16.msra.mxu0 %v5708
  %5834 = vmatpush.bf16.msra.mxu0 %v5707
  %5835 = vmatpush.bf16.msra.mxu0 %v5706
  %5836 = vmatmul.bf16.gmra.mxu0 %v5766
  %v5837 = vpop.f32.mrf.mxu0
  %v5838 = vadd.f32 %v5810, %v5837
  %v5839 = vpop.f32.mrf.mxu0
  %v5840 = vadd.f32 %v5812, %v5839
  %5841 = vmatmul.bf16.gmra.mxu0 %v5769
  %v5842 = vpop.f32.mrf.mxu0
  %v5843 = vadd.f32 %v5815, %v5842
  %v5844 = vpop.f32.mrf.mxu0
  %v5845 = vadd.f32 %v5817, %v5844
  %5846 = vmatmul.bf16.gmra.mxu0 %v5772
  %v5847 = vpop.f32.mrf.mxu0
  %v5848 = vadd.f32 %v5820, %v5847
  %v5849 = vpop.f32.mrf.mxu0
  %v5850 = vadd.f32 %v5822, %v5849
  %5851 = vmatmul.bf16.gmra.mxu0 %v5775
  %v5852 = vpop.f32.mrf.mxu0
  %v5853 = vadd.f32 %v5825, %v5852
  %v5854 = vpop.f32.mrf.mxu0
  %5855 = vdwg.mxu0
  %5856 = vmatpush.bf16.msra.mxu0 0
  %5857 = vmatpush.bf16.msra.mxu0 0
  %5858 = vmatpush.bf16.msra.mxu0 0
  %5859 = vmatpush.bf16.msra.mxu0 0
  %5860 = vmatpush.bf16.msra.mxu0 0
  %5861 = vmatpush.bf16.msra.mxu0 0
  %5862 = vmatpush.bf16.msra.mxu0 0
  %5863 = vmatpush.bf16.msra.mxu0 %v5798
  %5864 = vmatmul.bf16.gmra.mxu0 %v5786
  %v5865 = vpop.f32.mrf.mxu0
  %v5866 = vadd.f32 %v5838, %v5865
  %v5867 = vpop.f32.mrf.mxu0
  %v5868 = vadd.f32 %v5840, %v5867
  %5869 = vmatmul.bf16.gmra.mxu0 %v5789
  %v5870 = vpop.f32.mrf.mxu0
  %v5871 = vadd.f32 %v5843, %v5870
  %v5872 = vpop.f32.mrf.mxu0
  %v5873 = vadd.f32 %v5845, %v5872
  %5874 = vmatmul.bf16.gmra.mxu0 %v5792
  %v5875 = vpop.f32.mrf.mxu0
  %v5876 = vadd.f32 %v5848, %v5875
  %v5877 = vpop.f32.mrf.mxu0
  %v5878 = vadd.f32 %v5850, %v5877
  %5879 = vmatmul.bf16.gmra.mxu0 %v5795
  %v5880 = vpop.f32.mrf.mxu0
  %v5881 = vadd.f32 %v5853, %v5880
  %v5882 = vpop.f32.mrf.mxu0
  %5883 = vdwg.mxu0
  %v5884 = vadd.f32 %v5517, %v5866
  %v5885 = vadd.f32 %v5518, %v5868
  %v5886 = vadd.f32 %v5519, %v5871
  %v5887 = vadd.f32 %v5520, %v5873
  %v5888 = vadd.f32 %v5521, %v5876
  %v5889 = vadd.f32 %v5522, %v5878
  %v5890 = vadd.f32 %v5523, %v5881
  %v5891 = vld [vmem:[%s0 + $0xf0] sm:$0xf]
  %v5892 = vld [vmem:[%s0 + $0xf4] sm:$0xf]
  %v5893 = vld [vmem:[%s0 + $0xf8] sm:$0xf]
  %v5894 = vld [vmem:[%s0 + $0xfc] sm:$0xf]
  %v5895 = vld [vmem:[%s0 + $0x100] sm:$0xf]
  %v5896 = vld [vmem:[%s0 + $0x104] sm:$0xf]
  %v5897 = vld [vmem:[%s0 + $0x108] sm:$0xf]
  %v5898 = vld [vmem:[%s0 + $0x10c] sm:$0xf]
  %v5899 = vld [vmem:[%s0 + $0x110] sm:$0xf]
  %v5900 = vld [vmem:[%s0 + $0x114] sm:$0xf]
  %v5901 = vld [vmem:[%s0 + $0x118] sm:$0xf]
  %v5902 = vld [vmem:[%s0 + $0x11c] sm:$0xf]
  %v5915 = vunpack.c.l.b16 %v5891
  %v5916 = vunpack.c.l.b16 %v5892
  %v5917 = vunpack.c.l.b16 %v5893
  %v5918 = vunpack.c.l.b16 %v5894
  %v5919 = vunpack.c.l.b16 %v5895
  %v5920 = vunpack.c.l.b16 %v5896
  %v5921 = vunpack.c.l.b16 %v5897
  %v5922 = vunpack.c.l.b16 %v5898
  %v5923 = vunpack.c.l.b16 %v5899
  %v5924 = vunpack.c.l.b16 %v5900
  %v5925 = vunpack.c.l.b16 %v5901
  %v5926 = vunpack.c.l.b16 %v5902
  %v5927 = vpack.c.b16 %v5916, %v5915
  %v5928 = vpack.c.b16 %v5918, %v5917
  %v5929 = vpack.c.b16 %v5920, %v5919
  %v5930 = vpack.c.b16 %v5922, %v5921
  %v5931 = vpack.c.b16 %v5924, %v5923
  %v5932 = vpack.c.b16 %v5926, %v5925
  %5939 = vmatpush.bf16.msra.mxu0 0
  %5940 = vmatpush.bf16.msra.mxu0 0
  %5941 = vmatpush.bf16.msra.mxu0 %v5932
  %5942 = vmatpush.bf16.msra.mxu0 %v5931
  %5943 = vmatpush.bf16.msra.mxu0 %v5930
  %5944 = vmatpush.bf16.msra.mxu0 %v5929
  %5945 = vmatpush.bf16.msra.mxu0 %v5928
  %5946 = vmatpush.bf16.msra.mxu0 %v5927
  %5947 = vmatmul.bf16.gmra.mxu0 %v397
  %v5948 = vpop.f32.mrf.mxu0
  %v5949 = vadd.f32 %v114, %v5948
  %v5950 = vpop.f32.mrf.mxu0
  %v5951 = vadd.f32 %v119, %v5950
  %5952 = vmatmul.bf16.gmra.mxu0 %v400
  %v5953 = vpop.f32.mrf.mxu0
  %v5954 = vadd.f32 %v124, %v5953
  %v5955 = vpop.f32.mrf.mxu0
  %v5956 = vadd.f32 %v129, %v5955
  %5957 = vmatmul.bf16.gmra.mxu0 %v403
  %v5958 = vpop.f32.mrf.mxu0
  %v5959 = vadd.f32 %v134, %v5958
  %v5960 = vpop.f32.mrf.mxu0
  %v5961 = vadd.f32 %v139, %v5960
  %5962 = vmatmul.bf16.gmra.mxu0 %v406
  %v5963 = vpop.f32.mrf.mxu0
  %v5964 = vadd.f32 %v144, %v5963
  %v5965 = vpop.f32.mrf.mxu0
  %v5966 = vadd.f32 %v149, %v5965
  %5967 = vmatmul.bf16.gmra.mxu0 %v409
  %v5968 = vpop.f32.mrf.mxu0
  %v5969 = vadd.f32 %v154, %v5968
  %v5970 = vpop.f32.mrf.mxu0
  %v5971 = vadd.f32 %v159, %v5970
  %5972 = vmatmul.bf16.gmra.mxu0 %v412
  %v5973 = vpop.f32.mrf.mxu0
  %v5974 = vadd.f32 %v164, %v5973
  %v5975 = vpop.f32.mrf.mxu0
  %v5976 = vadd.f32 %v169, %v5975
  %5977 = vmatmul.bf16.gmra.mxu0 %v415
  %v5978 = vpop.f32.mrf.mxu0
  %v5979 = vadd.f32 %v174, %v5978
  %v5980 = vpop.f32.mrf.mxu0
  %v5981 = vadd.f32 %v179, %v5980
  %5982 = vmatmul.bf16.gmra.mxu0 %v418
  %v5983 = vpop.f32.mrf.mxu0
  %v5984 = vadd.f32 %v184, %v5983
  %v5985 = vpop.f32.mrf.mxu0
  %v5986 = vadd.f32 %v189, %v5985
  %5987 = vmatmul.bf16.gmra.mxu0 %v421
  %v5988 = vpop.f32.mrf.mxu0
  %v5989 = vadd.f32 %v194, %v5988
  %v5990 = vpop.f32.mrf.mxu0
  %v5991 = vadd.f32 %v199, %v5990
  %5992 = vmatmul.bf16.gmra.mxu0 %v424
  %v5993 = vpop.f32.mrf.mxu0
  %v5994 = vadd.f32 %v204, %v5993
  %v5995 = vpop.f32.mrf.mxu0
  %v5996 = vadd.f32 %v209, %v5995
  %5997 = vmatmul.bf16.gmra.mxu0 %v427
  %v5998 = vpop.f32.mrf.mxu0
  %v5999 = vadd.f32 %v214, %v5998
  %v6000 = vpop.f32.mrf.mxu0
  %v6001 = vadd.f32 %v219, %v6000
  %6002 = vmatmul.bf16.gmra.mxu0 %v430
  %v6003 = vpop.f32.mrf.mxu0
  %v6004 = vadd.f32 %v224, %v6003
  %v6005 = vpop.f32.mrf.mxu0
  %v6006 = vadd.f32 %v229, %v6005
  %6007 = vmatmul.bf16.gmra.mxu0 %v433
  %v6008 = vpop.f32.mrf.mxu0
  %v6009 = vadd.f32 %v234, %v6008
  %v6010 = vpop.f32.mrf.mxu0
  %v6011 = vadd.f32 %v239, %v6010
  %6012 = vmatmul.bf16.gmra.mxu0 %v436
  %v6013 = vpop.f32.mrf.mxu0
  %v6014 = vadd.f32 %v244, %v6013
  %v6015 = vpop.f32.mrf.mxu0
  %v6016 = vadd.f32 %v249, %v6015
  %6017 = vmatmul.bf16.gmra.mxu0 %v439
  %v6018 = vpop.f32.mrf.mxu0
  %v6019 = vadd.f32 %v254, %v6018
  %v6020 = vpop.f32.mrf.mxu0
  %v6021 = vadd.f32 %v259, %v6020
  %6022 = vmatmul.bf16.gmra.mxu0 %v442
  %v6023 = vpop.f32.mrf.mxu0
  %v6024 = vadd.f32 %v264, %v6023
  %v6025 = vpop.f32.mrf.mxu0
  %v6026 = vadd.f32 %v269, %v6025
  %6027 = vmatmul.bf16.gmra.mxu0 %v445
  %v6028 = vpop.f32.mrf.mxu0
  %v6029 = vadd.f32 %v274, %v6028
  %v6030 = vpop.f32.mrf.mxu0
  %6031 = vdwg.mxu0
  %v6032 = vmax.f32 %v5949, 0.0
  %v6033 = vmax.f32 %v5951, 0.0
  %v6034 = vmax.f32 %v5954, 0.0
  %v6035 = vmax.f32 %v5956, 0.0
  %v6036 = vmax.f32 %v5959, 0.0
  %v6037 = vmax.f32 %v5961, 0.0
  %v6038 = vmax.f32 %v5964, 0.0
  %v6039 = vmax.f32 %v5966, 0.0
  %v6040 = vmax.f32 %v5969, 0.0
  %v6041 = vmax.f32 %v5971, 0.0
  %v6042 = vmax.f32 %v5974, 0.0
  %v6043 = vmax.f32 %v5976, 0.0
  %v6044 = vmax.f32 %v5979, 0.0
  %v6045 = vmax.f32 %v5981, 0.0
  %v6046 = vmax.f32 %v5984, 0.0
  %v6047 = vmax.f32 %v5986, 0.0
  %v6048 = vmax.f32 %v5989, 0.0
  %v6049 = vmax.f32 %v5991, 0.0
  %v6050 = vmax.f32 %v5994, 0.0
  %v6051 = vmax.f32 %v5996, 0.0
  %v6052 = vmax.f32 %v5999, 0.0
  %v6053 = vmax.f32 %v6001, 0.0
  %v6054 = vmax.f32 %v6004, 0.0
  %v6055 = vmax.f32 %v6006, 0.0
  %v6056 = vmax.f32 %v6009, 0.0
  %v6057 = vmax.f32 %v6011, 0.0
  %v6058 = vmax.f32 %v6014, 0.0
  %v6059 = vmax.f32 %v6016, 0.0
  %v6060 = vmax.f32 %v6019, 0.0
  %v6061 = vmax.f32 %v6021, 0.0
  %v6062 = vmax.f32 %v6024, 0.0
  %v6063 = vmax.f32 %v6026, 0.0
  %v6064 = vmax.f32 %v6029, 0.0
  %v6065 = vpack.c.bf16 %v6033, %v6032
  %v6066 = vpack.c.bf16 %v6035, %v6034
  %v6067 = vpack.c.bf16 %v6037, %v6036
  %v6068 = vpack.c.bf16 %v6039, %v6038
  %v6069 = vpack.c.bf16 %v6041, %v6040
  %v6070 = vpack.c.bf16 %v6043, %v6042
  %v6071 = vpack.c.bf16 %v6045, %v6044
  %v6072 = vpack.c.bf16 %v6047, %v6046
  %v6073 = vpack.c.bf16 %v6049, %v6048
  %v6074 = vpack.c.bf16 %v6051, %v6050
  %v6075 = vpack.c.bf16 %v6053, %v6052
  %v6076 = vpack.c.bf16 %v6055, %v6054
  %v6077 = vpack.c.bf16 %v6057, %v6056
  %v6078 = vpack.c.bf16 %v6059, %v6058
  %v6079 = vpack.c.bf16 %v6061, %v6060
  %v6080 = vpack.c.bf16 %v6063, %v6062
  %v6081 = vpack.c.bf16 %v6064, %v6064
  %s6082 = scalar_lea.vmem %s3, 1260
  %v6083 = vld [vmem:[%s6082] sm:$0xff]
  %v6084 = vld [vmem:[%s6082 + $0x8] sm:$0xf]
  %v6085 = vld [vmem:[%s6082 + $0xc] sm:$0xff]
  %v6086 = vld [vmem:[%s6082 + $0x14] sm:$0xf]
  %v6087 = vld [vmem:[%s6082 + $0x18] sm:$0xff]
  %v6088 = vld [vmem:[%s6082 + $0x20] sm:$0xf]
  %v6089 = vld [vmem:[%s6082 + $0x24] sm:$0xff]
  %v6090 = vld [vmem:[%s6082 + $0x2c] sm:$0xf]
  %v6091 = vld [vmem:[%s6082 + $0x30] sm:$0xff]
  %v6092 = vld [vmem:[%s6082 + $0x38] sm:$0xf]
  %v6093 = vld [vmem:[%s6082 + $0x3c] sm:$0xff]
  %v6094 = vld [vmem:[%s6082 + $0x44] sm:$0xf]
  %v6095 = vld [vmem:[%s6082 + $0x48] sm:$0x11]
  %v6096 = vld [vmem:[%s6082 + $0x50] sm:$0x1]
  %v6111 = vunpack.c.l.b16 %v6083
  %v6112 = vunpack.c.h.b16 %v6083
  %v6113 = vunpack.c.l.b16 %v6084
  %v6114 = vunpack.c.l.b16 %v6085
  %v6115 = vunpack.c.h.b16 %v6085
  %v6116 = vunpack.c.l.b16 %v6086
  %v6117 = vunpack.c.l.b16 %v6087
  %v6118 = vunpack.c.h.b16 %v6087
  %v6119 = vunpack.c.l.b16 %v6088
  %v6120 = vunpack.c.l.b16 %v6089
  %v6121 = vunpack.c.h.b16 %v6089
  %v6122 = vunpack.c.l.b16 %v6090
  %v6123 = vunpack.c.l.b16 %v6091
  %v6124 = vunpack.c.h.b16 %v6091
  %v6125 = vunpack.c.l.b16 %v6092
  %v6126 = vunpack.c.l.b16 %v6093
  %v6127 = vunpack.c.h.b16 %v6093
  %v6128 = vunpack.c.l.b16 %v6094
  %v6129 = vunpack.c.l.b16 %v6095
  %v6130 = vunpack.c.h.b16 %v6095
  %v6131 = vunpack.c.l.b16 %v6096
  %v6132 = vpack.c.b16 %v6114, %v6111
  %v6133 = vpack.c.b16 %v6115, %v6112
  %v6134 = vpack.c.b16 %v6116, %v6113
  %v6135 = vpack.c.b16 %v6120, %v6117
  %v6136 = vpack.c.b16 %v6121, %v6118
  %v6137 = vpack.c.b16 %v6122, %v6119
  %v6138 = vpack.c.b16 %v6126, %v6123
  %v6139 = vpack.c.b16 %v6127, %v6124
  %v6140 = vpack.c.b16 %v6128, %v6125
  %v6141 = vpack.c.b16 %v6129, %v6129
  %v6142 = vpack.c.b16 %v6130, %v6130
  %v6143 = vpack.c.b16 %v6131, %v6131
  %v6153 = vsel %vm865, %v6134, 0
  %v6156 = vsel %vm865, %v6137, 0
  %v6159 = vsel %vm865, %v6140, 0
  %v6162 = vsel %vm865, %v6143, 0
  %v6165 = vsel %vm878, %v6081, 0
  %6167 = vmatpush.bf16.msra.mxu0 %v6072
  %6168 = vmatpush.bf16.msra.mxu0 %v6071
  %6169 = vmatpush.bf16.msra.mxu0 %v6070
  %6170 = vmatpush.bf16.msra.mxu0 %v6069
  %6171 = vmatpush.bf16.msra.mxu0 %v6068
  %6172 = vmatpush.bf16.msra.mxu0 %v6067
  %6173 = vmatpush.bf16.msra.mxu0 %v6066
  %6174 = vmatpush.bf16.msra.mxu0 %v6065
  %6175 = vmatmul.bf16.gmra.mxu0 %v6132
  %v6176 = vpop.f32.mrf.mxu0
  %v6177 = vadd.f32 0.0, %v6176
  %v6178 = vpop.f32.mrf.mxu0
  %v6179 = vadd.f32 0.0, %v6178
  %6180 = vmatmul.bf16.gmra.mxu0 %v6135
  %v6181 = vpop.f32.mrf.mxu0
  %v6182 = vadd.f32 0.0, %v6181
  %v6183 = vpop.f32.mrf.mxu0
  %v6184 = vadd.f32 0.0, %v6183
  %6185 = vmatmul.bf16.gmra.mxu0 %v6138
  %v6186 = vpop.f32.mrf.mxu0
  %v6187 = vadd.f32 0.0, %v6186
  %v6188 = vpop.f32.mrf.mxu0
  %v6189 = vadd.f32 0.0, %v6188
  %6190 = vmatmul.bf16.gmra.mxu0 %v6141
  %v6191 = vpop.f32.mrf.mxu0
  %v6192 = vadd.f32 0.0, %v6191
  %v6193 = vpop.f32.mrf.mxu0
  %6194 = vdwg.mxu0
  %6195 = vmatpush.bf16.msra.mxu0 %v6080
  %6196 = vmatpush.bf16.msra.mxu0 %v6079
  %6197 = vmatpush.bf16.msra.mxu0 %v6078
  %6198 = vmatpush.bf16.msra.mxu0 %v6077
  %6199 = vmatpush.bf16.msra.mxu0 %v6076
  %6200 = vmatpush.bf16.msra.mxu0 %v6075
  %6201 = vmatpush.bf16.msra.mxu0 %v6074
  %6202 = vmatpush.bf16.msra.mxu0 %v6073
  %6203 = vmatmul.bf16.gmra.mxu0 %v6133
  %v6204 = vpop.f32.mrf.mxu0
  %v6205 = vadd.f32 %v6177, %v6204
  %v6206 = vpop.f32.mrf.mxu0
  %v6207 = vadd.f32 %v6179, %v6206
  %6208 = vmatmul.bf16.gmra.mxu0 %v6136
  %v6209 = vpop.f32.mrf.mxu0
  %v6210 = vadd.f32 %v6182, %v6209
  %v6211 = vpop.f32.mrf.mxu0
  %v6212 = vadd.f32 %v6184, %v6211
  %6213 = vmatmul.bf16.gmra.mxu0 %v6139
  %v6214 = vpop.f32.mrf.mxu0
  %v6215 = vadd.f32 %v6187, %v6214
  %v6216 = vpop.f32.mrf.mxu0
  %v6217 = vadd.f32 %v6189, %v6216
  %6218 = vmatmul.bf16.gmra.mxu0 %v6142
  %v6219 = vpop.f32.mrf.mxu0
  %v6220 = vadd.f32 %v6192, %v6219
  %v6221 = vpop.f32.mrf.mxu0
  %6222 = vdwg.mxu0
  %6223 = vmatpush.bf16.msra.mxu0 0
  %6224 = vmatpush.bf16.msra.mxu0 0
  %6225 = vmatpush.bf16.msra.mxu0 0
  %6226 = vmatpush.bf16.msra.mxu0 0
  %6227 = vmatpush.bf16.msra.mxu0 0
  %6228 = vmatpush.bf16.msra.mxu0 0
  %6229 = vmatpush.bf16.msra.mxu0 0
  %6230 = vmatpush.bf16.msra.mxu0 %v6165
  %6231 = vmatmul.bf16.gmra.mxu0 %v6153
  %v6232 = vpop.f32.mrf.mxu0
  %v6233 = vadd.f32 %v6205, %v6232
  %v6234 = vpop.f32.mrf.mxu0
  %v6235 = vadd.f32 %v6207, %v6234
  %6236 = vmatmul.bf16.gmra.mxu0 %v6156
  %v6237 = vpop.f32.mrf.mxu0
  %v6238 = vadd.f32 %v6210, %v6237
  %v6239 = vpop.f32.mrf.mxu0
  %v6240 = vadd.f32 %v6212, %v6239
  %6241 = vmatmul.bf16.gmra.mxu0 %v6159
  %v6242 = vpop.f32.mrf.mxu0
  %v6243 = vadd.f32 %v6215, %v6242
  %v6244 = vpop.f32.mrf.mxu0
  %v6245 = vadd.f32 %v6217, %v6244
  %6246 = vmatmul.bf16.gmra.mxu0 %v6162
  %v6247 = vpop.f32.mrf.mxu0
  %v6248 = vadd.f32 %v6220, %v6247
  %v6249 = vpop.f32.mrf.mxu0
  %6250 = vdwg.mxu0
  %v6251 = vadd.f32 %v5884, %v6233
  %v6252 = vadd.f32 %v5885, %v6235
  %v6253 = vadd.f32 %v5886, %v6238
  %v6254 = vadd.f32 %v5887, %v6240
  %v6255 = vadd.f32 %v5888, %v6243
  %v6256 = vadd.f32 %v5889, %v6245
  %v6257 = vadd.f32 %v5890, %v6248
  %v6258 = vld [vmem:[%s0 + $0x100] sm:$0xf]
  %v6259 = vld [vmem:[%s0 + $0x104] sm:$0xf]
  %v6260 = vld [vmem:[%s0 + $0x108] sm:$0xf]
  %v6261 = vld [vmem:[%s0 + $0x10c] sm:$0xf]
  %v6262 = vld [vmem:[%s0 + $0x110] sm:$0xf]
  %v6263 = vld [vmem:[%s0 + $0x114] sm:$0xf]
  %v6264 = vld [vmem:[%s0 + $0x118] sm:$0xf]
  %v6265 = vld [vmem:[%s0 + $0x11c] sm:$0xf]
  %v6266 = vld [vmem:[%s0 + $0x120] sm:$0xf]
  %v6267 = vld [vmem:[%s0 + $0x124] sm:$0xf]
  %v6268 = vld [vmem:[%s0 + $0x128] sm:$0xf]
  %v6269 = vld [vmem:[%s0 + $0x12c] sm:$0xf]
  %v6282 = vunpack.c.l.b16 %v6258
  %v6283 = vunpack.c.l.b16 %v6259
  %v6284 = vunpack.c.l.b16 %v6260
  %v6285 = vunpack.c.l.b16 %v6261
  %v6286 = vunpack.c.l.b16 %v6262
  %v6287 = vunpack.c.l.b16 %v6263
  %v6288 = vunpack.c.l.b16 %v6264
  %v6289 = vunpack.c.l.b16 %v6265
  %v6290 = vunpack.c.l.b16 %v6266
  %v6291 = vunpack.c.l.b16 %v6267
  %v6292 = vunpack.c.l.b16 %v6268
  %v6293 = vunpack.c.l.b16 %v6269
  %v6294 = vpack.c.b16 %v6283, %v6282
  %v6295 = vpack.c.b16 %v6285, %v6284
  %v6296 = vpack.c.b16 %v6287, %v6286
  %v6297 = vpack.c.b16 %v6289, %v6288
  %v6298 = vpack.c.b16 %v6291, %v6290
  %v6299 = vpack.c.b16 %v6293, %v6292
  %6306 = vmatpush.bf16.msra.mxu0 0
  %6307 = vmatpush.bf16.msra.mxu0 0
  %6308 = vmatpush.bf16.msra.mxu0 %v6299
  %6309 = vmatpush.bf16.msra.mxu0 %v6298
  %6310 = vmatpush.bf16.msra.mxu0 %v6297
  %6311 = vmatpush.bf16.msra.mxu0 %v6296
  %6312 = vmatpush.bf16.msra.mxu0 %v6295
  %6313 = vmatpush.bf16.msra.mxu0 %v6294
  %6314 = vmatmul.bf16.gmra.mxu0 %v397
  %v6315 = vpop.f32.mrf.mxu0
  %v6316 = vadd.f32 %v114, %v6315
  %v6317 = vpop.f32.mrf.mxu0
  %v6318 = vadd.f32 %v119, %v6317
  %6319 = vmatmul.bf16.gmra.mxu0 %v400
  %v6320 = vpop.f32.mrf.mxu0
  %v6321 = vadd.f32 %v124, %v6320
  %v6322 = vpop.f32.mrf.mxu0
  %v6323 = vadd.f32 %v129, %v6322
  %6324 = vmatmul.bf16.gmra.mxu0 %v403
  %v6325 = vpop.f32.mrf.mxu0
  %v6326 = vadd.f32 %v134, %v6325
  %v6327 = vpop.f32.mrf.mxu0
  %v6328 = vadd.f32 %v139, %v6327
  %6329 = vmatmul.bf16.gmra.mxu0 %v406
  %v6330 = vpop.f32.mrf.mxu0
  %v6331 = vadd.f32 %v144, %v6330
  %v6332 = vpop.f32.mrf.mxu0
  %v6333 = vadd.f32 %v149, %v6332
  %6334 = vmatmul.bf16.gmra.mxu0 %v409
  %v6335 = vpop.f32.mrf.mxu0
  %v6336 = vadd.f32 %v154, %v6335
  %v6337 = vpop.f32.mrf.mxu0
  %v6338 = vadd.f32 %v159, %v6337
  %6339 = vmatmul.bf16.gmra.mxu0 %v412
  %v6340 = vpop.f32.mrf.mxu0
  %v6341 = vadd.f32 %v164, %v6340
  %v6342 = vpop.f32.mrf.mxu0
  %v6343 = vadd.f32 %v169, %v6342
  %6344 = vmatmul.bf16.gmra.mxu0 %v415
  %v6345 = vpop.f32.mrf.mxu0
  %v6346 = vadd.f32 %v174, %v6345
  %v6347 = vpop.f32.mrf.mxu0
  %v6348 = vadd.f32 %v179, %v6347
  %6349 = vmatmul.bf16.gmra.mxu0 %v418
  %v6350 = vpop.f32.mrf.mxu0
  %v6351 = vadd.f32 %v184, %v6350
  %v6352 = vpop.f32.mrf.mxu0
  %v6353 = vadd.f32 %v189, %v6352
  %6354 = vmatmul.bf16.gmra.mxu0 %v421
  %v6355 = vpop.f32.mrf.mxu0
  %v6356 = vadd.f32 %v194, %v6355
  %v6357 = vpop.f32.mrf.mxu0
  %v6358 = vadd.f32 %v199, %v6357
  %6359 = vmatmul.bf16.gmra.mxu0 %v424
  %v6360 = vpop.f32.mrf.mxu0
  %v6361 = vadd.f32 %v204, %v6360
  %v6362 = vpop.f32.mrf.mxu0
  %v6363 = vadd.f32 %v209, %v6362
  %6364 = vmatmul.bf16.gmra.mxu0 %v427
  %v6365 = vpop.f32.mrf.mxu0
  %v6366 = vadd.f32 %v214, %v6365
  %v6367 = vpop.f32.mrf.mxu0
  %v6368 = vadd.f32 %v219, %v6367
  %6369 = vmatmul.bf16.gmra.mxu0 %v430
  %v6370 = vpop.f32.mrf.mxu0
  %v6371 = vadd.f32 %v224, %v6370
  %v6372 = vpop.f32.mrf.mxu0
  %v6373 = vadd.f32 %v229, %v6372
  %6374 = vmatmul.bf16.gmra.mxu0 %v433
  %v6375 = vpop.f32.mrf.mxu0
  %v6376 = vadd.f32 %v234, %v6375
  %v6377 = vpop.f32.mrf.mxu0
  %v6378 = vadd.f32 %v239, %v6377
  %6379 = vmatmul.bf16.gmra.mxu0 %v436
  %v6380 = vpop.f32.mrf.mxu0
  %v6381 = vadd.f32 %v244, %v6380
  %v6382 = vpop.f32.mrf.mxu0
  %v6383 = vadd.f32 %v249, %v6382
  %6384 = vmatmul.bf16.gmra.mxu0 %v439
  %v6385 = vpop.f32.mrf.mxu0
  %v6386 = vadd.f32 %v254, %v6385
  %v6387 = vpop.f32.mrf.mxu0
  %v6388 = vadd.f32 %v259, %v6387
  %6389 = vmatmul.bf16.gmra.mxu0 %v442
  %v6390 = vpop.f32.mrf.mxu0
  %v6391 = vadd.f32 %v264, %v6390
  %v6392 = vpop.f32.mrf.mxu0
  %v6393 = vadd.f32 %v269, %v6392
  %6394 = vmatmul.bf16.gmra.mxu0 %v445
  %v6395 = vpop.f32.mrf.mxu0
  %v6396 = vadd.f32 %v274, %v6395
  %v6397 = vpop.f32.mrf.mxu0
  %6398 = vdwg.mxu0
  %v6399 = vmax.f32 %v6316, 0.0
  %v6400 = vmax.f32 %v6318, 0.0
  %v6401 = vmax.f32 %v6321, 0.0
  %v6402 = vmax.f32 %v6323, 0.0
  %v6403 = vmax.f32 %v6326, 0.0
  %v6404 = vmax.f32 %v6328, 0.0
  %v6405 = vmax.f32 %v6331, 0.0
  %v6406 = vmax.f32 %v6333, 0.0
  %v6407 = vmax.f32 %v6336, 0.0
  %v6408 = vmax.f32 %v6338, 0.0
  %v6409 = vmax.f32 %v6341, 0.0
  %v6410 = vmax.f32 %v6343, 0.0
  %v6411 = vmax.f32 %v6346, 0.0
  %v6412 = vmax.f32 %v6348, 0.0
  %v6413 = vmax.f32 %v6351, 0.0
  %v6414 = vmax.f32 %v6353, 0.0
  %v6415 = vmax.f32 %v6356, 0.0
  %v6416 = vmax.f32 %v6358, 0.0
  %v6417 = vmax.f32 %v6361, 0.0
  %v6418 = vmax.f32 %v6363, 0.0
  %v6419 = vmax.f32 %v6366, 0.0
  %v6420 = vmax.f32 %v6368, 0.0
  %v6421 = vmax.f32 %v6371, 0.0
  %v6422 = vmax.f32 %v6373, 0.0
  %v6423 = vmax.f32 %v6376, 0.0
  %v6424 = vmax.f32 %v6378, 0.0
  %v6425 = vmax.f32 %v6381, 0.0
  %v6426 = vmax.f32 %v6383, 0.0
  %v6427 = vmax.f32 %v6386, 0.0
  %v6428 = vmax.f32 %v6388, 0.0
  %v6429 = vmax.f32 %v6391, 0.0
  %v6430 = vmax.f32 %v6393, 0.0
  %v6431 = vmax.f32 %v6396, 0.0
  %v6432 = vpack.c.bf16 %v6400, %v6399
  %v6433 = vpack.c.bf16 %v6402, %v6401
  %v6434 = vpack.c.bf16 %v6404, %v6403
  %v6435 = vpack.c.bf16 %v6406, %v6405
  %v6436 = vpack.c.bf16 %v6408, %v6407
  %v6437 = vpack.c.bf16 %v6410, %v6409
  %v6438 = vpack.c.bf16 %v6412, %v6411
  %v6439 = vpack.c.bf16 %v6414, %v6413
  %v6440 = vpack.c.bf16 %v6416, %v6415
  %v6441 = vpack.c.bf16 %v6418, %v6417
  %v6442 = vpack.c.bf16 %v6420, %v6419
  %v6443 = vpack.c.bf16 %v6422, %v6421
  %v6444 = vpack.c.bf16 %v6424, %v6423
  %v6445 = vpack.c.bf16 %v6426, %v6425
  %v6446 = vpack.c.bf16 %v6428, %v6427
  %v6447 = vpack.c.bf16 %v6430, %v6429
  %v6448 = vpack.c.bf16 %v6431, %v6431
  %s6449 = scalar_lea.vmem %s3, 1344
  %v6450 = vld [vmem:[%s6449] sm:$0xff]
  %v6451 = vld [vmem:[%s6449 + $0x8] sm:$0xf]
  %v6452 = vld [vmem:[%s6449 + $0xc] sm:$0xff]
  %v6453 = vld [vmem:[%s6449 + $0x14] sm:$0xf]
  %v6454 = vld [vmem:[%s6449 + $0x18] sm:$0xff]
  %v6455 = vld [vmem:[%s6449 + $0x20] sm:$0xf]
  %v6456 = vld [vmem:[%s6449 + $0x24] sm:$0xff]
  %v6457 = vld [vmem:[%s6449 + $0x2c] sm:$0xf]
  %v6458 = vld [vmem:[%s6449 + $0x30] sm:$0xff]
  %v6459 = vld [vmem:[%s6449 + $0x38] sm:$0xf]
  %v6460 = vld [vmem:[%s6449 + $0x3c] sm:$0xff]
  %v6461 = vld [vmem:[%s6449 + $0x44] sm:$0xf]
  %v6462 = vld [vmem:[%s6449 + $0x48] sm:$0x11]
  %v6463 = vld [vmem:[%s6449 + $0x50] sm:$0x1]
  %v6478 = vunpack.c.l.b16 %v6450
  %v6479 = vunpack.c.h.b16 %v6450
  %v6480 = vunpack.c.l.b16 %v6451
  %v6481 = vunpack.c.l.b16 %v6452
  %v6482 = vunpack.c.h.b16 %v6452
  %v6483 = vunpack.c.l.b16 %v6453
  %v6484 = vunpack.c.l.b16 %v6454
  %v6485 = vunpack.c.h.b16 %v6454
  %v6486 = vunpack.c.l.b16 %v6455
  %v6487 = vunpack.c.l.b16 %v6456
  %v6488 = vunpack.c.h.b16 %v6456
  %v6489 = vunpack.c.l.b16 %v6457
  %v6490 = vunpack.c.l.b16 %v6458
  %v6491 = vunpack.c.h.b16 %v6458
  %v6492 = vunpack.c.l.b16 %v6459
  %v6493 = vunpack.c.l.b16 %v6460
  %v6494 = vunpack.c.h.b16 %v6460
  %v6495 = vunpack.c.l.b16 %v6461
  %v6496 = vunpack.c.l.b16 %v6462
  %v6497 = vunpack.c.h.b16 %v6462
  %v6498 = vunpack.c.l.b16 %v6463
  %v6499 = vpack.c.b16 %v6481, %v6478
  %v6500 = vpack.c.b16 %v6482, %v6479
  %v6501 = vpack.c.b16 %v6483, %v6480
  %v6502 = vpack.c.b16 %v6487, %v6484
  %v6503 = vpack.c.b16 %v6488, %v6485
  %v6504 = vpack.c.b16 %v6489, %v6486
  %v6505 = vpack.c.b16 %v6493, %v6490
  %v6506 = vpack.c.b16 %v6494, %v6491
  %v6507 = vpack.c.b16 %v6495, %v6492
  %v6508 = vpack.c.b16 %v6496, %v6496
  %v6509 = vpack.c.b16 %v6497, %v6497
  %v6510 = vpack.c.b16 %v6498, %v6498
  %v6520 = vsel %vm865, %v6501, 0
  %v6523 = vsel %vm865, %v6504, 0
  %v6526 = vsel %vm865, %v6507, 0
  %v6529 = vsel %vm865, %v6510, 0
  %v6532 = vsel %vm878, %v6448, 0
  %6534 = vmatpush.bf16.msra.mxu0 %v6439
  %6535 = vmatpush.bf16.msra.mxu0 %v6438
  %6536 = vmatpush.bf16.msra.mxu0 %v6437
  %6537 = vmatpush.bf16.msra.mxu0 %v6436
  %6538 = vmatpush.bf16.msra.mxu0 %v6435
  %6539 = vmatpush.bf16.msra.mxu0 %v6434
  %6540 = vmatpush.bf16.msra.mxu0 %v6433
  %6541 = vmatpush.bf16.msra.mxu0 %v6432
  %6542 = vmatmul.bf16.gmra.mxu0 %v6499
  %v6543 = vpop.f32.mrf.mxu0
  %v6544 = vadd.f32 0.0, %v6543
  %v6545 = vpop.f32.mrf.mxu0
  %v6546 = vadd.f32 0.0, %v6545
  %6547 = vmatmul.bf16.gmra.mxu0 %v6502
  %v6548 = vpop.f32.mrf.mxu0
  %v6549 = vadd.f32 0.0, %v6548
  %v6550 = vpop.f32.mrf.mxu0
  %v6551 = vadd.f32 0.0, %v6550
  %6552 = vmatmul.bf16.gmra.mxu0 %v6505
  %v6553 = vpop.f32.mrf.mxu0
  %v6554 = vadd.f32 0.0, %v6553
  %v6555 = vpop.f32.mrf.mxu0
  %v6556 = vadd.f32 0.0, %v6555
  %6557 = vmatmul.bf16.gmra.mxu0 %v6508
  %v6558 = vpop.f32.mrf.mxu0
  %v6559 = vadd.f32 0.0, %v6558
  %v6560 = vpop.f32.mrf.mxu0
  %6561 = vdwg.mxu0
  %6562 = vmatpush.bf16.msra.mxu0 %v6447
  %6563 = vmatpush.bf16.msra.mxu0 %v6446
  %6564 = vmatpush.bf16.msra.mxu0 %v6445
  %6565 = vmatpush.bf16.msra.mxu0 %v6444
  %6566 = vmatpush.bf16.msra.mxu0 %v6443
  %6567 = vmatpush.bf16.msra.mxu0 %v6442
  %6568 = vmatpush.bf16.msra.mxu0 %v6441
  %6569 = vmatpush.bf16.msra.mxu0 %v6440
  %6570 = vmatmul.bf16.gmra.mxu0 %v6500
  %v6571 = vpop.f32.mrf.mxu0
  %v6572 = vadd.f32 %v6544, %v6571
  %v6573 = vpop.f32.mrf.mxu0
  %v6574 = vadd.f32 %v6546, %v6573
  %6575 = vmatmul.bf16.gmra.mxu0 %v6503
  %v6576 = vpop.f32.mrf.mxu0
  %v6577 = vadd.f32 %v6549, %v6576
  %v6578 = vpop.f32.mrf.mxu0
  %v6579 = vadd.f32 %v6551, %v6578
  %6580 = vmatmul.bf16.gmra.mxu0 %v6506
  %v6581 = vpop.f32.mrf.mxu0
  %v6582 = vadd.f32 %v6554, %v6581
  %v6583 = vpop.f32.mrf.mxu0
  %v6584 = vadd.f32 %v6556, %v6583
  %6585 = vmatmul.bf16.gmra.mxu0 %v6509
  %v6586 = vpop.f32.mrf.mxu0
  %v6587 = vadd.f32 %v6559, %v6586
  %v6588 = vpop.f32.mrf.mxu0
  %6589 = vdwg.mxu0
  %6590 = vmatpush.bf16.msra.mxu0 0
  %6591 = vmatpush.bf16.msra.mxu0 0
  %6592 = vmatpush.bf16.msra.mxu0 0
  %6593 = vmatpush.bf16.msra.mxu0 0
  %6594 = vmatpush.bf16.msra.mxu0 0
  %6595 = vmatpush.bf16.msra.mxu0 0
  %6596 = vmatpush.bf16.msra.mxu0 0
  %6597 = vmatpush.bf16.msra.mxu0 %v6532
  %6598 = vmatmul.bf16.gmra.mxu0 %v6520
  %v6599 = vpop.f32.mrf.mxu0
  %v6600 = vadd.f32 %v6572, %v6599
  %v6601 = vpop.f32.mrf.mxu0
  %v6602 = vadd.f32 %v6574, %v6601
  %6603 = vmatmul.bf16.gmra.mxu0 %v6523
  %v6604 = vpop.f32.mrf.mxu0
  %v6605 = vadd.f32 %v6577, %v6604
  %v6606 = vpop.f32.mrf.mxu0
  %v6607 = vadd.f32 %v6579, %v6606
  %6608 = vmatmul.bf16.gmra.mxu0 %v6526
  %v6609 = vpop.f32.mrf.mxu0
  %v6610 = vadd.f32 %v6582, %v6609
  %v6611 = vpop.f32.mrf.mxu0
  %v6612 = vadd.f32 %v6584, %v6611
  %6613 = vmatmul.bf16.gmra.mxu0 %v6529
  %v6614 = vpop.f32.mrf.mxu0
  %v6615 = vadd.f32 %v6587, %v6614
  %v6616 = vpop.f32.mrf.mxu0
  %6617 = vdwg.mxu0
  %v6618 = vadd.f32 %v6251, %v6600
  %v6619 = vadd.f32 %v6252, %v6602
  %v6620 = vadd.f32 %v6253, %v6605
  %v6621 = vadd.f32 %v6254, %v6607
  %v6622 = vadd.f32 %v6255, %v6610
  %v6623 = vadd.f32 %v6256, %v6612
  %v6624 = vadd.f32 %v6257, %v6615
  %v6625 = vld [vmem:[%s0 + $0x110] sm:$0xf]
  %v6626 = vld [vmem:[%s0 + $0x114] sm:$0xf]
  %v6627 = vld [vmem:[%s0 + $0x118] sm:$0xf]
  %v6628 = vld [vmem:[%s0 + $0x11c] sm:$0xf]
  %v6629 = vld [vmem:[%s0 + $0x120] sm:$0xf]
  %v6630 = vld [vmem:[%s0 + $0x124] sm:$0xf]
  %v6631 = vld [vmem:[%s0 + $0x128] sm:$0xf]
  %v6632 = vld [vmem:[%s0 + $0x12c] sm:$0xf]
  %v6633 = vld [vmem:[%s0 + $0x130] sm:$0xf]
  %v6634 = vld [vmem:[%s0 + $0x134] sm:$0xf]
  %v6635 = vld [vmem:[%s0 + $0x138] sm:$0xf]
  %v6636 = vld [vmem:[%s0 + $0x13c] sm:$0xf]
  %v6649 = vunpack.c.l.b16 %v6625
  %v6650 = vunpack.c.l.b16 %v6626
  %v6651 = vunpack.c.l.b16 %v6627
  %v6652 = vunpack.c.l.b16 %v6628
  %v6653 = vunpack.c.l.b16 %v6629
  %v6654 = vunpack.c.l.b16 %v6630
  %v6655 = vunpack.c.l.b16 %v6631
  %v6656 = vunpack.c.l.b16 %v6632
  %v6657 = vunpack.c.l.b16 %v6633
  %v6658 = vunpack.c.l.b16 %v6634
  %v6659 = vunpack.c.l.b16 %v6635
  %v6660 = vunpack.c.l.b16 %v6636
  %v6661 = vpack.c.b16 %v6650, %v6649
  %v6662 = vpack.c.b16 %v6652, %v6651
  %v6663 = vpack.c.b16 %v6654, %v6653
  %v6664 = vpack.c.b16 %v6656, %v6655
  %v6665 = vpack.c.b16 %v6658, %v6657
  %v6666 = vpack.c.b16 %v6660, %v6659
  %6673 = vmatpush.bf16.msra.mxu0 0
  %6674 = vmatpush.bf16.msra.mxu0 0
  %6675 = vmatpush.bf16.msra.mxu0 %v6666
  %6676 = vmatpush.bf16.msra.mxu0 %v6665
  %6677 = vmatpush.bf16.msra.mxu0 %v6664
  %6678 = vmatpush.bf16.msra.mxu0 %v6663
  %6679 = vmatpush.bf16.msra.mxu0 %v6662
  %6680 = vmatpush.bf16.msra.mxu0 %v6661
  %6681 = vmatmul.bf16.gmra.mxu0 %v397
  %v6682 = vpop.f32.mrf.mxu0
  %v6683 = vadd.f32 %v114, %v6682
  %v6684 = vpop.f32.mrf.mxu0
  %v6685 = vadd.f32 %v119, %v6684
  %6686 = vmatmul.bf16.gmra.mxu0 %v400
  %v6687 = vpop.f32.mrf.mxu0
  %v6688 = vadd.f32 %v124, %v6687
  %v6689 = vpop.f32.mrf.mxu0
  %v6690 = vadd.f32 %v129, %v6689
  %6691 = vmatmul.bf16.gmra.mxu0 %v403
  %v6692 = vpop.f32.mrf.mxu0
  %v6693 = vadd.f32 %v134, %v6692
  %v6694 = vpop.f32.mrf.mxu0
  %v6695 = vadd.f32 %v139, %v6694
  %6696 = vmatmul.bf16.gmra.mxu0 %v406
  %v6697 = vpop.f32.mrf.mxu0
  %v6698 = vadd.f32 %v144, %v6697
  %v6699 = vpop.f32.mrf.mxu0
  %v6700 = vadd.f32 %v149, %v6699
  %6701 = vmatmul.bf16.gmra.mxu0 %v409
  %v6702 = vpop.f32.mrf.mxu0
  %v6703 = vadd.f32 %v154, %v6702
  %v6704 = vpop.f32.mrf.mxu0
  %v6705 = vadd.f32 %v159, %v6704
  %6706 = vmatmul.bf16.gmra.mxu0 %v412
  %v6707 = vpop.f32.mrf.mxu0
  %v6708 = vadd.f32 %v164, %v6707
  %v6709 = vpop.f32.mrf.mxu0
  %v6710 = vadd.f32 %v169, %v6709
  %6711 = vmatmul.bf16.gmra.mxu0 %v415
  %v6712 = vpop.f32.mrf.mxu0
  %v6713 = vadd.f32 %v174, %v6712
  %v6714 = vpop.f32.mrf.mxu0
  %v6715 = vadd.f32 %v179, %v6714
  %6716 = vmatmul.bf16.gmra.mxu0 %v418
  %v6717 = vpop.f32.mrf.mxu0
  %v6718 = vadd.f32 %v184, %v6717
  %v6719 = vpop.f32.mrf.mxu0
  %v6720 = vadd.f32 %v189, %v6719
  %6721 = vmatmul.bf16.gmra.mxu0 %v421
  %v6722 = vpop.f32.mrf.mxu0
  %v6723 = vadd.f32 %v194, %v6722
  %v6724 = vpop.f32.mrf.mxu0
  %v6725 = vadd.f32 %v199, %v6724
  %6726 = vmatmul.bf16.gmra.mxu0 %v424
  %v6727 = vpop.f32.mrf.mxu0
  %v6728 = vadd.f32 %v204, %v6727
  %v6729 = vpop.f32.mrf.mxu0
  %v6730 = vadd.f32 %v209, %v6729
  %6731 = vmatmul.bf16.gmra.mxu0 %v427
  %v6732 = vpop.f32.mrf.mxu0
  %v6733 = vadd.f32 %v214, %v6732
  %v6734 = vpop.f32.mrf.mxu0
  %v6735 = vadd.f32 %v219, %v6734
  %6736 = vmatmul.bf16.gmra.mxu0 %v430
  %v6737 = vpop.f32.mrf.mxu0
  %v6738 = vadd.f32 %v224, %v6737
  %v6739 = vpop.f32.mrf.mxu0
  %v6740 = vadd.f32 %v229, %v6739
  %6741 = vmatmul.bf16.gmra.mxu0 %v433
  %v6742 = vpop.f32.mrf.mxu0
  %v6743 = vadd.f32 %v234, %v6742
  %v6744 = vpop.f32.mrf.mxu0
  %v6745 = vadd.f32 %v239, %v6744
  %6746 = vmatmul.bf16.gmra.mxu0 %v436
  %v6747 = vpop.f32.mrf.mxu0
  %v6748 = vadd.f32 %v244, %v6747
  %v6749 = vpop.f32.mrf.mxu0
  %v6750 = vadd.f32 %v249, %v6749
  %6751 = vmatmul.bf16.gmra.mxu0 %v439
  %v6752 = vpop.f32.mrf.mxu0
  %v6753 = vadd.f32 %v254, %v6752
  %v6754 = vpop.f32.mrf.mxu0
  %v6755 = vadd.f32 %v259, %v6754
  %6756 = vmatmul.bf16.gmra.mxu0 %v442
  %v6757 = vpop.f32.mrf.mxu0
  %v6758 = vadd.f32 %v264, %v6757
  %v6759 = vpop.f32.mrf.mxu0
  %v6760 = vadd.f32 %v269, %v6759
  %6761 = vmatmul.bf16.gmra.mxu0 %v445
  %v6762 = vpop.f32.mrf.mxu0
  %v6763 = vadd.f32 %v274, %v6762
  %v6764 = vpop.f32.mrf.mxu0
  %6765 = vdwg.mxu0
  %v6766 = vmax.f32 %v6683, 0.0
  %v6767 = vmax.f32 %v6685, 0.0
  %v6768 = vmax.f32 %v6688, 0.0
  %v6769 = vmax.f32 %v6690, 0.0
  %v6770 = vmax.f32 %v6693, 0.0
  %v6771 = vmax.f32 %v6695, 0.0
  %v6772 = vmax.f32 %v6698, 0.0
  %v6773 = vmax.f32 %v6700, 0.0
  %v6774 = vmax.f32 %v6703, 0.0
  %v6775 = vmax.f32 %v6705, 0.0
  %v6776 = vmax.f32 %v6708, 0.0
  %v6777 = vmax.f32 %v6710, 0.0
  %v6778 = vmax.f32 %v6713, 0.0
  %v6779 = vmax.f32 %v6715, 0.0
  %v6780 = vmax.f32 %v6718, 0.0
  %v6781 = vmax.f32 %v6720, 0.0
  %v6782 = vmax.f32 %v6723, 0.0
  %v6783 = vmax.f32 %v6725, 0.0
  %v6784 = vmax.f32 %v6728, 0.0
  %v6785 = vmax.f32 %v6730, 0.0
  %v6786 = vmax.f32 %v6733, 0.0
  %v6787 = vmax.f32 %v6735, 0.0
  %v6788 = vmax.f32 %v6738, 0.0
  %v6789 = vmax.f32 %v6740, 0.0
  %v6790 = vmax.f32 %v6743, 0.0
  %v6791 = vmax.f32 %v6745, 0.0
  %v6792 = vmax.f32 %v6748, 0.0
  %v6793 = vmax.f32 %v6750, 0.0
  %v6794 = vmax.f32 %v6753, 0.0
  %v6795 = vmax.f32 %v6755, 0.0
  %v6796 = vmax.f32 %v6758, 0.0
  %v6797 = vmax.f32 %v6760, 0.0
  %v6798 = vmax.f32 %v6763, 0.0
  %v6799 = vpack.c.bf16 %v6767, %v6766
  %v6800 = vpack.c.bf16 %v6769, %v6768
  %v6801 = vpack.c.bf16 %v6771, %v6770
  %v6802 = vpack.c.bf16 %v6773, %v6772
  %v6803 = vpack.c.bf16 %v6775, %v6774
  %v6804 = vpack.c.bf16 %v6777, %v6776
  %v6805 = vpack.c.bf16 %v6779, %v6778
  %v6806 = vpack.c.bf16 %v6781, %v6780
  %v6807 = vpack.c.bf16 %v6783, %v6782
  %v6808 = vpack.c.bf16 %v6785, %v6784
  %v6809 = vpack.c.bf16 %v6787, %v6786
  %v6810 = vpack.c.bf16 %v6789, %v6788
  %v6811 = vpack.c.bf16 %v6791, %v6790
  %v6812 = vpack.c.bf16 %v6793, %v6792
  %v6813 = vpack.c.bf16 %v6795, %v6794
  %v6814 = vpack.c.bf16 %v6797, %v6796
  %v6815 = vpack.c.bf16 %v6798, %v6798
  %s6816 = scalar_lea.vmem %s3, 1428
  %v6817 = vld [vmem:[%s6816] sm:$0xff]
  %v6818 = vld [vmem:[%s6816 + $0x8] sm:$0xf]
  %v6819 = vld [vmem:[%s6816 + $0xc] sm:$0xff]
  %v6820 = vld [vmem:[%s6816 + $0x14] sm:$0xf]
  %v6821 = vld [vmem:[%s6816 + $0x18] sm:$0xff]
  %v6822 = vld [vmem:[%s6816 + $0x20] sm:$0xf]
  %v6823 = vld [vmem:[%s6816 + $0x24] sm:$0xff]
  %v6824 = vld [vmem:[%s6816 + $0x2c] sm:$0xf]
  %v6825 = vld [vmem:[%s6816 + $0x30] sm:$0xff]
  %v6826 = vld [vmem:[%s6816 + $0x38] sm:$0xf]
  %v6827 = vld [vmem:[%s6816 + $0x3c] sm:$0xff]
  %v6828 = vld [vmem:[%s6816 + $0x44] sm:$0xf]
  %v6829 = vld [vmem:[%s6816 + $0x48] sm:$0x11]
  %v6830 = vld [vmem:[%s6816 + $0x50] sm:$0x1]
  %v6845 = vunpack.c.l.b16 %v6817
  %v6846 = vunpack.c.h.b16 %v6817
  %v6847 = vunpack.c.l.b16 %v6818
  %v6848 = vunpack.c.l.b16 %v6819
  %v6849 = vunpack.c.h.b16 %v6819
  %v6850 = vunpack.c.l.b16 %v6820
  %v6851 = vunpack.c.l.b16 %v6821
  %v6852 = vunpack.c.h.b16 %v6821
  %v6853 = vunpack.c.l.b16 %v6822
  %v6854 = vunpack.c.l.b16 %v6823
  %v6855 = vunpack.c.h.b16 %v6823
  %v6856 = vunpack.c.l.b16 %v6824
  %v6857 = vunpack.c.l.b16 %v6825
  %v6858 = vunpack.c.h.b16 %v6825
  %v6859 = vunpack.c.l.b16 %v6826
  %v6860 = vunpack.c.l.b16 %v6827
  %v6861 = vunpack.c.h.b16 %v6827
  %v6862 = vunpack.c.l.b16 %v6828
  %v6863 = vunpack.c.l.b16 %v6829
  %v6864 = vunpack.c.h.b16 %v6829
  %v6865 = vunpack.c.l.b16 %v6830
  %v6866 = vpack.c.b16 %v6848, %v6845
  %v6867 = vpack.c.b16 %v6849, %v6846
  %v6868 = vpack.c.b16 %v6850, %v6847
  %v6869 = vpack.c.b16 %v6854, %v6851
  %v6870 = vpack.c.b16 %v6855, %v6852
  %v6871 = vpack.c.b16 %v6856, %v6853
  %v6872 = vpack.c.b16 %v6860, %v6857
  %v6873 = vpack.c.b16 %v6861, %v6858
  %v6874 = vpack.c.b16 %v6862, %v6859
  %v6875 = vpack.c.b16 %v6863, %v6863
  %v6876 = vpack.c.b16 %v6864, %v6864
  %v6877 = vpack.c.b16 %v6865, %v6865
  %v6887 = vsel %vm865, %v6868, 0
  %v6890 = vsel %vm865, %v6871, 0
  %v6893 = vsel %vm865, %v6874, 0
  %v6896 = vsel %vm865, %v6877, 0
  %v6899 = vsel %vm878, %v6815, 0
  %6901 = vmatpush.bf16.msra.mxu0 %v6806
  %6902 = vmatpush.bf16.msra.mxu0 %v6805
  %6903 = vmatpush.bf16.msra.mxu0 %v6804
  %6904 = vmatpush.bf16.msra.mxu0 %v6803
  %6905 = vmatpush.bf16.msra.mxu0 %v6802
  %6906 = vmatpush.bf16.msra.mxu0 %v6801
  %6907 = vmatpush.bf16.msra.mxu0 %v6800
  %6908 = vmatpush.bf16.msra.mxu0 %v6799
  %6909 = vmatmul.bf16.gmra.mxu0 %v6866
  %v6910 = vpop.f32.mrf.mxu0
  %v6911 = vadd.f32 0.0, %v6910
  %v6912 = vpop.f32.mrf.mxu0
  %v6913 = vadd.f32 0.0, %v6912
  %6914 = vmatmul.bf16.gmra.mxu0 %v6869
  %v6915 = vpop.f32.mrf.mxu0
  %v6916 = vadd.f32 0.0, %v6915
  %v6917 = vpop.f32.mrf.mxu0
  %v6918 = vadd.f32 0.0, %v6917
  %6919 = vmatmul.bf16.gmra.mxu0 %v6872
  %v6920 = vpop.f32.mrf.mxu0
  %v6921 = vadd.f32 0.0, %v6920
  %v6922 = vpop.f32.mrf.mxu0
  %v6923 = vadd.f32 0.0, %v6922
  %6924 = vmatmul.bf16.gmra.mxu0 %v6875
  %v6925 = vpop.f32.mrf.mxu0
  %v6926 = vadd.f32 0.0, %v6925
  %v6927 = vpop.f32.mrf.mxu0
  %6928 = vdwg.mxu0
  %6929 = vmatpush.bf16.msra.mxu0 %v6814
  %6930 = vmatpush.bf16.msra.mxu0 %v6813
  %6931 = vmatpush.bf16.msra.mxu0 %v6812
  %6932 = vmatpush.bf16.msra.mxu0 %v6811
  %6933 = vmatpush.bf16.msra.mxu0 %v6810
  %6934 = vmatpush.bf16.msra.mxu0 %v6809
  %6935 = vmatpush.bf16.msra.mxu0 %v6808
  %6936 = vmatpush.bf16.msra.mxu0 %v6807
  %6937 = vmatmul.bf16.gmra.mxu0 %v6867
  %v6938 = vpop.f32.mrf.mxu0
  %v6939 = vadd.f32 %v6911, %v6938
  %v6940 = vpop.f32.mrf.mxu0
  %v6941 = vadd.f32 %v6913, %v6940
  %6942 = vmatmul.bf16.gmra.mxu0 %v6870
  %v6943 = vpop.f32.mrf.mxu0
  %v6944 = vadd.f32 %v6916, %v6943
  %v6945 = vpop.f32.mrf.mxu0
  %v6946 = vadd.f32 %v6918, %v6945
  %6947 = vmatmul.bf16.gmra.mxu0 %v6873
  %v6948 = vpop.f32.mrf.mxu0
  %v6949 = vadd.f32 %v6921, %v6948
  %v6950 = vpop.f32.mrf.mxu0
  %v6951 = vadd.f32 %v6923, %v6950
  %6952 = vmatmul.bf16.gmra.mxu0 %v6876
  %v6953 = vpop.f32.mrf.mxu0
  %v6954 = vadd.f32 %v6926, %v6953
  %v6955 = vpop.f32.mrf.mxu0
  %6956 = vdwg.mxu0
  %6957 = vmatpush.bf16.msra.mxu0 0
  %6958 = vmatpush.bf16.msra.mxu0 0
  %6959 = vmatpush.bf16.msra.mxu0 0
  %6960 = vmatpush.bf16.msra.mxu0 0
  %6961 = vmatpush.bf16.msra.mxu0 0
  %6962 = vmatpush.bf16.msra.mxu0 0
  %6963 = vmatpush.bf16.msra.mxu0 0
  %6964 = vmatpush.bf16.msra.mxu0 %v6899
  %6965 = vmatmul.bf16.gmra.mxu0 %v6887
  %v6966 = vpop.f32.mrf.mxu0
  %v6967 = vadd.f32 %v6939, %v6966
  %v6968 = vpop.f32.mrf.mxu0
  %v6969 = vadd.f32 %v6941, %v6968
  %6970 = vmatmul.bf16.gmra.mxu0 %v6890
  %v6971 = vpop.f32.mrf.mxu0
  %v6972 = vadd.f32 %v6944, %v6971
  %v6973 = vpop.f32.mrf.mxu0
  %v6974 = vadd.f32 %v6946, %v6973
  %6975 = vmatmul.bf16.gmra.mxu0 %v6893
  %v6976 = vpop.f32.mrf.mxu0
  %v6977 = vadd.f32 %v6949, %v6976
  %v6978 = vpop.f32.mrf.mxu0
  %v6979 = vadd.f32 %v6951, %v6978
  %6980 = vmatmul.bf16.gmra.mxu0 %v6896
  %v6981 = vpop.f32.mrf.mxu0
  %v6982 = vadd.f32 %v6954, %v6981
  %v6983 = vpop.f32.mrf.mxu0
  %6984 = vdwg.mxu0
  %v6985 = vadd.f32 %v6618, %v6967
  %v6986 = vadd.f32 %v6619, %v6969
  %v6987 = vadd.f32 %v6620, %v6972
  %v6988 = vadd.f32 %v6621, %v6974
  %v6989 = vadd.f32 %v6622, %v6977
  %v6990 = vadd.f32 %v6623, %v6979
  %v6991 = vadd.f32 %v6624, %v6982
  %v6992 = vld [vmem:[%s0 + $0x120] sm:$0xf]
  %v6993 = vld [vmem:[%s0 + $0x124] sm:$0xf]
  %v6994 = vld [vmem:[%s0 + $0x128] sm:$0xf]
  %v6995 = vld [vmem:[%s0 + $0x12c] sm:$0xf]
  %v6996 = vld [vmem:[%s0 + $0x130] sm:$0xf]
  %v6997 = vld [vmem:[%s0 + $0x134] sm:$0xf]
  %v6998 = vld [vmem:[%s0 + $0x138] sm:$0xf]
  %v6999 = vld [vmem:[%s0 + $0x13c] sm:$0xf]
  %v7000 = vld [vmem:[%s0 + $0x140] sm:$0xf]
  %v7001 = vld [vmem:[%s0 + $0x144] sm:$0xf]
  %v7002 = vld [vmem:[%s0 + $0x148] sm:$0xf]
  %v7003 = vld [vmem:[%s0 + $0x14c] sm:$0xf]
  %v7016 = vunpack.c.l.b16 %v6992
  %v7017 = vunpack.c.l.b16 %v6993
  %v7018 = vunpack.c.l.b16 %v6994
  %v7019 = vunpack.c.l.b16 %v6995
  %v7020 = vunpack.c.l.b16 %v6996
  %v7021 = vunpack.c.l.b16 %v6997
  %v7022 = vunpack.c.l.b16 %v6998
  %v7023 = vunpack.c.l.b16 %v6999
  %v7024 = vunpack.c.l.b16 %v7000
  %v7025 = vunpack.c.l.b16 %v7001
  %v7026 = vunpack.c.l.b16 %v7002
  %v7027 = vunpack.c.l.b16 %v7003
  %v7028 = vpack.c.b16 %v7017, %v7016
  %v7029 = vpack.c.b16 %v7019, %v7018
  %v7030 = vpack.c.b16 %v7021, %v7020
  %v7031 = vpack.c.b16 %v7023, %v7022
  %v7032 = vpack.c.b16 %v7025, %v7024
  %v7033 = vpack.c.b16 %v7027, %v7026
  %7040 = vmatpush.bf16.msra.mxu0 0
  %7041 = vmatpush.bf16.msra.mxu0 0
  %7042 = vmatpush.bf16.msra.mxu0 %v7033
  %7043 = vmatpush.bf16.msra.mxu0 %v7032
  %7044 = vmatpush.bf16.msra.mxu0 %v7031
  %7045 = vmatpush.bf16.msra.mxu0 %v7030
  %7046 = vmatpush.bf16.msra.mxu0 %v7029
  %7047 = vmatpush.bf16.msra.mxu0 %v7028
  %7048 = vmatmul.bf16.gmra.mxu0 %v397
  %v7049 = vpop.f32.mrf.mxu0
  %v7050 = vadd.f32 %v114, %v7049
  %v7051 = vpop.f32.mrf.mxu0
  %v7052 = vadd.f32 %v119, %v7051
  %7053 = vmatmul.bf16.gmra.mxu0 %v400
  %v7054 = vpop.f32.mrf.mxu0
  %v7055 = vadd.f32 %v124, %v7054
  %v7056 = vpop.f32.mrf.mxu0
  %v7057 = vadd.f32 %v129, %v7056
  %7058 = vmatmul.bf16.gmra.mxu0 %v403
  %v7059 = vpop.f32.mrf.mxu0
  %v7060 = vadd.f32 %v134, %v7059
  %v7061 = vpop.f32.mrf.mxu0
  %v7062 = vadd.f32 %v139, %v7061
  %7063 = vmatmul.bf16.gmra.mxu0 %v406
  %v7064 = vpop.f32.mrf.mxu0
  %v7065 = vadd.f32 %v144, %v7064
  %v7066 = vpop.f32.mrf.mxu0
  %v7067 = vadd.f32 %v149, %v7066
  %7068 = vmatmul.bf16.gmra.mxu0 %v409
  %v7069 = vpop.f32.mrf.mxu0
  %v7070 = vadd.f32 %v154, %v7069
  %v7071 = vpop.f32.mrf.mxu0
  %v7072 = vadd.f32 %v159, %v7071
  %7073 = vmatmul.bf16.gmra.mxu0 %v412
  %v7074 = vpop.f32.mrf.mxu0
  %v7075 = vadd.f32 %v164, %v7074
  %v7076 = vpop.f32.mrf.mxu0
  %v7077 = vadd.f32 %v169, %v7076
  %7078 = vmatmul.bf16.gmra.mxu0 %v415
  %v7079 = vpop.f32.mrf.mxu0
  %v7080 = vadd.f32 %v174, %v7079
  %v7081 = vpop.f32.mrf.mxu0
  %v7082 = vadd.f32 %v179, %v7081
  %7083 = vmatmul.bf16.gmra.mxu0 %v418
  %v7084 = vpop.f32.mrf.mxu0
  %v7085 = vadd.f32 %v184, %v7084
  %v7086 = vpop.f32.mrf.mxu0
  %v7087 = vadd.f32 %v189, %v7086
  %7088 = vmatmul.bf16.gmra.mxu0 %v421
  %v7089 = vpop.f32.mrf.mxu0
  %v7090 = vadd.f32 %v194, %v7089
  %v7091 = vpop.f32.mrf.mxu0
  %v7092 = vadd.f32 %v199, %v7091
  %7093 = vmatmul.bf16.gmra.mxu0 %v424
  %v7094 = vpop.f32.mrf.mxu0
  %v7095 = vadd.f32 %v204, %v7094
  %v7096 = vpop.f32.mrf.mxu0
  %v7097 = vadd.f32 %v209, %v7096
  %7098 = vmatmul.bf16.gmra.mxu0 %v427
  %v7099 = vpop.f32.mrf.mxu0
  %v7100 = vadd.f32 %v214, %v7099
  %v7101 = vpop.f32.mrf.mxu0
  %v7102 = vadd.f32 %v219, %v7101
  %7103 = vmatmul.bf16.gmra.mxu0 %v430
  %v7104 = vpop.f32.mrf.mxu0
  %v7105 = vadd.f32 %v224, %v7104
  %v7106 = vpop.f32.mrf.mxu0
  %v7107 = vadd.f32 %v229, %v7106
  %7108 = vmatmul.bf16.gmra.mxu0 %v433
  %v7109 = vpop.f32.mrf.mxu0
  %v7110 = vadd.f32 %v234, %v7109
  %v7111 = vpop.f32.mrf.mxu0
  %v7112 = vadd.f32 %v239, %v7111
  %7113 = vmatmul.bf16.gmra.mxu0 %v436
  %v7114 = vpop.f32.mrf.mxu0
  %v7115 = vadd.f32 %v244, %v7114
  %v7116 = vpop.f32.mrf.mxu0
  %v7117 = vadd.f32 %v249, %v7116
  %7118 = vmatmul.bf16.gmra.mxu0 %v439
  %v7119 = vpop.f32.mrf.mxu0
  %v7120 = vadd.f32 %v254, %v7119
  %v7121 = vpop.f32.mrf.mxu0
  %v7122 = vadd.f32 %v259, %v7121
  %7123 = vmatmul.bf16.gmra.mxu0 %v442
  %v7124 = vpop.f32.mrf.mxu0
  %v7125 = vadd.f32 %v264, %v7124
  %v7126 = vpop.f32.mrf.mxu0
  %v7127 = vadd.f32 %v269, %v7126
  %7128 = vmatmul.bf16.gmra.mxu0 %v445
  %v7129 = vpop.f32.mrf.mxu0
  %v7130 = vadd.f32 %v274, %v7129
  %v7131 = vpop.f32.mrf.mxu0
  %7132 = vdwg.mxu0
  %v7133 = vmax.f32 %v7050, 0.0
  %v7134 = vmax.f32 %v7052, 0.0
  %v7135 = vmax.f32 %v7055, 0.0
  %v7136 = vmax.f32 %v7057, 0.0
  %v7137 = vmax.f32 %v7060, 0.0
  %v7138 = vmax.f32 %v7062, 0.0
  %v7139 = vmax.f32 %v7065, 0.0
  %v7140 = vmax.f32 %v7067, 0.0
  %v7141 = vmax.f32 %v7070, 0.0
  %v7142 = vmax.f32 %v7072, 0.0
  %v7143 = vmax.f32 %v7075, 0.0
  %v7144 = vmax.f32 %v7077, 0.0
  %v7145 = vmax.f32 %v7080, 0.0
  %v7146 = vmax.f32 %v7082, 0.0
  %v7147 = vmax.f32 %v7085, 0.0
  %v7148 = vmax.f32 %v7087, 0.0
  %v7149 = vmax.f32 %v7090, 0.0
  %v7150 = vmax.f32 %v7092, 0.0
  %v7151 = vmax.f32 %v7095, 0.0
  %v7152 = vmax.f32 %v7097, 0.0
  %v7153 = vmax.f32 %v7100, 0.0
  %v7154 = vmax.f32 %v7102, 0.0
  %v7155 = vmax.f32 %v7105, 0.0
  %v7156 = vmax.f32 %v7107, 0.0
  %v7157 = vmax.f32 %v7110, 0.0
  %v7158 = vmax.f32 %v7112, 0.0
  %v7159 = vmax.f32 %v7115, 0.0
  %v7160 = vmax.f32 %v7117, 0.0
  %v7161 = vmax.f32 %v7120, 0.0
  %v7162 = vmax.f32 %v7122, 0.0
  %v7163 = vmax.f32 %v7125, 0.0
  %v7164 = vmax.f32 %v7127, 0.0
  %v7165 = vmax.f32 %v7130, 0.0
  %v7166 = vpack.c.bf16 %v7134, %v7133
  %v7167 = vpack.c.bf16 %v7136, %v7135
  %v7168 = vpack.c.bf16 %v7138, %v7137
  %v7169 = vpack.c.bf16 %v7140, %v7139
  %v7170 = vpack.c.bf16 %v7142, %v7141
  %v7171 = vpack.c.bf16 %v7144, %v7143
  %v7172 = vpack.c.bf16 %v7146, %v7145
  %v7173 = vpack.c.bf16 %v7148, %v7147
  %v7174 = vpack.c.bf16 %v7150, %v7149
  %v7175 = vpack.c.bf16 %v7152, %v7151
  %v7176 = vpack.c.bf16 %v7154, %v7153
  %v7177 = vpack.c.bf16 %v7156, %v7155
  %v7178 = vpack.c.bf16 %v7158, %v7157
  %v7179 = vpack.c.bf16 %v7160, %v7159
  %v7180 = vpack.c.bf16 %v7162, %v7161
  %v7181 = vpack.c.bf16 %v7164, %v7163
  %v7182 = vpack.c.bf16 %v7165, %v7165
  %s7183 = scalar_lea.vmem %s3, 1512
  %v7184 = vld [vmem:[%s7183] sm:$0xff]
  %v7185 = vld [vmem:[%s7183 + $0x8] sm:$0xf]
  %v7186 = vld [vmem:[%s7183 + $0xc] sm:$0xff]
  %v7187 = vld [vmem:[%s7183 + $0x14] sm:$0xf]
  %v7188 = vld [vmem:[%s7183 + $0x18] sm:$0xff]
  %v7189 = vld [vmem:[%s7183 + $0x20] sm:$0xf]
  %v7190 = vld [vmem:[%s7183 + $0x24] sm:$0xff]
  %v7191 = vld [vmem:[%s7183 + $0x2c] sm:$0xf]
  %v7192 = vld [vmem:[%s7183 + $0x30] sm:$0xff]
  %v7193 = vld [vmem:[%s7183 + $0x38] sm:$0xf]
  %v7194 = vld [vmem:[%s7183 + $0x3c] sm:$0xff]
  %v7195 = vld [vmem:[%s7183 + $0x44] sm:$0xf]
  %v7196 = vld [vmem:[%s7183 + $0x48] sm:$0x11]
  %v7197 = vld [vmem:[%s7183 + $0x50] sm:$0x1]
  %v7212 = vunpack.c.l.b16 %v7184
  %v7213 = vunpack.c.h.b16 %v7184
  %v7214 = vunpack.c.l.b16 %v7185
  %v7215 = vunpack.c.l.b16 %v7186
  %v7216 = vunpack.c.h.b16 %v7186
  %v7217 = vunpack.c.l.b16 %v7187
  %v7218 = vunpack.c.l.b16 %v7188
  %v7219 = vunpack.c.h.b16 %v7188
  %v7220 = vunpack.c.l.b16 %v7189
  %v7221 = vunpack.c.l.b16 %v7190
  %v7222 = vunpack.c.h.b16 %v7190
  %v7223 = vunpack.c.l.b16 %v7191
  %v7224 = vunpack.c.l.b16 %v7192
  %v7225 = vunpack.c.h.b16 %v7192
  %v7226 = vunpack.c.l.b16 %v7193
  %v7227 = vunpack.c.l.b16 %v7194
  %v7228 = vunpack.c.h.b16 %v7194
  %v7229 = vunpack.c.l.b16 %v7195
  %v7230 = vunpack.c.l.b16 %v7196
  %v7231 = vunpack.c.h.b16 %v7196
  %v7232 = vunpack.c.l.b16 %v7197
  %v7233 = vpack.c.b16 %v7215, %v7212
  %v7234 = vpack.c.b16 %v7216, %v7213
  %v7235 = vpack.c.b16 %v7217, %v7214
  %v7236 = vpack.c.b16 %v7221, %v7218
  %v7237 = vpack.c.b16 %v7222, %v7219
  %v7238 = vpack.c.b16 %v7223, %v7220
  %v7239 = vpack.c.b16 %v7227, %v7224
  %v7240 = vpack.c.b16 %v7228, %v7225
  %v7241 = vpack.c.b16 %v7229, %v7226
  %v7242 = vpack.c.b16 %v7230, %v7230
  %v7243 = vpack.c.b16 %v7231, %v7231
  %v7244 = vpack.c.b16 %v7232, %v7232
  %v7254 = vsel %vm865, %v7235, 0
  %v7257 = vsel %vm865, %v7238, 0
  %v7260 = vsel %vm865, %v7241, 0
  %v7263 = vsel %vm865, %v7244, 0
  %v7266 = vsel %vm878, %v7182, 0
  %7268 = vmatpush.bf16.msra.mxu0 %v7173
  %7269 = vmatpush.bf16.msra.mxu0 %v7172
  %7270 = vmatpush.bf16.msra.mxu0 %v7171
  %7271 = vmatpush.bf16.msra.mxu0 %v7170
  %7272 = vmatpush.bf16.msra.mxu0 %v7169
  %7273 = vmatpush.bf16.msra.mxu0 %v7168
  %7274 = vmatpush.bf16.msra.mxu0 %v7167
  %7275 = vmatpush.bf16.msra.mxu0 %v7166
  %7276 = vmatmul.bf16.gmra.mxu0 %v7233
  %v7277 = vpop.f32.mrf.mxu0
  %v7278 = vadd.f32 0.0, %v7277
  %v7279 = vpop.f32.mrf.mxu0
  %v7280 = vadd.f32 0.0, %v7279
  %7281 = vmatmul.bf16.gmra.mxu0 %v7236
  %v7282 = vpop.f32.mrf.mxu0
  %v7283 = vadd.f32 0.0, %v7282
  %v7284 = vpop.f32.mrf.mxu0
  %v7285 = vadd.f32 0.0, %v7284
  %7286 = vmatmul.bf16.gmra.mxu0 %v7239
  %v7287 = vpop.f32.mrf.mxu0
  %v7288 = vadd.f32 0.0, %v7287
  %v7289 = vpop.f32.mrf.mxu0
  %v7290 = vadd.f32 0.0, %v7289
  %7291 = vmatmul.bf16.gmra.mxu0 %v7242
  %v7292 = vpop.f32.mrf.mxu0
  %v7293 = vadd.f32 0.0, %v7292
  %v7294 = vpop.f32.mrf.mxu0
  %7295 = vdwg.mxu0
  %7296 = vmatpush.bf16.msra.mxu0 %v7181
  %7297 = vmatpush.bf16.msra.mxu0 %v7180
  %7298 = vmatpush.bf16.msra.mxu0 %v7179
  %7299 = vmatpush.bf16.msra.mxu0 %v7178
  %7300 = vmatpush.bf16.msra.mxu0 %v7177
  %7301 = vmatpush.bf16.msra.mxu0 %v7176
  %7302 = vmatpush.bf16.msra.mxu0 %v7175
  %7303 = vmatpush.bf16.msra.mxu0 %v7174
  %7304 = vmatmul.bf16.gmra.mxu0 %v7234
  %v7305 = vpop.f32.mrf.mxu0
  %v7306 = vadd.f32 %v7278, %v7305
  %v7307 = vpop.f32.mrf.mxu0
  %v7308 = vadd.f32 %v7280, %v7307
  %7309 = vmatmul.bf16.gmra.mxu0 %v7237
  %v7310 = vpop.f32.mrf.mxu0
  %v7311 = vadd.f32 %v7283, %v7310
  %v7312 = vpop.f32.mrf.mxu0
  %v7313 = vadd.f32 %v7285, %v7312
  %7314 = vmatmul.bf16.gmra.mxu0 %v7240
  %v7315 = vpop.f32.mrf.mxu0
  %v7316 = vadd.f32 %v7288, %v7315
  %v7317 = vpop.f32.mrf.mxu0
  %v7318 = vadd.f32 %v7290, %v7317
  %7319 = vmatmul.bf16.gmra.mxu0 %v7243
  %v7320 = vpop.f32.mrf.mxu0
  %v7321 = vadd.f32 %v7293, %v7320
  %v7322 = vpop.f32.mrf.mxu0
  %7323 = vdwg.mxu0
  %7324 = vmatpush.bf16.msra.mxu0 0
  %7325 = vmatpush.bf16.msra.mxu0 0
  %7326 = vmatpush.bf16.msra.mxu0 0
  %7327 = vmatpush.bf16.msra.mxu0 0
  %7328 = vmatpush.bf16.msra.mxu0 0
  %7329 = vmatpush.bf16.msra.mxu0 0
  %7330 = vmatpush.bf16.msra.mxu0 0
  %7331 = vmatpush.bf16.msra.mxu0 %v7266
  %7332 = vmatmul.bf16.gmra.mxu0 %v7254
  %v7333 = vpop.f32.mrf.mxu0
  %v7334 = vadd.f32 %v7306, %v7333
  %v7335 = vpop.f32.mrf.mxu0
  %v7336 = vadd.f32 %v7308, %v7335
  %7337 = vmatmul.bf16.gmra.mxu0 %v7257
  %v7338 = vpop.f32.mrf.mxu0
  %v7339 = vadd.f32 %v7311, %v7338
  %v7340 = vpop.f32.mrf.mxu0
  %v7341 = vadd.f32 %v7313, %v7340
  %7342 = vmatmul.bf16.gmra.mxu0 %v7260
  %v7343 = vpop.f32.mrf.mxu0
  %v7344 = vadd.f32 %v7316, %v7343
  %v7345 = vpop.f32.mrf.mxu0
  %v7346 = vadd.f32 %v7318, %v7345
  %7347 = vmatmul.bf16.gmra.mxu0 %v7263
  %v7348 = vpop.f32.mrf.mxu0
  %v7349 = vadd.f32 %v7321, %v7348
  %v7350 = vpop.f32.mrf.mxu0
  %7351 = vdwg.mxu0
  %v7352 = vadd.f32 %v6985, %v7334
  %v7353 = vadd.f32 %v6986, %v7336
  %v7354 = vadd.f32 %v6987, %v7339
  %v7355 = vadd.f32 %v6988, %v7341
  %v7356 = vadd.f32 %v6989, %v7344
  %v7357 = vadd.f32 %v6990, %v7346
  %v7358 = vadd.f32 %v6991, %v7349
  %v7359 = vld [vmem:[%s0 + $0x130] sm:$0xf]
  %v7360 = vld [vmem:[%s0 + $0x134] sm:$0xf]
  %v7361 = vld [vmem:[%s0 + $0x138] sm:$0xf]
  %v7362 = vld [vmem:[%s0 + $0x13c] sm:$0xf]
  %v7363 = vld [vmem:[%s0 + $0x140] sm:$0xf]
  %v7364 = vld [vmem:[%s0 + $0x144] sm:$0xf]
  %v7365 = vld [vmem:[%s0 + $0x148] sm:$0xf]
  %v7366 = vld [vmem:[%s0 + $0x14c] sm:$0xf]
  %v7367 = vld [vmem:[%s0 + $0x150] sm:$0xf]
  %v7368 = vld [vmem:[%s0 + $0x154] sm:$0xf]
  %v7369 = vld [vmem:[%s0 + $0x158] sm:$0xf]
  %v7370 = vld [vmem:[%s0 + $0x15c] sm:$0xf]
  %v7383 = vunpack.c.l.b16 %v7359
  %v7384 = vunpack.c.l.b16 %v7360
  %v7385 = vunpack.c.l.b16 %v7361
  %v7386 = vunpack.c.l.b16 %v7362
  %v7387 = vunpack.c.l.b16 %v7363
  %v7388 = vunpack.c.l.b16 %v7364
  %v7389 = vunpack.c.l.b16 %v7365
  %v7390 = vunpack.c.l.b16 %v7366
  %v7391 = vunpack.c.l.b16 %v7367
  %v7392 = vunpack.c.l.b16 %v7368
  %v7393 = vunpack.c.l.b16 %v7369
  %v7394 = vunpack.c.l.b16 %v7370
  %v7395 = vpack.c.b16 %v7384, %v7383
  %v7396 = vpack.c.b16 %v7386, %v7385
  %v7397 = vpack.c.b16 %v7388, %v7387
  %v7398 = vpack.c.b16 %v7390, %v7389
  %v7399 = vpack.c.b16 %v7392, %v7391
  %v7400 = vpack.c.b16 %v7394, %v7393
  %7407 = vmatpush.bf16.msra.mxu0 0
  %7408 = vmatpush.bf16.msra.mxu0 0
  %7409 = vmatpush.bf16.msra.mxu0 %v7400
  %7410 = vmatpush.bf16.msra.mxu0 %v7399
  %7411 = vmatpush.bf16.msra.mxu0 %v7398
  %7412 = vmatpush.bf16.msra.mxu0 %v7397
  %7413 = vmatpush.bf16.msra.mxu0 %v7396
  %7414 = vmatpush.bf16.msra.mxu0 %v7395
  %7415 = vmatmul.bf16.gmra.mxu0 %v397
  %v7416 = vpop.f32.mrf.mxu0
  %v7417 = vadd.f32 %v114, %v7416
  %v7418 = vpop.f32.mrf.mxu0
  %v7419 = vadd.f32 %v119, %v7418
  %7420 = vmatmul.bf16.gmra.mxu0 %v400
  %v7421 = vpop.f32.mrf.mxu0
  %v7422 = vadd.f32 %v124, %v7421
  %v7423 = vpop.f32.mrf.mxu0
  %v7424 = vadd.f32 %v129, %v7423
  %7425 = vmatmul.bf16.gmra.mxu0 %v403
  %v7426 = vpop.f32.mrf.mxu0
  %v7427 = vadd.f32 %v134, %v7426
  %v7428 = vpop.f32.mrf.mxu0
  %v7429 = vadd.f32 %v139, %v7428
  %7430 = vmatmul.bf16.gmra.mxu0 %v406
  %v7431 = vpop.f32.mrf.mxu0
  %v7432 = vadd.f32 %v144, %v7431
  %v7433 = vpop.f32.mrf.mxu0
  %v7434 = vadd.f32 %v149, %v7433
  %7435 = vmatmul.bf16.gmra.mxu0 %v409
  %v7436 = vpop.f32.mrf.mxu0
  %v7437 = vadd.f32 %v154, %v7436
  %v7438 = vpop.f32.mrf.mxu0
  %v7439 = vadd.f32 %v159, %v7438
  %7440 = vmatmul.bf16.gmra.mxu0 %v412
  %v7441 = vpop.f32.mrf.mxu0
  %v7442 = vadd.f32 %v164, %v7441
  %v7443 = vpop.f32.mrf.mxu0
  %v7444 = vadd.f32 %v169, %v7443
  %7445 = vmatmul.bf16.gmra.mxu0 %v415
  %v7446 = vpop.f32.mrf.mxu0
  %v7447 = vadd.f32 %v174, %v7446
  %v7448 = vpop.f32.mrf.mxu0
  %v7449 = vadd.f32 %v179, %v7448
  %7450 = vmatmul.bf16.gmra.mxu0 %v418
  %v7451 = vpop.f32.mrf.mxu0
  %v7452 = vadd.f32 %v184, %v7451
  %v7453 = vpop.f32.mrf.mxu0
  %v7454 = vadd.f32 %v189, %v7453
  %7455 = vmatmul.bf16.gmra.mxu0 %v421
  %v7456 = vpop.f32.mrf.mxu0
  %v7457 = vadd.f32 %v194, %v7456
  %v7458 = vpop.f32.mrf.mxu0
  %v7459 = vadd.f32 %v199, %v7458
  %7460 = vmatmul.bf16.gmra.mxu0 %v424
  %v7461 = vpop.f32.mrf.mxu0
  %v7462 = vadd.f32 %v204, %v7461
  %v7463 = vpop.f32.mrf.mxu0
  %v7464 = vadd.f32 %v209, %v7463
  %7465 = vmatmul.bf16.gmra.mxu0 %v427
  %v7466 = vpop.f32.mrf.mxu0
  %v7467 = vadd.f32 %v214, %v7466
  %v7468 = vpop.f32.mrf.mxu0
  %v7469 = vadd.f32 %v219, %v7468
  %7470 = vmatmul.bf16.gmra.mxu0 %v430
  %v7471 = vpop.f32.mrf.mxu0
  %v7472 = vadd.f32 %v224, %v7471
  %v7473 = vpop.f32.mrf.mxu0
  %v7474 = vadd.f32 %v229, %v7473
  %7475 = vmatmul.bf16.gmra.mxu0 %v433
  %v7476 = vpop.f32.mrf.mxu0
  %v7477 = vadd.f32 %v234, %v7476
  %v7478 = vpop.f32.mrf.mxu0
  %v7479 = vadd.f32 %v239, %v7478
  %7480 = vmatmul.bf16.gmra.mxu0 %v436
  %v7481 = vpop.f32.mrf.mxu0
  %v7482 = vadd.f32 %v244, %v7481
  %v7483 = vpop.f32.mrf.mxu0
  %v7484 = vadd.f32 %v249, %v7483
  %7485 = vmatmul.bf16.gmra.mxu0 %v439
  %v7486 = vpop.f32.mrf.mxu0
  %v7487 = vadd.f32 %v254, %v7486
  %v7488 = vpop.f32.mrf.mxu0
  %v7489 = vadd.f32 %v259, %v7488
  %7490 = vmatmul.bf16.gmra.mxu0 %v442
  %v7491 = vpop.f32.mrf.mxu0
  %v7492 = vadd.f32 %v264, %v7491
  %v7493 = vpop.f32.mrf.mxu0
  %v7494 = vadd.f32 %v269, %v7493
  %7495 = vmatmul.bf16.gmra.mxu0 %v445
  %v7496 = vpop.f32.mrf.mxu0
  %v7497 = vadd.f32 %v274, %v7496
  %v7498 = vpop.f32.mrf.mxu0
  %7499 = vdwg.mxu0
  %v7500 = vmax.f32 %v7417, 0.0
  %v7501 = vmax.f32 %v7419, 0.0
  %v7502 = vmax.f32 %v7422, 0.0
  %v7503 = vmax.f32 %v7424, 0.0
  %v7504 = vmax.f32 %v7427, 0.0
  %v7505 = vmax.f32 %v7429, 0.0
  %v7506 = vmax.f32 %v7432, 0.0
  %v7507 = vmax.f32 %v7434, 0.0
  %v7508 = vmax.f32 %v7437, 0.0
  %v7509 = vmax.f32 %v7439, 0.0
  %v7510 = vmax.f32 %v7442, 0.0
  %v7511 = vmax.f32 %v7444, 0.0
  %v7512 = vmax.f32 %v7447, 0.0
  %v7513 = vmax.f32 %v7449, 0.0
  %v7514 = vmax.f32 %v7452, 0.0
  %v7515 = vmax.f32 %v7454, 0.0
  %v7516 = vmax.f32 %v7457, 0.0
  %v7517 = vmax.f32 %v7459, 0.0
  %v7518 = vmax.f32 %v7462, 0.0
  %v7519 = vmax.f32 %v7464, 0.0
  %v7520 = vmax.f32 %v7467, 0.0
  %v7521 = vmax.f32 %v7469, 0.0
  %v7522 = vmax.f32 %v7472, 0.0
  %v7523 = vmax.f32 %v7474, 0.0
  %v7524 = vmax.f32 %v7477, 0.0
  %v7525 = vmax.f32 %v7479, 0.0
  %v7526 = vmax.f32 %v7482, 0.0
  %v7527 = vmax.f32 %v7484, 0.0
  %v7528 = vmax.f32 %v7487, 0.0
  %v7529 = vmax.f32 %v7489, 0.0
  %v7530 = vmax.f32 %v7492, 0.0
  %v7531 = vmax.f32 %v7494, 0.0
  %v7532 = vmax.f32 %v7497, 0.0
  %v7533 = vpack.c.bf16 %v7501, %v7500
  %v7534 = vpack.c.bf16 %v7503, %v7502
  %v7535 = vpack.c.bf16 %v7505, %v7504
  %v7536 = vpack.c.bf16 %v7507, %v7506
  %v7537 = vpack.c.bf16 %v7509, %v7508
  %v7538 = vpack.c.bf16 %v7511, %v7510
  %v7539 = vpack.c.bf16 %v7513, %v7512
  %v7540 = vpack.c.bf16 %v7515, %v7514
  %v7541 = vpack.c.bf16 %v7517, %v7516
  %v7542 = vpack.c.bf16 %v7519, %v7518
  %v7543 = vpack.c.bf16 %v7521, %v7520
  %v7544 = vpack.c.bf16 %v7523, %v7522
  %v7545 = vpack.c.bf16 %v7525, %v7524
  %v7546 = vpack.c.bf16 %v7527, %v7526
  %v7547 = vpack.c.bf16 %v7529, %v7528
  %v7548 = vpack.c.bf16 %v7531, %v7530
  %v7549 = vpack.c.bf16 %v7532, %v7532
  %s7550 = scalar_lea.vmem %s3, 1596
  %v7551 = vld [vmem:[%s7550] sm:$0xff]
  %v7552 = vld [vmem:[%s7550 + $0x8] sm:$0xf]
  %v7553 = vld [vmem:[%s7550 + $0xc] sm:$0xff]
  %v7554 = vld [vmem:[%s7550 + $0x14] sm:$0xf]
  %v7555 = vld [vmem:[%s7550 + $0x18] sm:$0xff]
  %v7556 = vld [vmem:[%s7550 + $0x20] sm:$0xf]
  %v7557 = vld [vmem:[%s7550 + $0x24] sm:$0xff]
  %v7558 = vld [vmem:[%s7550 + $0x2c] sm:$0xf]
  %v7559 = vld [vmem:[%s7550 + $0x30] sm:$0xff]
  %v7560 = vld [vmem:[%s7550 + $0x38] sm:$0xf]
  %v7561 = vld [vmem:[%s7550 + $0x3c] sm:$0xff]
  %v7562 = vld [vmem:[%s7550 + $0x44] sm:$0xf]
  %v7563 = vld [vmem:[%s7550 + $0x48] sm:$0x11]
  %v7564 = vld [vmem:[%s7550 + $0x50] sm:$0x1]
  %v7579 = vunpack.c.l.b16 %v7551
  %v7580 = vunpack.c.h.b16 %v7551
  %v7581 = vunpack.c.l.b16 %v7552
  %v7582 = vunpack.c.l.b16 %v7553
  %v7583 = vunpack.c.h.b16 %v7553
  %v7584 = vunpack.c.l.b16 %v7554
  %v7585 = vunpack.c.l.b16 %v7555
  %v7586 = vunpack.c.h.b16 %v7555
  %v7587 = vunpack.c.l.b16 %v7556
  %v7588 = vunpack.c.l.b16 %v7557
  %v7589 = vunpack.c.h.b16 %v7557
  %v7590 = vunpack.c.l.b16 %v7558
  %v7591 = vunpack.c.l.b16 %v7559
  %v7592 = vunpack.c.h.b16 %v7559
  %v7593 = vunpack.c.l.b16 %v7560
  %v7594 = vunpack.c.l.b16 %v7561
  %v7595 = vunpack.c.h.b16 %v7561
  %v7596 = vunpack.c.l.b16 %v7562
  %v7597 = vunpack.c.l.b16 %v7563
  %v7598 = vunpack.c.h.b16 %v7563
  %v7599 = vunpack.c.l.b16 %v7564
  %v7600 = vpack.c.b16 %v7582, %v7579
  %v7601 = vpack.c.b16 %v7583, %v7580
  %v7602 = vpack.c.b16 %v7584, %v7581
  %v7603 = vpack.c.b16 %v7588, %v7585
  %v7604 = vpack.c.b16 %v7589, %v7586
  %v7605 = vpack.c.b16 %v7590, %v7587
  %v7606 = vpack.c.b16 %v7594, %v7591
  %v7607 = vpack.c.b16 %v7595, %v7592
  %v7608 = vpack.c.b16 %v7596, %v7593
  %v7609 = vpack.c.b16 %v7597, %v7597
  %v7610 = vpack.c.b16 %v7598, %v7598
  %v7611 = vpack.c.b16 %v7599, %v7599
  %v7621 = vsel %vm865, %v7602, 0
  %v7624 = vsel %vm865, %v7605, 0
  %v7627 = vsel %vm865, %v7608, 0
  %v7630 = vsel %vm865, %v7611, 0
  %v7633 = vsel %vm878, %v7549, 0
  %7635 = vmatpush.bf16.msra.mxu0 %v7540
  %7636 = vmatpush.bf16.msra.mxu0 %v7539
  %7637 = vmatpush.bf16.msra.mxu0 %v7538
  %7638 = vmatpush.bf16.msra.mxu0 %v7537
  %7639 = vmatpush.bf16.msra.mxu0 %v7536
  %7640 = vmatpush.bf16.msra.mxu0 %v7535
  %7641 = vmatpush.bf16.msra.mxu0 %v7534
  %7642 = vmatpush.bf16.msra.mxu0 %v7533
  %7643 = vmatmul.bf16.gmra.mxu0 %v7600
  %v7644 = vpop.f32.mrf.mxu0
  %v7645 = vadd.f32 0.0, %v7644
  %v7646 = vpop.f32.mrf.mxu0
  %v7647 = vadd.f32 0.0, %v7646
  %7648 = vmatmul.bf16.gmra.mxu0 %v7603
  %v7649 = vpop.f32.mrf.mxu0
  %v7650 = vadd.f32 0.0, %v7649
  %v7651 = vpop.f32.mrf.mxu0
  %v7652 = vadd.f32 0.0, %v7651
  %7653 = vmatmul.bf16.gmra.mxu0 %v7606
  %v7654 = vpop.f32.mrf.mxu0
  %v7655 = vadd.f32 0.0, %v7654
  %v7656 = vpop.f32.mrf.mxu0
  %v7657 = vadd.f32 0.0, %v7656
  %7658 = vmatmul.bf16.gmra.mxu0 %v7609
  %v7659 = vpop.f32.mrf.mxu0
  %v7660 = vadd.f32 0.0, %v7659
  %v7661 = vpop.f32.mrf.mxu0
  %7662 = vdwg.mxu0
  %7663 = vmatpush.bf16.msra.mxu0 %v7548
  %7664 = vmatpush.bf16.msra.mxu0 %v7547
  %7665 = vmatpush.bf16.msra.mxu0 %v7546
  %7666 = vmatpush.bf16.msra.mxu0 %v7545
  %7667 = vmatpush.bf16.msra.mxu0 %v7544
  %7668 = vmatpush.bf16.msra.mxu0 %v7543
  %7669 = vmatpush.bf16.msra.mxu0 %v7542
  %7670 = vmatpush.bf16.msra.mxu0 %v7541
  %7671 = vmatmul.bf16.gmra.mxu0 %v7601
  %v7672 = vpop.f32.mrf.mxu0
  %v7673 = vadd.f32 %v7645, %v7672
  %v7674 = vpop.f32.mrf.mxu0
  %v7675 = vadd.f32 %v7647, %v7674
  %7676 = vmatmul.bf16.gmra.mxu0 %v7604
  %v7677 = vpop.f32.mrf.mxu0
  %v7678 = vadd.f32 %v7650, %v7677
  %v7679 = vpop.f32.mrf.mxu0
  %v7680 = vadd.f32 %v7652, %v7679
  %7681 = vmatmul.bf16.gmra.mxu0 %v7607
  %v7682 = vpop.f32.mrf.mxu0
  %v7683 = vadd.f32 %v7655, %v7682
  %v7684 = vpop.f32.mrf.mxu0
  %v7685 = vadd.f32 %v7657, %v7684
  %7686 = vmatmul.bf16.gmra.mxu0 %v7610
  %v7687 = vpop.f32.mrf.mxu0
  %v7688 = vadd.f32 %v7660, %v7687
  %v7689 = vpop.f32.mrf.mxu0
  %7690 = vdwg.mxu0
  %7691 = vmatpush.bf16.msra.mxu0 0
  %7692 = vmatpush.bf16.msra.mxu0 0
  %7693 = vmatpush.bf16.msra.mxu0 0
  %7694 = vmatpush.bf16.msra.mxu0 0
  %7695 = vmatpush.bf16.msra.mxu0 0
  %7696 = vmatpush.bf16.msra.mxu0 0
  %7697 = vmatpush.bf16.msra.mxu0 0
  %7698 = vmatpush.bf16.msra.mxu0 %v7633
  %7699 = vmatmul.bf16.gmra.mxu0 %v7621
  %v7700 = vpop.f32.mrf.mxu0
  %v7701 = vadd.f32 %v7673, %v7700
  %v7702 = vpop.f32.mrf.mxu0
  %v7703 = vadd.f32 %v7675, %v7702
  %7704 = vmatmul.bf16.gmra.mxu0 %v7624
  %v7705 = vpop.f32.mrf.mxu0
  %v7706 = vadd.f32 %v7678, %v7705
  %v7707 = vpop.f32.mrf.mxu0
  %v7708 = vadd.f32 %v7680, %v7707
  %7709 = vmatmul.bf16.gmra.mxu0 %v7627
  %v7710 = vpop.f32.mrf.mxu0
  %v7711 = vadd.f32 %v7683, %v7710
  %v7712 = vpop.f32.mrf.mxu0
  %v7713 = vadd.f32 %v7685, %v7712
  %7714 = vmatmul.bf16.gmra.mxu0 %v7630
  %v7715 = vpop.f32.mrf.mxu0
  %v7716 = vadd.f32 %v7688, %v7715
  %v7717 = vpop.f32.mrf.mxu0
  %7718 = vdwg.mxu0
  %v7719 = vadd.f32 %v7352, %v7701
  %v7720 = vadd.f32 %v7353, %v7703
  %v7721 = vadd.f32 %v7354, %v7706
  %v7722 = vadd.f32 %v7355, %v7708
  %v7723 = vadd.f32 %v7356, %v7711
  %v7724 = vadd.f32 %v7357, %v7713
  %v7725 = vadd.f32 %v7358, %v7716
  %v7726 = vld [vmem:[%s0 + $0x140] sm:$0xf]
  %v7727 = vld [vmem:[%s0 + $0x144] sm:$0xf]
  %v7728 = vld [vmem:[%s0 + $0x148] sm:$0xf]
  %v7729 = vld [vmem:[%s0 + $0x14c] sm:$0xf]
  %v7730 = vld [vmem:[%s0 + $0x150] sm:$0xf]
  %v7731 = vld [vmem:[%s0 + $0x154] sm:$0xf]
  %v7732 = vld [vmem:[%s0 + $0x158] sm:$0xf]
  %v7733 = vld [vmem:[%s0 + $0x15c] sm:$0xf]
  %v7734 = vld [vmem:[%s0 + $0x160] sm:$0xf]
  %v7735 = vld [vmem:[%s0 + $0x164] sm:$0xf]
  %v7736 = vld [vmem:[%s0 + $0x168] sm:$0xf]
  %v7737 = vld [vmem:[%s0 + $0x16c] sm:$0xf]
  %v7750 = vunpack.c.l.b16 %v7726
  %v7751 = vunpack.c.l.b16 %v7727
  %v7752 = vunpack.c.l.b16 %v7728
  %v7753 = vunpack.c.l.b16 %v7729
  %v7754 = vunpack.c.l.b16 %v7730
  %v7755 = vunpack.c.l.b16 %v7731
  %v7756 = vunpack.c.l.b16 %v7732
  %v7757 = vunpack.c.l.b16 %v7733
  %v7758 = vunpack.c.l.b16 %v7734
  %v7759 = vunpack.c.l.b16 %v7735
  %v7760 = vunpack.c.l.b16 %v7736
  %v7761 = vunpack.c.l.b16 %v7737
  %v7762 = vpack.c.b16 %v7751, %v7750
  %v7763 = vpack.c.b16 %v7753, %v7752
  %v7764 = vpack.c.b16 %v7755, %v7754
  %v7765 = vpack.c.b16 %v7757, %v7756
  %v7766 = vpack.c.b16 %v7759, %v7758
  %v7767 = vpack.c.b16 %v7761, %v7760
  %7774 = vmatpush.bf16.msra.mxu0 0
  %7775 = vmatpush.bf16.msra.mxu0 0
  %7776 = vmatpush.bf16.msra.mxu0 %v7767
  %7777 = vmatpush.bf16.msra.mxu0 %v7766
  %7778 = vmatpush.bf16.msra.mxu0 %v7765
  %7779 = vmatpush.bf16.msra.mxu0 %v7764
  %7780 = vmatpush.bf16.msra.mxu0 %v7763
  %7781 = vmatpush.bf16.msra.mxu0 %v7762
  %7782 = vmatmul.bf16.gmra.mxu0 %v397
  %v7783 = vpop.f32.mrf.mxu0
  %v7784 = vadd.f32 %v114, %v7783
  %v7785 = vpop.f32.mrf.mxu0
  %v7786 = vadd.f32 %v119, %v7785
  %7787 = vmatmul.bf16.gmra.mxu0 %v400
  %v7788 = vpop.f32.mrf.mxu0
  %v7789 = vadd.f32 %v124, %v7788
  %v7790 = vpop.f32.mrf.mxu0
  %v7791 = vadd.f32 %v129, %v7790
  %7792 = vmatmul.bf16.gmra.mxu0 %v403
  %v7793 = vpop.f32.mrf.mxu0
  %v7794 = vadd.f32 %v134, %v7793
  %v7795 = vpop.f32.mrf.mxu0
  %v7796 = vadd.f32 %v139, %v7795
  %7797 = vmatmul.bf16.gmra.mxu0 %v406
  %v7798 = vpop.f32.mrf.mxu0
  %v7799 = vadd.f32 %v144, %v7798
  %v7800 = vpop.f32.mrf.mxu0
  %v7801 = vadd.f32 %v149, %v7800
  %7802 = vmatmul.bf16.gmra.mxu0 %v409
  %v7803 = vpop.f32.mrf.mxu0
  %v7804 = vadd.f32 %v154, %v7803
  %v7805 = vpop.f32.mrf.mxu0
  %v7806 = vadd.f32 %v159, %v7805
  %7807 = vmatmul.bf16.gmra.mxu0 %v412
  %v7808 = vpop.f32.mrf.mxu0
  %v7809 = vadd.f32 %v164, %v7808
  %v7810 = vpop.f32.mrf.mxu0
  %v7811 = vadd.f32 %v169, %v7810
  %7812 = vmatmul.bf16.gmra.mxu0 %v415
  %v7813 = vpop.f32.mrf.mxu0
  %v7814 = vadd.f32 %v174, %v7813
  %v7815 = vpop.f32.mrf.mxu0
  %v7816 = vadd.f32 %v179, %v7815
  %7817 = vmatmul.bf16.gmra.mxu0 %v418
  %v7818 = vpop.f32.mrf.mxu0
  %v7819 = vadd.f32 %v184, %v7818
  %v7820 = vpop.f32.mrf.mxu0
  %v7821 = vadd.f32 %v189, %v7820
  %7822 = vmatmul.bf16.gmra.mxu0 %v421
  %v7823 = vpop.f32.mrf.mxu0
  %v7824 = vadd.f32 %v194, %v7823
  %v7825 = vpop.f32.mrf.mxu0
  %v7826 = vadd.f32 %v199, %v7825
  %7827 = vmatmul.bf16.gmra.mxu0 %v424
  %v7828 = vpop.f32.mrf.mxu0
  %v7829 = vadd.f32 %v204, %v7828
  %v7830 = vpop.f32.mrf.mxu0
  %v7831 = vadd.f32 %v209, %v7830
  %7832 = vmatmul.bf16.gmra.mxu0 %v427
  %v7833 = vpop.f32.mrf.mxu0
  %v7834 = vadd.f32 %v214, %v7833
  %v7835 = vpop.f32.mrf.mxu0
  %v7836 = vadd.f32 %v219, %v7835
  %7837 = vmatmul.bf16.gmra.mxu0 %v430
  %v7838 = vpop.f32.mrf.mxu0
  %v7839 = vadd.f32 %v224, %v7838
  %v7840 = vpop.f32.mrf.mxu0
  %v7841 = vadd.f32 %v229, %v7840
  %7842 = vmatmul.bf16.gmra.mxu0 %v433
  %v7843 = vpop.f32.mrf.mxu0
  %v7844 = vadd.f32 %v234, %v7843
  %v7845 = vpop.f32.mrf.mxu0
  %v7846 = vadd.f32 %v239, %v7845
  %7847 = vmatmul.bf16.gmra.mxu0 %v436
  %v7848 = vpop.f32.mrf.mxu0
  %v7849 = vadd.f32 %v244, %v7848
  %v7850 = vpop.f32.mrf.mxu0
  %v7851 = vadd.f32 %v249, %v7850
  %7852 = vmatmul.bf16.gmra.mxu0 %v439
  %v7853 = vpop.f32.mrf.mxu0
  %v7854 = vadd.f32 %v254, %v7853
  %v7855 = vpop.f32.mrf.mxu0
  %v7856 = vadd.f32 %v259, %v7855
  %7857 = vmatmul.bf16.gmra.mxu0 %v442
  %v7858 = vpop.f32.mrf.mxu0
  %v7859 = vadd.f32 %v264, %v7858
  %v7860 = vpop.f32.mrf.mxu0
  %v7861 = vadd.f32 %v269, %v7860
  %7862 = vmatmul.bf16.gmra.mxu0 %v445
  %v7863 = vpop.f32.mrf.mxu0
  %v7864 = vadd.f32 %v274, %v7863
  %v7865 = vpop.f32.mrf.mxu0
  %7866 = vdwg.mxu0
  %v7867 = vmax.f32 %v7784, 0.0
  %v7868 = vmax.f32 %v7786, 0.0
  %v7869 = vmax.f32 %v7789, 0.0
  %v7870 = vmax.f32 %v7791, 0.0
  %v7871 = vmax.f32 %v7794, 0.0
  %v7872 = vmax.f32 %v7796, 0.0
  %v7873 = vmax.f32 %v7799, 0.0
  %v7874 = vmax.f32 %v7801, 0.0
  %v7875 = vmax.f32 %v7804, 0.0
  %v7876 = vmax.f32 %v7806, 0.0
  %v7877 = vmax.f32 %v7809, 0.0
  %v7878 = vmax.f32 %v7811, 0.0
  %v7879 = vmax.f32 %v7814, 0.0
  %v7880 = vmax.f32 %v7816, 0.0
  %v7881 = vmax.f32 %v7819, 0.0
  %v7882 = vmax.f32 %v7821, 0.0
  %v7883 = vmax.f32 %v7824, 0.0
  %v7884 = vmax.f32 %v7826, 0.0
  %v7885 = vmax.f32 %v7829, 0.0
  %v7886 = vmax.f32 %v7831, 0.0
  %v7887 = vmax.f32 %v7834, 0.0
  %v7888 = vmax.f32 %v7836, 0.0
  %v7889 = vmax.f32 %v7839, 0.0
  %v7890 = vmax.f32 %v7841, 0.0
  %v7891 = vmax.f32 %v7844, 0.0
  %v7892 = vmax.f32 %v7846, 0.0
  %v7893 = vmax.f32 %v7849, 0.0
  %v7894 = vmax.f32 %v7851, 0.0
  %v7895 = vmax.f32 %v7854, 0.0
  %v7896 = vmax.f32 %v7856, 0.0
  %v7897 = vmax.f32 %v7859, 0.0
  %v7898 = vmax.f32 %v7861, 0.0
  %v7899 = vmax.f32 %v7864, 0.0
  %v7900 = vpack.c.bf16 %v7868, %v7867
  %v7901 = vpack.c.bf16 %v7870, %v7869
  %v7902 = vpack.c.bf16 %v7872, %v7871
  %v7903 = vpack.c.bf16 %v7874, %v7873
  %v7904 = vpack.c.bf16 %v7876, %v7875
  %v7905 = vpack.c.bf16 %v7878, %v7877
  %v7906 = vpack.c.bf16 %v7880, %v7879
  %v7907 = vpack.c.bf16 %v7882, %v7881
  %v7908 = vpack.c.bf16 %v7884, %v7883
  %v7909 = vpack.c.bf16 %v7886, %v7885
  %v7910 = vpack.c.bf16 %v7888, %v7887
  %v7911 = vpack.c.bf16 %v7890, %v7889
  %v7912 = vpack.c.bf16 %v7892, %v7891
  %v7913 = vpack.c.bf16 %v7894, %v7893
  %v7914 = vpack.c.bf16 %v7896, %v7895
  %v7915 = vpack.c.bf16 %v7898, %v7897
  %v7916 = vpack.c.bf16 %v7899, %v7899
  %s7917 = scalar_lea.vmem %s3, 1680
  %v7918 = vld [vmem:[%s7917] sm:$0xff]
  %v7919 = vld [vmem:[%s7917 + $0x8] sm:$0xf]
  %v7920 = vld [vmem:[%s7917 + $0xc] sm:$0xff]
  %v7921 = vld [vmem:[%s7917 + $0x14] sm:$0xf]
  %v7922 = vld [vmem:[%s7917 + $0x18] sm:$0xff]
  %v7923 = vld [vmem:[%s7917 + $0x20] sm:$0xf]
  %v7924 = vld [vmem:[%s7917 + $0x24] sm:$0xff]
  %v7925 = vld [vmem:[%s7917 + $0x2c] sm:$0xf]
  %v7926 = vld [vmem:[%s7917 + $0x30] sm:$0xff]
  %v7927 = vld [vmem:[%s7917 + $0x38] sm:$0xf]
  %v7928 = vld [vmem:[%s7917 + $0x3c] sm:$0xff]
  %v7929 = vld [vmem:[%s7917 + $0x44] sm:$0xf]
  %v7930 = vld [vmem:[%s7917 + $0x48] sm:$0x11]
  %v7931 = vld [vmem:[%s7917 + $0x50] sm:$0x1]
  %v7946 = vunpack.c.l.b16 %v7918
  %v7947 = vunpack.c.h.b16 %v7918
  %v7948 = vunpack.c.l.b16 %v7919
  %v7949 = vunpack.c.l.b16 %v7920
  %v7950 = vunpack.c.h.b16 %v7920
  %v7951 = vunpack.c.l.b16 %v7921
  %v7952 = vunpack.c.l.b16 %v7922
  %v7953 = vunpack.c.h.b16 %v7922
  %v7954 = vunpack.c.l.b16 %v7923
  %v7955 = vunpack.c.l.b16 %v7924
  %v7956 = vunpack.c.h.b16 %v7924
  %v7957 = vunpack.c.l.b16 %v7925
  %v7958 = vunpack.c.l.b16 %v7926
  %v7959 = vunpack.c.h.b16 %v7926
  %v7960 = vunpack.c.l.b16 %v7927
  %v7961 = vunpack.c.l.b16 %v7928
  %v7962 = vunpack.c.h.b16 %v7928
  %v7963 = vunpack.c.l.b16 %v7929
  %v7964 = vunpack.c.l.b16 %v7930
  %v7965 = vunpack.c.h.b16 %v7930
  %v7966 = vunpack.c.l.b16 %v7931
  %v7967 = vpack.c.b16 %v7949, %v7946
  %v7968 = vpack.c.b16 %v7950, %v7947
  %v7969 = vpack.c.b16 %v7951, %v7948
  %v7970 = vpack.c.b16 %v7955, %v7952
  %v7971 = vpack.c.b16 %v7956, %v7953
  %v7972 = vpack.c.b16 %v7957, %v7954
  %v7973 = vpack.c.b16 %v7961, %v7958
  %v7974 = vpack.c.b16 %v7962, %v7959
  %v7975 = vpack.c.b16 %v7963, %v7960
  %v7976 = vpack.c.b16 %v7964, %v7964
  %v7977 = vpack.c.b16 %v7965, %v7965
  %v7978 = vpack.c.b16 %v7966, %v7966
  %v7988 = vsel %vm865, %v7969, 0
  %v7991 = vsel %vm865, %v7972, 0
  %v7994 = vsel %vm865, %v7975, 0
  %v7997 = vsel %vm865, %v7978, 0
  %v8000 = vsel %vm878, %v7916, 0
  %8002 = vmatpush.bf16.msra.mxu0 %v7907
  %8003 = vmatpush.bf16.msra.mxu0 %v7906
  %8004 = vmatpush.bf16.msra.mxu0 %v7905
  %8005 = vmatpush.bf16.msra.mxu0 %v7904
  %8006 = vmatpush.bf16.msra.mxu0 %v7903
  %8007 = vmatpush.bf16.msra.mxu0 %v7902
  %8008 = vmatpush.bf16.msra.mxu0 %v7901
  %8009 = vmatpush.bf16.msra.mxu0 %v7900
  %8010 = vmatmul.bf16.gmra.mxu0 %v7967
  %v8011 = vpop.f32.mrf.mxu0
  %v8012 = vadd.f32 0.0, %v8011
  %v8013 = vpop.f32.mrf.mxu0
  %v8014 = vadd.f32 0.0, %v8013
  %8015 = vmatmul.bf16.gmra.mxu0 %v7970
  %v8016 = vpop.f32.mrf.mxu0
  %v8017 = vadd.f32 0.0, %v8016
  %v8018 = vpop.f32.mrf.mxu0
  %v8019 = vadd.f32 0.0, %v8018
  %8020 = vmatmul.bf16.gmra.mxu0 %v7973
  %v8021 = vpop.f32.mrf.mxu0
  %v8022 = vadd.f32 0.0, %v8021
  %v8023 = vpop.f32.mrf.mxu0
  %v8024 = vadd.f32 0.0, %v8023
  %8025 = vmatmul.bf16.gmra.mxu0 %v7976
  %v8026 = vpop.f32.mrf.mxu0
  %v8027 = vadd.f32 0.0, %v8026
  %v8028 = vpop.f32.mrf.mxu0
  %8029 = vdwg.mxu0
  %8030 = vmatpush.bf16.msra.mxu0 %v7915
  %8031 = vmatpush.bf16.msra.mxu0 %v7914
  %8032 = vmatpush.bf16.msra.mxu0 %v7913
  %8033 = vmatpush.bf16.msra.mxu0 %v7912
  %8034 = vmatpush.bf16.msra.mxu0 %v7911
  %8035 = vmatpush.bf16.msra.mxu0 %v7910
  %8036 = vmatpush.bf16.msra.mxu0 %v7909
  %8037 = vmatpush.bf16.msra.mxu0 %v7908
  %8038 = vmatmul.bf16.gmra.mxu0 %v7968
  %v8039 = vpop.f32.mrf.mxu0
  %v8040 = vadd.f32 %v8012, %v8039
  %v8041 = vpop.f32.mrf.mxu0
  %v8042 = vadd.f32 %v8014, %v8041
  %8043 = vmatmul.bf16.gmra.mxu0 %v7971
  %v8044 = vpop.f32.mrf.mxu0
  %v8045 = vadd.f32 %v8017, %v8044
  %v8046 = vpop.f32.mrf.mxu0
  %v8047 = vadd.f32 %v8019, %v8046
  %8048 = vmatmul.bf16.gmra.mxu0 %v7974
  %v8049 = vpop.f32.mrf.mxu0
  %v8050 = vadd.f32 %v8022, %v8049
  %v8051 = vpop.f32.mrf.mxu0
  %v8052 = vadd.f32 %v8024, %v8051
  %8053 = vmatmul.bf16.gmra.mxu0 %v7977
  %v8054 = vpop.f32.mrf.mxu0
  %v8055 = vadd.f32 %v8027, %v8054
  %v8056 = vpop.f32.mrf.mxu0
  %8057 = vdwg.mxu0
  %8058 = vmatpush.bf16.msra.mxu0 0
  %8059 = vmatpush.bf16.msra.mxu0 0
  %8060 = vmatpush.bf16.msra.mxu0 0
  %8061 = vmatpush.bf16.msra.mxu0 0
  %8062 = vmatpush.bf16.msra.mxu0 0
  %8063 = vmatpush.bf16.msra.mxu0 0
  %8064 = vmatpush.bf16.msra.mxu0 0
  %8065 = vmatpush.bf16.msra.mxu0 %v8000
  %8066 = vmatmul.bf16.gmra.mxu0 %v7988
  %v8067 = vpop.f32.mrf.mxu0
  %v8068 = vadd.f32 %v8040, %v8067
  %v8069 = vpop.f32.mrf.mxu0
  %v8070 = vadd.f32 %v8042, %v8069
  %8071 = vmatmul.bf16.gmra.mxu0 %v7991
  %v8072 = vpop.f32.mrf.mxu0
  %v8073 = vadd.f32 %v8045, %v8072
  %v8074 = vpop.f32.mrf.mxu0
  %v8075 = vadd.f32 %v8047, %v8074
  %8076 = vmatmul.bf16.gmra.mxu0 %v7994
  %v8077 = vpop.f32.mrf.mxu0
  %v8078 = vadd.f32 %v8050, %v8077
  %v8079 = vpop.f32.mrf.mxu0
  %v8080 = vadd.f32 %v8052, %v8079
  %8081 = vmatmul.bf16.gmra.mxu0 %v7997
  %v8082 = vpop.f32.mrf.mxu0
  %v8083 = vadd.f32 %v8055, %v8082
  %v8084 = vpop.f32.mrf.mxu0
  %8085 = vdwg.mxu0
  %v8086 = vadd.f32 %v7719, %v8068
  %v8087 = vadd.f32 %v7720, %v8070
  %v8088 = vadd.f32 %v7721, %v8073
  %v8089 = vadd.f32 %v7722, %v8075
  %v8090 = vadd.f32 %v7723, %v8078
  %v8091 = vadd.f32 %v7724, %v8080
  %v8092 = vadd.f32 %v7725, %v8083
  %v8093 = vld [vmem:[%s0 + $0x150] sm:$0xf]
  %v8094 = vld [vmem:[%s0 + $0x154] sm:$0xf]
  %v8095 = vld [vmem:[%s0 + $0x158] sm:$0xf]
  %v8096 = vld [vmem:[%s0 + $0x15c] sm:$0xf]
  %v8097 = vld [vmem:[%s0 + $0x160] sm:$0xf]
  %v8098 = vld [vmem:[%s0 + $0x164] sm:$0xf]
  %v8099 = vld [vmem:[%s0 + $0x168] sm:$0xf]
  %v8100 = vld [vmem:[%s0 + $0x16c] sm:$0xf]
  %v8101 = vld [vmem:[%s0 + $0x170] sm:$0xf]
  %v8102 = vld [vmem:[%s0 + $0x174] sm:$0xf]
  %v8103 = vld [vmem:[%s0 + $0x178] sm:$0xf]
  %v8104 = vld [vmem:[%s0 + $0x17c] sm:$0xf]
  %v8117 = vunpack.c.l.b16 %v8093
  %v8118 = vunpack.c.l.b16 %v8094
  %v8119 = vunpack.c.l.b16 %v8095
  %v8120 = vunpack.c.l.b16 %v8096
  %v8121 = vunpack.c.l.b16 %v8097
  %v8122 = vunpack.c.l.b16 %v8098
  %v8123 = vunpack.c.l.b16 %v8099
  %v8124 = vunpack.c.l.b16 %v8100
  %v8125 = vunpack.c.l.b16 %v8101
  %v8126 = vunpack.c.l.b16 %v8102
  %v8127 = vunpack.c.l.b16 %v8103
  %v8128 = vunpack.c.l.b16 %v8104
  %v8129 = vpack.c.b16 %v8118, %v8117
  %v8130 = vpack.c.b16 %v8120, %v8119
  %v8131 = vpack.c.b16 %v8122, %v8121
  %v8132 = vpack.c.b16 %v8124, %v8123
  %v8133 = vpack.c.b16 %v8126, %v8125
  %v8134 = vpack.c.b16 %v8128, %v8127
  %8141 = vmatpush.bf16.msra.mxu0 0
  %8142 = vmatpush.bf16.msra.mxu0 0
  %8143 = vmatpush.bf16.msra.mxu0 %v8134
  %8144 = vmatpush.bf16.msra.mxu0 %v8133
  %8145 = vmatpush.bf16.msra.mxu0 %v8132
  %8146 = vmatpush.bf16.msra.mxu0 %v8131
  %8147 = vmatpush.bf16.msra.mxu0 %v8130
  %8148 = vmatpush.bf16.msra.mxu0 %v8129
  %8149 = vmatmul.bf16.gmra.mxu0 %v397
  %v8150 = vpop.f32.mrf.mxu0
  %v8151 = vadd.f32 %v114, %v8150
  %v8152 = vpop.f32.mrf.mxu0
  %v8153 = vadd.f32 %v119, %v8152
  %8154 = vmatmul.bf16.gmra.mxu0 %v400
  %v8155 = vpop.f32.mrf.mxu0
  %v8156 = vadd.f32 %v124, %v8155
  %v8157 = vpop.f32.mrf.mxu0
  %v8158 = vadd.f32 %v129, %v8157
  %8159 = vmatmul.bf16.gmra.mxu0 %v403
  %v8160 = vpop.f32.mrf.mxu0
  %v8161 = vadd.f32 %v134, %v8160
  %v8162 = vpop.f32.mrf.mxu0
  %v8163 = vadd.f32 %v139, %v8162
  %8164 = vmatmul.bf16.gmra.mxu0 %v406
  %v8165 = vpop.f32.mrf.mxu0
  %v8166 = vadd.f32 %v144, %v8165
  %v8167 = vpop.f32.mrf.mxu0
  %v8168 = vadd.f32 %v149, %v8167
  %8169 = vmatmul.bf16.gmra.mxu0 %v409
  %v8170 = vpop.f32.mrf.mxu0
  %v8171 = vadd.f32 %v154, %v8170
  %v8172 = vpop.f32.mrf.mxu0
  %v8173 = vadd.f32 %v159, %v8172
  %8174 = vmatmul.bf16.gmra.mxu0 %v412
  %v8175 = vpop.f32.mrf.mxu0
  %v8176 = vadd.f32 %v164, %v8175
  %v8177 = vpop.f32.mrf.mxu0
  %v8178 = vadd.f32 %v169, %v8177
  %8179 = vmatmul.bf16.gmra.mxu0 %v415
  %v8180 = vpop.f32.mrf.mxu0
  %v8181 = vadd.f32 %v174, %v8180
  %v8182 = vpop.f32.mrf.mxu0
  %v8183 = vadd.f32 %v179, %v8182
  %8184 = vmatmul.bf16.gmra.mxu0 %v418
  %v8185 = vpop.f32.mrf.mxu0
  %v8186 = vadd.f32 %v184, %v8185
  %v8187 = vpop.f32.mrf.mxu0
  %v8188 = vadd.f32 %v189, %v8187
  %8189 = vmatmul.bf16.gmra.mxu0 %v421
  %v8190 = vpop.f32.mrf.mxu0
  %v8191 = vadd.f32 %v194, %v8190
  %v8192 = vpop.f32.mrf.mxu0
  %v8193 = vadd.f32 %v199, %v8192
  %8194 = vmatmul.bf16.gmra.mxu0 %v424
  %v8195 = vpop.f32.mrf.mxu0
  %v8196 = vadd.f32 %v204, %v8195
  %v8197 = vpop.f32.mrf.mxu0
  %v8198 = vadd.f32 %v209, %v8197
  %8199 = vmatmul.bf16.gmra.mxu0 %v427
  %v8200 = vpop.f32.mrf.mxu0
  %v8201 = vadd.f32 %v214, %v8200
  %v8202 = vpop.f32.mrf.mxu0
  %v8203 = vadd.f32 %v219, %v8202
  %8204 = vmatmul.bf16.gmra.mxu0 %v430
  %v8205 = vpop.f32.mrf.mxu0
  %v8206 = vadd.f32 %v224, %v8205
  %v8207 = vpop.f32.mrf.mxu0
  %v8208 = vadd.f32 %v229, %v8207
  %8209 = vmatmul.bf16.gmra.mxu0 %v433
  %v8210 = vpop.f32.mrf.mxu0
  %v8211 = vadd.f32 %v234, %v8210
  %v8212 = vpop.f32.mrf.mxu0
  %v8213 = vadd.f32 %v239, %v8212
  %8214 = vmatmul.bf16.gmra.mxu0 %v436
  %v8215 = vpop.f32.mrf.mxu0
  %v8216 = vadd.f32 %v244, %v8215
  %v8217 = vpop.f32.mrf.mxu0
  %v8218 = vadd.f32 %v249, %v8217
  %8219 = vmatmul.bf16.gmra.mxu0 %v439
  %v8220 = vpop.f32.mrf.mxu0
  %v8221 = vadd.f32 %v254, %v8220
  %v8222 = vpop.f32.mrf.mxu0
  %v8223 = vadd.f32 %v259, %v8222
  %8224 = vmatmul.bf16.gmra.mxu0 %v442
  %v8225 = vpop.f32.mrf.mxu0
  %v8226 = vadd.f32 %v264, %v8225
  %v8227 = vpop.f32.mrf.mxu0
  %v8228 = vadd.f32 %v269, %v8227
  %8229 = vmatmul.bf16.gmra.mxu0 %v445
  %v8230 = vpop.f32.mrf.mxu0
  %v8231 = vadd.f32 %v274, %v8230
  %v8232 = vpop.f32.mrf.mxu0
  %8233 = vdwg.mxu0
  %v8234 = vmax.f32 %v8151, 0.0
  %v8235 = vmax.f32 %v8153, 0.0
  %v8236 = vmax.f32 %v8156, 0.0
  %v8237 = vmax.f32 %v8158, 0.0
  %v8238 = vmax.f32 %v8161, 0.0
  %v8239 = vmax.f32 %v8163, 0.0
  %v8240 = vmax.f32 %v8166, 0.0
  %v8241 = vmax.f32 %v8168, 0.0
  %v8242 = vmax.f32 %v8171, 0.0
  %v8243 = vmax.f32 %v8173, 0.0
  %v8244 = vmax.f32 %v8176, 0.0
  %v8245 = vmax.f32 %v8178, 0.0
  %v8246 = vmax.f32 %v8181, 0.0
  %v8247 = vmax.f32 %v8183, 0.0
  %v8248 = vmax.f32 %v8186, 0.0
  %v8249 = vmax.f32 %v8188, 0.0
  %v8250 = vmax.f32 %v8191, 0.0
  %v8251 = vmax.f32 %v8193, 0.0
  %v8252 = vmax.f32 %v8196, 0.0
  %v8253 = vmax.f32 %v8198, 0.0
  %v8254 = vmax.f32 %v8201, 0.0
  %v8255 = vmax.f32 %v8203, 0.0
  %v8256 = vmax.f32 %v8206, 0.0
  %v8257 = vmax.f32 %v8208, 0.0
  %v8258 = vmax.f32 %v8211, 0.0
  %v8259 = vmax.f32 %v8213, 0.0
  %v8260 = vmax.f32 %v8216, 0.0
  %v8261 = vmax.f32 %v8218, 0.0
  %v8262 = vmax.f32 %v8221, 0.0
  %v8263 = vmax.f32 %v8223, 0.0
  %v8264 = vmax.f32 %v8226, 0.0
  %v8265 = vmax.f32 %v8228, 0.0
  %v8266 = vmax.f32 %v8231, 0.0
  %v8267 = vpack.c.bf16 %v8235, %v8234
  %v8268 = vpack.c.bf16 %v8237, %v8236
  %v8269 = vpack.c.bf16 %v8239, %v8238
  %v8270 = vpack.c.bf16 %v8241, %v8240
  %v8271 = vpack.c.bf16 %v8243, %v8242
  %v8272 = vpack.c.bf16 %v8245, %v8244
  %v8273 = vpack.c.bf16 %v8247, %v8246
  %v8274 = vpack.c.bf16 %v8249, %v8248
  %v8275 = vpack.c.bf16 %v8251, %v8250
  %v8276 = vpack.c.bf16 %v8253, %v8252
  %v8277 = vpack.c.bf16 %v8255, %v8254
  %v8278 = vpack.c.bf16 %v8257, %v8256
  %v8279 = vpack.c.bf16 %v8259, %v8258
  %v8280 = vpack.c.bf16 %v8261, %v8260
  %v8281 = vpack.c.bf16 %v8263, %v8262
  %v8282 = vpack.c.bf16 %v8265, %v8264
  %v8283 = vpack.c.bf16 %v8266, %v8266
  %s8284 = scalar_lea.vmem %s3, 1764
  %v8285 = vld [vmem:[%s8284] sm:$0xff]
  %v8286 = vld [vmem:[%s8284 + $0x8] sm:$0xf]
  %v8287 = vld [vmem:[%s8284 + $0xc] sm:$0xff]
  %v8288 = vld [vmem:[%s8284 + $0x14] sm:$0xf]
  %v8289 = vld [vmem:[%s8284 + $0x18] sm:$0xff]
  %v8290 = vld [vmem:[%s8284 + $0x20] sm:$0xf]
  %v8291 = vld [vmem:[%s8284 + $0x24] sm:$0xff]
  %v8292 = vld [vmem:[%s8284 + $0x2c] sm:$0xf]
  %v8293 = vld [vmem:[%s8284 + $0x30] sm:$0xff]
  %v8294 = vld [vmem:[%s8284 + $0x38] sm:$0xf]
  %v8295 = vld [vmem:[%s8284 + $0x3c] sm:$0xff]
  %v8296 = vld [vmem:[%s8284 + $0x44] sm:$0xf]
  %v8297 = vld [vmem:[%s8284 + $0x48] sm:$0x11]
  %v8298 = vld [vmem:[%s8284 + $0x50] sm:$0x1]
  %v8313 = vunpack.c.l.b16 %v8285
  %v8314 = vunpack.c.h.b16 %v8285
  %v8315 = vunpack.c.l.b16 %v8286
  %v8316 = vunpack.c.l.b16 %v8287
  %v8317 = vunpack.c.h.b16 %v8287
  %v8318 = vunpack.c.l.b16 %v8288
  %v8319 = vunpack.c.l.b16 %v8289
  %v8320 = vunpack.c.h.b16 %v8289
  %v8321 = vunpack.c.l.b16 %v8290
  %v8322 = vunpack.c.l.b16 %v8291
  %v8323 = vunpack.c.h.b16 %v8291
  %v8324 = vunpack.c.l.b16 %v8292
  %v8325 = vunpack.c.l.b16 %v8293
  %v8326 = vunpack.c.h.b16 %v8293
  %v8327 = vunpack.c.l.b16 %v8294
  %v8328 = vunpack.c.l.b16 %v8295
  %v8329 = vunpack.c.h.b16 %v8295
  %v8330 = vunpack.c.l.b16 %v8296
  %v8331 = vunpack.c.l.b16 %v8297
  %v8332 = vunpack.c.h.b16 %v8297
  %v8333 = vunpack.c.l.b16 %v8298
  %v8334 = vpack.c.b16 %v8316, %v8313
  %v8335 = vpack.c.b16 %v8317, %v8314
  %v8336 = vpack.c.b16 %v8318, %v8315
  %v8337 = vpack.c.b16 %v8322, %v8319
  %v8338 = vpack.c.b16 %v8323, %v8320
  %v8339 = vpack.c.b16 %v8324, %v8321
  %v8340 = vpack.c.b16 %v8328, %v8325
  %v8341 = vpack.c.b16 %v8329, %v8326
  %v8342 = vpack.c.b16 %v8330, %v8327
  %v8343 = vpack.c.b16 %v8331, %v8331
  %v8344 = vpack.c.b16 %v8332, %v8332
  %v8345 = vpack.c.b16 %v8333, %v8333
  %v8355 = vsel %vm865, %v8336, 0
  %v8358 = vsel %vm865, %v8339, 0
  %v8361 = vsel %vm865, %v8342, 0
  %v8364 = vsel %vm865, %v8345, 0
  %v8367 = vsel %vm878, %v8283, 0
  %8369 = vmatpush.bf16.msra.mxu0 %v8274
  %8370 = vmatpush.bf16.msra.mxu0 %v8273
  %8371 = vmatpush.bf16.msra.mxu0 %v8272
  %8372 = vmatpush.bf16.msra.mxu0 %v8271
  %8373 = vmatpush.bf16.msra.mxu0 %v8270
  %8374 = vmatpush.bf16.msra.mxu0 %v8269
  %8375 = vmatpush.bf16.msra.mxu0 %v8268
  %8376 = vmatpush.bf16.msra.mxu0 %v8267
  %8377 = vmatmul.bf16.gmra.mxu0 %v8334
  %v8378 = vpop.f32.mrf.mxu0
  %v8379 = vadd.f32 0.0, %v8378
  %v8380 = vpop.f32.mrf.mxu0
  %v8381 = vadd.f32 0.0, %v8380
  %8382 = vmatmul.bf16.gmra.mxu0 %v8337
  %v8383 = vpop.f32.mrf.mxu0
  %v8384 = vadd.f32 0.0, %v8383
  %v8385 = vpop.f32.mrf.mxu0
  %v8386 = vadd.f32 0.0, %v8385
  %8387 = vmatmul.bf16.gmra.mxu0 %v8340
  %v8388 = vpop.f32.mrf.mxu0
  %v8389 = vadd.f32 0.0, %v8388
  %v8390 = vpop.f32.mrf.mxu0
  %v8391 = vadd.f32 0.0, %v8390
  %8392 = vmatmul.bf16.gmra.mxu0 %v8343
  %v8393 = vpop.f32.mrf.mxu0
  %v8394 = vadd.f32 0.0, %v8393
  %v8395 = vpop.f32.mrf.mxu0
  %8396 = vdwg.mxu0
  %8397 = vmatpush.bf16.msra.mxu0 %v8282
  %8398 = vmatpush.bf16.msra.mxu0 %v8281
  %8399 = vmatpush.bf16.msra.mxu0 %v8280
  %8400 = vmatpush.bf16.msra.mxu0 %v8279
  %8401 = vmatpush.bf16.msra.mxu0 %v8278
  %8402 = vmatpush.bf16.msra.mxu0 %v8277
  %8403 = vmatpush.bf16.msra.mxu0 %v8276
  %8404 = vmatpush.bf16.msra.mxu0 %v8275
  %8405 = vmatmul.bf16.gmra.mxu0 %v8335
  %v8406 = vpop.f32.mrf.mxu0
  %v8407 = vadd.f32 %v8379, %v8406
  %v8408 = vpop.f32.mrf.mxu0
  %v8409 = vadd.f32 %v8381, %v8408
  %8410 = vmatmul.bf16.gmra.mxu0 %v8338
  %v8411 = vpop.f32.mrf.mxu0
  %v8412 = vadd.f32 %v8384, %v8411
  %v8413 = vpop.f32.mrf.mxu0
  %v8414 = vadd.f32 %v8386, %v8413
  %8415 = vmatmul.bf16.gmra.mxu0 %v8341
  %v8416 = vpop.f32.mrf.mxu0
  %v8417 = vadd.f32 %v8389, %v8416
  %v8418 = vpop.f32.mrf.mxu0
  %v8419 = vadd.f32 %v8391, %v8418
  %8420 = vmatmul.bf16.gmra.mxu0 %v8344
  %v8421 = vpop.f32.mrf.mxu0
  %v8422 = vadd.f32 %v8394, %v8421
  %v8423 = vpop.f32.mrf.mxu0
  %8424 = vdwg.mxu0
  %8425 = vmatpush.bf16.msra.mxu0 0
  %8426 = vmatpush.bf16.msra.mxu0 0
  %8427 = vmatpush.bf16.msra.mxu0 0
  %8428 = vmatpush.bf16.msra.mxu0 0
  %8429 = vmatpush.bf16.msra.mxu0 0
  %8430 = vmatpush.bf16.msra.mxu0 0
  %8431 = vmatpush.bf16.msra.mxu0 0
  %8432 = vmatpush.bf16.msra.mxu0 %v8367
  %8433 = vmatmul.bf16.gmra.mxu0 %v8355
  %v8434 = vpop.f32.mrf.mxu0
  %v8435 = vadd.f32 %v8407, %v8434
  %v8436 = vpop.f32.mrf.mxu0
  %v8437 = vadd.f32 %v8409, %v8436
  %8438 = vmatmul.bf16.gmra.mxu0 %v8358
  %v8439 = vpop.f32.mrf.mxu0
  %v8440 = vadd.f32 %v8412, %v8439
  %v8441 = vpop.f32.mrf.mxu0
  %v8442 = vadd.f32 %v8414, %v8441
  %8443 = vmatmul.bf16.gmra.mxu0 %v8361
  %v8444 = vpop.f32.mrf.mxu0
  %v8445 = vadd.f32 %v8417, %v8444
  %v8446 = vpop.f32.mrf.mxu0
  %v8447 = vadd.f32 %v8419, %v8446
  %8448 = vmatmul.bf16.gmra.mxu0 %v8364
  %v8449 = vpop.f32.mrf.mxu0
  %v8450 = vadd.f32 %v8422, %v8449
  %v8451 = vpop.f32.mrf.mxu0
  %8452 = vdwg.mxu0
  %v8453 = vadd.f32 %v8086, %v8435
  %v8454 = vadd.f32 %v8087, %v8437
  %v8455 = vadd.f32 %v8088, %v8440
  %v8456 = vadd.f32 %v8089, %v8442
  %v8457 = vadd.f32 %v8090, %v8445
  %v8458 = vadd.f32 %v8091, %v8447
  %v8459 = vadd.f32 %v8092, %v8450
  %v8460 = vld [vmem:[%s0 + $0x160] sm:$0xf]
  %v8461 = vld [vmem:[%s0 + $0x164] sm:$0xf]
  %v8462 = vld [vmem:[%s0 + $0x168] sm:$0xf]
  %v8463 = vld [vmem:[%s0 + $0x16c] sm:$0xf]
  %v8464 = vld [vmem:[%s0 + $0x170] sm:$0xf]
  %v8465 = vld [vmem:[%s0 + $0x174] sm:$0xf]
  %v8466 = vld [vmem:[%s0 + $0x178] sm:$0xf]
  %v8467 = vld [vmem:[%s0 + $0x17c] sm:$0xf]
  %v8468 = vld [vmem:[%s0 + $0x180] sm:$0xf]
  %v8469 = vld [vmem:[%s0 + $0x184] sm:$0xf]
  %v8470 = vld [vmem:[%s0 + $0x188] sm:$0xf]
  %v8471 = vld [vmem:[%s0 + $0x18c] sm:$0xf]
  %v8484 = vunpack.c.l.b16 %v8460
  %v8485 = vunpack.c.l.b16 %v8461
  %v8486 = vunpack.c.l.b16 %v8462
  %v8487 = vunpack.c.l.b16 %v8463
  %v8488 = vunpack.c.l.b16 %v8464
  %v8489 = vunpack.c.l.b16 %v8465
  %v8490 = vunpack.c.l.b16 %v8466
  %v8491 = vunpack.c.l.b16 %v8467
  %v8492 = vunpack.c.l.b16 %v8468
  %v8493 = vunpack.c.l.b16 %v8469
  %v8494 = vunpack.c.l.b16 %v8470
  %v8495 = vunpack.c.l.b16 %v8471
  %v8496 = vpack.c.b16 %v8485, %v8484
  %v8497 = vpack.c.b16 %v8487, %v8486
  %v8498 = vpack.c.b16 %v8489, %v8488
  %v8499 = vpack.c.b16 %v8491, %v8490
  %v8500 = vpack.c.b16 %v8493, %v8492
  %v8501 = vpack.c.b16 %v8495, %v8494
  %8508 = vmatpush.bf16.msra.mxu0 0
  %8509 = vmatpush.bf16.msra.mxu0 0
  %8510 = vmatpush.bf16.msra.mxu0 %v8501
  %8511 = vmatpush.bf16.msra.mxu0 %v8500
  %8512 = vmatpush.bf16.msra.mxu0 %v8499
  %8513 = vmatpush.bf16.msra.mxu0 %v8498
  %8514 = vmatpush.bf16.msra.mxu0 %v8497
  %8515 = vmatpush.bf16.msra.mxu0 %v8496
  %8516 = vmatmul.bf16.gmra.mxu0 %v397
  %v8517 = vpop.f32.mrf.mxu0
  %v8518 = vadd.f32 %v114, %v8517
  %v8519 = vpop.f32.mrf.mxu0
  %v8520 = vadd.f32 %v119, %v8519
  %8521 = vmatmul.bf16.gmra.mxu0 %v400
  %v8522 = vpop.f32.mrf.mxu0
  %v8523 = vadd.f32 %v124, %v8522
  %v8524 = vpop.f32.mrf.mxu0
  %v8525 = vadd.f32 %v129, %v8524
  %8526 = vmatmul.bf16.gmra.mxu0 %v403
  %v8527 = vpop.f32.mrf.mxu0
  %v8528 = vadd.f32 %v134, %v8527
  %v8529 = vpop.f32.mrf.mxu0
  %v8530 = vadd.f32 %v139, %v8529
  %8531 = vmatmul.bf16.gmra.mxu0 %v406
  %v8532 = vpop.f32.mrf.mxu0
  %v8533 = vadd.f32 %v144, %v8532
  %v8534 = vpop.f32.mrf.mxu0
  %v8535 = vadd.f32 %v149, %v8534
  %8536 = vmatmul.bf16.gmra.mxu0 %v409
  %v8537 = vpop.f32.mrf.mxu0
  %v8538 = vadd.f32 %v154, %v8537
  %v8539 = vpop.f32.mrf.mxu0
  %v8540 = vadd.f32 %v159, %v8539
  %8541 = vmatmul.bf16.gmra.mxu0 %v412
  %v8542 = vpop.f32.mrf.mxu0
  %v8543 = vadd.f32 %v164, %v8542
  %v8544 = vpop.f32.mrf.mxu0
  %v8545 = vadd.f32 %v169, %v8544
  %8546 = vmatmul.bf16.gmra.mxu0 %v415
  %v8547 = vpop.f32.mrf.mxu0
  %v8548 = vadd.f32 %v174, %v8547
  %v8549 = vpop.f32.mrf.mxu0
  %v8550 = vadd.f32 %v179, %v8549
  %8551 = vmatmul.bf16.gmra.mxu0 %v418
  %v8552 = vpop.f32.mrf.mxu0
  %v8553 = vadd.f32 %v184, %v8552
  %v8554 = vpop.f32.mrf.mxu0
  %v8555 = vadd.f32 %v189, %v8554
  %8556 = vmatmul.bf16.gmra.mxu0 %v421
  %v8557 = vpop.f32.mrf.mxu0
  %v8558 = vadd.f32 %v194, %v8557
  %v8559 = vpop.f32.mrf.mxu0
  %v8560 = vadd.f32 %v199, %v8559
  %8561 = vmatmul.bf16.gmra.mxu0 %v424
  %v8562 = vpop.f32.mrf.mxu0
  %v8563 = vadd.f32 %v204, %v8562
  %v8564 = vpop.f32.mrf.mxu0
  %v8565 = vadd.f32 %v209, %v8564
  %8566 = vmatmul.bf16.gmra.mxu0 %v427
  %v8567 = vpop.f32.mrf.mxu0
  %v8568 = vadd.f32 %v214, %v8567
  %v8569 = vpop.f32.mrf.mxu0
  %v8570 = vadd.f32 %v219, %v8569
  %8571 = vmatmul.bf16.gmra.mxu0 %v430
  %v8572 = vpop.f32.mrf.mxu0
  %v8573 = vadd.f32 %v224, %v8572
  %v8574 = vpop.f32.mrf.mxu0
  %v8575 = vadd.f32 %v229, %v8574
  %8576 = vmatmul.bf16.gmra.mxu0 %v433
  %v8577 = vpop.f32.mrf.mxu0
  %v8578 = vadd.f32 %v234, %v8577
  %v8579 = vpop.f32.mrf.mxu0
  %v8580 = vadd.f32 %v239, %v8579
  %8581 = vmatmul.bf16.gmra.mxu0 %v436
  %v8582 = vpop.f32.mrf.mxu0
  %v8583 = vadd.f32 %v244, %v8582
  %v8584 = vpop.f32.mrf.mxu0
  %v8585 = vadd.f32 %v249, %v8584
  %8586 = vmatmul.bf16.gmra.mxu0 %v439
  %v8587 = vpop.f32.mrf.mxu0
  %v8588 = vadd.f32 %v254, %v8587
  %v8589 = vpop.f32.mrf.mxu0
  %v8590 = vadd.f32 %v259, %v8589
  %8591 = vmatmul.bf16.gmra.mxu0 %v442
  %v8592 = vpop.f32.mrf.mxu0
  %v8593 = vadd.f32 %v264, %v8592
  %v8594 = vpop.f32.mrf.mxu0
  %v8595 = vadd.f32 %v269, %v8594
  %8596 = vmatmul.bf16.gmra.mxu0 %v445
  %v8597 = vpop.f32.mrf.mxu0
  %v8598 = vadd.f32 %v274, %v8597
  %v8599 = vpop.f32.mrf.mxu0
  %8600 = vdwg.mxu0
  %v8601 = vmax.f32 %v8518, 0.0
  %v8602 = vmax.f32 %v8520, 0.0
  %v8603 = vmax.f32 %v8523, 0.0
  %v8604 = vmax.f32 %v8525, 0.0
  %v8605 = vmax.f32 %v8528, 0.0
  %v8606 = vmax.f32 %v8530, 0.0
  %v8607 = vmax.f32 %v8533, 0.0
  %v8608 = vmax.f32 %v8535, 0.0
  %v8609 = vmax.f32 %v8538, 0.0
  %v8610 = vmax.f32 %v8540, 0.0
  %v8611 = vmax.f32 %v8543, 0.0
  %v8612 = vmax.f32 %v8545, 0.0
  %v8613 = vmax.f32 %v8548, 0.0
  %v8614 = vmax.f32 %v8550, 0.0
  %v8615 = vmax.f32 %v8553, 0.0
  %v8616 = vmax.f32 %v8555, 0.0
  %v8617 = vmax.f32 %v8558, 0.0
  %v8618 = vmax.f32 %v8560, 0.0
  %v8619 = vmax.f32 %v8563, 0.0
  %v8620 = vmax.f32 %v8565, 0.0
  %v8621 = vmax.f32 %v8568, 0.0
  %v8622 = vmax.f32 %v8570, 0.0
  %v8623 = vmax.f32 %v8573, 0.0
  %v8624 = vmax.f32 %v8575, 0.0
  %v8625 = vmax.f32 %v8578, 0.0
  %v8626 = vmax.f32 %v8580, 0.0
  %v8627 = vmax.f32 %v8583, 0.0
  %v8628 = vmax.f32 %v8585, 0.0
  %v8629 = vmax.f32 %v8588, 0.0
  %v8630 = vmax.f32 %v8590, 0.0
  %v8631 = vmax.f32 %v8593, 0.0
  %v8632 = vmax.f32 %v8595, 0.0
  %v8633 = vmax.f32 %v8598, 0.0
  %v8634 = vpack.c.bf16 %v8602, %v8601
  %v8635 = vpack.c.bf16 %v8604, %v8603
  %v8636 = vpack.c.bf16 %v8606, %v8605
  %v8637 = vpack.c.bf16 %v8608, %v8607
  %v8638 = vpack.c.bf16 %v8610, %v8609
  %v8639 = vpack.c.bf16 %v8612, %v8611
  %v8640 = vpack.c.bf16 %v8614, %v8613
  %v8641 = vpack.c.bf16 %v8616, %v8615
  %v8642 = vpack.c.bf16 %v8618, %v8617
  %v8643 = vpack.c.bf16 %v8620, %v8619
  %v8644 = vpack.c.bf16 %v8622, %v8621
  %v8645 = vpack.c.bf16 %v8624, %v8623
  %v8646 = vpack.c.bf16 %v8626, %v8625
  %v8647 = vpack.c.bf16 %v8628, %v8627
  %v8648 = vpack.c.bf16 %v8630, %v8629
  %v8649 = vpack.c.bf16 %v8632, %v8631
  %v8650 = vpack.c.bf16 %v8633, %v8633
  %s8651 = scalar_lea.vmem %s3, 1848
  %v8652 = vld [vmem:[%s8651] sm:$0xff]
  %v8653 = vld [vmem:[%s8651 + $0x8] sm:$0xf]
  %v8654 = vld [vmem:[%s8651 + $0xc] sm:$0xff]
  %v8655 = vld [vmem:[%s8651 + $0x14] sm:$0xf]
  %v8656 = vld [vmem:[%s8651 + $0x18] sm:$0xff]
  %v8657 = vld [vmem:[%s8651 + $0x20] sm:$0xf]
  %v8658 = vld [vmem:[%s8651 + $0x24] sm:$0xff]
  %v8659 = vld [vmem:[%s8651 + $0x2c] sm:$0xf]
  %v8660 = vld [vmem:[%s8651 + $0x30] sm:$0xff]
  %v8661 = vld [vmem:[%s8651 + $0x38] sm:$0xf]
  %v8662 = vld [vmem:[%s8651 + $0x3c] sm:$0xff]
  %v8663 = vld [vmem:[%s8651 + $0x44] sm:$0xf]
  %v8664 = vld [vmem:[%s8651 + $0x48] sm:$0x11]
  %v8665 = vld [vmem:[%s8651 + $0x50] sm:$0x1]
  %v8680 = vunpack.c.l.b16 %v8652
  %v8681 = vunpack.c.h.b16 %v8652
  %v8682 = vunpack.c.l.b16 %v8653
  %v8683 = vunpack.c.l.b16 %v8654
  %v8684 = vunpack.c.h.b16 %v8654
  %v8685 = vunpack.c.l.b16 %v8655
  %v8686 = vunpack.c.l.b16 %v8656
  %v8687 = vunpack.c.h.b16 %v8656
  %v8688 = vunpack.c.l.b16 %v8657
  %v8689 = vunpack.c.l.b16 %v8658
  %v8690 = vunpack.c.h.b16 %v8658
  %v8691 = vunpack.c.l.b16 %v8659
  %v8692 = vunpack.c.l.b16 %v8660
  %v8693 = vunpack.c.h.b16 %v8660
  %v8694 = vunpack.c.l.b16 %v8661
  %v8695 = vunpack.c.l.b16 %v8662
  %v8696 = vunpack.c.h.b16 %v8662
  %v8697 = vunpack.c.l.b16 %v8663
  %v8698 = vunpack.c.l.b16 %v8664
  %v8699 = vunpack.c.h.b16 %v8664
  %v8700 = vunpack.c.l.b16 %v8665
  %v8701 = vpack.c.b16 %v8683, %v8680
  %v8702 = vpack.c.b16 %v8684, %v8681
  %v8703 = vpack.c.b16 %v8685, %v8682
  %v8704 = vpack.c.b16 %v8689, %v8686
  %v8705 = vpack.c.b16 %v8690, %v8687
  %v8706 = vpack.c.b16 %v8691, %v8688
  %v8707 = vpack.c.b16 %v8695, %v8692
  %v8708 = vpack.c.b16 %v8696, %v8693
  %v8709 = vpack.c.b16 %v8697, %v8694
  %v8710 = vpack.c.b16 %v8698, %v8698
  %v8711 = vpack.c.b16 %v8699, %v8699
  %v8712 = vpack.c.b16 %v8700, %v8700
  %v8722 = vsel %vm865, %v8703, 0
  %v8725 = vsel %vm865, %v8706, 0
  %v8728 = vsel %vm865, %v8709, 0
  %v8731 = vsel %vm865, %v8712, 0
  %v8734 = vsel %vm878, %v8650, 0
  %8736 = vmatpush.bf16.msra.mxu0 %v8641
  %8737 = vmatpush.bf16.msra.mxu0 %v8640
  %8738 = vmatpush.bf16.msra.mxu0 %v8639
  %8739 = vmatpush.bf16.msra.mxu0 %v8638
  %8740 = vmatpush.bf16.msra.mxu0 %v8637
  %8741 = vmatpush.bf16.msra.mxu0 %v8636
  %8742 = vmatpush.bf16.msra.mxu0 %v8635
  %8743 = vmatpush.bf16.msra.mxu0 %v8634
  %8744 = vmatmul.bf16.gmra.mxu0 %v8701
  %v8745 = vpop.f32.mrf.mxu0
  %v8746 = vadd.f32 0.0, %v8745
  %v8747 = vpop.f32.mrf.mxu0
  %v8748 = vadd.f32 0.0, %v8747
  %8749 = vmatmul.bf16.gmra.mxu0 %v8704
  %v8750 = vpop.f32.mrf.mxu0
  %v8751 = vadd.f32 0.0, %v8750
  %v8752 = vpop.f32.mrf.mxu0
  %v8753 = vadd.f32 0.0, %v8752
  %8754 = vmatmul.bf16.gmra.mxu0 %v8707
  %v8755 = vpop.f32.mrf.mxu0
  %v8756 = vadd.f32 0.0, %v8755
  %v8757 = vpop.f32.mrf.mxu0
  %v8758 = vadd.f32 0.0, %v8757
  %8759 = vmatmul.bf16.gmra.mxu0 %v8710
  %v8760 = vpop.f32.mrf.mxu0
  %v8761 = vadd.f32 0.0, %v8760
  %v8762 = vpop.f32.mrf.mxu0
  %8763 = vdwg.mxu0
  %8764 = vmatpush.bf16.msra.mxu0 %v8649
  %8765 = vmatpush.bf16.msra.mxu0 %v8648
  %8766 = vmatpush.bf16.msra.mxu0 %v8647
  %8767 = vmatpush.bf16.msra.mxu0 %v8646
  %8768 = vmatpush.bf16.msra.mxu0 %v8645
  %8769 = vmatpush.bf16.msra.mxu0 %v8644
  %8770 = vmatpush.bf16.msra.mxu0 %v8643
  %8771 = vmatpush.bf16.msra.mxu0 %v8642
  %8772 = vmatmul.bf16.gmra.mxu0 %v8702
  %v8773 = vpop.f32.mrf.mxu0
  %v8774 = vadd.f32 %v8746, %v8773
  %v8775 = vpop.f32.mrf.mxu0
  %v8776 = vadd.f32 %v8748, %v8775
  %8777 = vmatmul.bf16.gmra.mxu0 %v8705
  %v8778 = vpop.f32.mrf.mxu0
  %v8779 = vadd.f32 %v8751, %v8778
  %v8780 = vpop.f32.mrf.mxu0
  %v8781 = vadd.f32 %v8753, %v8780
  %8782 = vmatmul.bf16.gmra.mxu0 %v8708
  %v8783 = vpop.f32.mrf.mxu0
  %v8784 = vadd.f32 %v8756, %v8783
  %v8785 = vpop.f32.mrf.mxu0
  %v8786 = vadd.f32 %v8758, %v8785
  %8787 = vmatmul.bf16.gmra.mxu0 %v8711
  %v8788 = vpop.f32.mrf.mxu0
  %v8789 = vadd.f32 %v8761, %v8788
  %v8790 = vpop.f32.mrf.mxu0
  %8791 = vdwg.mxu0
  %8792 = vmatpush.bf16.msra.mxu0 0
  %8793 = vmatpush.bf16.msra.mxu0 0
  %8794 = vmatpush.bf16.msra.mxu0 0
  %8795 = vmatpush.bf16.msra.mxu0 0
  %8796 = vmatpush.bf16.msra.mxu0 0
  %8797 = vmatpush.bf16.msra.mxu0 0
  %8798 = vmatpush.bf16.msra.mxu0 0
  %8799 = vmatpush.bf16.msra.mxu0 %v8734
  %8800 = vmatmul.bf16.gmra.mxu0 %v8722
  %v8801 = vpop.f32.mrf.mxu0
  %v8802 = vadd.f32 %v8774, %v8801
  %v8803 = vpop.f32.mrf.mxu0
  %v8804 = vadd.f32 %v8776, %v8803
  %8805 = vmatmul.bf16.gmra.mxu0 %v8725
  %v8806 = vpop.f32.mrf.mxu0
  %v8807 = vadd.f32 %v8779, %v8806
  %v8808 = vpop.f32.mrf.mxu0
  %v8809 = vadd.f32 %v8781, %v8808
  %8810 = vmatmul.bf16.gmra.mxu0 %v8728
  %v8811 = vpop.f32.mrf.mxu0
  %v8812 = vadd.f32 %v8784, %v8811
  %v8813 = vpop.f32.mrf.mxu0
  %v8814 = vadd.f32 %v8786, %v8813
  %8815 = vmatmul.bf16.gmra.mxu0 %v8731
  %v8816 = vpop.f32.mrf.mxu0
  %v8817 = vadd.f32 %v8789, %v8816
  %v8818 = vpop.f32.mrf.mxu0
  %8819 = vdwg.mxu0
  %v8820 = vadd.f32 %v8453, %v8802
  %v8821 = vadd.f32 %v8454, %v8804
  %v8822 = vadd.f32 %v8455, %v8807
  %v8823 = vadd.f32 %v8456, %v8809
  %v8824 = vadd.f32 %v8457, %v8812
  %v8825 = vadd.f32 %v8458, %v8814
  %v8826 = vadd.f32 %v8459, %v8817
  %v8827 = vld [vmem:[%s0 + $0x170] sm:$0xf]
  %v8828 = vld [vmem:[%s0 + $0x174] sm:$0xf]
  %v8829 = vld [vmem:[%s0 + $0x178] sm:$0xf]
  %v8830 = vld [vmem:[%s0 + $0x17c] sm:$0xf]
  %v8831 = vld [vmem:[%s0 + $0x180] sm:$0xf]
  %v8832 = vld [vmem:[%s0 + $0x184] sm:$0xf]
  %v8833 = vld [vmem:[%s0 + $0x188] sm:$0xf]
  %v8834 = vld [vmem:[%s0 + $0x18c] sm:$0xf]
  %v8835 = vld [vmem:[%s0 + $0x190] sm:$0xf]
  %v8836 = vld [vmem:[%s0 + $0x194] sm:$0xf]
  %v8837 = vld [vmem:[%s0 + $0x198] sm:$0xf]
  %v8838 = vld [vmem:[%s0 + $0x19c] sm:$0xf]
  %v8851 = vunpack.c.l.b16 %v8827
  %v8852 = vunpack.c.l.b16 %v8828
  %v8853 = vunpack.c.l.b16 %v8829
  %v8854 = vunpack.c.l.b16 %v8830
  %v8855 = vunpack.c.l.b16 %v8831
  %v8856 = vunpack.c.l.b16 %v8832
  %v8857 = vunpack.c.l.b16 %v8833
  %v8858 = vunpack.c.l.b16 %v8834
  %v8859 = vunpack.c.l.b16 %v8835
  %v8860 = vunpack.c.l.b16 %v8836
  %v8861 = vunpack.c.l.b16 %v8837
  %v8862 = vunpack.c.l.b16 %v8838
  %v8863 = vpack.c.b16 %v8852, %v8851
  %v8864 = vpack.c.b16 %v8854, %v8853
  %v8865 = vpack.c.b16 %v8856, %v8855
  %v8866 = vpack.c.b16 %v8858, %v8857
  %v8867 = vpack.c.b16 %v8860, %v8859
  %v8868 = vpack.c.b16 %v8862, %v8861
  %8875 = vmatpush.bf16.msra.mxu0 0
  %8876 = vmatpush.bf16.msra.mxu0 0
  %8877 = vmatpush.bf16.msra.mxu0 %v8868
  %8878 = vmatpush.bf16.msra.mxu0 %v8867
  %8879 = vmatpush.bf16.msra.mxu0 %v8866
  %8880 = vmatpush.bf16.msra.mxu0 %v8865
  %8881 = vmatpush.bf16.msra.mxu0 %v8864
  %8882 = vmatpush.bf16.msra.mxu0 %v8863
  %8883 = vmatmul.bf16.gmra.mxu0 %v397
  %v8884 = vpop.f32.mrf.mxu0
  %v8885 = vadd.f32 %v114, %v8884
  %v8886 = vpop.f32.mrf.mxu0
  %v8887 = vadd.f32 %v119, %v8886
  %8888 = vmatmul.bf16.gmra.mxu0 %v400
  %v8889 = vpop.f32.mrf.mxu0
  %v8890 = vadd.f32 %v124, %v8889
  %v8891 = vpop.f32.mrf.mxu0
  %v8892 = vadd.f32 %v129, %v8891
  %8893 = vmatmul.bf16.gmra.mxu0 %v403
  %v8894 = vpop.f32.mrf.mxu0
  %v8895 = vadd.f32 %v134, %v8894
  %v8896 = vpop.f32.mrf.mxu0
  %v8897 = vadd.f32 %v139, %v8896
  %8898 = vmatmul.bf16.gmra.mxu0 %v406
  %v8899 = vpop.f32.mrf.mxu0
  %v8900 = vadd.f32 %v144, %v8899
  %v8901 = vpop.f32.mrf.mxu0
  %v8902 = vadd.f32 %v149, %v8901
  %8903 = vmatmul.bf16.gmra.mxu0 %v409
  %v8904 = vpop.f32.mrf.mxu0
  %v8905 = vadd.f32 %v154, %v8904
  %v8906 = vpop.f32.mrf.mxu0
  %v8907 = vadd.f32 %v159, %v8906
  %8908 = vmatmul.bf16.gmra.mxu0 %v412
  %v8909 = vpop.f32.mrf.mxu0
  %v8910 = vadd.f32 %v164, %v8909
  %v8911 = vpop.f32.mrf.mxu0
  %v8912 = vadd.f32 %v169, %v8911
  %8913 = vmatmul.bf16.gmra.mxu0 %v415
  %v8914 = vpop.f32.mrf.mxu0
  %v8915 = vadd.f32 %v174, %v8914
  %v8916 = vpop.f32.mrf.mxu0
  %v8917 = vadd.f32 %v179, %v8916
  %8918 = vmatmul.bf16.gmra.mxu0 %v418
  %v8919 = vpop.f32.mrf.mxu0
  %v8920 = vadd.f32 %v184, %v8919
  %v8921 = vpop.f32.mrf.mxu0
  %v8922 = vadd.f32 %v189, %v8921
  %8923 = vmatmul.bf16.gmra.mxu0 %v421
  %v8924 = vpop.f32.mrf.mxu0
  %v8925 = vadd.f32 %v194, %v8924
  %v8926 = vpop.f32.mrf.mxu0
  %v8927 = vadd.f32 %v199, %v8926
  %8928 = vmatmul.bf16.gmra.mxu0 %v424
  %v8929 = vpop.f32.mrf.mxu0
  %v8930 = vadd.f32 %v204, %v8929
  %v8931 = vpop.f32.mrf.mxu0
  %v8932 = vadd.f32 %v209, %v8931
  %8933 = vmatmul.bf16.gmra.mxu0 %v427
  %v8934 = vpop.f32.mrf.mxu0
  %v8935 = vadd.f32 %v214, %v8934
  %v8936 = vpop.f32.mrf.mxu0
  %v8937 = vadd.f32 %v219, %v8936
  %8938 = vmatmul.bf16.gmra.mxu0 %v430
  %v8939 = vpop.f32.mrf.mxu0
  %v8940 = vadd.f32 %v224, %v8939
  %v8941 = vpop.f32.mrf.mxu0
  %v8942 = vadd.f32 %v229, %v8941
  %8943 = vmatmul.bf16.gmra.mxu0 %v433
  %v8944 = vpop.f32.mrf.mxu0
  %v8945 = vadd.f32 %v234, %v8944
  %v8946 = vpop.f32.mrf.mxu0
  %v8947 = vadd.f32 %v239, %v8946
  %8948 = vmatmul.bf16.gmra.mxu0 %v436
  %v8949 = vpop.f32.mrf.mxu0
  %v8950 = vadd.f32 %v244, %v8949
  %v8951 = vpop.f32.mrf.mxu0
  %v8952 = vadd.f32 %v249, %v8951
  %8953 = vmatmul.bf16.gmra.mxu0 %v439
  %v8954 = vpop.f32.mrf.mxu0
  %v8955 = vadd.f32 %v254, %v8954
  %v8956 = vpop.f32.mrf.mxu0
  %v8957 = vadd.f32 %v259, %v8956
  %8958 = vmatmul.bf16.gmra.mxu0 %v442
  %v8959 = vpop.f32.mrf.mxu0
  %v8960 = vadd.f32 %v264, %v8959
  %v8961 = vpop.f32.mrf.mxu0
  %v8962 = vadd.f32 %v269, %v8961
  %8963 = vmatmul.bf16.gmra.mxu0 %v445
  %v8964 = vpop.f32.mrf.mxu0
  %v8965 = vadd.f32 %v274, %v8964
  %v8966 = vpop.f32.mrf.mxu0
  %8967 = vdwg.mxu0
  %v8968 = vmax.f32 %v8885, 0.0
  %v8969 = vmax.f32 %v8887, 0.0
  %v8970 = vmax.f32 %v8890, 0.0
  %v8971 = vmax.f32 %v8892, 0.0
  %v8972 = vmax.f32 %v8895, 0.0
  %v8973 = vmax.f32 %v8897, 0.0
  %v8974 = vmax.f32 %v8900, 0.0
  %v8975 = vmax.f32 %v8902, 0.0
  %v8976 = vmax.f32 %v8905, 0.0
  %v8977 = vmax.f32 %v8907, 0.0
  %v8978 = vmax.f32 %v8910, 0.0
  %v8979 = vmax.f32 %v8912, 0.0
  %v8980 = vmax.f32 %v8915, 0.0
  %v8981 = vmax.f32 %v8917, 0.0
  %v8982 = vmax.f32 %v8920, 0.0
  %v8983 = vmax.f32 %v8922, 0.0
  %v8984 = vmax.f32 %v8925, 0.0
  %v8985 = vmax.f32 %v8927, 0.0
  %v8986 = vmax.f32 %v8930, 0.0
  %v8987 = vmax.f32 %v8932, 0.0
  %v8988 = vmax.f32 %v8935, 0.0
  %v8989 = vmax.f32 %v8937, 0.0
  %v8990 = vmax.f32 %v8940, 0.0
  %v8991 = vmax.f32 %v8942, 0.0
  %v8992 = vmax.f32 %v8945, 0.0
  %v8993 = vmax.f32 %v8947, 0.0
  %v8994 = vmax.f32 %v8950, 0.0
  %v8995 = vmax.f32 %v8952, 0.0
  %v8996 = vmax.f32 %v8955, 0.0
  %v8997 = vmax.f32 %v8957, 0.0
  %v8998 = vmax.f32 %v8960, 0.0
  %v8999 = vmax.f32 %v8962, 0.0
  %v9000 = vmax.f32 %v8965, 0.0
  %v9001 = vpack.c.bf16 %v8969, %v8968
  %v9002 = vpack.c.bf16 %v8971, %v8970
  %v9003 = vpack.c.bf16 %v8973, %v8972
  %v9004 = vpack.c.bf16 %v8975, %v8974
  %v9005 = vpack.c.bf16 %v8977, %v8976
  %v9006 = vpack.c.bf16 %v8979, %v8978
  %v9007 = vpack.c.bf16 %v8981, %v8980
  %v9008 = vpack.c.bf16 %v8983, %v8982
  %v9009 = vpack.c.bf16 %v8985, %v8984
  %v9010 = vpack.c.bf16 %v8987, %v8986
  %v9011 = vpack.c.bf16 %v8989, %v8988
  %v9012 = vpack.c.bf16 %v8991, %v8990
  %v9013 = vpack.c.bf16 %v8993, %v8992
  %v9014 = vpack.c.bf16 %v8995, %v8994
  %v9015 = vpack.c.bf16 %v8997, %v8996
  %v9016 = vpack.c.bf16 %v8999, %v8998
  %v9017 = vpack.c.bf16 %v9000, %v9000
  %s9018 = scalar_lea.vmem %s3, 1932
  %v9019 = vld [vmem:[%s9018] sm:$0xff]
  %v9020 = vld [vmem:[%s9018 + $0x8] sm:$0xf]
  %v9021 = vld [vmem:[%s9018 + $0xc] sm:$0xff]
  %v9022 = vld [vmem:[%s9018 + $0x14] sm:$0xf]
  %v9023 = vld [vmem:[%s9018 + $0x18] sm:$0xff]
  %v9024 = vld [vmem:[%s9018 + $0x20] sm:$0xf]
  %v9025 = vld [vmem:[%s9018 + $0x24] sm:$0xff]
  %v9026 = vld [vmem:[%s9018 + $0x2c] sm:$0xf]
  %v9027 = vld [vmem:[%s9018 + $0x30] sm:$0xff]
  %v9028 = vld [vmem:[%s9018 + $0x38] sm:$0xf]
  %v9029 = vld [vmem:[%s9018 + $0x3c] sm:$0xff]
  %v9030 = vld [vmem:[%s9018 + $0x44] sm:$0xf]
  %v9031 = vld [vmem:[%s9018 + $0x48] sm:$0x11]
  %v9032 = vld [vmem:[%s9018 + $0x50] sm:$0x1]
  %v9047 = vunpack.c.l.b16 %v9019
  %v9048 = vunpack.c.h.b16 %v9019
  %v9049 = vunpack.c.l.b16 %v9020
  %v9050 = vunpack.c.l.b16 %v9021
  %v9051 = vunpack.c.h.b16 %v9021
  %v9052 = vunpack.c.l.b16 %v9022
  %v9053 = vunpack.c.l.b16 %v9023
  %v9054 = vunpack.c.h.b16 %v9023
  %v9055 = vunpack.c.l.b16 %v9024
  %v9056 = vunpack.c.l.b16 %v9025
  %v9057 = vunpack.c.h.b16 %v9025
  %v9058 = vunpack.c.l.b16 %v9026
  %v9059 = vunpack.c.l.b16 %v9027
  %v9060 = vunpack.c.h.b16 %v9027
  %v9061 = vunpack.c.l.b16 %v9028
  %v9062 = vunpack.c.l.b16 %v9029
  %v9063 = vunpack.c.h.b16 %v9029
  %v9064 = vunpack.c.l.b16 %v9030
  %v9065 = vunpack.c.l.b16 %v9031
  %v9066 = vunpack.c.h.b16 %v9031
  %v9067 = vunpack.c.l.b16 %v9032
  %v9068 = vpack.c.b16 %v9050, %v9047
  %v9069 = vpack.c.b16 %v9051, %v9048
  %v9070 = vpack.c.b16 %v9052, %v9049
  %v9071 = vpack.c.b16 %v9056, %v9053
  %v9072 = vpack.c.b16 %v9057, %v9054
  %v9073 = vpack.c.b16 %v9058, %v9055
  %v9074 = vpack.c.b16 %v9062, %v9059
  %v9075 = vpack.c.b16 %v9063, %v9060
  %v9076 = vpack.c.b16 %v9064, %v9061
  %v9077 = vpack.c.b16 %v9065, %v9065
  %v9078 = vpack.c.b16 %v9066, %v9066
  %v9079 = vpack.c.b16 %v9067, %v9067
  %v9089 = vsel %vm865, %v9070, 0
  %v9092 = vsel %vm865, %v9073, 0
  %v9095 = vsel %vm865, %v9076, 0
  %v9098 = vsel %vm865, %v9079, 0
  %v9101 = vsel %vm878, %v9017, 0
  %9103 = vmatpush.bf16.msra.mxu0 %v9008
  %9104 = vmatpush.bf16.msra.mxu0 %v9007
  %9105 = vmatpush.bf16.msra.mxu0 %v9006
  %9106 = vmatpush.bf16.msra.mxu0 %v9005
  %9107 = vmatpush.bf16.msra.mxu0 %v9004
  %9108 = vmatpush.bf16.msra.mxu0 %v9003
  %9109 = vmatpush.bf16.msra.mxu0 %v9002
  %9110 = vmatpush.bf16.msra.mxu0 %v9001
  %9111 = vmatmul.bf16.gmra.mxu0 %v9068
  %v9112 = vpop.f32.mrf.mxu0
  %v9113 = vadd.f32 0.0, %v9112
  %v9114 = vpop.f32.mrf.mxu0
  %v9115 = vadd.f32 0.0, %v9114
  %9116 = vmatmul.bf16.gmra.mxu0 %v9071
  %v9117 = vpop.f32.mrf.mxu0
  %v9118 = vadd.f32 0.0, %v9117
  %v9119 = vpop.f32.mrf.mxu0
  %v9120 = vadd.f32 0.0, %v9119
  %9121 = vmatmul.bf16.gmra.mxu0 %v9074
  %v9122 = vpop.f32.mrf.mxu0
  %v9123 = vadd.f32 0.0, %v9122
  %v9124 = vpop.f32.mrf.mxu0
  %v9125 = vadd.f32 0.0, %v9124
  %9126 = vmatmul.bf16.gmra.mxu0 %v9077
  %v9127 = vpop.f32.mrf.mxu0
  %v9128 = vadd.f32 0.0, %v9127
  %v9129 = vpop.f32.mrf.mxu0
  %9130 = vdwg.mxu0
  %9131 = vmatpush.bf16.msra.mxu0 %v9016
  %9132 = vmatpush.bf16.msra.mxu0 %v9015
  %9133 = vmatpush.bf16.msra.mxu0 %v9014
  %9134 = vmatpush.bf16.msra.mxu0 %v9013
  %9135 = vmatpush.bf16.msra.mxu0 %v9012
  %9136 = vmatpush.bf16.msra.mxu0 %v9011
  %9137 = vmatpush.bf16.msra.mxu0 %v9010
  %9138 = vmatpush.bf16.msra.mxu0 %v9009
  %9139 = vmatmul.bf16.gmra.mxu0 %v9069
  %v9140 = vpop.f32.mrf.mxu0
  %v9141 = vadd.f32 %v9113, %v9140
  %v9142 = vpop.f32.mrf.mxu0
  %v9143 = vadd.f32 %v9115, %v9142
  %9144 = vmatmul.bf16.gmra.mxu0 %v9072
  %v9145 = vpop.f32.mrf.mxu0
  %v9146 = vadd.f32 %v9118, %v9145
  %v9147 = vpop.f32.mrf.mxu0
  %v9148 = vadd.f32 %v9120, %v9147
  %9149 = vmatmul.bf16.gmra.mxu0 %v9075
  %v9150 = vpop.f32.mrf.mxu0
  %v9151 = vadd.f32 %v9123, %v9150
  %v9152 = vpop.f32.mrf.mxu0
  %v9153 = vadd.f32 %v9125, %v9152
  %9154 = vmatmul.bf16.gmra.mxu0 %v9078
  %v9155 = vpop.f32.mrf.mxu0
  %v9156 = vadd.f32 %v9128, %v9155
  %v9157 = vpop.f32.mrf.mxu0
  %9158 = vdwg.mxu0
  %9159 = vmatpush.bf16.msra.mxu0 0
  %9160 = vmatpush.bf16.msra.mxu0 0
  %9161 = vmatpush.bf16.msra.mxu0 0
  %9162 = vmatpush.bf16.msra.mxu0 0
  %9163 = vmatpush.bf16.msra.mxu0 0
  %9164 = vmatpush.bf16.msra.mxu0 0
  %9165 = vmatpush.bf16.msra.mxu0 0
  %9166 = vmatpush.bf16.msra.mxu0 %v9101
  %9167 = vmatmul.bf16.gmra.mxu0 %v9089
  %v9168 = vpop.f32.mrf.mxu0
  %v9169 = vadd.f32 %v9141, %v9168
  %v9170 = vpop.f32.mrf.mxu0
  %v9171 = vadd.f32 %v9143, %v9170
  %9172 = vmatmul.bf16.gmra.mxu0 %v9092
  %v9173 = vpop.f32.mrf.mxu0
  %v9174 = vadd.f32 %v9146, %v9173
  %v9175 = vpop.f32.mrf.mxu0
  %v9176 = vadd.f32 %v9148, %v9175
  %9177 = vmatmul.bf16.gmra.mxu0 %v9095
  %v9178 = vpop.f32.mrf.mxu0
  %v9179 = vadd.f32 %v9151, %v9178
  %v9180 = vpop.f32.mrf.mxu0
  %v9181 = vadd.f32 %v9153, %v9180
  %9182 = vmatmul.bf16.gmra.mxu0 %v9098
  %v9183 = vpop.f32.mrf.mxu0
  %v9184 = vadd.f32 %v9156, %v9183
  %v9185 = vpop.f32.mrf.mxu0
  %9186 = vdwg.mxu0
  %v9187 = vadd.f32 %v8820, %v9169
  %v9188 = vadd.f32 %v8821, %v9171
  %v9189 = vadd.f32 %v8822, %v9174
  %v9190 = vadd.f32 %v8823, %v9176
  %v9191 = vadd.f32 %v8824, %v9179
  %v9192 = vadd.f32 %v8825, %v9181
  %v9193 = vadd.f32 %v8826, %v9184
  %v9194 = vld [vmem:[%s0 + $0x180] sm:$0xf]
  %v9195 = vld [vmem:[%s0 + $0x184] sm:$0xf]
  %v9196 = vld [vmem:[%s0 + $0x188] sm:$0xf]
  %v9197 = vld [vmem:[%s0 + $0x18c] sm:$0xf]
  %v9198 = vld [vmem:[%s0 + $0x190] sm:$0xf]
  %v9199 = vld [vmem:[%s0 + $0x194] sm:$0xf]
  %v9200 = vld [vmem:[%s0 + $0x198] sm:$0xf]
  %v9201 = vld [vmem:[%s0 + $0x19c] sm:$0xf]
  %v9202 = vld [vmem:[%s0 + $0x1a0] sm:$0xf]
  %v9203 = vld [vmem:[%s0 + $0x1a4] sm:$0xf]
  %v9204 = vld [vmem:[%s0 + $0x1a8] sm:$0xf]
  %v9205 = vld [vmem:[%s0 + $0x1ac] sm:$0xf]
  %v9218 = vunpack.c.l.b16 %v9194
  %v9219 = vunpack.c.l.b16 %v9195
  %v9220 = vunpack.c.l.b16 %v9196
  %v9221 = vunpack.c.l.b16 %v9197
  %v9222 = vunpack.c.l.b16 %v9198
  %v9223 = vunpack.c.l.b16 %v9199
  %v9224 = vunpack.c.l.b16 %v9200
  %v9225 = vunpack.c.l.b16 %v9201
  %v9226 = vunpack.c.l.b16 %v9202
  %v9227 = vunpack.c.l.b16 %v9203
  %v9228 = vunpack.c.l.b16 %v9204
  %v9229 = vunpack.c.l.b16 %v9205
  %v9230 = vpack.c.b16 %v9219, %v9218
  %v9231 = vpack.c.b16 %v9221, %v9220
  %v9232 = vpack.c.b16 %v9223, %v9222
  %v9233 = vpack.c.b16 %v9225, %v9224
  %v9234 = vpack.c.b16 %v9227, %v9226
  %v9235 = vpack.c.b16 %v9229, %v9228
  %9242 = vmatpush.bf16.msra.mxu0 0
  %9243 = vmatpush.bf16.msra.mxu0 0
  %9244 = vmatpush.bf16.msra.mxu0 %v9235
  %9245 = vmatpush.bf16.msra.mxu0 %v9234
  %9246 = vmatpush.bf16.msra.mxu0 %v9233
  %9247 = vmatpush.bf16.msra.mxu0 %v9232
  %9248 = vmatpush.bf16.msra.mxu0 %v9231
  %9249 = vmatpush.bf16.msra.mxu0 %v9230
  %9250 = vmatmul.bf16.gmra.mxu0 %v397
  %v9251 = vpop.f32.mrf.mxu0
  %v9252 = vadd.f32 %v114, %v9251
  %v9253 = vpop.f32.mrf.mxu0
  %v9254 = vadd.f32 %v119, %v9253
  %9255 = vmatmul.bf16.gmra.mxu0 %v400
  %v9256 = vpop.f32.mrf.mxu0
  %v9257 = vadd.f32 %v124, %v9256
  %v9258 = vpop.f32.mrf.mxu0
  %v9259 = vadd.f32 %v129, %v9258
  %9260 = vmatmul.bf16.gmra.mxu0 %v403
  %v9261 = vpop.f32.mrf.mxu0
  %v9262 = vadd.f32 %v134, %v9261
  %v9263 = vpop.f32.mrf.mxu0
  %v9264 = vadd.f32 %v139, %v9263
  %9265 = vmatmul.bf16.gmra.mxu0 %v406
  %v9266 = vpop.f32.mrf.mxu0
  %v9267 = vadd.f32 %v144, %v9266
  %v9268 = vpop.f32.mrf.mxu0
  %v9269 = vadd.f32 %v149, %v9268
  %9270 = vmatmul.bf16.gmra.mxu0 %v409
  %v9271 = vpop.f32.mrf.mxu0
  %v9272 = vadd.f32 %v154, %v9271
  %v9273 = vpop.f32.mrf.mxu0
  %v9274 = vadd.f32 %v159, %v9273
  %9275 = vmatmul.bf16.gmra.mxu0 %v412
  %v9276 = vpop.f32.mrf.mxu0
  %v9277 = vadd.f32 %v164, %v9276
  %v9278 = vpop.f32.mrf.mxu0
  %v9279 = vadd.f32 %v169, %v9278
  %9280 = vmatmul.bf16.gmra.mxu0 %v415
  %v9281 = vpop.f32.mrf.mxu0
  %v9282 = vadd.f32 %v174, %v9281
  %v9283 = vpop.f32.mrf.mxu0
  %v9284 = vadd.f32 %v179, %v9283
  %9285 = vmatmul.bf16.gmra.mxu0 %v418
  %v9286 = vpop.f32.mrf.mxu0
  %v9287 = vadd.f32 %v184, %v9286
  %v9288 = vpop.f32.mrf.mxu0
  %v9289 = vadd.f32 %v189, %v9288
  %9290 = vmatmul.bf16.gmra.mxu0 %v421
  %v9291 = vpop.f32.mrf.mxu0
  %v9292 = vadd.f32 %v194, %v9291
  %v9293 = vpop.f32.mrf.mxu0
  %v9294 = vadd.f32 %v199, %v9293
  %9295 = vmatmul.bf16.gmra.mxu0 %v424
  %v9296 = vpop.f32.mrf.mxu0
  %v9297 = vadd.f32 %v204, %v9296
  %v9298 = vpop.f32.mrf.mxu0
  %v9299 = vadd.f32 %v209, %v9298
  %9300 = vmatmul.bf16.gmra.mxu0 %v427
  %v9301 = vpop.f32.mrf.mxu0
  %v9302 = vadd.f32 %v214, %v9301
  %v9303 = vpop.f32.mrf.mxu0
  %v9304 = vadd.f32 %v219, %v9303
  %9305 = vmatmul.bf16.gmra.mxu0 %v430
  %v9306 = vpop.f32.mrf.mxu0
  %v9307 = vadd.f32 %v224, %v9306
  %v9308 = vpop.f32.mrf.mxu0
  %v9309 = vadd.f32 %v229, %v9308
  %9310 = vmatmul.bf16.gmra.mxu0 %v433
  %v9311 = vpop.f32.mrf.mxu0
  %v9312 = vadd.f32 %v234, %v9311
  %v9313 = vpop.f32.mrf.mxu0
  %v9314 = vadd.f32 %v239, %v9313
  %9315 = vmatmul.bf16.gmra.mxu0 %v436
  %v9316 = vpop.f32.mrf.mxu0
  %v9317 = vadd.f32 %v244, %v9316
  %v9318 = vpop.f32.mrf.mxu0
  %v9319 = vadd.f32 %v249, %v9318
  %9320 = vmatmul.bf16.gmra.mxu0 %v439
  %v9321 = vpop.f32.mrf.mxu0
  %v9322 = vadd.f32 %v254, %v9321
  %v9323 = vpop.f32.mrf.mxu0
  %v9324 = vadd.f32 %v259, %v9323
  %9325 = vmatmul.bf16.gmra.mxu0 %v442
  %v9326 = vpop.f32.mrf.mxu0
  %v9327 = vadd.f32 %v264, %v9326
  %v9328 = vpop.f32.mrf.mxu0
  %v9329 = vadd.f32 %v269, %v9328
  %9330 = vmatmul.bf16.gmra.mxu0 %v445
  %v9331 = vpop.f32.mrf.mxu0
  %v9332 = vadd.f32 %v274, %v9331
  %v9333 = vpop.f32.mrf.mxu0
  %9334 = vdwg.mxu0
  %v9335 = vmax.f32 %v9252, 0.0
  %v9336 = vmax.f32 %v9254, 0.0
  %v9337 = vmax.f32 %v9257, 0.0
  %v9338 = vmax.f32 %v9259, 0.0
  %v9339 = vmax.f32 %v9262, 0.0
  %v9340 = vmax.f32 %v9264, 0.0
  %v9341 = vmax.f32 %v9267, 0.0
  %v9342 = vmax.f32 %v9269, 0.0
  %v9343 = vmax.f32 %v9272, 0.0
  %v9344 = vmax.f32 %v9274, 0.0
  %v9345 = vmax.f32 %v9277, 0.0
  %v9346 = vmax.f32 %v9279, 0.0
  %v9347 = vmax.f32 %v9282, 0.0
  %v9348 = vmax.f32 %v9284, 0.0
  %v9349 = vmax.f32 %v9287, 0.0
  %v9350 = vmax.f32 %v9289, 0.0
  %v9351 = vmax.f32 %v9292, 0.0
  %v9352 = vmax.f32 %v9294, 0.0
  %v9353 = vmax.f32 %v9297, 0.0
  %v9354 = vmax.f32 %v9299, 0.0
  %v9355 = vmax.f32 %v9302, 0.0
  %v9356 = vmax.f32 %v9304, 0.0
  %v9357 = vmax.f32 %v9307, 0.0
  %v9358 = vmax.f32 %v9309, 0.0
  %v9359 = vmax.f32 %v9312, 0.0
  %v9360 = vmax.f32 %v9314, 0.0
  %v9361 = vmax.f32 %v9317, 0.0
  %v9362 = vmax.f32 %v9319, 0.0
  %v9363 = vmax.f32 %v9322, 0.0
  %v9364 = vmax.f32 %v9324, 0.0
  %v9365 = vmax.f32 %v9327, 0.0
  %v9366 = vmax.f32 %v9329, 0.0
  %v9367 = vmax.f32 %v9332, 0.0
  %v9368 = vpack.c.bf16 %v9336, %v9335
  %v9369 = vpack.c.bf16 %v9338, %v9337
  %v9370 = vpack.c.bf16 %v9340, %v9339
  %v9371 = vpack.c.bf16 %v9342, %v9341
  %v9372 = vpack.c.bf16 %v9344, %v9343
  %v9373 = vpack.c.bf16 %v9346, %v9345
  %v9374 = vpack.c.bf16 %v9348, %v9347
  %v9375 = vpack.c.bf16 %v9350, %v9349
  %v9376 = vpack.c.bf16 %v9352, %v9351
  %v9377 = vpack.c.bf16 %v9354, %v9353
  %v9378 = vpack.c.bf16 %v9356, %v9355
  %v9379 = vpack.c.bf16 %v9358, %v9357
  %v9380 = vpack.c.bf16 %v9360, %v9359
  %v9381 = vpack.c.bf16 %v9362, %v9361
  %v9382 = vpack.c.bf16 %v9364, %v9363
  %v9383 = vpack.c.bf16 %v9366, %v9365
  %v9384 = vpack.c.bf16 %v9367, %v9367
  %s9385 = scalar_lea.vmem %s3, 2016
  %v9386 = vld [vmem:[%s9385] sm:$0xff]
  %v9387 = vld [vmem:[%s9385 + $0x8] sm:$0xf]
  %v9388 = vld [vmem:[%s9385 + $0xc] sm:$0xff]
  %v9389 = vld [vmem:[%s9385 + $0x14] sm:$0xf]
  %v9390 = vld [vmem:[%s9385 + $0x18] sm:$0xff]
  %v9391 = vld [vmem:[%s9385 + $0x20] sm:$0xf]
  %v9392 = vld [vmem:[%s9385 + $0x24] sm:$0xff]
  %v9393 = vld [vmem:[%s9385 + $0x2c] sm:$0xf]
  %v9394 = vld [vmem:[%s9385 + $0x30] sm:$0xff]
  %v9395 = vld [vmem:[%s9385 + $0x38] sm:$0xf]
  %v9396 = vld [vmem:[%s9385 + $0x3c] sm:$0xff]
  %v9397 = vld [vmem:[%s9385 + $0x44] sm:$0xf]
  %v9398 = vld [vmem:[%s9385 + $0x48] sm:$0x11]
  %v9399 = vld [vmem:[%s9385 + $0x50] sm:$0x1]
  %v9414 = vunpack.c.l.b16 %v9386
  %v9415 = vunpack.c.h.b16 %v9386
  %v9416 = vunpack.c.l.b16 %v9387
  %v9417 = vunpack.c.l.b16 %v9388
  %v9418 = vunpack.c.h.b16 %v9388
  %v9419 = vunpack.c.l.b16 %v9389
  %v9420 = vunpack.c.l.b16 %v9390
  %v9421 = vunpack.c.h.b16 %v9390
  %v9422 = vunpack.c.l.b16 %v9391
  %v9423 = vunpack.c.l.b16 %v9392
  %v9424 = vunpack.c.h.b16 %v9392
  %v9425 = vunpack.c.l.b16 %v9393
  %v9426 = vunpack.c.l.b16 %v9394
  %v9427 = vunpack.c.h.b16 %v9394
  %v9428 = vunpack.c.l.b16 %v9395
  %v9429 = vunpack.c.l.b16 %v9396
  %v9430 = vunpack.c.h.b16 %v9396
  %v9431 = vunpack.c.l.b16 %v9397
  %v9432 = vunpack.c.l.b16 %v9398
  %v9433 = vunpack.c.h.b16 %v9398
  %v9434 = vunpack.c.l.b16 %v9399
  %v9435 = vpack.c.b16 %v9417, %v9414
  %v9436 = vpack.c.b16 %v9418, %v9415
  %v9437 = vpack.c.b16 %v9419, %v9416
  %v9438 = vpack.c.b16 %v9423, %v9420
  %v9439 = vpack.c.b16 %v9424, %v9421
  %v9440 = vpack.c.b16 %v9425, %v9422
  %v9441 = vpack.c.b16 %v9429, %v9426
  %v9442 = vpack.c.b16 %v9430, %v9427
  %v9443 = vpack.c.b16 %v9431, %v9428
  %v9444 = vpack.c.b16 %v9432, %v9432
  %v9445 = vpack.c.b16 %v9433, %v9433
  %v9446 = vpack.c.b16 %v9434, %v9434
  %v9456 = vsel %vm865, %v9437, 0
  %v9459 = vsel %vm865, %v9440, 0
  %v9462 = vsel %vm865, %v9443, 0
  %v9465 = vsel %vm865, %v9446, 0
  %v9468 = vsel %vm878, %v9384, 0
  %9470 = vmatpush.bf16.msra.mxu0 %v9375
  %9471 = vmatpush.bf16.msra.mxu0 %v9374
  %9472 = vmatpush.bf16.msra.mxu0 %v9373
  %9473 = vmatpush.bf16.msra.mxu0 %v9372
  %9474 = vmatpush.bf16.msra.mxu0 %v9371
  %9475 = vmatpush.bf16.msra.mxu0 %v9370
  %9476 = vmatpush.bf16.msra.mxu0 %v9369
  %9477 = vmatpush.bf16.msra.mxu0 %v9368
  %9478 = vmatmul.bf16.gmra.mxu0 %v9435
  %v9479 = vpop.f32.mrf.mxu0
  %v9480 = vadd.f32 0.0, %v9479
  %v9481 = vpop.f32.mrf.mxu0
  %v9482 = vadd.f32 0.0, %v9481
  %9483 = vmatmul.bf16.gmra.mxu0 %v9438
  %v9484 = vpop.f32.mrf.mxu0
  %v9485 = vadd.f32 0.0, %v9484
  %v9486 = vpop.f32.mrf.mxu0
  %v9487 = vadd.f32 0.0, %v9486
  %9488 = vmatmul.bf16.gmra.mxu0 %v9441
  %v9489 = vpop.f32.mrf.mxu0
  %v9490 = vadd.f32 0.0, %v9489
  %v9491 = vpop.f32.mrf.mxu0
  %v9492 = vadd.f32 0.0, %v9491
  %9493 = vmatmul.bf16.gmra.mxu0 %v9444
  %v9494 = vpop.f32.mrf.mxu0
  %v9495 = vadd.f32 0.0, %v9494
  %v9496 = vpop.f32.mrf.mxu0
  %9497 = vdwg.mxu0
  %9498 = vmatpush.bf16.msra.mxu0 %v9383
  %9499 = vmatpush.bf16.msra.mxu0 %v9382
  %9500 = vmatpush.bf16.msra.mxu0 %v9381
  %9501 = vmatpush.bf16.msra.mxu0 %v9380
  %9502 = vmatpush.bf16.msra.mxu0 %v9379
  %9503 = vmatpush.bf16.msra.mxu0 %v9378
  %9504 = vmatpush.bf16.msra.mxu0 %v9377
  %9505 = vmatpush.bf16.msra.mxu0 %v9376
  %9506 = vmatmul.bf16.gmra.mxu0 %v9436
  %v9507 = vpop.f32.mrf.mxu0
  %v9508 = vadd.f32 %v9480, %v9507
  %v9509 = vpop.f32.mrf.mxu0
  %v9510 = vadd.f32 %v9482, %v9509
  %9511 = vmatmul.bf16.gmra.mxu0 %v9439
  %v9512 = vpop.f32.mrf.mxu0
  %v9513 = vadd.f32 %v9485, %v9512
  %v9514 = vpop.f32.mrf.mxu0
  %v9515 = vadd.f32 %v9487, %v9514
  %9516 = vmatmul.bf16.gmra.mxu0 %v9442
  %v9517 = vpop.f32.mrf.mxu0
  %v9518 = vadd.f32 %v9490, %v9517
  %v9519 = vpop.f32.mrf.mxu0
  %v9520 = vadd.f32 %v9492, %v9519
  %9521 = vmatmul.bf16.gmra.mxu0 %v9445
  %v9522 = vpop.f32.mrf.mxu0
  %v9523 = vadd.f32 %v9495, %v9522
  %v9524 = vpop.f32.mrf.mxu0
  %9525 = vdwg.mxu0
  %9526 = vmatpush.bf16.msra.mxu0 0
  %9527 = vmatpush.bf16.msra.mxu0 0
  %9528 = vmatpush.bf16.msra.mxu0 0
  %9529 = vmatpush.bf16.msra.mxu0 0
  %9530 = vmatpush.bf16.msra.mxu0 0
  %9531 = vmatpush.bf16.msra.mxu0 0
  %9532 = vmatpush.bf16.msra.mxu0 0
  %9533 = vmatpush.bf16.msra.mxu0 %v9468
  %9534 = vmatmul.bf16.gmra.mxu0 %v9456
  %v9535 = vpop.f32.mrf.mxu0
  %v9536 = vadd.f32 %v9508, %v9535
  %v9537 = vpop.f32.mrf.mxu0
  %v9538 = vadd.f32 %v9510, %v9537
  %9539 = vmatmul.bf16.gmra.mxu0 %v9459
  %v9540 = vpop.f32.mrf.mxu0
  %v9541 = vadd.f32 %v9513, %v9540
  %v9542 = vpop.f32.mrf.mxu0
  %v9543 = vadd.f32 %v9515, %v9542
  %9544 = vmatmul.bf16.gmra.mxu0 %v9462
  %v9545 = vpop.f32.mrf.mxu0
  %v9546 = vadd.f32 %v9518, %v9545
  %v9547 = vpop.f32.mrf.mxu0
  %v9548 = vadd.f32 %v9520, %v9547
  %9549 = vmatmul.bf16.gmra.mxu0 %v9465
  %v9550 = vpop.f32.mrf.mxu0
  %v9551 = vadd.f32 %v9523, %v9550
  %v9552 = vpop.f32.mrf.mxu0
  %9553 = vdwg.mxu0
  %v9554 = vadd.f32 %v9187, %v9536
  %v9555 = vadd.f32 %v9188, %v9538
  %v9556 = vadd.f32 %v9189, %v9541
  %v9557 = vadd.f32 %v9190, %v9543
  %v9558 = vadd.f32 %v9191, %v9546
  %v9559 = vadd.f32 %v9192, %v9548
  %v9560 = vadd.f32 %v9193, %v9551
  %v9561 = vld [vmem:[%s0 + $0x190] sm:$0xf]
  %v9562 = vld [vmem:[%s0 + $0x194] sm:$0xf]
  %v9563 = vld [vmem:[%s0 + $0x198] sm:$0xf]
  %v9564 = vld [vmem:[%s0 + $0x19c] sm:$0xf]
  %v9565 = vld [vmem:[%s0 + $0x1a0] sm:$0xf]
  %v9566 = vld [vmem:[%s0 + $0x1a4] sm:$0xf]
  %v9567 = vld [vmem:[%s0 + $0x1a8] sm:$0xf]
  %v9568 = vld [vmem:[%s0 + $0x1ac] sm:$0xf]
  %v9569 = vld [vmem:[%s0 + $0x1b0] sm:$0xf]
  %v9570 = vld [vmem:[%s0 + $0x1b4] sm:$0xf]
  %v9571 = vld [vmem:[%s0 + $0x1b8] sm:$0xf]
  %v9572 = vld [vmem:[%s0 + $0x1bc] sm:$0xf]
  %v9585 = vunpack.c.l.b16 %v9561
  %v9586 = vunpack.c.l.b16 %v9562
  %v9587 = vunpack.c.l.b16 %v9563
  %v9588 = vunpack.c.l.b16 %v9564
  %v9589 = vunpack.c.l.b16 %v9565
  %v9590 = vunpack.c.l.b16 %v9566
  %v9591 = vunpack.c.l.b16 %v9567
  %v9592 = vunpack.c.l.b16 %v9568
  %v9593 = vunpack.c.l.b16 %v9569
  %v9594 = vunpack.c.l.b16 %v9570
  %v9595 = vunpack.c.l.b16 %v9571
  %v9596 = vunpack.c.l.b16 %v9572
  %v9597 = vpack.c.b16 %v9586, %v9585
  %v9598 = vpack.c.b16 %v9588, %v9587
  %v9599 = vpack.c.b16 %v9590, %v9589
  %v9600 = vpack.c.b16 %v9592, %v9591
  %v9601 = vpack.c.b16 %v9594, %v9593
  %v9602 = vpack.c.b16 %v9596, %v9595
  %9609 = vmatpush.bf16.msra.mxu0 0
  %9610 = vmatpush.bf16.msra.mxu0 0
  %9611 = vmatpush.bf16.msra.mxu0 %v9602
  %9612 = vmatpush.bf16.msra.mxu0 %v9601
  %9613 = vmatpush.bf16.msra.mxu0 %v9600
  %9614 = vmatpush.bf16.msra.mxu0 %v9599
  %9615 = vmatpush.bf16.msra.mxu0 %v9598
  %9616 = vmatpush.bf16.msra.mxu0 %v9597
  %9617 = vmatmul.bf16.gmra.mxu0 %v397
  %v9618 = vpop.f32.mrf.mxu0
  %v9619 = vadd.f32 %v114, %v9618
  %v9620 = vpop.f32.mrf.mxu0
  %v9621 = vadd.f32 %v119, %v9620
  %9622 = vmatmul.bf16.gmra.mxu0 %v400
  %v9623 = vpop.f32.mrf.mxu0
  %v9624 = vadd.f32 %v124, %v9623
  %v9625 = vpop.f32.mrf.mxu0
  %v9626 = vadd.f32 %v129, %v9625
  %9627 = vmatmul.bf16.gmra.mxu0 %v403
  %v9628 = vpop.f32.mrf.mxu0
  %v9629 = vadd.f32 %v134, %v9628
  %v9630 = vpop.f32.mrf.mxu0
  %v9631 = vadd.f32 %v139, %v9630
  %9632 = vmatmul.bf16.gmra.mxu0 %v406
  %v9633 = vpop.f32.mrf.mxu0
  %v9634 = vadd.f32 %v144, %v9633
  %v9635 = vpop.f32.mrf.mxu0
  %v9636 = vadd.f32 %v149, %v9635
  %9637 = vmatmul.bf16.gmra.mxu0 %v409
  %v9638 = vpop.f32.mrf.mxu0
  %v9639 = vadd.f32 %v154, %v9638
  %v9640 = vpop.f32.mrf.mxu0
  %v9641 = vadd.f32 %v159, %v9640
  %9642 = vmatmul.bf16.gmra.mxu0 %v412
  %v9643 = vpop.f32.mrf.mxu0
  %v9644 = vadd.f32 %v164, %v9643
  %v9645 = vpop.f32.mrf.mxu0
  %v9646 = vadd.f32 %v169, %v9645
  %9647 = vmatmul.bf16.gmra.mxu0 %v415
  %v9648 = vpop.f32.mrf.mxu0
  %v9649 = vadd.f32 %v174, %v9648
  %v9650 = vpop.f32.mrf.mxu0
  %v9651 = vadd.f32 %v179, %v9650
  %9652 = vmatmul.bf16.gmra.mxu0 %v418
  %v9653 = vpop.f32.mrf.mxu0
  %v9654 = vadd.f32 %v184, %v9653
  %v9655 = vpop.f32.mrf.mxu0
  %v9656 = vadd.f32 %v189, %v9655
  %9657 = vmatmul.bf16.gmra.mxu0 %v421
  %v9658 = vpop.f32.mrf.mxu0
  %v9659 = vadd.f32 %v194, %v9658
  %v9660 = vpop.f32.mrf.mxu0
  %v9661 = vadd.f32 %v199, %v9660
  %9662 = vmatmul.bf16.gmra.mxu0 %v424
  %v9663 = vpop.f32.mrf.mxu0
  %v9664 = vadd.f32 %v204, %v9663
  %v9665 = vpop.f32.mrf.mxu0
  %v9666 = vadd.f32 %v209, %v9665
  %9667 = vmatmul.bf16.gmra.mxu0 %v427
  %v9668 = vpop.f32.mrf.mxu0
  %v9669 = vadd.f32 %v214, %v9668
  %v9670 = vpop.f32.mrf.mxu0
  %v9671 = vadd.f32 %v219, %v9670
  %9672 = vmatmul.bf16.gmra.mxu0 %v430
  %v9673 = vpop.f32.mrf.mxu0
  %v9674 = vadd.f32 %v224, %v9673
  %v9675 = vpop.f32.mrf.mxu0
  %v9676 = vadd.f32 %v229, %v9675
  %9677 = vmatmul.bf16.gmra.mxu0 %v433
  %v9678 = vpop.f32.mrf.mxu0
  %v9679 = vadd.f32 %v234, %v9678
  %v9680 = vpop.f32.mrf.mxu0
  %v9681 = vadd.f32 %v239, %v9680
  %9682 = vmatmul.bf16.gmra.mxu0 %v436
  %v9683 = vpop.f32.mrf.mxu0
  %v9684 = vadd.f32 %v244, %v9683
  %v9685 = vpop.f32.mrf.mxu0
  %v9686 = vadd.f32 %v249, %v9685
  %9687 = vmatmul.bf16.gmra.mxu0 %v439
  %v9688 = vpop.f32.mrf.mxu0
  %v9689 = vadd.f32 %v254, %v9688
  %v9690 = vpop.f32.mrf.mxu0
  %v9691 = vadd.f32 %v259, %v9690
  %9692 = vmatmul.bf16.gmra.mxu0 %v442
  %v9693 = vpop.f32.mrf.mxu0
  %v9694 = vadd.f32 %v264, %v9693
  %v9695 = vpop.f32.mrf.mxu0
  %v9696 = vadd.f32 %v269, %v9695
  %9697 = vmatmul.bf16.gmra.mxu0 %v445
  %v9698 = vpop.f32.mrf.mxu0
  %v9699 = vadd.f32 %v274, %v9698
  %v9700 = vpop.f32.mrf.mxu0
  %9701 = vdwg.mxu0
  %v9702 = vmax.f32 %v9619, 0.0
  %v9703 = vmax.f32 %v9621, 0.0
  %v9704 = vmax.f32 %v9624, 0.0
  %v9705 = vmax.f32 %v9626, 0.0
  %v9706 = vmax.f32 %v9629, 0.0
  %v9707 = vmax.f32 %v9631, 0.0
  %v9708 = vmax.f32 %v9634, 0.0
  %v9709 = vmax.f32 %v9636, 0.0
  %v9710 = vmax.f32 %v9639, 0.0
  %v9711 = vmax.f32 %v9641, 0.0
  %v9712 = vmax.f32 %v9644, 0.0
  %v9713 = vmax.f32 %v9646, 0.0
  %v9714 = vmax.f32 %v9649, 0.0
  %v9715 = vmax.f32 %v9651, 0.0
  %v9716 = vmax.f32 %v9654, 0.0
  %v9717 = vmax.f32 %v9656, 0.0
  %v9718 = vmax.f32 %v9659, 0.0
  %v9719 = vmax.f32 %v9661, 0.0
  %v9720 = vmax.f32 %v9664, 0.0
  %v9721 = vmax.f32 %v9666, 0.0
  %v9722 = vmax.f32 %v9669, 0.0
  %v9723 = vmax.f32 %v9671, 0.0
  %v9724 = vmax.f32 %v9674, 0.0
  %v9725 = vmax.f32 %v9676, 0.0
  %v9726 = vmax.f32 %v9679, 0.0
  %v9727 = vmax.f32 %v9681, 0.0
  %v9728 = vmax.f32 %v9684, 0.0
  %v9729 = vmax.f32 %v9686, 0.0
  %v9730 = vmax.f32 %v9689, 0.0
  %v9731 = vmax.f32 %v9691, 0.0
  %v9732 = vmax.f32 %v9694, 0.0
  %v9733 = vmax.f32 %v9696, 0.0
  %v9734 = vmax.f32 %v9699, 0.0
  %v9735 = vpack.c.bf16 %v9703, %v9702
  %v9736 = vpack.c.bf16 %v9705, %v9704
  %v9737 = vpack.c.bf16 %v9707, %v9706
  %v9738 = vpack.c.bf16 %v9709, %v9708
  %v9739 = vpack.c.bf16 %v9711, %v9710
  %v9740 = vpack.c.bf16 %v9713, %v9712
  %v9741 = vpack.c.bf16 %v9715, %v9714
  %v9742 = vpack.c.bf16 %v9717, %v9716
  %v9743 = vpack.c.bf16 %v9719, %v9718
  %v9744 = vpack.c.bf16 %v9721, %v9720
  %v9745 = vpack.c.bf16 %v9723, %v9722
  %v9746 = vpack.c.bf16 %v9725, %v9724
  %v9747 = vpack.c.bf16 %v9727, %v9726
  %v9748 = vpack.c.bf16 %v9729, %v9728
  %v9749 = vpack.c.bf16 %v9731, %v9730
  %v9750 = vpack.c.bf16 %v9733, %v9732
  %v9751 = vpack.c.bf16 %v9734, %v9734
  %s9752 = scalar_lea.vmem %s3, 2100
  %v9753 = vld [vmem:[%s9752] sm:$0xff]
  %v9754 = vld [vmem:[%s9752 + $0x8] sm:$0xf]
  %v9755 = vld [vmem:[%s9752 + $0xc] sm:$0xff]
  %v9756 = vld [vmem:[%s9752 + $0x14] sm:$0xf]
  %v9757 = vld [vmem:[%s9752 + $0x18] sm:$0xff]
  %v9758 = vld [vmem:[%s9752 + $0x20] sm:$0xf]
  %v9759 = vld [vmem:[%s9752 + $0x24] sm:$0xff]
  %v9760 = vld [vmem:[%s9752 + $0x2c] sm:$0xf]
  %v9761 = vld [vmem:[%s9752 + $0x30] sm:$0xff]
  %v9762 = vld [vmem:[%s9752 + $0x38] sm:$0xf]
  %v9763 = vld [vmem:[%s9752 + $0x3c] sm:$0xff]
  %v9764 = vld [vmem:[%s9752 + $0x44] sm:$0xf]
  %v9765 = vld [vmem:[%s9752 + $0x48] sm:$0x11]
  %v9766 = vld [vmem:[%s9752 + $0x50] sm:$0x1]
  %v9781 = vunpack.c.l.b16 %v9753
  %v9782 = vunpack.c.h.b16 %v9753
  %v9783 = vunpack.c.l.b16 %v9754
  %v9784 = vunpack.c.l.b16 %v9755
  %v9785 = vunpack.c.h.b16 %v9755
  %v9786 = vunpack.c.l.b16 %v9756
  %v9787 = vunpack.c.l.b16 %v9757
  %v9788 = vunpack.c.h.b16 %v9757
  %v9789 = vunpack.c.l.b16 %v9758
  %v9790 = vunpack.c.l.b16 %v9759
  %v9791 = vunpack.c.h.b16 %v9759
  %v9792 = vunpack.c.l.b16 %v9760
  %v9793 = vunpack.c.l.b16 %v9761
  %v9794 = vunpack.c.h.b16 %v9761
  %v9795 = vunpack.c.l.b16 %v9762
  %v9796 = vunpack.c.l.b16 %v9763
  %v9797 = vunpack.c.h.b16 %v9763
  %v9798 = vunpack.c.l.b16 %v9764
  %v9799 = vunpack.c.l.b16 %v9765
  %v9800 = vunpack.c.h.b16 %v9765
  %v9801 = vunpack.c.l.b16 %v9766
  %v9802 = vpack.c.b16 %v9784, %v9781
  %v9803 = vpack.c.b16 %v9785, %v9782
  %v9804 = vpack.c.b16 %v9786, %v9783
  %v9805 = vpack.c.b16 %v9790, %v9787
  %v9806 = vpack.c.b16 %v9791, %v9788
  %v9807 = vpack.c.b16 %v9792, %v9789
  %v9808 = vpack.c.b16 %v9796, %v9793
  %v9809 = vpack.c.b16 %v9797, %v9794
  %v9810 = vpack.c.b16 %v9798, %v9795
  %v9811 = vpack.c.b16 %v9799, %v9799
  %v9812 = vpack.c.b16 %v9800, %v9800
  %v9813 = vpack.c.b16 %v9801, %v9801
  %v9823 = vsel %vm865, %v9804, 0
  %v9826 = vsel %vm865, %v9807, 0
  %v9829 = vsel %vm865, %v9810, 0
  %v9832 = vsel %vm865, %v9813, 0
  %v9835 = vsel %vm878, %v9751, 0
  %9837 = vmatpush.bf16.msra.mxu0 %v9742
  %9838 = vmatpush.bf16.msra.mxu0 %v9741
  %9839 = vmatpush.bf16.msra.mxu0 %v9740
  %9840 = vmatpush.bf16.msra.mxu0 %v9739
  %9841 = vmatpush.bf16.msra.mxu0 %v9738
  %9842 = vmatpush.bf16.msra.mxu0 %v9737
  %9843 = vmatpush.bf16.msra.mxu0 %v9736
  %9844 = vmatpush.bf16.msra.mxu0 %v9735
  %9845 = vmatmul.bf16.gmra.mxu0 %v9802
  %v9846 = vpop.f32.mrf.mxu0
  %v9847 = vadd.f32 0.0, %v9846
  %v9848 = vpop.f32.mrf.mxu0
  %v9849 = vadd.f32 0.0, %v9848
  %9850 = vmatmul.bf16.gmra.mxu0 %v9805
  %v9851 = vpop.f32.mrf.mxu0
  %v9852 = vadd.f32 0.0, %v9851
  %v9853 = vpop.f32.mrf.mxu0
  %v9854 = vadd.f32 0.0, %v9853
  %9855 = vmatmul.bf16.gmra.mxu0 %v9808
  %v9856 = vpop.f32.mrf.mxu0
  %v9857 = vadd.f32 0.0, %v9856
  %v9858 = vpop.f32.mrf.mxu0
  %v9859 = vadd.f32 0.0, %v9858
  %9860 = vmatmul.bf16.gmra.mxu0 %v9811
  %v9861 = vpop.f32.mrf.mxu0
  %v9862 = vadd.f32 0.0, %v9861
  %v9863 = vpop.f32.mrf.mxu0
  %9864 = vdwg.mxu0
  %9865 = vmatpush.bf16.msra.mxu0 %v9750
  %9866 = vmatpush.bf16.msra.mxu0 %v9749
  %9867 = vmatpush.bf16.msra.mxu0 %v9748
  %9868 = vmatpush.bf16.msra.mxu0 %v9747
  %9869 = vmatpush.bf16.msra.mxu0 %v9746
  %9870 = vmatpush.bf16.msra.mxu0 %v9745
  %9871 = vmatpush.bf16.msra.mxu0 %v9744
  %9872 = vmatpush.bf16.msra.mxu0 %v9743
  %9873 = vmatmul.bf16.gmra.mxu0 %v9803
  %v9874 = vpop.f32.mrf.mxu0
  %v9875 = vadd.f32 %v9847, %v9874
  %v9876 = vpop.f32.mrf.mxu0
  %v9877 = vadd.f32 %v9849, %v9876
  %9878 = vmatmul.bf16.gmra.mxu0 %v9806
  %v9879 = vpop.f32.mrf.mxu0
  %v9880 = vadd.f32 %v9852, %v9879
  %v9881 = vpop.f32.mrf.mxu0
  %v9882 = vadd.f32 %v9854, %v9881
  %9883 = vmatmul.bf16.gmra.mxu0 %v9809
  %v9884 = vpop.f32.mrf.mxu0
  %v9885 = vadd.f32 %v9857, %v9884
  %v9886 = vpop.f32.mrf.mxu0
  %v9887 = vadd.f32 %v9859, %v9886
  %9888 = vmatmul.bf16.gmra.mxu0 %v9812
  %v9889 = vpop.f32.mrf.mxu0
  %v9890 = vadd.f32 %v9862, %v9889
  %v9891 = vpop.f32.mrf.mxu0
  %9892 = vdwg.mxu0
  %9893 = vmatpush.bf16.msra.mxu0 0
  %9894 = vmatpush.bf16.msra.mxu0 0
  %9895 = vmatpush.bf16.msra.mxu0 0
  %9896 = vmatpush.bf16.msra.mxu0 0
  %9897 = vmatpush.bf16.msra.mxu0 0
  %9898 = vmatpush.bf16.msra.mxu0 0
  %9899 = vmatpush.bf16.msra.mxu0 0
  %9900 = vmatpush.bf16.msra.mxu0 %v9835
  %9901 = vmatmul.bf16.gmra.mxu0 %v9823
  %v9902 = vpop.f32.mrf.mxu0
  %v9903 = vadd.f32 %v9875, %v9902
  %v9904 = vpop.f32.mrf.mxu0
  %v9905 = vadd.f32 %v9877, %v9904
  %9906 = vmatmul.bf16.gmra.mxu0 %v9826
  %v9907 = vpop.f32.mrf.mxu0
  %v9908 = vadd.f32 %v9880, %v9907
  %v9909 = vpop.f32.mrf.mxu0
  %v9910 = vadd.f32 %v9882, %v9909
  %9911 = vmatmul.bf16.gmra.mxu0 %v9829
  %v9912 = vpop.f32.mrf.mxu0
  %v9913 = vadd.f32 %v9885, %v9912
  %v9914 = vpop.f32.mrf.mxu0
  %v9915 = vadd.f32 %v9887, %v9914
  %9916 = vmatmul.bf16.gmra.mxu0 %v9832
  %v9917 = vpop.f32.mrf.mxu0
  %v9918 = vadd.f32 %v9890, %v9917
  %v9919 = vpop.f32.mrf.mxu0
  %9920 = vdwg.mxu0
  %v9921 = vadd.f32 %v9554, %v9903
  %v9922 = vadd.f32 %v9555, %v9905
  %v9923 = vadd.f32 %v9556, %v9908
  %v9924 = vadd.f32 %v9557, %v9910
  %v9925 = vadd.f32 %v9558, %v9913
  %v9926 = vadd.f32 %v9559, %v9915
  %v9927 = vadd.f32 %v9560, %v9918
  %v9928 = vld [vmem:[%s4] sm:$0xff]
  %v9929 = vld [vmem:[%s4 + $0x8] sm:$0xff]
  %v9930 = vld [vmem:[%s4 + $0x10] sm:$0xff]
  %v9931 = vld [vmem:[%s4 + $0x18] sm:$0xff]
  %v9932 = vld [vmem:[%s4 + $0x20] sm:$0xff]
  %v9933 = vld [vmem:[%s4 + $0x28] sm:$0xff]
  %v9934 = vld [vmem:[%s4 + $0x30] sm:$0x3]
  %9936 = vset.pattern.permute.xlu0 0
  %9937 = vperm.xlu0 %9936, %v9928
  %v9938 = vpop.permute.xlu0 %9937
  %9941 = vset.pattern.permute.xlu0 0
  %9942 = vperm.xlu0 %9941, %v9929
  %v9943 = vpop.permute.xlu0 %9942
  %9946 = vset.pattern.permute.xlu0 0
  %9947 = vperm.xlu0 %9946, %v9930
  %v9948 = vpop.permute.xlu0 %9947
  %9951 = vset.pattern.permute.xlu0 0
  %9952 = vperm.xlu0 %9951, %v9931
  %v9953 = vpop.permute.xlu0 %9952
  %9956 = vset.pattern.permute.xlu0 0
  %9957 = vperm.xlu0 %9956, %v9932
  %v9958 = vpop.permute.xlu0 %9957
  %9961 = vset.pattern.permute.xlu0 0
  %9962 = vperm.xlu0 %9961, %v9933
  %v9963 = vpop.permute.xlu0 %9962
  %9966 = vset.pattern.permute.xlu0 0
  %9967 = vperm.xlu0 %9966, %v9934
  %v9968 = vpop.permute.xlu0 %9967
  %v9970 = vadd.f32 %v9921, %v9938
  %v9971 = vadd.f32 %v9922, %v9943
  %v9972 = vadd.f32 %v9923, %v9948
  %v9973 = vadd.f32 %v9924, %v9953
  %v9974 = vadd.f32 %v9925, %v9958
  %v9975 = vadd.f32 %v9926, %v9963
  %v9976 = vadd.f32 %v9927, %v9968
  %v9977 = vmax.f32 %v9970, 0.0
  %v9978 = vmax.f32 %v9971, 0.0
  %v9979 = vmax.f32 %v9972, 0.0
  %v9980 = vmax.f32 %v9973, 0.0
  %v9981 = vmax.f32 %v9974, 0.0
  %v9982 = vmax.f32 %v9975, 0.0
  %v9983 = vmax.f32 %v9976, 0.0
  %v9984 = vld [vmem:[%s5] sm:$0xff]
  %v9985 = vld [vmem:[%s5 + $0x8] sm:$0xff]
  %v9986 = vld [vmem:[%s5 + $0x10] sm:$0xf]
  %v9987 = vld [vmem:[%s6] sm:$0xff]
  %v9988 = vld [vmem:[%s6 + $0x8] sm:$0xff]
  %v9989 = vld [vmem:[%s6 + $0x10] sm:$0xf]
  %9991 = vset.pattern.permute.xlu0 0
  %9992 = vperm.xlu0 %9991, %v9987
  %v9993 = vpop.permute.xlu0 %9992
  %9996 = vset.pattern.permute.xlu0 0
  %9997 = vperm.xlu0 %9996, %v9988
  %v9998 = vpop.permute.xlu0 %9997
  %10001 = vset.pattern.permute.xlu0 0
  %10002 = vperm.xlu0 %10001, %v9989
  %v10003 = vpop.permute.xlu0 %10002
  %vm10005 = vcmask 408576
  %v10007 = vsel %vm10005, %v9984, 0
  %v10010 = vsel %vm10005, %v9985, 0
  %v10013 = vsel %vm10005, %v9986, 0
  %v10016 = vsel %vm878, %v9983, 0
  %10018 = vmatpush.msra.mxu0 0.0
  %10019 = vmatpush.msra.mxu0 0.0
  %10020 = vmatpush.msra.mxu0 0.0
  %10021 = vmatpush.msra.mxu0 0.0
  %10022 = vmatpush.msra.mxu0 0.0
  %10023 = vmatpush.msra.mxu0 0.0
  %10024 = vmatpush.msra.mxu0 0.0
  %10025 = vmatpush.msra.mxu0 0.0
  %10026 = vmatpush.msra.mxu0 0.0
  %10027 = vmatpush.msra.mxu0 %v10016
  %10028 = vmatpush.msra.mxu0 %v9982
  %10029 = vmatpush.msra.mxu0 %v9981
  %10030 = vmatpush.msra.mxu0 %v9980
  %10031 = vmatpush.msra.mxu0 %v9979
  %10032 = vmatpush.msra.mxu0 %v9978
  %10033 = vmatpush.msra.mxu0 %v9977
  %10034 = vmatmul.f32.gmra.mxu0 %v10007
  %v10035 = vpop.f32.mrf.mxu0
  %v10036 = vadd.f32 %v9993, %v10035
  %10037 = vmatmul.f32.gmra.mxu0 %v10010
  %v10038 = vpop.f32.mrf.mxu0
  %v10039 = vadd.f32 %v9998, %v10038
  %10040 = vmatmul.f32.gmra.mxu0 %v10013
  %v10041 = vpop.f32.mrf.mxu0
  %v10042 = vadd.f32 %v10003, %v10041
  %10043 = vdwg.mxu0
  %v10044 = vmax.f32 %v10036, 0.0
  %v10045 = vmax.f32 %v10039, 0.0
  %v10046 = vmax.f32 %v10042, 0.0
  %v10047 = vld [vmem:[%s7] sm:$0xff]
  %v10048 = vld [vmem:[%s7 + $0x8] sm:$0x3]
  %v10049 = vld [vmem:[%s8] sm:$0xff]
  %v10050 = vld [vmem:[%s8 + $0x8] sm:$0x3]
  %10052 = vset.pattern.permute.xlu0 0
  %10053 = vperm.xlu0 %10052, %v10049
  %v10054 = vpop.permute.xlu0 %10053
  %10057 = vset.pattern.permute.xlu0 0
  %10058 = vperm.xlu0 %10057, %v10050
  %v10059 = vpop.permute.xlu0 %10058
  %vm10061 = vcmask 162816
  %v10063 = vsel %vm10061, %v10047, 0
  %v10066 = vsel %vm10061, %v10048, 0
  %vm10068 = vcmask 1043456
  %v10070 = vsel %vm10068, %v10046, 0
  %10072 = vmatpush.msra.mxu0 0.0
  %10073 = vmatpush.msra.mxu0 0.0
  %10074 = vmatpush.msra.mxu0 0.0
  %10075 = vmatpush.msra.mxu0 0.0
  %10076 = vmatpush.msra.mxu0 0.0
  %10077 = vmatpush.msra.mxu0 0.0
  %10078 = vmatpush.msra.mxu0 0.0
  %10079 = vmatpush.msra.mxu0 0.0
  %10080 = vmatpush.msra.mxu0 0.0
  %10081 = vmatpush.msra.mxu0 0.0
  %10082 = vmatpush.msra.mxu0 0.0
  %10083 = vmatpush.msra.mxu0 0.0
  %10084 = vmatpush.msra.mxu0 0.0
  %10085 = vmatpush.msra.mxu0 %v10070
  %10086 = vmatpush.msra.mxu0 %v10045
  %10087 = vmatpush.msra.mxu0 %v10044
  %10088 = vmatmul.f32.gmra.mxu0 %v10063
  %v10089 = vpop.f32.mrf.mxu0
  %v10090 = vadd.f32 %v10054, %v10089
  %10091 = vmatmul.f32.gmra.mxu0 %v10066
  %v10092 = vpop.f32.mrf.mxu0
  %v10093 = vadd.f32 %v10059, %v10092
  %10094 = vdwg.mxu0
  %10095 = vst [vmem:[%s9] sm:$0xff] %v10090
  %10096 = vst [vmem:[%s9 + $0x8] sm:$0x3] %v10093
  // Predicated region
  $region38: #{simple_conv_net_forward.1} parent=0 // pred_check
    _
  $region39: #{simple_conv_net_forward.1} parent=0 // pred_check_branch
    %10098 = sbr.rel (0) target = $region41
  $region40: #{simple_conv_net_forward.1} parent=0 // pred_region
    _
  $region41: #{simple_conv_net_forward.1} parent=0 // pred_fallthru
    _
  // Predicated region
  $region42: #{simple_conv_net_forward.1} parent=0 // pred_check
    _
  $region43: #{simple_conv_net_forward.1} parent=0 // pred_check_branch
    %10100 = sbr.rel (0) target = $region45
  $region44: #{simple_conv_net_forward.1} parent=0 // pred_region
    _
  $region45: #{simple_conv_net_forward.1} parent=0 // pred_fallthru
    _

</llo_original>
